<compile_context>
chip_gen: v6e
topology: v6e:2x2x1
jax: 0.10.0
libtpu: 0.0.40
codegen_flags: <defaults>
</compile_context>

<pallas_src>
import numpy as np
import jax
import jax.numpy as jnp
from jax import lax
from jax.experimental import pallas as pl
from jax.experimental.pallas import tpu as pltpu

EPS = 1e-5


# ----------------------------------------------------------------------------
# Static stage plan: spatial sizes of the 2*depth+1 conv applications.
# ----------------------------------------------------------------------------
def _stage_plan(H, W, depth):
    plan = []
    h, w = H, W
    for _ in range(depth):                        # down: Conv2d k3 s2 p1
        ho, wo = (h - 1) // 2 + 1, (w - 1) // 2 + 1
        plan.append((h, w, ho, wo))
        h, w = ho, wo
    ho, wo = (h - 1) // 2 + 1, (w - 1) // 2 + 1   # extra pass of the last down layer
    plan.append((h, w, ho, wo))
    h, w = ho, wo
    for i in range(depth):                        # up: ConvTranspose2d k3 s2 p1 op1
        # TODO(synk): F.interpolate(bilinear) fallback for mismatched skip shapes
        # is not implemented; for power-of-two inputs shapes always match.
        assert (h, w) == plan[depth - 1 - i][2:4], "skip shape mismatch unsupported"
        ho, wo = 2 * h, 2 * w
        plan.append((h, w, ho, wo))
        h, w = ho, wo
    assert (h, w) == (H, W)
    return plan


# ----------------------------------------------------------------------------
# Parameters (PyTorch-equivalent; conv biases omitted — they cancel under BN).
# ----------------------------------------------------------------------------
def init_params(key, channels, depth=4):
    down, up = [], []
    for _ in range(depth):
        key, k1, k2, k3 = jax.random.split(key, 4)
        w = 0.1 * jax.random.normal(k1, (channels, channels, 3, 3), jnp.float32)  # (co,ci,kh,kw)
        gamma = 1.0 + 0.1 * jax.random.normal(k2, (channels,), jnp.float32)
        beta = 0.1 * jax.random.normal(k3, (channels,), jnp.float32)
        down.append((w, gamma, beta))
    for _ in range(depth):
        key, k1, k2, k3 = jax.random.split(key, 4)
        w = 0.1 * jax.random.normal(k1, (channels, channels, 3, 3), jnp.float32)  # (ci,co,kh,kw)
        gamma = 1.0 + 0.1 * jax.random.normal(k2, (channels,), jnp.float32)
        beta = 0.1 * jax.random.normal(k3, (channels,), jnp.float32)
        up.append((w, gamma, beta))
    return {"down": down, "up": up}


# ----------------------------------------------------------------------------
# One-time packing: turn every layer into small constant GEMM operands.
# ----------------------------------------------------------------------------
def pack_params(params, B, C, H, W, depth=4):
    plan = _stage_plan(H, W, depth)
    ns = len(plan)                                       # 2*depth + 1 stages
    RP = B * max(max(hi, ho) for hi, _, ho, _ in plan)   # padded row count  (B*H)
    LP = C * max(max(wi, wo) for _, wi, _, wo in plan)   # padded lane count (W*C)

    layers = ([(params["down"][d], True) for d in range(depth)]
              + [(params["down"][depth - 1], True)]      # extra pass, same weights
              + [(params["up"][u], False) for u in range(depth)])

    rmat = np.zeros((ns, 3 * RP, RP), np.float32)  # stacked height gather (3 kh rows)
    smat = np.zeros((ns, 3, LP, LP), np.float32)   # width gather + channel mixing
    pmat = np.zeros((ns, LP, LP), np.float32)      # per-channel sum/replicate * 1/N (BN)
    gl = np.zeros((ns, 1, LP), np.float32)         # gamma broadcast to lanes
    bl = np.zeros((ns, 1, LP), np.float32)         # beta  broadcast to lanes

    for s, ((hi, wi, ho, wo), ((wgt, gamma, beta), is_down)) in enumerate(zip(plan, layers)):
        wnp = np.asarray(wgt)
        for kh in range(3):
            for b in range(B):
                if is_down:                        # input row = 2*io - 1 + kh
                    for io in range(ho):
                        ih = 2 * io - 1 + kh
                        if 0 <= ih < hi:
                            rmat[s, kh * RP + b * ho + io, b * hi + ih] = 1.0
                else:                              # output row = 2*ih - 1 + kh
                    for ih in range(hi):
                        io = 2 * ih - 1 + kh
                        if 0 <= io < ho:
                            rmat[s, kh * RP + b * ho + io, b * hi + ih] = 1.0
            for kw in range(3):
                # block[ci, co] = conv W[co,ci,kh,kw]  /  convT W[ci,co,kh,kw]
                blk = wnp[:, :, kh, kw].T if is_down else wnp[:, :, kh, kw]
                if is_down:
                    for jo in range(wo):
                        jw = 2 * jo - 1 + kw
                        if 0 <= jw < wi:
                            smat[s, kh, jw * C:(jw + 1) * C, jo * C:(jo + 1) * C] += blk
                else:
                    for jw in range(wi):
                        jo = 2 * jw - 1 + kw
                        if 0 <= jo < wo:
                            smat[s, kh, jw * C:(jw + 1) * C, jo * C:(jo + 1) * C] += blk
        inv_n = 1.0 / float(B * ho * wo)           # BN normalizer folded into pmat
        pmat[s, :wo * C, :wo * C] = inv_n * np.tile(np.eye(C, dtype=np.float32), (wo, wo))
        gl[s, 0, :wo * C] = np.tile(np.asarray(gamma), wo)
        bl[s, 0, :wo * C] = np.tile(np.asarray(beta), wo)

    # Layout-change matrices: NCHW-flat (B*C*H, W)  <->  (B*H, W*C)
    sel = np.zeros((C, RP, B * C * H), np.float32)
    csc = np.zeros((C, W, LP), np.float32)
    arow = np.zeros((C, B * C * H, RP), np.float32)
    bcol = np.zeros((C, LP, W), np.float32)
    for c in range(C):
        for b in range(B):
            for h in range(H):
                sel[c, b * H + h, (b * C + c) * H + h] = 1.0
                arow[c, (b * C + c) * H + h, b * H + h] = 1.0
        for w in range(W):
            csc[c, w, w * C + c] = 1.0
            bcol[c, w * C + c, w] = 1.0

    return {
        "rmat": jnp.asarray(rmat),
        "smat": jnp.asarray(smat.reshape(ns * 3, LP, LP)),
        "pmat": jnp.asarray(pmat),
        "gl": jnp.asarray(gl),
        "bl": jnp.asarray(bl),
        "sel": jnp.asarray(sel),
        "csc": jnp.asarray(csc),
        "arow": jnp.asarray(arow),
        "bcol": jnp.asarray(bcol),
    }


# ----------------------------------------------------------------------------
# Fused forward kernel (single pallas_call, everything VMEM-resident).
# ----------------------------------------------------------------------------
def make_hourglass_forward(B, C, H, W, depth=4):
    plan = _stage_plan(H, W, depth)
    RP = B * max(max(hi, ho) for hi, _, ho, _ in plan)
    LP = C * max(max(wi, wo) for _, wi, _, wo in plan)
    f32 = jnp.float32

    def kernel(x_ref, rmat_ref, smat_ref, pmat_ref, gl_ref, bl_ref,
               sel_ref, csc_ref, arow_ref, bcol_ref, o_ref):
        def mm(a, b):
            return jnp.dot(a, b, preferred_element_type=f32)

        # -- entry layout change: (B*C*H, W) NCHW-flat -> (B*H, W*C) ----------
        x_in = x_ref[...]
        x = jnp.zeros((RP, LP), f32)
        for c in range(C):
            x = x + mm(mm(sel_ref[c], x_in), csc_ref[c])

        def stage(x, idx):
            # conv / transposed conv: y = sum_kh (R_kh @ x) @ S_kh, with the 3
            # height-gather matmuls fused into one stacked GEMM; slices land on
            # sublane-aligned offsets (multiples of RP, RP % 8 == 0).
            rx = mm(rmat_ref[idx], x)                                # (3*RP, LP)
            y = jnp.zeros((RP, LP), f32)
            for kh in range(3):
                y = y + mm(rx[kh * RP:(kh + 1) * RP, :], smat_ref[idx * 3 + kh])

            # BatchNorm2d (batch statistics) + ReLU as a per-lane scale+shift.
            # Padded rows/lanes of y are exactly zero and pmat already carries
            # 1/(B*ho*wo), so these are the exact batch statistics.
            p = pmat_ref[idx]
            mean = jnp.sum(mm(y, p), axis=0, keepdims=True)          # (1, LP)
            ex2 = jnp.sum(mm(y * y, p), axis=0, keepdims=True)       # (1, LP)
            var = jnp.maximum(ex2 - mean * mean, 0.0)
            scale = gl_ref[idx] * lax.rsqrt(var + EPS)               # (1, LP)
            shift = bl_ref[idx] - mean * scale                       # (1, LP)
            return jnp.maximum(y * scale + shift, 0.0)               # sublane bcast

        skips = []
        for d in range(depth):
            x = stage(x, d)
            skips.append(x)
        x = stage(x, depth)                        # extra pass of the last down layer
        for i in range(depth):
            x = stage(x + skips.pop(), depth + 1 + i)

        # -- exit layout change: (B*H, W*C) -> (B*C*H, W) NCHW-flat -----------
        out = jnp.zeros((B * C * H, W), f32)
        for c in range(C):
            out = out + mm(arow_ref[c], mm(x, bcol_ref[c]))
        o_ref[...] = out

    vmem = pl.BlockSpec(memory_space=pltpu.MemorySpace.VMEM)
    call = pl.pallas_call(
        kernel,
        out_shape=jax.ShapeDtypeStruct((B * C * H, W), f32),
        in_specs=[vmem] * 10,
        out_specs=vmem,
    )

    @jax.jit
    def forward(x_nchw, packed):
        x_flat = x_nchw.reshape(B * C * H, W)           # free reshape
        y_flat = call(x_flat, packed["rmat"], packed["smat"], packed["pmat"],
                      packed["gl"], packed["bl"], packed["sel"], packed["csc"],
                      packed["arow"], packed["bcol"])
        return y_flat.reshape(B, C, H, W)               # free reshape

    return forward


if __name__ == "__main__":
    B, C, H, W, DEPTH = 2, 4, 16, 16, 4
    key = jax.random.PRNGKey(0)
    kx, kp = jax.random.split(key)
    x = jax.random.normal(kx, (B, C, H, W), jnp.float32)   # PyTorch NCHW input
    params = init_params(kp, C, DEPTH)
    packed = pack_params(params, B, C, H, W, DEPTH)
    forward = make_hourglass_forward(B, C, H, W, DEPTH)

    out = jax.block_until_ready(forward(x, packed))
    assert out.shape == (B, C, H, W), out.shape
    assert bool(jnp.all(jnp.isfinite(out)))
    print("KERNEL_OK")
</pallas_src>

<mosaic_0001>
module attributes {stable_mosaic.version = 11 : i64} {
  func.func @kernel(%arg0: memref<128x16xf32, #tpu.memory_space<vmem>>, %arg1: memref<9x96x32xf32, #tpu.memory_space<vmem>>, %arg2: memref<27x64x64xf32, #tpu.memory_space<vmem>>, %arg3: memref<9x64x64xf32, #tpu.memory_space<vmem>>, %arg4: memref<9x1x64xf32, #tpu.memory_space<vmem>>, %arg5: memref<9x1x64xf32, #tpu.memory_space<vmem>>, %arg6: memref<4x32x128xf32, #tpu.memory_space<vmem>>, %arg7: memref<4x16x64xf32, #tpu.memory_space<vmem>>, %arg8: memref<4x128x32xf32, #tpu.memory_space<vmem>>, %arg9: memref<4x64x16xf32, #tpu.memory_space<vmem>>, %arg10: memref<128x16xf32, #tpu.memory_space<vmem>>) attributes {dimension_semantics = [], scalar_prefetch = 0 : i64, scratch_operands = 0 : i64, tpu.core_type = #tpu.core_type<tc>} {
    %c0 = arith.constant 0 : index
    %c0_0 = arith.constant 0 : index
    %0 = vector.load %arg0[%c0, %c0_0] : memref<128x16xf32, #tpu.memory_space<vmem>>, vector<128x16xf32>
    %cst = arith.constant 0.000000e+00 : f32
    %1 = vector.broadcast %cst : f32 to vector<32x64xf32>
    %c0_1 = arith.constant 0 : index
    %c0_2 = arith.constant 0 : index
    %c0_3 = arith.constant 0 : index
    %2 = vector.load %arg6[%c0_1, %c0_2, %c0_3] : memref<4x32x128xf32, #tpu.memory_space<vmem>>, vector<1x32x128xf32>
    %3 = vector.shape_cast %2 : vector<1x32x128xf32> to vector<32x128xf32>
    %cst_4 = arith.constant dense<0.000000e+00> : vector<32x16xf32>
    %4 = tpu.matmul %3, %0, %cst_4 {dimension_numbers = #tpu.dot_dimension_numbers<[1], [0], [0], [1], [0, 0, 1, 1], [], []>} : vector<32x128xf32>, vector<128x16xf32>, vector<32x16xf32> -> vector<32x16xf32>
    %c0_5 = arith.constant 0 : index
    %c0_6 = arith.constant 0 : index
    %c0_7 = arith.constant 0 : index
    %5 = vector.load %arg7[%c0_5, %c0_6, %c0_7] : memref<4x16x64xf32, #tpu.memory_space<vmem>>, vector<1x16x64xf32>
    %6 = vector.shape_cast %5 : vector<1x16x64xf32> to vector<16x64xf32>
    %cst_8 = arith.constant dense<0.000000e+00> : vector<32x64xf32>
    %7 = tpu.matmul %4, %6, %cst_8 {dimension_numbers = #tpu.dot_dimension_numbers<[1], [0], [0], [1], [0, 0, 1, 1], [], []>} : vector<32x16xf32>, vector<16x64xf32>, vector<32x64xf32> -> vector<32x64xf32>
    %8 = arith.addf %1, %7 : vector<32x64xf32>
    %c1 = arith.constant 1 : index
    %c0_9 = arith.constant 0 : index
    %c0_10 = arith.constant 0 : index
    %9 = vector.load %arg6[%c1, %c0_9, %c0_10] : memref<4x32x128xf32, #tpu.memory_space<vmem>>, vector<1x32x128xf32>
    %10 = vector.shape_cast %9 : vector<1x32x128xf32> to vector<32x128xf32>
    %cst_11 = arith.constant dense<0.000000e+00> : vector<32x16xf32>
    %11 = tpu.matmul %10, %0, %cst_11 {dimension_numbers = #tpu.dot_dimension_numbers<[1], [0], [0], [1], [0, 0, 1, 1], [], []>} : vector<32x128xf32>, vector<128x16xf32>, vector<32x16xf32> -> vector<32x16xf32>
    %c1_12 = arith.constant 1 : index
    %c0_13 = arith.constant 0 : index
    %c0_14 = arith.constant 0 : index
    %12 = vector.load %arg7[%c1_12, %c0_13, %c0_14] : memref<4x16x64xf32, #tpu.memory_space<vmem>>, vector<1x16x64xf32>
    %13 = vector.shape_cast %12 : vector<1x16x64xf32> to vector<16x64xf32>
    %cst_15 = arith.constant dense<0.000000e+00> : vector<32x64xf32>
    %14 = tpu.matmul %11, %13, %cst_15 {dimension_numbers = #tpu.dot_dimension_numbers<[1], [0], [0], [1], [0, 0, 1, 1], [], []>} : vector<32x16xf32>, vector<16x64xf32>, vector<32x64xf32> -> vector<32x64xf32>
    %15 = arith.addf %8, %14 : vector<32x64xf32>
    %c2 = arith.constant 2 : index
    %c0_16 = arith.constant 0 : index
    %c0_17 = arith.constant 0 : index
    %16 = vector.load %arg6[%c2, %c0_16, %c0_17] : memref<4x32x128xf32, #tpu.memory_space<vmem>>, vector<1x32x128xf32>
    %17 = vector.shape_cast %16 : vector<1x32x128xf32> to vector<32x128xf32>
    %cst_18 = arith.constant dense<0.000000e+00> : vector<32x16xf32>
    %18 = tpu.matmul %17, %0, %cst_18 {dimension_numbers = #tpu.dot_dimension_numbers<[1], [0], [0], [1], [0, 0, 1, 1], [], []>} : vector<32x128xf32>, vector<128x16xf32>, vector<32x16xf32> -> vector<32x16xf32>
    %c2_19 = arith.constant 2 : index
    %c0_20 = arith.constant 0 : index
    %c0_21 = arith.constant 0 : index
    %19 = vector.load %arg7[%c2_19, %c0_20, %c0_21] : memref<4x16x64xf32, #tpu.memory_space<vmem>>, vector<1x16x64xf32>
    %20 = vector.shape_cast %19 : vector<1x16x64xf32> to vector<16x64xf32>
    %cst_22 = arith.constant dense<0.000000e+00> : vector<32x64xf32>
    %21 = tpu.matmul %18, %20, %cst_22 {dimension_numbers = #tpu.dot_dimension_numbers<[1], [0], [0], [1], [0, 0, 1, 1], [], []>} : vector<32x16xf32>, vector<16x64xf32>, vector<32x64xf32> -> vector<32x64xf32>
    %22 = arith.addf %15, %21 : vector<32x64xf32>
    %c3 = arith.constant 3 : index
    %c0_23 = arith.constant 0 : index
    %c0_24 = arith.constant 0 : index
    %23 = vector.load %arg6[%c3, %c0_23, %c0_24] : memref<4x32x128xf32, #tpu.memory_space<vmem>>, vector<1x32x128xf32>
    %24 = vector.shape_cast %23 : vector<1x32x128xf32> to vector<32x128xf32>
    %cst_25 = arith.constant dense<0.000000e+00> : vector<32x16xf32>
    %25 = tpu.matmul %24, %0, %cst_25 {dimension_numbers = #tpu.dot_dimension_numbers<[1], [0], [0], [1], [0, 0, 1, 1], [], []>} : vector<32x128xf32>, vector<128x16xf32>, vector<32x16xf32> -> vector<32x16xf32>
    %c3_26 = arith.constant 3 : index
    %c0_27 = arith.constant 0 : index
    %c0_28 = arith.constant 0 : index
    %26 = vector.load %arg7[%c3_26, %c0_27, %c0_28] : memref<4x16x64xf32, #tpu.memory_space<vmem>>, vector<1x16x64xf32>
    %27 = vector.shape_cast %26 : vector<1x16x64xf32> to vector<16x64xf32>
    %cst_29 = arith.constant dense<0.000000e+00> : vector<32x64xf32>
    %28 = tpu.matmul %25, %27, %cst_29 {dimension_numbers = #tpu.dot_dimension_numbers<[1], [0], [0], [1], [0, 0, 1, 1], [], []>} : vector<32x16xf32>, vector<16x64xf32>, vector<32x64xf32> -> vector<32x64xf32>
    %29 = arith.addf %22, %28 : vector<32x64xf32>
    %c0_30 = arith.constant 0 : index
    %c0_31 = arith.constant 0 : index
    %c0_32 = arith.constant 0 : index
    %30 = vector.load %arg1[%c0_30, %c0_31, %c0_32] : memref<9x96x32xf32, #tpu.memory_space<vmem>>, vector<1x96x32xf32>
    %31 = vector.shape_cast %30 : vector<1x96x32xf32> to vector<96x32xf32>
    %cst_33 = arith.constant dense<0.000000e+00> : vector<96x64xf32>
    %32 = tpu.matmul %31, %29, %cst_33 {dimension_numbers = #tpu.dot_dimension_numbers<[1], [0], [0], [1], [0, 0, 1, 1], [], []>} : vector<96x32xf32>, vector<32x64xf32>, vector<96x64xf32> -> vector<96x64xf32>
    %cst_34 = arith.constant 0.000000e+00 : f32
    %33 = vector.broadcast %cst_34 : f32 to vector<32x64xf32>
    %34 = vector.extract_strided_slice %32 {offsets = [0, 0], sizes = [32, 64], strides = [1, 1]} : vector<96x64xf32> to vector<32x64xf32>
    %c0_35 = arith.constant 0 : index
    %c0_36 = arith.constant 0 : index
    %c0_37 = arith.constant 0 : index
    %35 = vector.load %arg2[%c0_35, %c0_36, %c0_37] : memref<27x64x64xf32, #tpu.memory_space<vmem>>, vector<1x64x64xf32>
    %36 = vector.shape_cast %35 : vector<1x64x64xf32> to vector<64x64xf32>
    %cst_38 = arith.constant dense<0.000000e+00> : vector<32x64xf32>
    %37 = tpu.matmul %34, %36, %cst_38 {dimension_numbers = #tpu.dot_dimension_numbers<[1], [0], [0], [1], [0, 0, 1, 1], [], []>} : vector<32x64xf32>, vector<64x64xf32>, vector<32x64xf32> -> vector<32x64xf32>
    %38 = arith.addf %33, %37 : vector<32x64xf32>
    %39 = vector.extract_strided_slice %32 {offsets = [32, 0], sizes = [32, 64], strides = [1, 1]} : vector<96x64xf32> to vector<32x64xf32>
    %c1_39 = arith.constant 1 : index
    %c0_40 = arith.constant 0 : index
    %c0_41 = arith.constant 0 : index
    %40 = vector.load %arg2[%c1_39, %c0_40, %c0_41] : memref<27x64x64xf32, #tpu.memory_space<vmem>>, vector<1x64x64xf32>
    %41 = vector.shape_cast %40 : vector<1x64x64xf32> to vector<64x64xf32>
    %cst_42 = arith.constant dense<0.000000e+00> : vector<32x64xf32>
    %42 = tpu.matmul %39, %41, %cst_42 {dimension_numbers = #tpu.dot_dimension_numbers<[1], [0], [0], [1], [0, 0, 1, 1], [], []>} : vector<32x64xf32>, vector<64x64xf32>, vector<32x64xf32> -> vector<32x64xf32>
    %43 = arith.addf %38, %42 : vector<32x64xf32>
    %44 = vector.extract_strided_slice %32 {offsets = [64, 0], sizes = [32, 64], strides = [1, 1]} : vector<96x64xf32> to vector<32x64xf32>
    %c2_43 = arith.constant 2 : index
    %c0_44 = arith.constant 0 : index
    %c0_45 = arith.constant 0 : index
    %45 = vector.load %arg2[%c2_43, %c0_44, %c0_45] : memref<27x64x64xf32, #tpu.memory_space<vmem>>, vector<1x64x64xf32>
    %46 = vector.shape_cast %45 : vector<1x64x64xf32> to vector<64x64xf32>
    %cst_46 = arith.constant dense<0.000000e+00> : vector<32x64xf32>
    %47 = tpu.matmul %44, %46, %cst_46 {dimension_numbers = #tpu.dot_dimension_numbers<[1], [0], [0], [1], [0, 0, 1, 1], [], []>} : vector<32x64xf32>, vector<64x64xf32>, vector<32x64xf32> -> vector<32x64xf32>
    %48 = arith.addf %43, %47 : vector<32x64xf32>
    %c0_47 = arith.constant 0 : index
    %c0_48 = arith.constant 0 : index
    %c0_49 = arith.constant 0 : index
    %49 = vector.load %arg3[%c0_47, %c0_48, %c0_49] : memref<9x64x64xf32, #tpu.memory_space<vmem>>, vector<1x64x64xf32>
    %50 = vector.shape_cast %49 : vector<1x64x64xf32> to vector<64x64xf32>
    %cst_50 = arith.constant dense<0.000000e+00> : vector<32x64xf32>
    %51 = tpu.matmul %48, %50, %cst_50 {dimension_numbers = #tpu.dot_dimension_numbers<[1], [0], [0], [1], [0, 0, 1, 1], [], []>} : vector<32x64xf32>, vector<64x64xf32>, vector<32x64xf32> -> vector<32x64xf32>
    %cst_51 = arith.constant dense<0.000000e+00> : vector<64xf32>
    %52 = vector.multi_reduction <add>, %51, %cst_51 [0] : vector<32x64xf32> to vector<64xf32>
    %53 = vector.shape_cast %52 : vector<64xf32> to vector<1x64xf32>
    %54 = arith.mulf %48, %48 : vector<32x64xf32>
    %cst_52 = arith.constant dense<0.000000e+00> : vector<32x64xf32>
    %55 = tpu.matmul %54, %50, %cst_52 {dimension_numbers = #tpu.dot_dimension_numbers<[1], [0], [0], [1], [0, 0, 1, 1], [], []>} : vector<32x64xf32>, vector<64x64xf32>, vector<32x64xf32> -> vector<32x64xf32>
    %cst_53 = arith.constant dense<0.000000e+00> : vector<64xf32>
    %56 = vector.multi_reduction <add>, %55, %cst_53 [0] : vector<32x64xf32> to vector<64xf32>
    %57 = vector.shape_cast %56 : vector<64xf32> to vector<1x64xf32>
    %58 = arith.mulf %53, %53 : vector<1x64xf32>
    %59 = arith.subf %57, %58 : vector<1x64xf32>
    %cst_54 = arith.constant 0.000000e+00 : f32
    %60 = vector.broadcast %cst_54 : f32 to vector<1x64xf32>
    %61 = arith.maximumf %59, %60 : vector<1x64xf32>
    %c0_55 = arith.constant 0 : index
    %c0_56 = arith.constant 0 : index
    %c0_57 = arith.constant 0 : index
    %62 = vector.load %arg4[%c0_55, %c0_56, %c0_57] : memref<9x1x64xf32, #tpu.memory_space<vmem>>, vector<1x1x64xf32>
    %63 = vector.shape_cast %62 : vector<1x1x64xf32> to vector<1x64xf32>
    %cst_58 = arith.constant 9.99999974E-6 : f32
    %64 = vector.broadcast %cst_58 : f32 to vector<1x64xf32>
    %65 = arith.addf %61, %64 : vector<1x64xf32>
    %66 = math.rsqrt %65 : vector<1x64xf32>
    %67 = arith.mulf %63, %66 : vector<1x64xf32>
    %c0_59 = arith.constant 0 : index
    %c0_60 = arith.constant 0 : index
    %c0_61 = arith.constant 0 : index
    %68 = vector.load %arg5[%c0_59, %c0_60, %c0_61] : memref<9x1x64xf32, #tpu.memory_space<vmem>>, vector<1x1x64xf32>
    %69 = vector.shape_cast %68 : vector<1x1x64xf32> to vector<1x64xf32>
    %70 = arith.mulf %53, %67 : vector<1x64xf32>
    %71 = arith.subf %69, %70 : vector<1x64xf32>
    %72 = vector.broadcast %67 : vector<1x64xf32> to vector<32x64xf32>
    %73 = arith.mulf %48, %72 : vector<32x64xf32>
    %74 = vector.broadcast %71 : vector<1x64xf32> to vector<32x64xf32>
    %75 = arith.addf %73, %74 : vector<32x64xf32>
    %cst_62 = arith.constant 0.000000e+00 : f32
    %76 = vector.broadcast %cst_62 : f32 to vector<32x64xf32>
    %77 = arith.maximumf %75, %76 : vector<32x64xf32>
    %c1_63 = arith.constant 1 : index
    %c0_64 = arith.constant 0 : index
    %c0_65 = arith.constant 0 : index
    %78 = vector.load %arg1[%c1_63, %c0_64, %c0_65] : memref<9x96x32xf32, #tpu.memory_space<vmem>>, vector<1x96x32xf32>
    %79 = vector.shape_cast %78 : vector<1x96x32xf32> to vector<96x32xf32>
    %cst_66 = arith.constant dense<0.000000e+00> : vector<96x64xf32>
    %80 = tpu.matmul %79, %77, %cst_66 {dimension_numbers = #tpu.dot_dimension_numbers<[1], [0], [0], [1], [0, 0, 1, 1], [], []>} : vector<96x32xf32>, vector<32x64xf32>, vector<96x64xf32> -> vector<96x64xf32>
    %cst_67 = arith.constant 0.000000e+00 : f32
    %81 = vector.broadcast %cst_67 : f32 to vector<32x64xf32>
    %82 = vector.extract_strided_slice %80 {offsets = [0, 0], sizes = [32, 64], strides = [1, 1]} : vector<96x64xf32> to vector<32x64xf32>
    %c3_68 = arith.constant 3 : index
    %c0_69 = arith.constant 0 : index
    %c0_70 = arith.constant 0 : index
    %83 = vector.load %arg2[%c3_68, %c0_69, %c0_70] : memref<27x64x64xf32, #tpu.memory_space<vmem>>, vector<1x64x64xf32>
    %84 = vector.shape_cast %83 : vector<1x64x64xf32> to vector<64x64xf32>
    %cst_71 = arith.constant dense<0.000000e+00> : vector<32x64xf32>
    %85 = tpu.matmul %82, %84, %cst_71 {dimension_numbers = #tpu.dot_dimension_numbers<[1], [0], [0], [1], [0, 0, 1, 1], [], []>} : vector<32x64xf32>, vector<64x64xf32>, vector<32x64xf32> -> vector<32x64xf32>
    %86 = arith.addf %81, %85 : vector<32x64xf32>
    %87 = vector.extract_strided_slice %80 {offsets = [32, 0], sizes = [32, 64], strides = [1, 1]} : vector<96x64xf32> to vector<32x64xf32>
    %c4 = arith.constant 4 : index
    %c0_72 = arith.constant 0 : index
    %c0_73 = arith.constant 0 : index
    %88 = vector.load %arg2[%c4, %c0_72, %c0_73] : memref<27x64x64xf32, #tpu.memory_space<vmem>>, vector<1x64x64xf32>
    %89 = vector.shape_cast %88 : vector<1x64x64xf32> to vector<64x64xf32>
    %cst_74 = arith.constant dense<0.000000e+00> : vector<32x64xf32>
    %90 = tpu.matmul %87, %89, %cst_74 {dimension_numbers = #tpu.dot_dimension_numbers<[1], [0], [0], [1], [0, 0, 1, 1], [], []>} : vector<32x64xf32>, vector<64x64xf32>, vector<32x64xf32> -> vector<32x64xf32>
    %91 = arith.addf %86, %90 : vector<32x64xf32>
    %92 = vector.extract_strided_slice %80 {offsets = [64, 0], sizes = [32, 64], strides = [1, 1]} : vector<96x64xf32> to vector<32x64xf32>
    %c5 = arith.constant 5 : index
    %c0_75 = arith.constant 0 : index
    %c0_76 = arith.constant 0 : index
    %93 = vector.load %arg2[%c5, %c0_75, %c0_76] : memref<27x64x64xf32, #tpu.memory_space<vmem>>, vector<1x64x64xf32>
    %94 = vector.shape_cast %93 : vector<1x64x64xf32> to vector<64x64xf32>
    %cst_77 = arith.constant dense<0.000000e+00> : vector<32x64xf32>
    %95 = tpu.matmul %92, %94, %cst_77 {dimension_numbers = #tpu.dot_dimension_numbers<[1], [0], [0], [1], [0, 0, 1, 1], [], []>} : vector<32x64xf32>, vector<64x64xf32>, vector<32x64xf32> -> vector<32x64xf32>
    %96 = arith.addf %91, %95 : vector<32x64xf32>
    %c1_78 = arith.constant 1 : index
    %c0_79 = arith.constant 0 : index
    %c0_80 = arith.constant 0 : index
    %97 = vector.load %arg3[%c1_78, %c0_79, %c0_80] : memref<9x64x64xf32, #tpu.memory_space<vmem>>, vector<1x64x64xf32>
    %98 = vector.shape_cast %97 : vector<1x64x64xf32> to vector<64x64xf32>
    %cst_81 = arith.constant dense<0.000000e+00> : vector<32x64xf32>
    %99 = tpu.matmul %96, %98, %cst_81 {dimension_numbers = #tpu.dot_dimension_numbers<[1], [0], [0], [1], [0, 0, 1, 1], [], []>} : vector<32x64xf32>, vector<64x64xf32>, vector<32x64xf32> -> vector<32x64xf32>
    %cst_82 = arith.constant dense<0.000000e+00> : vector<64xf32>
    %100 = vector.multi_reduction <add>, %99, %cst_82 [0] : vector<32x64xf32> to vector<64xf32>
    %101 = vector.shape_cast %100 : vector<64xf32> to vector<1x64xf32>
    %102 = arith.mulf %96, %96 : vector<32x64xf32>
    %cst_83 = arith.constant dense<0.000000e+00> : vector<32x64xf32>
    %103 = tpu.matmul %102, %98, %cst_83 {dimension_numbers = #tpu.dot_dimension_numbers<[1], [0], [0], [1], [0, 0, 1, 1], [], []>} : vector<32x64xf32>, vector<64x64xf32>, vector<32x64xf32> -> vector<32x64xf32>
    %cst_84 = arith.constant dense<0.000000e+00> : vector<64xf32>
    %104 = vector.multi_reduction <add>, %103, %cst_84 [0] : vector<32x64xf32> to vector<64xf32>
    %105 = vector.shape_cast %104 : vector<64xf32> to vector<1x64xf32>
    %106 = arith.mulf %101, %101 : vector<1x64xf32>
    %107 = arith.subf %105, %106 : vector<1x64xf32>
    %cst_85 = arith.constant 0.000000e+00 : f32
    %108 = vector.broadcast %cst_85 : f32 to vector<1x64xf32>
    %109 = arith.maximumf %107, %108 : vector<1x64xf32>
    %c1_86 = arith.constant 1 : index
    %c0_87 = arith.constant 0 : index
    %c0_88 = arith.constant 0 : index
    %110 = vector.load %arg4[%c1_86, %c0_87, %c0_88] : memref<9x1x64xf32, #tpu.memory_space<vmem>>, vector<1x1x64xf32>
    %111 = vector.shape_cast %110 : vector<1x1x64xf32> to vector<1x64xf32>
    %cst_89 = arith.constant 9.99999974E-6 : f32
    %112 = vector.broadcast %cst_89 : f32 to vector<1x64xf32>
    %113 = arith.addf %109, %112 : vector<1x64xf32>
    %114 = math.rsqrt %113 : vector<1x64xf32>
    %115 = arith.mulf %111, %114 : vector<1x64xf32>
    %c1_90 = arith.constant 1 : index
    %c0_91 = arith.constant 0 : index
    %c0_92 = arith.constant 0 : index
    %116 = vector.load %arg5[%c1_90, %c0_91, %c0_92] : memref<9x1x64xf32, #tpu.memory_space<vmem>>, vector<1x1x64xf32>
    %117 = vector.shape_cast %116 : vector<1x1x64xf32> to vector<1x64xf32>
    %118 = arith.mulf %101, %115 : vector<1x64xf32>
    %119 = arith.subf %117, %118 : vector<1x64xf32>
    %120 = vector.broadcast %115 : vector<1x64xf32> to vector<32x64xf32>
    %121 = arith.mulf %96, %120 : vector<32x64xf32>
    %122 = vector.broadcast %119 : vector<1x64xf32> to vector<32x64xf32>
    %123 = arith.addf %121, %122 : vector<32x64xf32>
    %cst_93 = arith.constant 0.000000e+00 : f32
    %124 = vector.broadcast %cst_93 : f32 to vector<32x64xf32>
    %125 = arith.maximumf %123, %124 : vector<32x64xf32>
    %c2_94 = arith.constant 2 : index
    %c0_95 = arith.constant 0 : index
    %c0_96 = arith.constant 0 : index
    %126 = vector.load %arg1[%c2_94, %c0_95, %c0_96] : memref<9x96x32xf32, #tpu.memory_space<vmem>>, vector<1x96x32xf32>
    %127 = vector.shape_cast %126 : vector<1x96x32xf32> to vector<96x32xf32>
    %cst_97 = arith.constant dense<0.000000e+00> : vector<96x64xf32>
    %128 = tpu.matmul %127, %125, %cst_97 {dimension_numbers = #tpu.dot_dimension_numbers<[1], [0], [0], [1], [0, 0, 1, 1], [], []>} : vector<96x32xf32>, vector<32x64xf32>, vector<96x64xf32> -> vector<96x64xf32>
    %cst_98 = arith.constant 0.000000e+00 : f32
    %129 = vector.broadcast %cst_98 : f32 to vector<32x64xf32>
    %130 = vector.extract_strided_slice %128 {offsets = [0, 0], sizes = [32, 64], strides = [1, 1]} : vector<96x64xf32> to vector<32x64xf32>
    %c6 = arith.constant 6 : index
    %c0_99 = arith.constant 0 : index
    %c0_100 = arith.constant 0 : index
    %131 = vector.load %arg2[%c6, %c0_99, %c0_100] : memref<27x64x64xf32, #tpu.memory_space<vmem>>, vector<1x64x64xf32>
    %132 = vector.shape_cast %131 : vector<1x64x64xf32> to vector<64x64xf32>
    %cst_101 = arith.constant dense<0.000000e+00> : vector<32x64xf32>
    %133 = tpu.matmul %130, %132, %cst_101 {dimension_numbers = #tpu.dot_dimension_numbers<[1], [0], [0], [1], [0, 0, 1, 1], [], []>} : vector<32x64xf32>, vector<64x64xf32>, vector<32x64xf32> -> vector<32x64xf32>
    %134 = arith.addf %129, %133 : vector<32x64xf32>
    %135 = vector.extract_strided_slice %128 {offsets = [32, 0], sizes = [32, 64], strides = [1, 1]} : vector<96x64xf32> to vector<32x64xf32>
    %c7 = arith.constant 7 : index
    %c0_102 = arith.constant 0 : index
    %c0_103 = arith.constant 0 : index
    %136 = vector.load %arg2[%c7, %c0_102, %c0_103] : memref<27x64x64xf32, #tpu.memory_space<vmem>>, vector<1x64x64xf32>
    %137 = vector.shape_cast %136 : vector<1x64x64xf32> to vector<64x64xf32>
    %cst_104 = arith.constant dense<0.000000e+00> : vector<32x64xf32>
    %138 = tpu.matmul %135, %137, %cst_104 {dimension_numbers = #tpu.dot_dimension_numbers<[1], [0], [0], [1], [0, 0, 1, 1], [], []>} : vector<32x64xf32>, vector<64x64xf32>, vector<32x64xf32> -> vector<32x64xf32>
    %139 = arith.addf %134, %138 : vector<32x64xf32>
    %140 = vector.extract_strided_slice %128 {offsets = [64, 0], sizes = [32, 64], strides = [1, 1]} : vector<96x64xf32> to vector<32x64xf32>
    %c8 = arith.constant 8 : index
    %c0_105 = arith.constant 0 : index
    %c0_106 = arith.constant 0 : index
    %141 = vector.load %arg2[%c8, %c0_105, %c0_106] : memref<27x64x64xf32, #tpu.memory_space<vmem>>, vector<1x64x64xf32>
    %142 = vector.shape_cast %141 : vector<1x64x64xf32> to vector<64x64xf32>
    %cst_107 = arith.constant dense<0.000000e+00> : vector<32x64xf32>
    %143 = tpu.matmul %140, %142, %cst_107 {dimension_numbers = #tpu.dot_dimension_numbers<[1], [0], [0], [1], [0, 0, 1, 1], [], []>} : vector<32x64xf32>, vector<64x64xf32>, vector<32x64xf32> -> vector<32x64xf32>
    %144 = arith.addf %139, %143 : vector<32x64xf32>
    %c2_108 = arith.constant 2 : index
    %c0_109 = arith.constant 0 : index
    %c0_110 = arith.constant 0 : index
    %145 = vector.load %arg3[%c2_108, %c0_109, %c0_110] : memref<9x64x64xf32, #tpu.memory_space<vmem>>, vector<1x64x64xf32>
    %146 = vector.shape_cast %145 : vector<1x64x64xf32> to vector<64x64xf32>
    %cst_111 = arith.constant dense<0.000000e+00> : vector<32x64xf32>
    %147 = tpu.matmul %144, %146, %cst_111 {dimension_numbers = #tpu.dot_dimension_numbers<[1], [0], [0], [1], [0, 0, 1, 1], [], []>} : vector<32x64xf32>, vector<64x64xf32>, vector<32x64xf32> -> vector<32x64xf32>
    %cst_112 = arith.constant dense<0.000000e+00> : vector<64xf32>
    %148 = vector.multi_reduction <add>, %147, %cst_112 [0] : vector<32x64xf32> to vector<64xf32>
    %149 = vector.shape_cast %148 : vector<64xf32> to vector<1x64xf32>
    %150 = arith.mulf %144, %144 : vector<32x64xf32>
    %cst_113 = arith.constant dense<0.000000e+00> : vector<32x64xf32>
    %151 = tpu.matmul %150, %146, %cst_113 {dimension_numbers = #tpu.dot_dimension_numbers<[1], [0], [0], [1], [0, 0, 1, 1], [], []>} : vector<32x64xf32>, vector<64x64xf32>, vector<32x64xf32> -> vector<32x64xf32>
    %cst_114 = arith.constant dense<0.000000e+00> : vector<64xf32>
    %152 = vector.multi_reduction <add>, %151, %cst_114 [0] : vector<32x64xf32> to vector<64xf32>
    %153 = vector.shape_cast %152 : vector<64xf32> to vector<1x64xf32>
    %154 = arith.mulf %149, %149 : vector<1x64xf32>
    %155 = arith.subf %153, %154 : vector<1x64xf32>
    %cst_115 = arith.constant 0.000000e+00 : f32
    %156 = vector.broadcast %cst_115 : f32 to vector<1x64xf32>
    %157 = arith.maximumf %155, %156 : vector<1x64xf32>
    %c2_116 = arith.constant 2 : index
    %c0_117 = arith.constant 0 : index
    %c0_118 = arith.constant 0 : index
    %158 = vector.load %arg4[%c2_116, %c0_117, %c0_118] : memref<9x1x64xf32, #tpu.memory_space<vmem>>, vector<1x1x64xf32>
    %159 = vector.shape_cast %158 : vector<1x1x64xf32> to vector<1x64xf32>
    %cst_119 = arith.constant 9.99999974E-6 : f32
    %160 = vector.broadcast %cst_119 : f32 to vector<1x64xf32>
    %161 = arith.addf %157, %160 : vector<1x64xf32>
    %162 = math.rsqrt %161 : vector<1x64xf32>
    %163 = arith.mulf %159, %162 : vector<1x64xf32>
    %c2_120 = arith.constant 2 : index
    %c0_121 = arith.constant 0 : index
    %c0_122 = arith.constant 0 : index
    %164 = vector.load %arg5[%c2_120, %c0_121, %c0_122] : memref<9x1x64xf32, #tpu.memory_space<vmem>>, vector<1x1x64xf32>
    %165 = vector.shape_cast %164 : vector<1x1x64xf32> to vector<1x64xf32>
    %166 = arith.mulf %149, %163 : vector<1x64xf32>
    %167 = arith.subf %165, %166 : vector<1x64xf32>
    %168 = vector.broadcast %163 : vector<1x64xf32> to vector<32x64xf32>
    %169 = arith.mulf %144, %168 : vector<32x64xf32>
    %170 = vector.broadcast %167 : vector<1x64xf32> to vector<32x64xf32>
    %171 = arith.addf %169, %170 : vector<32x64xf32>
    %cst_123 = arith.constant 0.000000e+00 : f32
    %172 = vector.broadcast %cst_123 : f32 to vector<32x64xf32>
    %173 = arith.maximumf %171, %172 : vector<32x64xf32>
    %c3_124 = arith.constant 3 : index
    %c0_125 = arith.constant 0 : index
    %c0_126 = arith.constant 0 : index
    %174 = vector.load %arg1[%c3_124, %c0_125, %c0_126] : memref<9x96x32xf32, #tpu.memory_space<vmem>>, vector<1x96x32xf32>
    %175 = vector.shape_cast %174 : vector<1x96x32xf32> to vector<96x32xf32>
    %cst_127 = arith.constant dense<0.000000e+00> : vector<96x64xf32>
    %176 = tpu.matmul %175, %173, %cst_127 {dimension_numbers = #tpu.dot_dimension_numbers<[1], [0], [0], [1], [0, 0, 1, 1], [], []>} : vector<96x32xf32>, vector<32x64xf32>, vector<96x64xf32> -> vector<96x64xf32>
    %cst_128 = arith.constant 0.000000e+00 : f32
    %177 = vector.broadcast %cst_128 : f32 to vector<32x64xf32>
    %178 = vector.extract_strided_slice %176 {offsets = [0, 0], sizes = [32, 64], strides = [1, 1]} : vector<96x64xf32> to vector<32x64xf32>
    %c9 = arith.constant 9 : index
    %c0_129 = arith.constant 0 : index
    %c0_130 = arith.constant 0 : index
    %179 = vector.load %arg2[%c9, %c0_129, %c0_130] : memref<27x64x64xf32, #tpu.memory_space<vmem>>, vector<1x64x64xf32>
    %180 = vector.shape_cast %179 : vector<1x64x64xf32> to vector<64x64xf32>
    %cst_131 = arith.constant dense<0.000000e+00> : vector<32x64xf32>
    %181 = tpu.matmul %178, %180, %cst_131 {dimension_numbers = #tpu.dot_dimension_numbers<[1], [0], [0], [1], [0, 0, 1, 1], [], []>} : vector<32x64xf32>, vector<64x64xf32>, vector<32x64xf32> -> vector<32x64xf32>
    %182 = arith.addf %177, %181 : vector<32x64xf32>
    %183 = vector.extract_strided_slice %176 {offsets = [32, 0], sizes = [32, 64], strides = [1, 1]} : vector<96x64xf32> to vector<32x64xf32>
    %c10 = arith.constant 10 : index
    %c0_132 = arith.constant 0 : index
    %c0_133 = arith.constant 0 : index
    %184 = vector.load %arg2[%c10, %c0_132, %c0_133] : memref<27x64x64xf32, #tpu.memory_space<vmem>>, vector<1x64x64xf32>
    %185 = vector.shape_cast %184 : vector<1x64x64xf32> to vector<64x64xf32>
    %cst_134 = arith.constant dense<0.000000e+00> : vector<32x64xf32>
    %186 = tpu.matmul %183, %185, %cst_134 {dimension_numbers = #tpu.dot_dimension_numbers<[1], [0], [0], [1], [0, 0, 1, 1], [], []>} : vector<32x64xf32>, vector<64x64xf32>, vector<32x64xf32> -> vector<32x64xf32>
    %187 = arith.addf %182, %186 : vector<32x64xf32>
    %188 = vector.extract_strided_slice %176 {offsets = [64, 0], sizes = [32, 64], strides = [1, 1]} : vector<96x64xf32> to vector<32x64xf32>
    %c11 = arith.constant 11 : index
    %c0_135 = arith.constant 0 : index
    %c0_136 = arith.constant 0 : index
    %189 = vector.load %arg2[%c11, %c0_135, %c0_136] : memref<27x64x64xf32, #tpu.memory_space<vmem>>, vector<1x64x64xf32>
    %190 = vector.shape_cast %189 : vector<1x64x64xf32> to vector<64x64xf32>
    %cst_137 = arith.constant dense<0.000000e+00> : vector<32x64xf32>
    %191 = tpu.matmul %188, %190, %cst_137 {dimension_numbers = #tpu.dot_dimension_numbers<[1], [0], [0], [1], [0, 0, 1, 1], [], []>} : vector<32x64xf32>, vector<64x64xf32>, vector<32x64xf32> -> vector<32x64xf32>
    %192 = arith.addf %187, %191 : vector<32x64xf32>
    %c3_138 = arith.constant 3 : index
    %c0_139 = arith.constant 0 : index
    %c0_140 = arith.constant 0 : index
    %193 = vector.load %arg3[%c3_138, %c0_139, %c0_140] : memref<9x64x64xf32, #tpu.memory_space<vmem>>, vector<1x64x64xf32>
    %194 = vector.shape_cast %193 : vector<1x64x64xf32> to vector<64x64xf32>
    %cst_141 = arith.constant dense<0.000000e+00> : vector<32x64xf32>
    %195 = tpu.matmul %192, %194, %cst_141 {dimension_numbers = #tpu.dot_dimension_numbers<[1], [0], [0], [1], [0, 0, 1, 1], [], []>} : vector<32x64xf32>, vector<64x64xf32>, vector<32x64xf32> -> vector<32x64xf32>
    %cst_142 = arith.constant dense<0.000000e+00> : vector<64xf32>
    %196 = vector.multi_reduction <add>, %195, %cst_142 [0] : vector<32x64xf32> to vector<64xf32>
    %197 = vector.shape_cast %196 : vector<64xf32> to vector<1x64xf32>
    %198 = arith.mulf %192, %192 : vector<32x64xf32>
    %cst_143 = arith.constant dense<0.000000e+00> : vector<32x64xf32>
    %199 = tpu.matmul %198, %194, %cst_143 {dimension_numbers = #tpu.dot_dimension_numbers<[1], [0], [0], [1], [0, 0, 1, 1], [], []>} : vector<32x64xf32>, vector<64x64xf32>, vector<32x64xf32> -> vector<32x64xf32>
    %cst_144 = arith.constant dense<0.000000e+00> : vector<64xf32>
    %200 = vector.multi_reduction <add>, %199, %cst_144 [0] : vector<32x64xf32> to vector<64xf32>
    %201 = vector.shape_cast %200 : vector<64xf32> to vector<1x64xf32>
    %202 = arith.mulf %197, %197 : vector<1x64xf32>
    %203 = arith.subf %201, %202 : vector<1x64xf32>
    %cst_145 = arith.constant 0.000000e+00 : f32
    %204 = vector.broadcast %cst_145 : f32 to vector<1x64xf32>
    %205 = arith.maximumf %203, %204 : vector<1x64xf32>
    %c3_146 = arith.constant 3 : index
    %c0_147 = arith.constant 0 : index
    %c0_148 = arith.constant 0 : index
    %206 = vector.load %arg4[%c3_146, %c0_147, %c0_148] : memref<9x1x64xf32, #tpu.memory_space<vmem>>, vector<1x1x64xf32>
    %207 = vector.shape_cast %206 : vector<1x1x64xf32> to vector<1x64xf32>
    %cst_149 = arith.constant 9.99999974E-6 : f32
    %208 = vector.broadcast %cst_149 : f32 to vector<1x64xf32>
    %209 = arith.addf %205, %208 : vector<1x64xf32>
    %210 = math.rsqrt %209 : vector<1x64xf32>
    %211 = arith.mulf %207, %210 : vector<1x64xf32>
    %c3_150 = arith.constant 3 : index
    %c0_151 = arith.constant 0 : index
    %c0_152 = arith.constant 0 : index
    %212 = vector.load %arg5[%c3_150, %c0_151, %c0_152] : memref<9x1x64xf32, #tpu.memory_space<vmem>>, vector<1x1x64xf32>
    %213 = vector.shape_cast %212 : vector<1x1x64xf32> to vector<1x64xf32>
    %214 = arith.mulf %197, %211 : vector<1x64xf32>
    %215 = arith.subf %213, %214 : vector<1x64xf32>
    %216 = vector.broadcast %211 : vector<1x64xf32> to vector<32x64xf32>
    %217 = arith.mulf %192, %216 : vector<32x64xf32>
    %218 = vector.broadcast %215 : vector<1x64xf32> to vector<32x64xf32>
    %219 = arith.addf %217, %218 : vector<32x64xf32>
    %cst_153 = arith.constant 0.000000e+00 : f32
    %220 = vector.broadcast %cst_153 : f32 to vector<32x64xf32>
    %221 = arith.maximumf %219, %220 : vector<32x64xf32>
    %c4_154 = arith.constant 4 : index
    %c0_155 = arith.constant 0 : index
    %c0_156 = arith.constant 0 : index
    %222 = vector.load %arg1[%c4_154, %c0_155, %c0_156] : memref<9x96x32xf32, #tpu.memory_space<vmem>>, vector<1x96x32xf32>
    %223 = vector.shape_cast %222 : vector<1x96x32xf32> to vector<96x32xf32>
    %cst_157 = arith.constant dense<0.000000e+00> : vector<96x64xf32>
    %224 = tpu.matmul %223, %221, %cst_157 {dimension_numbers = #tpu.dot_dimension_numbers<[1], [0], [0], [1], [0, 0, 1, 1], [], []>} : vector<96x32xf32>, vector<32x64xf32>, vector<96x64xf32> -> vector<96x64xf32>
    %cst_158 = arith.constant 0.000000e+00 : f32
    %225 = vector.broadcast %cst_158 : f32 to vector<32x64xf32>
    %226 = vector.extract_strided_slice %224 {offsets = [0, 0], sizes = [32, 64], strides = [1, 1]} : vector<96x64xf32> to vector<32x64xf32>
    %c12 = arith.constant 12 : index
    %c0_159 = arith.constant 0 : index
    %c0_160 = arith.constant 0 : index
    %227 = vector.load %arg2[%c12, %c0_159, %c0_160] : memref<27x64x64xf32, #tpu.memory_space<vmem>>, vector<1x64x64xf32>
    %228 = vector.shape_cast %227 : vector<1x64x64xf32> to vector<64x64xf32>
    %cst_161 = arith.constant dense<0.000000e+00> : vector<32x64xf32>
    %229 = tpu.matmul %226, %228, %cst_161 {dimension_numbers = #tpu.dot_dimension_numbers<[1], [0], [0], [1], [0, 0, 1, 1], [], []>} : vector<32x64xf32>, vector<64x64xf32>, vector<32x64xf32> -> vector<32x64xf32>
    %230 = arith.addf %225, %229 : vector<32x64xf32>
    %231 = vector.extract_strided_slice %224 {offsets = [32, 0], sizes = [32, 64], strides = [1, 1]} : vector<96x64xf32> to vector<32x64xf32>
    %c13 = arith.constant 13 : index
    %c0_162 = arith.constant 0 : index
    %c0_163 = arith.constant 0 : index
    %232 = vector.load %arg2[%c13, %c0_162, %c0_163] : memref<27x64x64xf32, #tpu.memory_space<vmem>>, vector<1x64x64xf32>
    %233 = vector.shape_cast %232 : vector<1x64x64xf32> to vector<64x64xf32>
    %cst_164 = arith.constant dense<0.000000e+00> : vector<32x64xf32>
    %234 = tpu.matmul %231, %233, %cst_164 {dimension_numbers = #tpu.dot_dimension_numbers<[1], [0], [0], [1], [0, 0, 1, 1], [], []>} : vector<32x64xf32>, vector<64x64xf32>, vector<32x64xf32> -> vector<32x64xf32>
    %235 = arith.addf %230, %234 : vector<32x64xf32>
    %236 = vector.extract_strided_slice %224 {offsets = [64, 0], sizes = [32, 64], strides = [1, 1]} : vector<96x64xf32> to vector<32x64xf32>
    %c14 = arith.constant 14 : index
    %c0_165 = arith.constant 0 : index
    %c0_166 = arith.constant 0 : index
    %237 = vector.load %arg2[%c14, %c0_165, %c0_166] : memref<27x64x64xf32, #tpu.memory_space<vmem>>, vector<1x64x64xf32>
    %238 = vector.shape_cast %237 : vector<1x64x64xf32> to vector<64x64xf32>
    %cst_167 = arith.constant dense<0.000000e+00> : vector<32x64xf32>
    %239 = tpu.matmul %236, %238, %cst_167 {dimension_numbers = #tpu.dot_dimension_numbers<[1], [0], [0], [1], [0, 0, 1, 1], [], []>} : vector<32x64xf32>, vector<64x64xf32>, vector<32x64xf32> -> vector<32x64xf32>
    %240 = arith.addf %235, %239 : vector<32x64xf32>
    %c4_168 = arith.constant 4 : index
    %c0_169 = arith.constant 0 : index
    %c0_170 = arith.constant 0 : index
    %241 = vector.load %arg3[%c4_168, %c0_169, %c0_170] : memref<9x64x64xf32, #tpu.memory_space<vmem>>, vector<1x64x64xf32>
    %242 = vector.shape_cast %241 : vector<1x64x64xf32> to vector<64x64xf32>
    %cst_171 = arith.constant dense<0.000000e+00> : vector<32x64xf32>
    %243 = tpu.matmul %240, %242, %cst_171 {dimension_numbers = #tpu.dot_dimension_numbers<[1], [0], [0], [1], [0, 0, 1, 1], [], []>} : vector<32x64xf32>, vector<64x64xf32>, vector<32x64xf32> -> vector<32x64xf32>
    %cst_172 = arith.constant dense<0.000000e+00> : vector<64xf32>
    %244 = vector.multi_reduction <add>, %243, %cst_172 [0] : vector<32x64xf32> to vector<64xf32>
    %245 = vector.shape_cast %244 : vector<64xf32> to vector<1x64xf32>
    %246 = arith.mulf %240, %240 : vector<32x64xf32>
    %cst_173 = arith.constant dense<0.000000e+00> : vector<32x64xf32>
    %247 = tpu.matmul %246, %242, %cst_173 {dimension_numbers = #tpu.dot_dimension_numbers<[1], [0], [0], [1], [0, 0, 1, 1], [], []>} : vector<32x64xf32>, vector<64x64xf32>, vector<32x64xf32> -> vector<32x64xf32>
    %cst_174 = arith.constant dense<0.000000e+00> : vector<64xf32>
    %248 = vector.multi_reduction <add>, %247, %cst_174 [0] : vector<32x64xf32> to vector<64xf32>
    %249 = vector.shape_cast %248 : vector<64xf32> to vector<1x64xf32>
    %250 = arith.mulf %245, %245 : vector<1x64xf32>
    %251 = arith.subf %249, %250 : vector<1x64xf32>
    %cst_175 = arith.constant 0.000000e+00 : f32
    %252 = vector.broadcast %cst_175 : f32 to vector<1x64xf32>
    %253 = arith.maximumf %251, %252 : vector<1x64xf32>
    %c4_176 = arith.constant 4 : index
    %c0_177 = arith.constant 0 : index
    %c0_178 = arith.constant 0 : index
    %254 = vector.load %arg4[%c4_176, %c0_177, %c0_178] : memref<9x1x64xf32, #tpu.memory_space<vmem>>, vector<1x1x64xf32>
    %255 = vector.shape_cast %254 : vector<1x1x64xf32> to vector<1x64xf32>
    %cst_179 = arith.constant 9.99999974E-6 : f32
    %256 = vector.broadcast %cst_179 : f32 to vector<1x64xf32>
    %257 = arith.addf %253, %256 : vector<1x64xf32>
    %258 = math.rsqrt %257 : vector<1x64xf32>
    %259 = arith.mulf %255, %258 : vector<1x64xf32>
    %c4_180 = arith.constant 4 : index
    %c0_181 = arith.constant 0 : index
    %c0_182 = arith.constant 0 : index
    %260 = vector.load %arg5[%c4_180, %c0_181, %c0_182] : memref<9x1x64xf32, #tpu.memory_space<vmem>>, vector<1x1x64xf32>
    %261 = vector.shape_cast %260 : vector<1x1x64xf32> to vector<1x64xf32>
    %262 = arith.mulf %245, %259 : vector<1x64xf32>
    %263 = arith.subf %261, %262 : vector<1x64xf32>
    %264 = vector.broadcast %259 : vector<1x64xf32> to vector<32x64xf32>
    %265 = arith.mulf %240, %264 : vector<32x64xf32>
    %266 = vector.broadcast %263 : vector<1x64xf32> to vector<32x64xf32>
    %267 = arith.addf %265, %266 : vector<32x64xf32>
    %cst_183 = arith.constant 0.000000e+00 : f32
    %268 = vector.broadcast %cst_183 : f32 to vector<32x64xf32>
    %269 = arith.maximumf %267, %268 : vector<32x64xf32>
    %270 = arith.addf %269, %221 : vector<32x64xf32>
    %c5_184 = arith.constant 5 : index
    %c0_185 = arith.constant 0 : index
    %c0_186 = arith.constant 0 : index
    %271 = vector.load %arg1[%c5_184, %c0_185, %c0_186] : memref<9x96x32xf32, #tpu.memory_space<vmem>>, vector<1x96x32xf32>
    %272 = vector.shape_cast %271 : vector<1x96x32xf32> to vector<96x32xf32>
    %cst_187 = arith.constant dense<0.000000e+00> : vector<96x64xf32>
    %273 = tpu.matmul %272, %270, %cst_187 {dimension_numbers = #tpu.dot_dimension_numbers<[1], [0], [0], [1], [0, 0, 1, 1], [], []>} : vector<96x32xf32>, vector<32x64xf32>, vector<96x64xf32> -> vector<96x64xf32>
    %cst_188 = arith.constant 0.000000e+00 : f32
    %274 = vector.broadcast %cst_188 : f32 to vector<32x64xf32>
    %275 = vector.extract_strided_slice %273 {offsets = [0, 0], sizes = [32, 64], strides = [1, 1]} : vector<96x64xf32> to vector<32x64xf32>
    %c15 = arith.constant 15 : index
    %c0_189 = arith.constant 0 : index
    %c0_190 = arith.constant 0 : index
    %276 = vector.load %arg2[%c15, %c0_189, %c0_190] : memref<27x64x64xf32, #tpu.memory_space<vmem>>, vector<1x64x64xf32>
    %277 = vector.shape_cast %276 : vector<1x64x64xf32> to vector<64x64xf32>
    %cst_191 = arith.constant dense<0.000000e+00> : vector<32x64xf32>
    %278 = tpu.matmul %275, %277, %cst_191 {dimension_numbers = #tpu.dot_dimension_numbers<[1], [0], [0], [1], [0, 0, 1, 1], [], []>} : vector<32x64xf32>, vector<64x64xf32>, vector<32x64xf32> -> vector<32x64xf32>
    %279 = arith.addf %274, %278 : vector<32x64xf32>
    %280 = vector.extract_strided_slice %273 {offsets = [32, 0], sizes = [32, 64], strides = [1, 1]} : vector<96x64xf32> to vector<32x64xf32>
    %c16 = arith.constant 16 : index
    %c0_192 = arith.constant 0 : index
    %c0_193 = arith.constant 0 : index
    %281 = vector.load %arg2[%c16, %c0_192, %c0_193] : memref<27x64x64xf32, #tpu.memory_space<vmem>>, vector<1x64x64xf32>
    %282 = vector.shape_cast %281 : vector<1x64x64xf32> to vector<64x64xf32>
    %cst_194 = arith.constant dense<0.000000e+00> : vector<32x64xf32>
    %283 = tpu.matmul %280, %282, %cst_194 {dimension_numbers = #tpu.dot_dimension_numbers<[1], [0], [0], [1], [0, 0, 1, 1], [], []>} : vector<32x64xf32>, vector<64x64xf32>, vector<32x64xf32> -> vector<32x64xf32>
    %284 = arith.addf %279, %283 : vector<32x64xf32>
    %285 = vector.extract_strided_slice %273 {offsets = [64, 0], sizes = [32, 64], strides = [1, 1]} : vector<96x64xf32> to vector<32x64xf32>
    %c17 = arith.constant 17 : index
    %c0_195 = arith.constant 0 : index
    %c0_196 = arith.constant 0 : index
    %286 = vector.load %arg2[%c17, %c0_195, %c0_196] : memref<27x64x64xf32, #tpu.memory_space<vmem>>, vector<1x64x64xf32>
    %287 = vector.shape_cast %286 : vector<1x64x64xf32> to vector<64x64xf32>
    %cst_197 = arith.constant dense<0.000000e+00> : vector<32x64xf32>
    %288 = tpu.matmul %285, %287, %cst_197 {dimension_numbers = #tpu.dot_dimension_numbers<[1], [0], [0], [1], [0, 0, 1, 1], [], []>} : vector<32x64xf32>, vector<64x64xf32>, vector<32x64xf32> -> vector<32x64xf32>
    %289 = arith.addf %284, %288 : vector<32x64xf32>
    %c5_198 = arith.constant 5 : index
    %c0_199 = arith.constant 0 : index
    %c0_200 = arith.constant 0 : index
    %290 = vector.load %arg3[%c5_198, %c0_199, %c0_200] : memref<9x64x64xf32, #tpu.memory_space<vmem>>, vector<1x64x64xf32>
    %291 = vector.shape_cast %290 : vector<1x64x64xf32> to vector<64x64xf32>
    %cst_201 = arith.constant dense<0.000000e+00> : vector<32x64xf32>
    %292 = tpu.matmul %289, %291, %cst_201 {dimension_numbers = #tpu.dot_dimension_numbers<[1], [0], [0], [1], [0, 0, 1, 1], [], []>} : vector<32x64xf32>, vector<64x64xf32>, vector<32x64xf32> -> vector<32x64xf32>
    %cst_202 = arith.constant dense<0.000000e+00> : vector<64xf32>
    %293 = vector.multi_reduction <add>, %292, %cst_202 [0] : vector<32x64xf32> to vector<64xf32>
    %294 = vector.shape_cast %293 : vector<64xf32> to vector<1x64xf32>
    %295 = arith.mulf %289, %289 : vector<32x64xf32>
    %cst_203 = arith.constant dense<0.000000e+00> : vector<32x64xf32>
    %296 = tpu.matmul %295, %291, %cst_203 {dimension_numbers = #tpu.dot_dimension_numbers<[1], [0], [0], [1], [0, 0, 1, 1], [], []>} : vector<32x64xf32>, vector<64x64xf32>, vector<32x64xf32> -> vector<32x64xf32>
    %cst_204 = arith.constant dense<0.000000e+00> : vector<64xf32>
    %297 = vector.multi_reduction <add>, %296, %cst_204 [0] : vector<32x64xf32> to vector<64xf32>
    %298 = vector.shape_cast %297 : vector<64xf32> to vector<1x64xf32>
    %299 = arith.mulf %294, %294 : vector<1x64xf32>
    %300 = arith.subf %298, %299 : vector<1x64xf32>
    %cst_205 = arith.constant 0.000000e+00 : f32
    %301 = vector.broadcast %cst_205 : f32 to vector<1x64xf32>
    %302 = arith.maximumf %300, %301 : vector<1x64xf32>
    %c5_206 = arith.constant 5 : index
    %c0_207 = arith.constant 0 : index
    %c0_208 = arith.constant 0 : index
    %303 = vector.load %arg4[%c5_206, %c0_207, %c0_208] : memref<9x1x64xf32, #tpu.memory_space<vmem>>, vector<1x1x64xf32>
    %304 = vector.shape_cast %303 : vector<1x1x64xf32> to vector<1x64xf32>
    %cst_209 = arith.constant 9.99999974E-6 : f32
    %305 = vector.broadcast %cst_209 : f32 to vector<1x64xf32>
    %306 = arith.addf %302, %305 : vector<1x64xf32>
    %307 = math.rsqrt %306 : vector<1x64xf32>
    %308 = arith.mulf %304, %307 : vector<1x64xf32>
    %c5_210 = arith.constant 5 : index
    %c0_211 = arith.constant 0 : index
    %c0_212 = arith.constant 0 : index
    %309 = vector.load %arg5[%c5_210, %c0_211, %c0_212] : memref<9x1x64xf32, #tpu.memory_space<vmem>>, vector<1x1x64xf32>
    %310 = vector.shape_cast %309 : vector<1x1x64xf32> to vector<1x64xf32>
    %311 = arith.mulf %294, %308 : vector<1x64xf32>
    %312 = arith.subf %310, %311 : vector<1x64xf32>
    %313 = vector.broadcast %308 : vector<1x64xf32> to vector<32x64xf32>
    %314 = arith.mulf %289, %313 : vector<32x64xf32>
    %315 = vector.broadcast %312 : vector<1x64xf32> to vector<32x64xf32>
    %316 = arith.addf %314, %315 : vector<32x64xf32>
    %cst_213 = arith.constant 0.000000e+00 : f32
    %317 = vector.broadcast %cst_213 : f32 to vector<32x64xf32>
    %318 = arith.maximumf %316, %317 : vector<32x64xf32>
    %319 = arith.addf %318, %173 : vector<32x64xf32>
    %c6_214 = arith.constant 6 : index
    %c0_215 = arith.constant 0 : index
    %c0_216 = arith.constant 0 : index
    %320 = vector.load %arg1[%c6_214, %c0_215, %c0_216] : memref<9x96x32xf32, #tpu.memory_space<vmem>>, vector<1x96x32xf32>
    %321 = vector.shape_cast %320 : vector<1x96x32xf32> to vector<96x32xf32>
    %cst_217 = arith.constant dense<0.000000e+00> : vector<96x64xf32>
    %322 = tpu.matmul %321, %319, %cst_217 {dimension_numbers = #tpu.dot_dimension_numbers<[1], [0], [0], [1], [0, 0, 1, 1], [], []>} : vector<96x32xf32>, vector<32x64xf32>, vector<96x64xf32> -> vector<96x64xf32>
    %cst_218 = arith.constant 0.000000e+00 : f32
    %323 = vector.broadcast %cst_218 : f32 to vector<32x64xf32>
    %324 = vector.extract_strided_slice %322 {offsets = [0, 0], sizes = [32, 64], strides = [1, 1]} : vector<96x64xf32> to vector<32x64xf32>
    %c18 = arith.constant 18 : index
    %c0_219 = arith.constant 0 : index
    %c0_220 = arith.constant 0 : index
    %325 = vector.load %arg2[%c18, %c0_219, %c0_220] : memref<27x64x64xf32, #tpu.memory_space<vmem>>, vector<1x64x64xf32>
    %326 = vector.shape_cast %325 : vector<1x64x64xf32> to vector<64x64xf32>
    %cst_221 = arith.constant dense<0.000000e+00> : vector<32x64xf32>
    %327 = tpu.matmul %324, %326, %cst_221 {dimension_numbers = #tpu.dot_dimension_numbers<[1], [0], [0], [1], [0, 0, 1, 1], [], []>} : vector<32x64xf32>, vector<64x64xf32>, vector<32x64xf32> -> vector<32x64xf32>
    %328 = arith.addf %323, %327 : vector<32x64xf32>
    %329 = vector.extract_strided_slice %322 {offsets = [32, 0], sizes = [32, 64], strides = [1, 1]} : vector<96x64xf32> to vector<32x64xf32>
    %c19 = arith.constant 19 : index
    %c0_222 = arith.constant 0 : index
    %c0_223 = arith.constant 0 : index
    %330 = vector.load %arg2[%c19, %c0_222, %c0_223] : memref<27x64x64xf32, #tpu.memory_space<vmem>>, vector<1x64x64xf32>
    %331 = vector.shape_cast %330 : vector<1x64x64xf32> to vector<64x64xf32>
    %cst_224 = arith.constant dense<0.000000e+00> : vector<32x64xf32>
    %332 = tpu.matmul %329, %331, %cst_224 {dimension_numbers = #tpu.dot_dimension_numbers<[1], [0], [0], [1], [0, 0, 1, 1], [], []>} : vector<32x64xf32>, vector<64x64xf32>, vector<32x64xf32> -> vector<32x64xf32>
    %333 = arith.addf %328, %332 : vector<32x64xf32>
    %334 = vector.extract_strided_slice %322 {offsets = [64, 0], sizes = [32, 64], strides = [1, 1]} : vector<96x64xf32> to vector<32x64xf32>
    %c20 = arith.constant 20 : index
    %c0_225 = arith.constant 0 : index
    %c0_226 = arith.constant 0 : index
    %335 = vector.load %arg2[%c20, %c0_225, %c0_226] : memref<27x64x64xf32, #tpu.memory_space<vmem>>, vector<1x64x64xf32>
    %336 = vector.shape_cast %335 : vector<1x64x64xf32> to vector<64x64xf32>
    %cst_227 = arith.constant dense<0.000000e+00> : vector<32x64xf32>
    %337 = tpu.matmul %334, %336, %cst_227 {dimension_numbers = #tpu.dot_dimension_numbers<[1], [0], [0], [1], [0, 0, 1, 1], [], []>} : vector<32x64xf32>, vector<64x64xf32>, vector<32x64xf32> -> vector<32x64xf32>
    %338 = arith.addf %333, %337 : vector<32x64xf32>
    %c6_228 = arith.constant 6 : index
    %c0_229 = arith.constant 0 : index
    %c0_230 = arith.constant 0 : index
    %339 = vector.load %arg3[%c6_228, %c0_229, %c0_230] : memref<9x64x64xf32, #tpu.memory_space<vmem>>, vector<1x64x64xf32>
    %340 = vector.shape_cast %339 : vector<1x64x64xf32> to vector<64x64xf32>
    %cst_231 = arith.constant dense<0.000000e+00> : vector<32x64xf32>
    %341 = tpu.matmul %338, %340, %cst_231 {dimension_numbers = #tpu.dot_dimension_numbers<[1], [0], [0], [1], [0, 0, 1, 1], [], []>} : vector<32x64xf32>, vector<64x64xf32>, vector<32x64xf32> -> vector<32x64xf32>
    %cst_232 = arith.constant dense<0.000000e+00> : vector<64xf32>
    %342 = vector.multi_reduction <add>, %341, %cst_232 [0] : vector<32x64xf32> to vector<64xf32>
    %343 = vector.shape_cast %342 : vector<64xf32> to vector<1x64xf32>
    %344 = arith.mulf %338, %338 : vector<32x64xf32>
    %cst_233 = arith.constant dense<0.000000e+00> : vector<32x64xf32>
    %345 = tpu.matmul %344, %340, %cst_233 {dimension_numbers = #tpu.dot_dimension_numbers<[1], [0], [0], [1], [0, 0, 1, 1], [], []>} : vector<32x64xf32>, vector<64x64xf32>, vector<32x64xf32> -> vector<32x64xf32>
    %cst_234 = arith.constant dense<0.000000e+00> : vector<64xf32>
    %346 = vector.multi_reduction <add>, %345, %cst_234 [0] : vector<32x64xf32> to vector<64xf32>
    %347 = vector.shape_cast %346 : vector<64xf32> to vector<1x64xf32>
    %348 = arith.mulf %343, %343 : vector<1x64xf32>
    %349 = arith.subf %347, %348 : vector<1x64xf32>
    %cst_235 = arith.constant 0.000000e+00 : f32
    %350 = vector.broadcast %cst_235 : f32 to vector<1x64xf32>
    %351 = arith.maximumf %349, %350 : vector<1x64xf32>
    %c6_236 = arith.constant 6 : index
    %c0_237 = arith.constant 0 : index
    %c0_238 = arith.constant 0 : index
    %352 = vector.load %arg4[%c6_236, %c0_237, %c0_238] : memref<9x1x64xf32, #tpu.memory_space<vmem>>, vector<1x1x64xf32>
    %353 = vector.shape_cast %352 : vector<1x1x64xf32> to vector<1x64xf32>
    %cst_239 = arith.constant 9.99999974E-6 : f32
    %354 = vector.broadcast %cst_239 : f32 to vector<1x64xf32>
    %355 = arith.addf %351, %354 : vector<1x64xf32>
    %356 = math.rsqrt %355 : vector<1x64xf32>
    %357 = arith.mulf %353, %356 : vector<1x64xf32>
    %c6_240 = arith.constant 6 : index
    %c0_241 = arith.constant 0 : index
    %c0_242 = arith.constant 0 : index
    %358 = vector.load %arg5[%c6_240, %c0_241, %c0_242] : memref<9x1x64xf32, #tpu.memory_space<vmem>>, vector<1x1x64xf32>
    %359 = vector.shape_cast %358 : vector<1x1x64xf32> to vector<1x64xf32>
    %360 = arith.mulf %343, %357 : vector<1x64xf32>
    %361 = arith.subf %359, %360 : vector<1x64xf32>
    %362 = vector.broadcast %357 : vector<1x64xf32> to vector<32x64xf32>
    %363 = arith.mulf %338, %362 : vector<32x64xf32>
    %364 = vector.broadcast %361 : vector<1x64xf32> to vector<32x64xf32>
    %365 = arith.addf %363, %364 : vector<32x64xf32>
    %cst_243 = arith.constant 0.000000e+00 : f32
    %366 = vector.broadcast %cst_243 : f32 to vector<32x64xf32>
    %367 = arith.maximumf %365, %366 : vector<32x64xf32>
    %368 = arith.addf %367, %125 : vector<32x64xf32>
    %c7_244 = arith.constant 7 : index
    %c0_245 = arith.constant 0 : index
    %c0_246 = arith.constant 0 : index
    %369 = vector.load %arg1[%c7_244, %c0_245, %c0_246] : memref<9x96x32xf32, #tpu.memory_space<vmem>>, vector<1x96x32xf32>
    %370 = vector.shape_cast %369 : vector<1x96x32xf32> to vector<96x32xf32>
    %cst_247 = arith.constant dense<0.000000e+00> : vector<96x64xf32>
    %371 = tpu.matmul %370, %368, %cst_247 {dimension_numbers = #tpu.dot_dimension_numbers<[1], [0], [0], [1], [0, 0, 1, 1], [], []>} : vector<96x32xf32>, vector<32x64xf32>, vector<96x64xf32> -> vector<96x64xf32>
    %cst_248 = arith.constant 0.000000e+00 : f32
    %372 = vector.broadcast %cst_248 : f32 to vector<32x64xf32>
    %373 = vector.extract_strided_slice %371 {offsets = [0, 0], sizes = [32, 64], strides = [1, 1]} : vector<96x64xf32> to vector<32x64xf32>
    %c21 = arith.constant 21 : index
    %c0_249 = arith.constant 0 : index
    %c0_250 = arith.constant 0 : index
    %374 = vector.load %arg2[%c21, %c0_249, %c0_250] : memref<27x64x64xf32, #tpu.memory_space<vmem>>, vector<1x64x64xf32>
    %375 = vector.shape_cast %374 : vector<1x64x64xf32> to vector<64x64xf32>
    %cst_251 = arith.constant dense<0.000000e+00> : vector<32x64xf32>
    %376 = tpu.matmul %373, %375, %cst_251 {dimension_numbers = #tpu.dot_dimension_numbers<[1], [0], [0], [1], [0, 0, 1, 1], [], []>} : vector<32x64xf32>, vector<64x64xf32>, vector<32x64xf32> -> vector<32x64xf32>
    %377 = arith.addf %372, %376 : vector<32x64xf32>
    %378 = vector.extract_strided_slice %371 {offsets = [32, 0], sizes = [32, 64], strides = [1, 1]} : vector<96x64xf32> to vector<32x64xf32>
    %c22 = arith.constant 22 : index
    %c0_252 = arith.constant 0 : index
    %c0_253 = arith.constant 0 : index
    %379 = vector.load %arg2[%c22, %c0_252, %c0_253] : memref<27x64x64xf32, #tpu.memory_space<vmem>>, vector<1x64x64xf32>
    %380 = vector.shape_cast %379 : vector<1x64x64xf32> to vector<64x64xf32>
    %cst_254 = arith.constant dense<0.000000e+00> : vector<32x64xf32>
    %381 = tpu.matmul %378, %380, %cst_254 {dimension_numbers = #tpu.dot_dimension_numbers<[1], [0], [0], [1], [0, 0, 1, 1], [], []>} : vector<32x64xf32>, vector<64x64xf32>, vector<32x64xf32> -> vector<32x64xf32>
    %382 = arith.addf %377, %381 : vector<32x64xf32>
    %383 = vector.extract_strided_slice %371 {offsets = [64, 0], sizes = [32, 64], strides = [1, 1]} : vector<96x64xf32> to vector<32x64xf32>
    %c23 = arith.constant 23 : index
    %c0_255 = arith.constant 0 : index
    %c0_256 = arith.constant 0 : index
    %384 = vector.load %arg2[%c23, %c0_255, %c0_256] : memref<27x64x64xf32, #tpu.memory_space<vmem>>, vector<1x64x64xf32>
    %385 = vector.shape_cast %384 : vector<1x64x64xf32> to vector<64x64xf32>
    %cst_257 = arith.constant dense<0.000000e+00> : vector<32x64xf32>
    %386 = tpu.matmul %383, %385, %cst_257 {dimension_numbers = #tpu.dot_dimension_numbers<[1], [0], [0], [1], [0, 0, 1, 1], [], []>} : vector<32x64xf32>, vector<64x64xf32>, vector<32x64xf32> -> vector<32x64xf32>
    %387 = arith.addf %382, %386 : vector<32x64xf32>
    %c7_258 = arith.constant 7 : index
    %c0_259 = arith.constant 0 : index
    %c0_260 = arith.constant 0 : index
    %388 = vector.load %arg3[%c7_258, %c0_259, %c0_260] : memref<9x64x64xf32, #tpu.memory_space<vmem>>, vector<1x64x64xf32>
    %389 = vector.shape_cast %388 : vector<1x64x64xf32> to vector<64x64xf32>
    %cst_261 = arith.constant dense<0.000000e+00> : vector<32x64xf32>
    %390 = tpu.matmul %387, %389, %cst_261 {dimension_numbers = #tpu.dot_dimension_numbers<[1], [0], [0], [1], [0, 0, 1, 1], [], []>} : vector<32x64xf32>, vector<64x64xf32>, vector<32x64xf32> -> vector<32x64xf32>
    %cst_262 = arith.constant dense<0.000000e+00> : vector<64xf32>
    %391 = vector.multi_reduction <add>, %390, %cst_262 [0] : vector<32x64xf32> to vector<64xf32>
    %392 = vector.shape_cast %391 : vector<64xf32> to vector<1x64xf32>
    %393 = arith.mulf %387, %387 : vector<32x64xf32>
    %cst_263 = arith.constant dense<0.000000e+00> : vector<32x64xf32>
    %394 = tpu.matmul %393, %389, %cst_263 {dimension_numbers = #tpu.dot_dimension_numbers<[1], [0], [0], [1], [0, 0, 1, 1], [], []>} : vector<32x64xf32>, vector<64x64xf32>, vector<32x64xf32> -> vector<32x64xf32>
    %cst_264 = arith.constant dense<0.000000e+00> : vector<64xf32>
    %395 = vector.multi_reduction <add>, %394, %cst_264 [0] : vector<32x64xf32> to vector<64xf32>
    %396 = vector.shape_cast %395 : vector<64xf32> to vector<1x64xf32>
    %397 = arith.mulf %392, %392 : vector<1x64xf32>
    %398 = arith.subf %396, %397 : vector<1x64xf32>
    %cst_265 = arith.constant 0.000000e+00 : f32
    %399 = vector.broadcast %cst_265 : f32 to vector<1x64xf32>
    %400 = arith.maximumf %398, %399 : vector<1x64xf32>
    %c7_266 = arith.constant 7 : index
    %c0_267 = arith.constant 0 : index
    %c0_268 = arith.constant 0 : index
    %401 = vector.load %arg4[%c7_266, %c0_267, %c0_268] : memref<9x1x64xf32, #tpu.memory_space<vmem>>, vector<1x1x64xf32>
    %402 = vector.shape_cast %401 : vector<1x1x64xf32> to vector<1x64xf32>
    %cst_269 = arith.constant 9.99999974E-6 : f32
    %403 = vector.broadcast %cst_269 : f32 to vector<1x64xf32>
    %404 = arith.addf %400, %403 : vector<1x64xf32>
    %405 = math.rsqrt %404 : vector<1x64xf32>
    %406 = arith.mulf %402, %405 : vector<1x64xf32>
    %c7_270 = arith.constant 7 : index
    %c0_271 = arith.constant 0 : index
    %c0_272 = arith.constant 0 : index
    %407 = vector.load %arg5[%c7_270, %c0_271, %c0_272] : memref<9x1x64xf32, #tpu.memory_space<vmem>>, vector<1x1x64xf32>
    %408 = vector.shape_cast %407 : vector<1x1x64xf32> to vector<1x64xf32>
    %409 = arith.mulf %392, %406 : vector<1x64xf32>
    %410 = arith.subf %408, %409 : vector<1x64xf32>
    %411 = vector.broadcast %406 : vector<1x64xf32> to vector<32x64xf32>
    %412 = arith.mulf %387, %411 : vector<32x64xf32>
    %413 = vector.broadcast %410 : vector<1x64xf32> to vector<32x64xf32>
    %414 = arith.addf %412, %413 : vector<32x64xf32>
    %cst_273 = arith.constant 0.000000e+00 : f32
    %415 = vector.broadcast %cst_273 : f32 to vector<32x64xf32>
    %416 = arith.maximumf %414, %415 : vector<32x64xf32>
    %417 = arith.addf %416, %77 : vector<32x64xf32>
    %c8_274 = arith.constant 8 : index
    %c0_275 = arith.constant 0 : index
    %c0_276 = arith.constant 0 : index
    %418 = vector.load %arg1[%c8_274, %c0_275, %c0_276] : memref<9x96x32xf32, #tpu.memory_space<vmem>>, vector<1x96x32xf32>
    %419 = vector.shape_cast %418 : vector<1x96x32xf32> to vector<96x32xf32>
    %cst_277 = arith.constant dense<0.000000e+00> : vector<96x64xf32>
    %420 = tpu.matmul %419, %417, %cst_277 {dimension_numbers = #tpu.dot_dimension_numbers<[1], [0], [0], [1], [0, 0, 1, 1], [], []>} : vector<96x32xf32>, vector<32x64xf32>, vector<96x64xf32> -> vector<96x64xf32>
    %cst_278 = arith.constant 0.000000e+00 : f32
    %421 = vector.broadcast %cst_278 : f32 to vector<32x64xf32>
    %422 = vector.extract_strided_slice %420 {offsets = [0, 0], sizes = [32, 64], strides = [1, 1]} : vector<96x64xf32> to vector<32x64xf32>
    %c24 = arith.constant 24 : index
    %c0_279 = arith.constant 0 : index
    %c0_280 = arith.constant 0 : index
    %423 = vector.load %arg2[%c24, %c0_279, %c0_280] : memref<27x64x64xf32, #tpu.memory_space<vmem>>, vector<1x64x64xf32>
    %424 = vector.shape_cast %423 : vector<1x64x64xf32> to vector<64x64xf32>
    %cst_281 = arith.constant dense<0.000000e+00> : vector<32x64xf32>
    %425 = tpu.matmul %422, %424, %cst_281 {dimension_numbers = #tpu.dot_dimension_numbers<[1], [0], [0], [1], [0, 0, 1, 1], [], []>} : vector<32x64xf32>, vector<64x64xf32>, vector<32x64xf32> -> vector<32x64xf32>
    %426 = arith.addf %421, %425 : vector<32x64xf32>
    %427 = vector.extract_strided_slice %420 {offsets = [32, 0], sizes = [32, 64], strides = [1, 1]} : vector<96x64xf32> to vector<32x64xf32>
    %c25 = arith.constant 25 : index
    %c0_282 = arith.constant 0 : index
    %c0_283 = arith.constant 0 : index
    %428 = vector.load %arg2[%c25, %c0_282, %c0_283] : memref<27x64x64xf32, #tpu.memory_space<vmem>>, vector<1x64x64xf32>
    %429 = vector.shape_cast %428 : vector<1x64x64xf32> to vector<64x64xf32>
    %cst_284 = arith.constant dense<0.000000e+00> : vector<32x64xf32>
    %430 = tpu.matmul %427, %429, %cst_284 {dimension_numbers = #tpu.dot_dimension_numbers<[1], [0], [0], [1], [0, 0, 1, 1], [], []>} : vector<32x64xf32>, vector<64x64xf32>, vector<32x64xf32> -> vector<32x64xf32>
    %431 = arith.addf %426, %430 : vector<32x64xf32>
    %432 = vector.extract_strided_slice %420 {offsets = [64, 0], sizes = [32, 64], strides = [1, 1]} : vector<96x64xf32> to vector<32x64xf32>
    %c26 = arith.constant 26 : index
    %c0_285 = arith.constant 0 : index
    %c0_286 = arith.constant 0 : index
    %433 = vector.load %arg2[%c26, %c0_285, %c0_286] : memref<27x64x64xf32, #tpu.memory_space<vmem>>, vector<1x64x64xf32>
    %434 = vector.shape_cast %433 : vector<1x64x64xf32> to vector<64x64xf32>
    %cst_287 = arith.constant dense<0.000000e+00> : vector<32x64xf32>
    %435 = tpu.matmul %432, %434, %cst_287 {dimension_numbers = #tpu.dot_dimension_numbers<[1], [0], [0], [1], [0, 0, 1, 1], [], []>} : vector<32x64xf32>, vector<64x64xf32>, vector<32x64xf32> -> vector<32x64xf32>
    %436 = arith.addf %431, %435 : vector<32x64xf32>
    %c8_288 = arith.constant 8 : index
    %c0_289 = arith.constant 0 : index
    %c0_290 = arith.constant 0 : index
    %437 = vector.load %arg3[%c8_288, %c0_289, %c0_290] : memref<9x64x64xf32, #tpu.memory_space<vmem>>, vector<1x64x64xf32>
    %438 = vector.shape_cast %437 : vector<1x64x64xf32> to vector<64x64xf32>
    %cst_291 = arith.constant dense<0.000000e+00> : vector<32x64xf32>
    %439 = tpu.matmul %436, %438, %cst_291 {dimension_numbers = #tpu.dot_dimension_numbers<[1], [0], [0], [1], [0, 0, 1, 1], [], []>} : vector<32x64xf32>, vector<64x64xf32>, vector<32x64xf32> -> vector<32x64xf32>
    %cst_292 = arith.constant dense<0.000000e+00> : vector<64xf32>
    %440 = vector.multi_reduction <add>, %439, %cst_292 [0] : vector<32x64xf32> to vector<64xf32>
    %441 = vector.shape_cast %440 : vector<64xf32> to vector<1x64xf32>
    %442 = arith.mulf %436, %436 : vector<32x64xf32>
    %cst_293 = arith.constant dense<0.000000e+00> : vector<32x64xf32>
    %443 = tpu.matmul %442, %438, %cst_293 {dimension_numbers = #tpu.dot_dimension_numbers<[1], [0], [0], [1], [0, 0, 1, 1], [], []>} : vector<32x64xf32>, vector<64x64xf32>, vector<32x64xf32> -> vector<32x64xf32>
    %cst_294 = arith.constant dense<0.000000e+00> : vector<64xf32>
    %444 = vector.multi_reduction <add>, %443, %cst_294 [0] : vector<32x64xf32> to vector<64xf32>
    %445 = vector.shape_cast %444 : vector<64xf32> to vector<1x64xf32>
    %446 = arith.mulf %441, %441 : vector<1x64xf32>
    %447 = arith.subf %445, %446 : vector<1x64xf32>
    %cst_295 = arith.constant 0.000000e+00 : f32
    %448 = vector.broadcast %cst_295 : f32 to vector<1x64xf32>
    %449 = arith.maximumf %447, %448 : vector<1x64xf32>
    %c8_296 = arith.constant 8 : index
    %c0_297 = arith.constant 0 : index
    %c0_298 = arith.constant 0 : index
    %450 = vector.load %arg4[%c8_296, %c0_297, %c0_298] : memref<9x1x64xf32, #tpu.memory_space<vmem>>, vector<1x1x64xf32>
    %451 = vector.shape_cast %450 : vector<1x1x64xf32> to vector<1x64xf32>
    %cst_299 = arith.constant 9.99999974E-6 : f32
    %452 = vector.broadcast %cst_299 : f32 to vector<1x64xf32>
    %453 = arith.addf %449, %452 : vector<1x64xf32>
    %454 = math.rsqrt %453 : vector<1x64xf32>
    %455 = arith.mulf %451, %454 : vector<1x64xf32>
    %c8_300 = arith.constant 8 : index
    %c0_301 = arith.constant 0 : index
    %c0_302 = arith.constant 0 : index
    %456 = vector.load %arg5[%c8_300, %c0_301, %c0_302] : memref<9x1x64xf32, #tpu.memory_space<vmem>>, vector<1x1x64xf32>
    %457 = vector.shape_cast %456 : vector<1x1x64xf32> to vector<1x64xf32>
    %458 = arith.mulf %441, %455 : vector<1x64xf32>
    %459 = arith.subf %457, %458 : vector<1x64xf32>
    %460 = vector.broadcast %455 : vector<1x64xf32> to vector<32x64xf32>
    %461 = arith.mulf %436, %460 : vector<32x64xf32>
    %462 = vector.broadcast %459 : vector<1x64xf32> to vector<32x64xf32>
    %463 = arith.addf %461, %462 : vector<32x64xf32>
    %cst_303 = arith.constant 0.000000e+00 : f32
    %464 = vector.broadcast %cst_303 : f32 to vector<32x64xf32>
    %465 = arith.maximumf %463, %464 : vector<32x64xf32>
    %cst_304 = arith.constant 0.000000e+00 : f32
    %466 = vector.broadcast %cst_304 : f32 to vector<128x16xf32>
    %c0_305 = arith.constant 0 : index
    %c0_306 = arith.constant 0 : index
    %c0_307 = arith.constant 0 : index
    %467 = vector.load %arg8[%c0_305, %c0_306, %c0_307] : memref<4x128x32xf32, #tpu.memory_space<vmem>>, vector<1x128x32xf32>
    %468 = vector.shape_cast %467 : vector<1x128x32xf32> to vector<128x32xf32>
    %c0_308 = arith.constant 0 : index
    %c0_309 = arith.constant 0 : index
    %c0_310 = arith.constant 0 : index
    %469 = vector.load %arg9[%c0_308, %c0_309, %c0_310] : memref<4x64x16xf32, #tpu.memory_space<vmem>>, vector<1x64x16xf32>
    %470 = vector.shape_cast %469 : vector<1x64x16xf32> to vector<64x16xf32>
    %cst_311 = arith.constant dense<0.000000e+00> : vector<32x16xf32>
    %471 = tpu.matmul %465, %470, %cst_311 {dimension_numbers = #tpu.dot_dimension_numbers<[1], [0], [0], [1], [0, 0, 1, 1], [], []>} : vector<32x64xf32>, vector<64x16xf32>, vector<32x16xf32> -> vector<32x16xf32>
    %cst_312 = arith.constant dense<0.000000e+00> : vector<128x16xf32>
    %472 = tpu.matmul %468, %471, %cst_312 {dimension_numbers = #tpu.dot_dimension_numbers<[1], [0], [0], [1], [0, 0, 1, 1], [], []>} : vector<128x32xf32>, vector<32x16xf32>, vector<128x16xf32> -> vector<128x16xf32>
    %473 = arith.addf %466, %472 : vector<128x16xf32>
    %c1_313 = arith.constant 1 : index
    %c0_314 = arith.constant 0 : index
    %c0_315 = arith.constant 0 : index
    %474 = vector.load %arg8[%c1_313, %c0_314, %c0_315] : memref<4x128x32xf32, #tpu.memory_space<vmem>>, vector<1x128x32xf32>
    %475 = vector.shape_cast %474 : vector<1x128x32xf32> to vector<128x32xf32>
    %c1_316 = arith.constant 1 : index
    %c0_317 = arith.constant 0 : index
    %c0_318 = arith.constant 0 : index
    %476 = vector.load %arg9[%c1_316, %c0_317, %c0_318] : memref<4x64x16xf32, #tpu.memory_space<vmem>>, vector<1x64x16xf32>
    %477 = vector.shape_cast %476 : vector<1x64x16xf32> to vector<64x16xf32>
    %cst_319 = arith.constant dense<0.000000e+00> : vector<32x16xf32>
    %478 = tpu.matmul %465, %477, %cst_319 {dimension_numbers = #tpu.dot_dimension_numbers<[1], [0], [0], [1], [0, 0, 1, 1], [], []>} : vector<32x64xf32>, vector<64x16xf32>, vector<32x16xf32> -> vector<32x16xf32>
    %cst_320 = arith.constant dense<0.000000e+00> : vector<128x16xf32>
    %479 = tpu.matmul %475, %478, %cst_320 {dimension_numbers = #tpu.dot_dimension_numbers<[1], [0], [0], [1], [0, 0, 1, 1], [], []>} : vector<128x32xf32>, vector<32x16xf32>, vector<128x16xf32> -> vector<128x16xf32>
    %480 = arith.addf %473, %479 : vector<128x16xf32>
    %c2_321 = arith.constant 2 : index
    %c0_322 = arith.constant 0 : index
    %c0_323 = arith.constant 0 : index
    %481 = vector.load %arg8[%c2_321, %c0_322, %c0_323] : memref<4x128x32xf32, #tpu.memory_space<vmem>>, vector<1x128x32xf32>
    %482 = vector.shape_cast %481 : vector<1x128x32xf32> to vector<128x32xf32>
    %c2_324 = arith.constant 2 : index
    %c0_325 = arith.constant 0 : index
    %c0_326 = arith.constant 0 : index
    %483 = vector.load %arg9[%c2_324, %c0_325, %c0_326] : memref<4x64x16xf32, #tpu.memory_space<vmem>>, vector<1x64x16xf32>
    %484 = vector.shape_cast %483 : vector<1x64x16xf32> to vector<64x16xf32>
    %cst_327 = arith.constant dense<0.000000e+00> : vector<32x16xf32>
    %485 = tpu.matmul %465, %484, %cst_327 {dimension_numbers = #tpu.dot_dimension_numbers<[1], [0], [0], [1], [0, 0, 1, 1], [], []>} : vector<32x64xf32>, vector<64x16xf32>, vector<32x16xf32> -> vector<32x16xf32>
    %cst_328 = arith.constant dense<0.000000e+00> : vector<128x16xf32>
    %486 = tpu.matmul %482, %485, %cst_328 {dimension_numbers = #tpu.dot_dimension_numbers<[1], [0], [0], [1], [0, 0, 1, 1], [], []>} : vector<128x32xf32>, vector<32x16xf32>, vector<128x16xf32> -> vector<128x16xf32>
    %487 = arith.addf %480, %486 : vector<128x16xf32>
    %c3_329 = arith.constant 3 : index
    %c0_330 = arith.constant 0 : index
    %c0_331 = arith.constant 0 : index
    %488 = vector.load %arg8[%c3_329, %c0_330, %c0_331] : memref<4x128x32xf32, #tpu.memory_space<vmem>>, vector<1x128x32xf32>
    %489 = vector.shape_cast %488 : vector<1x128x32xf32> to vector<128x32xf32>
    %c3_332 = arith.constant 3 : index
    %c0_333 = arith.constant 0 : index
    %c0_334 = arith.constant 0 : index
    %490 = vector.load %arg9[%c3_332, %c0_333, %c0_334] : memref<4x64x16xf32, #tpu.memory_space<vmem>>, vector<1x64x16xf32>
    %491 = vector.shape_cast %490 : vector<1x64x16xf32> to vector<64x16xf32>
    %cst_335 = arith.constant dense<0.000000e+00> : vector<32x16xf32>
    %492 = tpu.matmul %465, %491, %cst_335 {dimension_numbers = #tpu.dot_dimension_numbers<[1], [0], [0], [1], [0, 0, 1, 1], [], []>} : vector<32x64xf32>, vector<64x16xf32>, vector<32x16xf32> -> vector<32x16xf32>
    %cst_336 = arith.constant dense<0.000000e+00> : vector<128x16xf32>
    %493 = tpu.matmul %489, %492, %cst_336 {dimension_numbers = #tpu.dot_dimension_numbers<[1], [0], [0], [1], [0, 0, 1, 1], [], []>} : vector<128x32xf32>, vector<32x16xf32>, vector<128x16xf32> -> vector<128x16xf32>
    %494 = arith.addf %487, %493 : vector<128x16xf32>
    %c0_337 = arith.constant 0 : index
    %c0_338 = arith.constant 0 : index
    %495 = vector.load %arg10[%c0_337, %c0_338] : memref<128x16xf32, #tpu.memory_space<vmem>>, vector<128x16xf32>
    tpu.vector_store %arg10[%c0_337, %c0_338], %494 {strides = array<i32>} : memref<128x16xf32, #tpu.memory_space<vmem>>, vector<128x16xf32>,
    return
  }
}

</mosaic_0001>

<llo_original>
// kernel: forward.1
$region0: #{forward.1}
  #allocation0 [shape = 'u32[]', space=smem, size = 0x4, offset = 0x4, fixed_abs, tag = 'smem constant byte address 0x4 - core index']
  #allocation1 [shape = 'u32[144,128]{1,0:T(1,128)}', space=vmem, size = 0x12000, scoped, tag = 'internal scratch']
  %s0 = inlined_call_operand.vmem [shape: f32[128,16], index: 0, kind: input, shape index: {}]
  %s1 = inlined_call_operand.vmem [shape: f32[9,96,32], index: 1, kind: input, shape index: {}]
  %s2 = inlined_call_operand.vmem [shape: f32[27,64,64], index: 2, kind: input, shape index: {}]
  %s3 = inlined_call_operand.hbm [shape: f32[9,64,64], index: 3, kind: input, shape index: {}]
  %s4 = inlined_call_operand.vmem [shape: f32[9,1,64], index: 4, kind: input, shape index: {}]
  %s5 = inlined_call_operand.vmem [shape: f32[9,1,64], index: 5, kind: input, shape index: {}]
  %s6 = inlined_call_operand.vmem [shape: f32[4,32,128], index: 6, kind: input, shape index: {}]
  %s7 = inlined_call_operand.vmem [shape: f32[4,16,64], index: 7, kind: input, shape index: {}]
  %s8 = inlined_call_operand.vmem [shape: f32[4,128,32], index: 8, kind: input, shape index: {}]
  %s9 = inlined_call_operand.vmem [shape: f32[4,64,16], index: 9, kind: input, shape index: {}]
  %s10 = inlined_call_operand.hbm [shape: f32[128,16], index: 10, kind: output, shape index: {}]
  %s11 = sld [smem:[#allocation0]]
  $region54: #{forward.1} parent=0
    _
  %s13 = ssub.s32 1, %s11
  %s14 = scalar_select 0, %s13, %s11
  $region1: #{forward.1} parent=0
    #allocation2 [shape = 'u8[294912]{0}', space=vmem, size = 0x48000, scoped, tag = 'input window, operand 3, single buffered']
    #allocation3 [shape = 's32[1]{0}', space=sflag, size = 0x4, scoped, tag = 'scoped memory for forward.1']
    #allocation4 [shape = 's32[1]{0}', space=sflag, size = 0x4, scoped, tag = 'scoped memory for forward.1']
    #allocation5 [shape = 'u8[65536]{0}', space=vmem, size = 0x10000, scoped, tag = 'output window, operand 0, single buffered']
    %15 = vsyncpa [#allocation3], 0
    %16 = vsyncpa [#allocation4], 0
    // Predicated region
    $region2: #{forward.1} parent=1 // pred_check
      _
    $region3: #{forward.1} parent=1 // pred_check_branch
      %18 = sbr.rel (0) target = $region5
    $region4: #{forward.1} parent=1 // pred_region
      _
    $region5: #{forward.1} parent=1 // pred_fallthru
      _
    // Predicated region
    $region6: #{forward.1} parent=1 // pred_check
      _
    $region7: #{forward.1} parent=1 // pred_check_branch
      %20 = sbr.rel (0) target = $region9
    $region8: #{forward.1} parent=1 // pred_region
      _
    $region9: #{forward.1} parent=1 // pred_fallthru
      _
    // Predicated region
    $region10: #{forward.1} parent=1 // pred_check
      _
    $region11: #{forward.1} parent=1 // pred_check_branch
      %22 = sbr.rel (0) target = $region13
    $region12: #{forward.1} parent=1 // pred_region
      _
    $region13: #{forward.1} parent=1 // pred_fallthru
      _
    // Predicated region
    $region14: #{forward.1} parent=1 // pred_check
      _
    $region15: #{forward.1} parent=1 // pred_check_branch
      %24 = sbr.rel (0) target = $region17
    $region16: #{forward.1} parent=1 // pred_region
      %s26 = ssub.s32 9216, 9216
      %27 = vsyncadd [#allocation3], %s26
      %s28 = sshll.u32 [#allocation2], 4
      %s29 = int_to_ptr.vmem [resolvable:$true] %s28
      %34 = dma.hbm_to_vmem [thread:$0]  %s3, 9216, %s29, [#allocation3], 128, 128, 8
    $region17: #{forward.1} parent=1 // pred_fallthru
      _
    // Predicated region
    $region18: #{forward.1} parent=1 // pred_check
      _
    $region19: #{forward.1} parent=1 // pred_check_branch
      %36 = sbr.rel (0) target = $region21
    $region20: #{forward.1} parent=1 // pred_region
      _
    $region21: #{forward.1} parent=1 // pred_fallthru
      _
    // Predicated region
    $region22: #{forward.1} parent=1 // pred_check
      _
    $region23: #{forward.1} parent=1 // pred_check_branch
      %38 = sbr.rel (0) target = $region25
    $region24: #{forward.1} parent=1 // pred_region
      _
    $region25: #{forward.1} parent=1 // pred_fallthru
      _
    // Predicated region
    $region26: #{forward.1} parent=1 // pred_check
      _
    $region27: #{forward.1} parent=1 // pred_check_branch
      %40 = sbr.rel (0) target = $region29
    $region28: #{forward.1} parent=1 // pred_region
      _
    $region29: #{forward.1} parent=1 // pred_fallthru
      _
    // Predicated region
    $region30: #{forward.1} parent=1 // pred_check
      _
    $region31: #{forward.1} parent=1 // pred_check_branch
      %42 = sbr.rel (0) target = $region33
    $region32: #{forward.1} parent=1 // pred_region
      _
    $region33: #{forward.1} parent=1 // pred_fallthru
      _
    // Predicated region
    $region34: #{forward.1} parent=1 // pred_check
      _
    $region35: #{forward.1} parent=1 // pred_check_branch
      %44 = sbr.rel (0) target = $region37
    $region36: #{forward.1} parent=1 // pred_region
      _
    $region37: #{forward.1} parent=1 // pred_fallthru
      _
    // Predicated region
    $region38: #{forward.1} parent=1 // pred_check
      _
    $region39: #{forward.1} parent=1 // pred_check_branch
      %46 = sbr.rel (0) target = $region41
    $region40: #{forward.1} parent=1 // pred_region
      _
    $region41: #{forward.1} parent=1 // pred_fallthru
      _
    // Predicated region
    $region42: #{forward.1} parent=1 // pred_check
      _
    $region43: #{forward.1} parent=1 // pred_check_branch
      %48 = sbr.rel (0) target = $region45
    $region44: #{forward.1} parent=1 // pred_region
      %49 = dma.done [#allocation3], 9216
    $region45: #{forward.1} parent=1 // pred_fallthru
      _
    %v50 = vld [vmem:[%s0] sm:$0xff]
    %v51 = vld [vmem:[%s0 + $0x8] sm:$0xff]
    %v52 = vld [vmem:[%s0 + $0x10] sm:$0xff]
    %v53 = vld [vmem:[%s0 + $0x18] sm:$0xff]
    %v54 = vld [vmem:[%s0 + $0x20] sm:$0xff]
    %v55 = vld [vmem:[%s0 + $0x28] sm:$0xff]
    %v56 = vld [vmem:[%s0 + $0x30] sm:$0xff]
    %v57 = vld [vmem:[%s0 + $0x38] sm:$0xff]
    %v58 = vld [vmem:[%s0 + $0x40] sm:$0xff]
    %v59 = vld [vmem:[%s0 + $0x48] sm:$0xff]
    %v60 = vld [vmem:[%s0 + $0x50] sm:$0xff]
    %v61 = vld [vmem:[%s0 + $0x58] sm:$0xff]
    %v62 = vld [vmem:[%s0 + $0x60] sm:$0xff]
    %v63 = vld [vmem:[%s0 + $0x68] sm:$0xff]
    %v64 = vld [vmem:[%s0 + $0x70] sm:$0xff]
    %v65 = vld [vmem:[%s0 + $0x78] sm:$0xff]
    %v66 = vld [vmem:[%s6] sm:$0xff]
    %v67 = vld [vmem:[%s6 + $0x8] sm:$0xff]
    %v68 = vld [vmem:[%s6 + $0x10] sm:$0xff]
    %v69 = vld [vmem:[%s6 + $0x18] sm:$0xff]
    %70 = vmatprep.subr.mxu0 0.0
    %71 = vmatpush1.msra.mxu0 %v65
    %72 = vmatprep.subr.mxu0 0.0
    %73 = vmatpush1.msra.mxu0 %v64
    %74 = vmatprep.subr.mxu0 0.0
    %75 = vmatpush1.msra.mxu0 %v63
    %76 = vmatprep.subr.mxu0 0.0
    %77 = vmatpush1.msra.mxu0 %v62
    %78 = vmatprep.subr.mxu0 0.0
    %79 = vmatpush1.msra.mxu0 %v61
    %80 = vmatprep.subr.mxu0 0.0
    %81 = vmatpush1.msra.mxu0 %v60
    %82 = vmatprep.subr.mxu0 0.0
    %83 = vmatpush1.msra.mxu0 %v59
    %84 = vmatprep.subr.mxu0 0.0
    %85 = vmatpush1.msra.mxu0 %v58
    %86 = vmatprep.subr.mxu0 0.0
    %87 = vmatpush1.msra.mxu0 %v57
    %88 = vmatprep.subr.mxu0 0.0
    %89 = vmatpush1.msra.mxu0 %v56
    %90 = vmatprep.subr.mxu0 0.0
    %91 = vmatpush1.msra.mxu0 %v55
    %92 = vmatprep.subr.mxu0 0.0
    %93 = vmatpush1.msra.mxu0 %v54
    %94 = vmatprep.subr.mxu0 0.0
    %95 = vmatpush1.msra.mxu0 %v53
    %96 = vmatprep.subr.mxu0 0.0
    %97 = vmatpush1.msra.mxu0 %v52
    %98 = vmatprep.subr.mxu0 0.0
    %99 = vmatpush1.msra.mxu0 %v51
    %100 = vmatprep.subr.mxu0 0.0
    %101 = vmatpush1.msra.mxu0 %v50
    %102 = vmatprep.subr.mxu0 0.0
    %103 = vmatpush2.msra.mxu0 0.0
    %104 = vmatprep.subr.mxu0 0.0
    %105 = vmatpush2.msra.mxu0 0.0
    %106 = vmatprep.subr.mxu0 0.0
    %107 = vmatpush2.msra.mxu0 0.0
    %108 = vmatprep.subr.mxu0 0.0
    %109 = vmatpush2.msra.mxu0 0.0
    %110 = vmatprep.subr.mxu0 0.0
    %111 = vmatpush2.msra.mxu0 0.0
    %112 = vmatprep.subr.mxu0 0.0
    %113 = vmatpush2.msra.mxu0 0.0
    %114 = vmatprep.subr.mxu0 0.0
    %115 = vmatpush2.msra.mxu0 0.0
    %116 = vmatprep.subr.mxu0 0.0
    %117 = vmatpush2.msra.mxu0 0.0
    %118 = vmatprep.subr.mxu0 0.0
    %119 = vmatpush2.msra.mxu0 0.0
    %120 = vmatprep.subr.mxu0 0.0
    %121 = vmatpush2.msra.mxu0 0.0
    %122 = vmatprep.subr.mxu0 0.0
    %123 = vmatpush2.msra.mxu0 0.0
    %124 = vmatprep.subr.mxu0 0.0
    %125 = vmatpush2.msra.mxu0 0.0
    %126 = vmatprep.subr.mxu0 0.0
    %127 = vmatpush2.msra.mxu0 0.0
    %128 = vmatprep.subr.mxu0 0.0
    %129 = vmatpush2.msra.mxu0 0.0
    %130 = vmatprep.subr.mxu0 0.0
    %131 = vmatpush2.msra.mxu0 0.0
    %132 = vmatprep.subr.mxu0 0.0
    %133 = vmatpush2.msra.mxu0 0.0
    %134 = vmatprep.mubr.f32.mxu0 0.0
    %135 = vmatmul.mubr.f32.gmra.mxu0 %v66
    %v136 = vpop.f32.mrf.mxu0
    %v137 = vadd.f32 0.0, %v136
    %v138 = vpop.f32.mrf.mxu0
    %139 = vmatprep.mubr.f32.mxu0 0.0
    %140 = vmatmul.mubr.f32.gmra.mxu0 %v67
    %v141 = vpop.f32.mrf.mxu0
    %v142 = vadd.f32 0.0, %v141
    %v143 = vpop.f32.mrf.mxu0
    %144 = vmatprep.mubr.f32.mxu0 0.0
    %145 = vmatmul.mubr.f32.gmra.mxu0 %v68
    %v146 = vpop.f32.mrf.mxu0
    %v147 = vadd.f32 0.0, %v146
    %v148 = vpop.f32.mrf.mxu0
    %149 = vmatprep.mubr.f32.mxu0 0.0
    %150 = vmatmul.mubr.f32.gmra.mxu0 %v69
    %v151 = vpop.f32.mrf.mxu0
    %v152 = vadd.f32 0.0, %v151
    %v153 = vpop.f32.mrf.mxu0
    %154 = vdwg.mxu0
    %v155 = vld [vmem:[%s7] sm:$0xff]
    %v156 = vld [vmem:[%s7 + $0x8] sm:$0xff]
    %s157 = scalar_lea.vmem %s6, 32
    %v158 = vld [vmem:[%s157] sm:$0xff]
    %v159 = vld [vmem:[%s157 + $0x8] sm:$0xff]
    %v160 = vld [vmem:[%s157 + $0x10] sm:$0xff]
    %v161 = vld [vmem:[%s157 + $0x18] sm:$0xff]
    %162 = vmatprep.subr.mxu0 0.0
    %163 = vmatpush1.msra.mxu0 %v65
    %164 = vmatprep.subr.mxu0 0.0
    %165 = vmatpush1.msra.mxu0 %v64
    %166 = vmatprep.subr.mxu0 0.0
    %167 = vmatpush1.msra.mxu0 %v63
    %168 = vmatprep.subr.mxu0 0.0
    %169 = vmatpush1.msra.mxu0 %v62
    %170 = vmatprep.subr.mxu0 0.0
    %171 = vmatpush1.msra.mxu0 %v61
    %172 = vmatprep.subr.mxu0 0.0
    %173 = vmatpush1.msra.mxu0 %v60
    %174 = vmatprep.subr.mxu0 0.0
    %175 = vmatpush1.msra.mxu0 %v59
    %176 = vmatprep.subr.mxu0 0.0
    %177 = vmatpush1.msra.mxu0 %v58
    %178 = vmatprep.subr.mxu0 0.0
    %179 = vmatpush1.msra.mxu0 %v57
    %180 = vmatprep.subr.mxu0 0.0
    %181 = vmatpush1.msra.mxu0 %v56
    %182 = vmatprep.subr.mxu0 0.0
    %183 = vmatpush1.msra.mxu0 %v55
    %184 = vmatprep.subr.mxu0 0.0
    %185 = vmatpush1.msra.mxu0 %v54
    %186 = vmatprep.subr.mxu0 0.0
    %187 = vmatpush1.msra.mxu0 %v53
    %188 = vmatprep.subr.mxu0 0.0
    %189 = vmatpush1.msra.mxu0 %v52
    %190 = vmatprep.subr.mxu0 0.0
    %191 = vmatpush1.msra.mxu0 %v51
    %192 = vmatprep.subr.mxu0 0.0
    %193 = vmatpush1.msra.mxu0 %v50
    %194 = vmatprep.subr.mxu0 0.0
    %195 = vmatpush2.msra.mxu0 0.0
    %196 = vmatprep.subr.mxu0 0.0
    %197 = vmatpush2.msra.mxu0 0.0
    %198 = vmatprep.subr.mxu0 0.0
    %199 = vmatpush2.msra.mxu0 0.0
    %200 = vmatprep.subr.mxu0 0.0
    %201 = vmatpush2.msra.mxu0 0.0
    %202 = vmatprep.subr.mxu0 0.0
    %203 = vmatpush2.msra.mxu0 0.0
    %204 = vmatprep.subr.mxu0 0.0
    %205 = vmatpush2.msra.mxu0 0.0
    %206 = vmatprep.subr.mxu0 0.0
    %207 = vmatpush2.msra.mxu0 0.0
    %208 = vmatprep.subr.mxu0 0.0
    %209 = vmatpush2.msra.mxu0 0.0
    %210 = vmatprep.subr.mxu0 0.0
    %211 = vmatpush2.msra.mxu0 0.0
    %212 = vmatprep.subr.mxu0 0.0
    %213 = vmatpush2.msra.mxu0 0.0
    %214 = vmatprep.subr.mxu0 0.0
    %215 = vmatpush2.msra.mxu0 0.0
    %216 = vmatprep.subr.mxu0 0.0
    %217 = vmatpush2.msra.mxu0 0.0
    %218 = vmatprep.subr.mxu0 0.0
    %219 = vmatpush2.msra.mxu0 0.0
    %220 = vmatprep.subr.mxu0 0.0
    %221 = vmatpush2.msra.mxu0 0.0
    %222 = vmatprep.subr.mxu0 0.0
    %223 = vmatpush2.msra.mxu0 0.0
    %224 = vmatprep.subr.mxu0 0.0
    %225 = vmatpush2.msra.mxu0 0.0
    %226 = vmatprep.mubr.f32.mxu0 0.0
    %227 = vmatmul.mubr.f32.gmra.mxu0 %v158
    %v228 = vpop.f32.mrf.mxu0
    %v229 = vadd.f32 0.0, %v228
    %v230 = vpop.f32.mrf.mxu0
    %231 = vmatprep.mubr.f32.mxu0 0.0
    %232 = vmatmul.mubr.f32.gmra.mxu0 %v159
    %v233 = vpop.f32.mrf.mxu0
    %v234 = vadd.f32 0.0, %v233
    %v235 = vpop.f32.mrf.mxu0
    %236 = vmatprep.mubr.f32.mxu0 0.0
    %237 = vmatmul.mubr.f32.gmra.mxu0 %v160
    %v238 = vpop.f32.mrf.mxu0
    %v239 = vadd.f32 0.0, %v238
    %v240 = vpop.f32.mrf.mxu0
    %241 = vmatprep.mubr.f32.mxu0 0.0
    %242 = vmatmul.mubr.f32.gmra.mxu0 %v161
    %v243 = vpop.f32.mrf.mxu0
    %v244 = vadd.f32 0.0, %v243
    %v245 = vpop.f32.mrf.mxu0
    %246 = vdwg.mxu0
    %s247 = scalar_lea.vmem %s7, 16
    %v248 = vld [vmem:[%s247] sm:$0xff]
    %v249 = vld [vmem:[%s247 + $0x8] sm:$0xff]
    %vm250 = vcmask 130048
    %v252 = vsel %vm250, %v229, 0
    %v255 = vsel %vm250, %v234, 0
    %v258 = vsel %vm250, %v239, 0
    %v261 = vsel %vm250, %v244, 0
    %263 = vmatprep.subr.mxu0 0.0
    %264 = vmatpush1.msra.mxu0 0.0
    %265 = vmatprep.subr.mxu0 0.0
    %266 = vmatpush1.msra.mxu0 0.0
    %267 = vmatprep.subr.mxu0 0.0
    %268 = vmatpush1.msra.mxu0 0.0
    %269 = vmatprep.subr.mxu0 0.0
    %270 = vmatpush1.msra.mxu0 0.0
    %271 = vmatprep.subr.mxu0 0.0
    %272 = vmatpush1.msra.mxu0 0.0
    %273 = vmatprep.subr.mxu0 0.0
    %274 = vmatpush1.msra.mxu0 0.0
    %275 = vmatprep.subr.mxu0 0.0
    %276 = vmatpush1.msra.mxu0 0.0
    %277 = vmatprep.subr.mxu0 0.0
    %278 = vmatpush1.msra.mxu0 0.0
    %279 = vmatprep.subr.mxu0 0.0
    %280 = vmatpush1.msra.mxu0 0.0
    %281 = vmatprep.subr.mxu0 0.0
    %282 = vmatpush1.msra.mxu0 0.0
    %283 = vmatprep.subr.mxu0 0.0
    %284 = vmatpush1.msra.mxu0 0.0
    %285 = vmatprep.subr.mxu0 0.0
    %286 = vmatpush1.msra.mxu0 0.0
    %287 = vmatprep.subr.mxu0 0.0
    %288 = vmatpush1.msra.mxu0 0.0
    %289 = vmatprep.subr.mxu0 0.0
    %290 = vmatpush1.msra.mxu0 0.0
    %291 = vmatprep.subr.mxu0 0.0
    %292 = vmatpush1.msra.mxu0 %v249
    %293 = vmatprep.subr.mxu0 0.0
    %294 = vmatpush1.msra.mxu0 %v248
    %295 = vmatprep.subr.mxu0 0.0
    %296 = vmatpush2.msra.mxu0 0.0
    %297 = vmatprep.subr.mxu0 0.0
    %298 = vmatpush2.msra.mxu0 0.0
    %299 = vmatprep.subr.mxu0 0.0
    %300 = vmatpush2.msra.mxu0 0.0
    %301 = vmatprep.subr.mxu0 0.0
    %302 = vmatpush2.msra.mxu0 0.0
    %303 = vmatprep.subr.mxu0 0.0
    %304 = vmatpush2.msra.mxu0 0.0
    %305 = vmatprep.subr.mxu0 0.0
    %306 = vmatpush2.msra.mxu0 0.0
    %307 = vmatprep.subr.mxu0 0.0
    %308 = vmatpush2.msra.mxu0 0.0
    %309 = vmatprep.subr.mxu0 0.0
    %310 = vmatpush2.msra.mxu0 0.0
    %311 = vmatprep.subr.mxu0 0.0
    %312 = vmatpush2.msra.mxu0 0.0
    %313 = vmatprep.subr.mxu0 0.0
    %314 = vmatpush2.msra.mxu0 0.0
    %315 = vmatprep.subr.mxu0 0.0
    %316 = vmatpush2.msra.mxu0 0.0
    %317 = vmatprep.subr.mxu0 0.0
    %318 = vmatpush2.msra.mxu0 0.0
    %319 = vmatprep.subr.mxu0 0.0
    %320 = vmatpush2.msra.mxu0 0.0
    %321 = vmatprep.subr.mxu0 0.0
    %322 = vmatpush2.msra.mxu0 0.0
    %323 = vmatprep.subr.mxu0 0.0
    %324 = vmatpush2.msra.mxu0 0.0
    %325 = vmatprep.subr.mxu0 0.0
    %326 = vmatpush2.msra.mxu0 0.0
    %327 = vmatprep.mubr.f32.mxu0 0.0
    %328 = vmatmul.mubr.f32.gmra.mxu0 %v252
    %v329 = vpop.f32.mrf.mxu0
    %v330 = vadd.f32 0.0, %v329
    %v331 = vpop.f32.mrf.mxu0
    %332 = vmatprep.mubr.f32.mxu0 0.0
    %333 = vmatmul.mubr.f32.gmra.mxu0 %v255
    %v334 = vpop.f32.mrf.mxu0
    %v335 = vadd.f32 0.0, %v334
    %v336 = vpop.f32.mrf.mxu0
    %337 = vmatprep.mubr.f32.mxu0 0.0
    %338 = vmatmul.mubr.f32.gmra.mxu0 %v258
    %v339 = vpop.f32.mrf.mxu0
    %v340 = vadd.f32 0.0, %v339
    %v341 = vpop.f32.mrf.mxu0
    %342 = vmatprep.mubr.f32.mxu0 0.0
    %343 = vmatmul.mubr.f32.gmra.mxu0 %v261
    %v344 = vpop.f32.mrf.mxu0
    %v345 = vadd.f32 0.0, %v344
    %v346 = vpop.f32.mrf.mxu0
    %347 = vdwg.mxu0
    %v349 = vsel %vm250, %v137, 0
    %v352 = vsel %vm250, %v142, 0
    %v355 = vsel %vm250, %v147, 0
    %v358 = vsel %vm250, %v152, 0
    %360 = vmatprep.subr.mxu0 0.0
    %361 = vmatpush1.msra.mxu0 0.0
    %362 = vmatprep.subr.mxu0 0.0
    %363 = vmatpush1.msra.mxu0 0.0
    %364 = vmatprep.subr.mxu0 0.0
    %365 = vmatpush1.msra.mxu0 0.0
    %366 = vmatprep.subr.mxu0 0.0
    %367 = vmatpush1.msra.mxu0 0.0
    %368 = vmatprep.subr.mxu0 0.0
    %369 = vmatpush1.msra.mxu0 0.0
    %370 = vmatprep.subr.mxu0 0.0
    %371 = vmatpush1.msra.mxu0 0.0
    %372 = vmatprep.subr.mxu0 0.0
    %373 = vmatpush1.msra.mxu0 0.0
    %374 = vmatprep.subr.mxu0 0.0
    %375 = vmatpush1.msra.mxu0 0.0
    %376 = vmatprep.subr.mxu0 0.0
    %377 = vmatpush1.msra.mxu0 0.0
    %378 = vmatprep.subr.mxu0 0.0
    %379 = vmatpush1.msra.mxu0 0.0
    %380 = vmatprep.subr.mxu0 0.0
    %381 = vmatpush1.msra.mxu0 0.0
    %382 = vmatprep.subr.mxu0 0.0
    %383 = vmatpush1.msra.mxu0 0.0
    %384 = vmatprep.subr.mxu0 0.0
    %385 = vmatpush1.msra.mxu0 0.0
    %386 = vmatprep.subr.mxu0 0.0
    %387 = vmatpush1.msra.mxu0 0.0
    %388 = vmatprep.subr.mxu0 0.0
    %389 = vmatpush1.msra.mxu0 %v156
    %390 = vmatprep.subr.mxu0 0.0
    %391 = vmatpush1.msra.mxu0 %v155
    %392 = vmatprep.subr.mxu0 0.0
    %393 = vmatpush2.msra.mxu0 0.0
    %394 = vmatprep.subr.mxu0 0.0
    %395 = vmatpush2.msra.mxu0 0.0
    %396 = vmatprep.subr.mxu0 0.0
    %397 = vmatpush2.msra.mxu0 0.0
    %398 = vmatprep.subr.mxu0 0.0
    %399 = vmatpush2.msra.mxu0 0.0
    %400 = vmatprep.subr.mxu0 0.0
    %401 = vmatpush2.msra.mxu0 0.0
    %402 = vmatprep.subr.mxu0 0.0
    %403 = vmatpush2.msra.mxu0 0.0
    %404 = vmatprep.subr.mxu0 0.0
    %405 = vmatpush2.msra.mxu0 0.0
    %406 = vmatprep.subr.mxu0 0.0
    %407 = vmatpush2.msra.mxu0 0.0
    %408 = vmatprep.subr.mxu0 0.0
    %409 = vmatpush2.msra.mxu0 0.0
    %410 = vmatprep.subr.mxu0 0.0
    %411 = vmatpush2.msra.mxu0 0.0
    %412 = vmatprep.subr.mxu0 0.0
    %413 = vmatpush2.msra.mxu0 0.0
    %414 = vmatprep.subr.mxu0 0.0
    %415 = vmatpush2.msra.mxu0 0.0
    %416 = vmatprep.subr.mxu0 0.0
    %417 = vmatpush2.msra.mxu0 0.0
    %418 = vmatprep.subr.mxu0 0.0
    %419 = vmatpush2.msra.mxu0 0.0
    %420 = vmatprep.subr.mxu0 0.0
    %421 = vmatpush2.msra.mxu0 0.0
    %422 = vmatprep.subr.mxu0 0.0
    %423 = vmatpush2.msra.mxu0 0.0
    %424 = vmatprep.mubr.f32.mxu0 0.0
    %425 = vmatmul.mubr.f32.gmra.mxu0 %v349
    %v426 = vpop.f32.mrf.mxu0
    %v427 = vadd.f32 %v330, %v426
    %v428 = vpop.f32.mrf.mxu0
    %429 = vmatprep.mubr.f32.mxu0 0.0
    %430 = vmatmul.mubr.f32.gmra.mxu0 %v352
    %v431 = vpop.f32.mrf.mxu0
    %v432 = vadd.f32 %v335, %v431
    %v433 = vpop.f32.mrf.mxu0
    %434 = vmatprep.mubr.f32.mxu0 0.0
    %435 = vmatmul.mubr.f32.gmra.mxu0 %v355
    %v436 = vpop.f32.mrf.mxu0
    %v437 = vadd.f32 %v340, %v436
    %v438 = vpop.f32.mrf.mxu0
    %439 = vmatprep.mubr.f32.mxu0 0.0
    %440 = vmatmul.mubr.f32.gmra.mxu0 %v358
    %v441 = vpop.f32.mrf.mxu0
    %v442 = vadd.f32 %v345, %v441
    %v443 = vpop.f32.mrf.mxu0
    %444 = vdwg.mxu0
    %s445 = scalar_lea.vmem %s6, 64
    %v446 = vld [vmem:[%s445] sm:$0xff]
    %v447 = vld [vmem:[%s445 + $0x8] sm:$0xff]
    %v448 = vld [vmem:[%s445 + $0x10] sm:$0xff]
    %v449 = vld [vmem:[%s445 + $0x18] sm:$0xff]
    %450 = vmatprep.subr.mxu0 0.0
    %451 = vmatpush1.msra.mxu0 %v65
    %452 = vmatprep.subr.mxu0 0.0
    %453 = vmatpush1.msra.mxu0 %v64
    %454 = vmatprep.subr.mxu0 0.0
    %455 = vmatpush1.msra.mxu0 %v63
    %456 = vmatprep.subr.mxu0 0.0
    %457 = vmatpush1.msra.mxu0 %v62
    %458 = vmatprep.subr.mxu0 0.0
    %459 = vmatpush1.msra.mxu0 %v61
    %460 = vmatprep.subr.mxu0 0.0
    %461 = vmatpush1.msra.mxu0 %v60
    %462 = vmatprep.subr.mxu0 0.0
    %463 = vmatpush1.msra.mxu0 %v59
    %464 = vmatprep.subr.mxu0 0.0
    %465 = vmatpush1.msra.mxu0 %v58
    %466 = vmatprep.subr.mxu0 0.0
    %467 = vmatpush1.msra.mxu0 %v57
    %468 = vmatprep.subr.mxu0 0.0
    %469 = vmatpush1.msra.mxu0 %v56
    %470 = vmatprep.subr.mxu0 0.0
    %471 = vmatpush1.msra.mxu0 %v55
    %472 = vmatprep.subr.mxu0 0.0
    %473 = vmatpush1.msra.mxu0 %v54
    %474 = vmatprep.subr.mxu0 0.0
    %475 = vmatpush1.msra.mxu0 %v53
    %476 = vmatprep.subr.mxu0 0.0
    %477 = vmatpush1.msra.mxu0 %v52
    %478 = vmatprep.subr.mxu0 0.0
    %479 = vmatpush1.msra.mxu0 %v51
    %480 = vmatprep.subr.mxu0 0.0
    %481 = vmatpush1.msra.mxu0 %v50
    %482 = vmatprep.subr.mxu0 0.0
    %483 = vmatpush2.msra.mxu0 0.0
    %484 = vmatprep.subr.mxu0 0.0
    %485 = vmatpush2.msra.mxu0 0.0
    %486 = vmatprep.subr.mxu0 0.0
    %487 = vmatpush2.msra.mxu0 0.0
    %488 = vmatprep.subr.mxu0 0.0
    %489 = vmatpush2.msra.mxu0 0.0
    %490 = vmatprep.subr.mxu0 0.0
    %491 = vmatpush2.msra.mxu0 0.0
    %492 = vmatprep.subr.mxu0 0.0
    %493 = vmatpush2.msra.mxu0 0.0
    %494 = vmatprep.subr.mxu0 0.0
    %495 = vmatpush2.msra.mxu0 0.0
    %496 = vmatprep.subr.mxu0 0.0
    %497 = vmatpush2.msra.mxu0 0.0
    %498 = vmatprep.subr.mxu0 0.0
    %499 = vmatpush2.msra.mxu0 0.0
    %500 = vmatprep.subr.mxu0 0.0
    %501 = vmatpush2.msra.mxu0 0.0
    %502 = vmatprep.subr.mxu0 0.0
    %503 = vmatpush2.msra.mxu0 0.0
    %504 = vmatprep.subr.mxu0 0.0
    %505 = vmatpush2.msra.mxu0 0.0
    %506 = vmatprep.subr.mxu0 0.0
    %507 = vmatpush2.msra.mxu0 0.0
    %508 = vmatprep.subr.mxu0 0.0
    %509 = vmatpush2.msra.mxu0 0.0
    %510 = vmatprep.subr.mxu0 0.0
    %511 = vmatpush2.msra.mxu0 0.0
    %512 = vmatprep.subr.mxu0 0.0
    %513 = vmatpush2.msra.mxu0 0.0
    %514 = vmatprep.mubr.f32.mxu0 0.0
    %515 = vmatmul.mubr.f32.gmra.mxu0 %v446
    %v516 = vpop.f32.mrf.mxu0
    %v517 = vadd.f32 0.0, %v516
    %v518 = vpop.f32.mrf.mxu0
    %519 = vmatprep.mubr.f32.mxu0 0.0
    %520 = vmatmul.mubr.f32.gmra.mxu0 %v447
    %v521 = vpop.f32.mrf.mxu0
    %v522 = vadd.f32 0.0, %v521
    %v523 = vpop.f32.mrf.mxu0
    %524 = vmatprep.mubr.f32.mxu0 0.0
    %525 = vmatmul.mubr.f32.gmra.mxu0 %v448
    %v526 = vpop.f32.mrf.mxu0
    %v527 = vadd.f32 0.0, %v526
    %v528 = vpop.f32.mrf.mxu0
    %529 = vmatprep.mubr.f32.mxu0 0.0
    %530 = vmatmul.mubr.f32.gmra.mxu0 %v449
    %v531 = vpop.f32.mrf.mxu0
    %v532 = vadd.f32 0.0, %v531
    %v533 = vpop.f32.mrf.mxu0
    %534 = vdwg.mxu0
    %s535 = scalar_lea.vmem %s7, 32
    %v536 = vld [vmem:[%s535] sm:$0xff]
    %v537 = vld [vmem:[%s535 + $0x8] sm:$0xff]
    %v539 = vsel %vm250, %v517, 0
    %v542 = vsel %vm250, %v522, 0
    %v545 = vsel %vm250, %v527, 0
    %v548 = vsel %vm250, %v532, 0
    %550 = vmatprep.subr.mxu0 0.0
    %551 = vmatpush1.msra.mxu0 0.0
    %552 = vmatprep.subr.mxu0 0.0
    %553 = vmatpush1.msra.mxu0 0.0
    %554 = vmatprep.subr.mxu0 0.0
    %555 = vmatpush1.msra.mxu0 0.0
    %556 = vmatprep.subr.mxu0 0.0
    %557 = vmatpush1.msra.mxu0 0.0
    %558 = vmatprep.subr.mxu0 0.0
    %559 = vmatpush1.msra.mxu0 0.0
    %560 = vmatprep.subr.mxu0 0.0
    %561 = vmatpush1.msra.mxu0 0.0
    %562 = vmatprep.subr.mxu0 0.0
    %563 = vmatpush1.msra.mxu0 0.0
    %564 = vmatprep.subr.mxu0 0.0
    %565 = vmatpush1.msra.mxu0 0.0
    %566 = vmatprep.subr.mxu0 0.0
    %567 = vmatpush1.msra.mxu0 0.0
    %568 = vmatprep.subr.mxu0 0.0
    %569 = vmatpush1.msra.mxu0 0.0
    %570 = vmatprep.subr.mxu0 0.0
    %571 = vmatpush1.msra.mxu0 0.0
    %572 = vmatprep.subr.mxu0 0.0
    %573 = vmatpush1.msra.mxu0 0.0
    %574 = vmatprep.subr.mxu0 0.0
    %575 = vmatpush1.msra.mxu0 0.0
    %576 = vmatprep.subr.mxu0 0.0
    %577 = vmatpush1.msra.mxu0 0.0
    %578 = vmatprep.subr.mxu0 0.0
    %579 = vmatpush1.msra.mxu0 %v537
    %580 = vmatprep.subr.mxu0 0.0
    %581 = vmatpush1.msra.mxu0 %v536
    %582 = vmatprep.subr.mxu0 0.0
    %583 = vmatpush2.msra.mxu0 0.0
    %584 = vmatprep.subr.mxu0 0.0
    %585 = vmatpush2.msra.mxu0 0.0
    %586 = vmatprep.subr.mxu0 0.0
    %587 = vmatpush2.msra.mxu0 0.0
    %588 = vmatprep.subr.mxu0 0.0
    %589 = vmatpush2.msra.mxu0 0.0
    %590 = vmatprep.subr.mxu0 0.0
    %591 = vmatpush2.msra.mxu0 0.0
    %592 = vmatprep.subr.mxu0 0.0
    %593 = vmatpush2.msra.mxu0 0.0
    %594 = vmatprep.subr.mxu0 0.0
    %595 = vmatpush2.msra.mxu0 0.0
    %596 = vmatprep.subr.mxu0 0.0
    %597 = vmatpush2.msra.mxu0 0.0
    %598 = vmatprep.subr.mxu0 0.0
    %599 = vmatpush2.msra.mxu0 0.0
    %600 = vmatprep.subr.mxu0 0.0
    %601 = vmatpush2.msra.mxu0 0.0
    %602 = vmatprep.subr.mxu0 0.0
    %603 = vmatpush2.msra.mxu0 0.0
    %604 = vmatprep.subr.mxu0 0.0
    %605 = vmatpush2.msra.mxu0 0.0
    %606 = vmatprep.subr.mxu0 0.0
    %607 = vmatpush2.msra.mxu0 0.0
    %608 = vmatprep.subr.mxu0 0.0
    %609 = vmatpush2.msra.mxu0 0.0
    %610 = vmatprep.subr.mxu0 0.0
    %611 = vmatpush2.msra.mxu0 0.0
    %612 = vmatprep.subr.mxu0 0.0
    %613 = vmatpush2.msra.mxu0 0.0
    %614 = vmatprep.mubr.f32.mxu0 0.0
    %615 = vmatmul.mubr.f32.gmra.mxu0 %v539
    %v616 = vpop.f32.mrf.mxu0
    %v617 = vadd.f32 0.0, %v616
    %v618 = vpop.f32.mrf.mxu0
    %619 = vmatprep.mubr.f32.mxu0 0.0
    %620 = vmatmul.mubr.f32.gmra.mxu0 %v542
    %v621 = vpop.f32.mrf.mxu0
    %v622 = vadd.f32 0.0, %v621
    %v623 = vpop.f32.mrf.mxu0
    %624 = vmatprep.mubr.f32.mxu0 0.0
    %625 = vmatmul.mubr.f32.gmra.mxu0 %v545
    %v626 = vpop.f32.mrf.mxu0
    %v627 = vadd.f32 0.0, %v626
    %v628 = vpop.f32.mrf.mxu0
    %629 = vmatprep.mubr.f32.mxu0 0.0
    %630 = vmatmul.mubr.f32.gmra.mxu0 %v548
    %v631 = vpop.f32.mrf.mxu0
    %v632 = vadd.f32 0.0, %v631
    %v633 = vpop.f32.mrf.mxu0
    %634 = vdwg.mxu0
    %v635 = vadd.f32 %v427, %v617
    %v636 = vadd.f32 %v432, %v622
    %v637 = vadd.f32 %v437, %v627
    %v638 = vadd.f32 %v442, %v632
    %s639 = scalar_lea.vmem %s6, 96
    %v640 = vld [vmem:[%s639] sm:$0xff]
    %v641 = vld [vmem:[%s639 + $0x8] sm:$0xff]
    %v642 = vld [vmem:[%s639 + $0x10] sm:$0xff]
    %v643 = vld [vmem:[%s639 + $0x18] sm:$0xff]
    %644 = vmatprep.subr.mxu0 0.0
    %645 = vmatpush1.msra.mxu0 %v65
    %646 = vmatprep.subr.mxu0 0.0
    %647 = vmatpush1.msra.mxu0 %v64
    %648 = vmatprep.subr.mxu0 0.0
    %649 = vmatpush1.msra.mxu0 %v63
    %650 = vmatprep.subr.mxu0 0.0
    %651 = vmatpush1.msra.mxu0 %v62
    %652 = vmatprep.subr.mxu0 0.0
    %653 = vmatpush1.msra.mxu0 %v61
    %654 = vmatprep.subr.mxu0 0.0
    %655 = vmatpush1.msra.mxu0 %v60
    %656 = vmatprep.subr.mxu0 0.0
    %657 = vmatpush1.msra.mxu0 %v59
    %658 = vmatprep.subr.mxu0 0.0
    %659 = vmatpush1.msra.mxu0 %v58
    %660 = vmatprep.subr.mxu0 0.0
    %661 = vmatpush1.msra.mxu0 %v57
    %662 = vmatprep.subr.mxu0 0.0
    %663 = vmatpush1.msra.mxu0 %v56
    %664 = vmatprep.subr.mxu0 0.0
    %665 = vmatpush1.msra.mxu0 %v55
    %666 = vmatprep.subr.mxu0 0.0
    %667 = vmatpush1.msra.mxu0 %v54
    %668 = vmatprep.subr.mxu0 0.0
    %669 = vmatpush1.msra.mxu0 %v53
    %670 = vmatprep.subr.mxu0 0.0
    %671 = vmatpush1.msra.mxu0 %v52
    %672 = vmatprep.subr.mxu0 0.0
    %673 = vmatpush1.msra.mxu0 %v51
    %674 = vmatprep.subr.mxu0 0.0
    %675 = vmatpush1.msra.mxu0 %v50
    %676 = vmatprep.subr.mxu0 0.0
    %677 = vmatpush2.msra.mxu0 0.0
    %678 = vmatprep.subr.mxu0 0.0
    %679 = vmatpush2.msra.mxu0 0.0
    %680 = vmatprep.subr.mxu0 0.0
    %681 = vmatpush2.msra.mxu0 0.0
    %682 = vmatprep.subr.mxu0 0.0
    %683 = vmatpush2.msra.mxu0 0.0
    %684 = vmatprep.subr.mxu0 0.0
    %685 = vmatpush2.msra.mxu0 0.0
    %686 = vmatprep.subr.mxu0 0.0
    %687 = vmatpush2.msra.mxu0 0.0
    %688 = vmatprep.subr.mxu0 0.0
    %689 = vmatpush2.msra.mxu0 0.0
    %690 = vmatprep.subr.mxu0 0.0
    %691 = vmatpush2.msra.mxu0 0.0
    %692 = vmatprep.subr.mxu0 0.0
    %693 = vmatpush2.msra.mxu0 0.0
    %694 = vmatprep.subr.mxu0 0.0
    %695 = vmatpush2.msra.mxu0 0.0
    %696 = vmatprep.subr.mxu0 0.0
    %697 = vmatpush2.msra.mxu0 0.0
    %698 = vmatprep.subr.mxu0 0.0
    %699 = vmatpush2.msra.mxu0 0.0
    %700 = vmatprep.subr.mxu0 0.0
    %701 = vmatpush2.msra.mxu0 0.0
    %702 = vmatprep.subr.mxu0 0.0
    %703 = vmatpush2.msra.mxu0 0.0
    %704 = vmatprep.subr.mxu0 0.0
    %705 = vmatpush2.msra.mxu0 0.0
    %706 = vmatprep.subr.mxu0 0.0
    %707 = vmatpush2.msra.mxu0 0.0
    %708 = vmatprep.mubr.f32.mxu0 0.0
    %709 = vmatmul.mubr.f32.gmra.mxu0 %v640
    %v710 = vpop.f32.mrf.mxu0
    %v711 = vadd.f32 0.0, %v710
    %v712 = vpop.f32.mrf.mxu0
    %713 = vmatprep.mubr.f32.mxu0 0.0
    %714 = vmatmul.mubr.f32.gmra.mxu0 %v641
    %v715 = vpop.f32.mrf.mxu0
    %v716 = vadd.f32 0.0, %v715
    %v717 = vpop.f32.mrf.mxu0
    %718 = vmatprep.mubr.f32.mxu0 0.0
    %719 = vmatmul.mubr.f32.gmra.mxu0 %v642
    %v720 = vpop.f32.mrf.mxu0
    %v721 = vadd.f32 0.0, %v720
    %v722 = vpop.f32.mrf.mxu0
    %723 = vmatprep.mubr.f32.mxu0 0.0
    %724 = vmatmul.mubr.f32.gmra.mxu0 %v643
    %v725 = vpop.f32.mrf.mxu0
    %v726 = vadd.f32 0.0, %v725
    %v727 = vpop.f32.mrf.mxu0
    %728 = vdwg.mxu0
    %s729 = scalar_lea.vmem %s7, 48
    %v730 = vld [vmem:[%s729] sm:$0xff]
    %v731 = vld [vmem:[%s729 + $0x8] sm:$0xff]
    %v733 = vsel %vm250, %v711, 0
    %v736 = vsel %vm250, %v716, 0
    %v739 = vsel %vm250, %v721, 0
    %v742 = vsel %vm250, %v726, 0
    %744 = vmatprep.subr.mxu0 0.0
    %745 = vmatpush1.msra.mxu0 0.0
    %746 = vmatprep.subr.mxu0 0.0
    %747 = vmatpush1.msra.mxu0 0.0
    %748 = vmatprep.subr.mxu0 0.0
    %749 = vmatpush1.msra.mxu0 0.0
    %750 = vmatprep.subr.mxu0 0.0
    %751 = vmatpush1.msra.mxu0 0.0
    %752 = vmatprep.subr.mxu0 0.0
    %753 = vmatpush1.msra.mxu0 0.0
    %754 = vmatprep.subr.mxu0 0.0
    %755 = vmatpush1.msra.mxu0 0.0
    %756 = vmatprep.subr.mxu0 0.0
    %757 = vmatpush1.msra.mxu0 0.0
    %758 = vmatprep.subr.mxu0 0.0
    %759 = vmatpush1.msra.mxu0 0.0
    %760 = vmatprep.subr.mxu0 0.0
    %761 = vmatpush1.msra.mxu0 0.0
    %762 = vmatprep.subr.mxu0 0.0
    %763 = vmatpush1.msra.mxu0 0.0
    %764 = vmatprep.subr.mxu0 0.0
    %765 = vmatpush1.msra.mxu0 0.0
    %766 = vmatprep.subr.mxu0 0.0
    %767 = vmatpush1.msra.mxu0 0.0
    %768 = vmatprep.subr.mxu0 0.0
    %769 = vmatpush1.msra.mxu0 0.0
    %770 = vmatprep.subr.mxu0 0.0
    %771 = vmatpush1.msra.mxu0 0.0
    %772 = vmatprep.subr.mxu0 0.0
    %773 = vmatpush1.msra.mxu0 %v731
    %774 = vmatprep.subr.mxu0 0.0
    %775 = vmatpush1.msra.mxu0 %v730
    %776 = vmatprep.subr.mxu0 0.0
    %777 = vmatpush2.msra.mxu0 0.0
    %778 = vmatprep.subr.mxu0 0.0
    %779 = vmatpush2.msra.mxu0 0.0
    %780 = vmatprep.subr.mxu0 0.0
    %781 = vmatpush2.msra.mxu0 0.0
    %782 = vmatprep.subr.mxu0 0.0
    %783 = vmatpush2.msra.mxu0 0.0
    %784 = vmatprep.subr.mxu0 0.0
    %785 = vmatpush2.msra.mxu0 0.0
    %786 = vmatprep.subr.mxu0 0.0
    %787 = vmatpush2.msra.mxu0 0.0
    %788 = vmatprep.subr.mxu0 0.0
    %789 = vmatpush2.msra.mxu0 0.0
    %790 = vmatprep.subr.mxu0 0.0
    %791 = vmatpush2.msra.mxu0 0.0
    %792 = vmatprep.subr.mxu0 0.0
    %793 = vmatpush2.msra.mxu0 0.0
    %794 = vmatprep.subr.mxu0 0.0
    %795 = vmatpush2.msra.mxu0 0.0
    %796 = vmatprep.subr.mxu0 0.0
    %797 = vmatpush2.msra.mxu0 0.0
    %798 = vmatprep.subr.mxu0 0.0
    %799 = vmatpush2.msra.mxu0 0.0
    %800 = vmatprep.subr.mxu0 0.0
    %801 = vmatpush2.msra.mxu0 0.0
    %802 = vmatprep.subr.mxu0 0.0
    %803 = vmatpush2.msra.mxu0 0.0
    %804 = vmatprep.subr.mxu0 0.0
    %805 = vmatpush2.msra.mxu0 0.0
    %806 = vmatprep.subr.mxu0 0.0
    %807 = vmatpush2.msra.mxu0 0.0
    %808 = vmatprep.mubr.f32.mxu0 0.0
    %809 = vmatmul.mubr.f32.gmra.mxu0 %v733
    %v810 = vpop.f32.mrf.mxu0
    %v811 = vadd.f32 0.0, %v810
    %v812 = vpop.f32.mrf.mxu0
    %813 = vmatprep.mubr.f32.mxu0 0.0
    %814 = vmatmul.mubr.f32.gmra.mxu0 %v736
    %v815 = vpop.f32.mrf.mxu0
    %v816 = vadd.f32 0.0, %v815
    %v817 = vpop.f32.mrf.mxu0
    %818 = vmatprep.mubr.f32.mxu0 0.0
    %819 = vmatmul.mubr.f32.gmra.mxu0 %v739
    %v820 = vpop.f32.mrf.mxu0
    %v821 = vadd.f32 0.0, %v820
    %v822 = vpop.f32.mrf.mxu0
    %823 = vmatprep.mubr.f32.mxu0 0.0
    %824 = vmatmul.mubr.f32.gmra.mxu0 %v742
    %v825 = vpop.f32.mrf.mxu0
    %v826 = vadd.f32 0.0, %v825
    %v827 = vpop.f32.mrf.mxu0
    %828 = vdwg.mxu0
    %v829 = vadd.f32 %v635, %v811
    %v830 = vadd.f32 %v636, %v816
    %v831 = vadd.f32 %v637, %v821
    %v832 = vadd.f32 %v638, %v826
    %v833 = vld [vmem:[%s1] sm:$0xff]
    %v834 = vld [vmem:[%s1 + $0x8] sm:$0xff]
    %v835 = vld [vmem:[%s1 + $0x10] sm:$0xff]
    %v836 = vld [vmem:[%s1 + $0x18] sm:$0xff]
    %v837 = vld [vmem:[%s1 + $0x20] sm:$0xff]
    %v838 = vld [vmem:[%s1 + $0x28] sm:$0xff]
    %v839 = vld [vmem:[%s1 + $0x30] sm:$0xff]
    %v840 = vld [vmem:[%s1 + $0x38] sm:$0xff]
    %v841 = vld [vmem:[%s1 + $0x40] sm:$0xff]
    %v842 = vld [vmem:[%s1 + $0x48] sm:$0xff]
    %v843 = vld [vmem:[%s1 + $0x50] sm:$0xff]
    %v844 = vld [vmem:[%s1 + $0x58] sm:$0xff]
    %vm845 = vcmask 261120
    %v847 = vsel %vm845, %v833, 0
    %v850 = vsel %vm845, %v834, 0
    %v853 = vsel %vm845, %v835, 0
    %v856 = vsel %vm845, %v836, 0
    %v859 = vsel %vm845, %v837, 0
    %v862 = vsel %vm845, %v838, 0
    %v865 = vsel %vm845, %v839, 0
    %v868 = vsel %vm845, %v840, 0
    %v871 = vsel %vm845, %v841, 0
    %v874 = vsel %vm845, %v842, 0
    %v877 = vsel %vm845, %v843, 0
    %v880 = vsel %vm845, %v844, 0
    %882 = vmatprep.subr.mxu0 0.0
    %883 = vmatpush1.msra.mxu0 0.0
    %884 = vmatprep.subr.mxu0 0.0
    %885 = vmatpush1.msra.mxu0 0.0
    %886 = vmatprep.subr.mxu0 0.0
    %887 = vmatpush1.msra.mxu0 0.0
    %888 = vmatprep.subr.mxu0 0.0
    %889 = vmatpush1.msra.mxu0 0.0
    %890 = vmatprep.subr.mxu0 0.0
    %891 = vmatpush1.msra.mxu0 0.0
    %892 = vmatprep.subr.mxu0 0.0
    %893 = vmatpush1.msra.mxu0 0.0
    %894 = vmatprep.subr.mxu0 0.0
    %895 = vmatpush1.msra.mxu0 0.0
    %896 = vmatprep.subr.mxu0 0.0
    %897 = vmatpush1.msra.mxu0 0.0
    %898 = vmatprep.subr.mxu0 0.0
    %899 = vmatpush1.msra.mxu0 0.0
    %900 = vmatprep.subr.mxu0 0.0
    %901 = vmatpush1.msra.mxu0 0.0
    %902 = vmatprep.subr.mxu0 0.0
    %903 = vmatpush1.msra.mxu0 0.0
    %904 = vmatprep.subr.mxu0 0.0
    %905 = vmatpush1.msra.mxu0 0.0
    %906 = vmatprep.subr.mxu0 0.0
    %907 = vmatpush1.msra.mxu0 %v832
    %908 = vmatprep.subr.mxu0 0.0
    %909 = vmatpush1.msra.mxu0 %v831
    %910 = vmatprep.subr.mxu0 0.0
    %911 = vmatpush1.msra.mxu0 %v830
    %912 = vmatprep.subr.mxu0 0.0
    %913 = vmatpush1.msra.mxu0 %v829
    %914 = vmatprep.subr.mxu0 0.0
    %915 = vmatpush2.msra.mxu0 0.0
    %916 = vmatprep.subr.mxu0 0.0
    %917 = vmatpush2.msra.mxu0 0.0
    %918 = vmatprep.subr.mxu0 0.0
    %919 = vmatpush2.msra.mxu0 0.0
    %920 = vmatprep.subr.mxu0 0.0
    %921 = vmatpush2.msra.mxu0 0.0
    %922 = vmatprep.subr.mxu0 0.0
    %923 = vmatpush2.msra.mxu0 0.0
    %924 = vmatprep.subr.mxu0 0.0
    %925 = vmatpush2.msra.mxu0 0.0
    %926 = vmatprep.subr.mxu0 0.0
    %927 = vmatpush2.msra.mxu0 0.0
    %928 = vmatprep.subr.mxu0 0.0
    %929 = vmatpush2.msra.mxu0 0.0
    %930 = vmatprep.subr.mxu0 0.0
    %931 = vmatpush2.msra.mxu0 0.0
    %932 = vmatprep.subr.mxu0 0.0
    %933 = vmatpush2.msra.mxu0 0.0
    %934 = vmatprep.subr.mxu0 0.0
    %935 = vmatpush2.msra.mxu0 0.0
    %936 = vmatprep.subr.mxu0 0.0
    %937 = vmatpush2.msra.mxu0 0.0
    %938 = vmatprep.subr.mxu0 0.0
    %939 = vmatpush2.msra.mxu0 0.0
    %940 = vmatprep.subr.mxu0 0.0
    %941 = vmatpush2.msra.mxu0 0.0
    %942 = vmatprep.subr.mxu0 0.0
    %943 = vmatpush2.msra.mxu0 0.0
    %944 = vmatprep.subr.mxu0 0.0
    %945 = vmatpush2.msra.mxu0 0.0
    %946 = vmatprep.mubr.f32.mxu0 0.0
    %947 = vmatmul.mubr.f32.gmra.mxu0 %v847
    %v948 = vpop.f32.mrf.mxu0
    %v949 = vadd.f32 0.0, %v948
    %v950 = vpop.f32.mrf.mxu0
    %951 = vmatprep.mubr.f32.mxu0 0.0
    %952 = vmatmul.mubr.f32.gmra.mxu0 %v850
    %v953 = vpop.f32.mrf.mxu0
    %v954 = vadd.f32 0.0, %v953
    %v955 = vpop.f32.mrf.mxu0
    %956 = vmatprep.mubr.f32.mxu0 0.0
    %957 = vmatmul.mubr.f32.gmra.mxu0 %v853
    %v958 = vpop.f32.mrf.mxu0
    %v959 = vadd.f32 0.0, %v958
    %v960 = vpop.f32.mrf.mxu0
    %961 = vmatprep.mubr.f32.mxu0 0.0
    %962 = vmatmul.mubr.f32.gmra.mxu0 %v856
    %v963 = vpop.f32.mrf.mxu0
    %v964 = vadd.f32 0.0, %v963
    %v965 = vpop.f32.mrf.mxu0
    %966 = vmatprep.mubr.f32.mxu0 0.0
    %967 = vmatmul.mubr.f32.gmra.mxu0 %v859
    %v968 = vpop.f32.mrf.mxu0
    %v969 = vadd.f32 0.0, %v968
    %v970 = vpop.f32.mrf.mxu0
    %971 = vmatprep.mubr.f32.mxu0 0.0
    %972 = vmatmul.mubr.f32.gmra.mxu0 %v862
    %v973 = vpop.f32.mrf.mxu0
    %v974 = vadd.f32 0.0, %v973
    %v975 = vpop.f32.mrf.mxu0
    %976 = vmatprep.mubr.f32.mxu0 0.0
    %977 = vmatmul.mubr.f32.gmra.mxu0 %v865
    %v978 = vpop.f32.mrf.mxu0
    %v979 = vadd.f32 0.0, %v978
    %v980 = vpop.f32.mrf.mxu0
    %981 = vmatprep.mubr.f32.mxu0 0.0
    %982 = vmatmul.mubr.f32.gmra.mxu0 %v868
    %v983 = vpop.f32.mrf.mxu0
    %v984 = vadd.f32 0.0, %v983
    %v985 = vpop.f32.mrf.mxu0
    %986 = vmatprep.mubr.f32.mxu0 0.0
    %987 = vmatmul.mubr.f32.gmra.mxu0 %v871
    %v988 = vpop.f32.mrf.mxu0
    %v989 = vadd.f32 0.0, %v988
    %v990 = vpop.f32.mrf.mxu0
    %991 = vmatprep.mubr.f32.mxu0 0.0
    %992 = vmatmul.mubr.f32.gmra.mxu0 %v874
    %v993 = vpop.f32.mrf.mxu0
    %v994 = vadd.f32 0.0, %v993
    %v995 = vpop.f32.mrf.mxu0
    %996 = vmatprep.mubr.f32.mxu0 0.0
    %997 = vmatmul.mubr.f32.gmra.mxu0 %v877
    %v998 = vpop.f32.mrf.mxu0
    %v999 = vadd.f32 0.0, %v998
    %v1000 = vpop.f32.mrf.mxu0
    %1001 = vmatprep.mubr.f32.mxu0 0.0
    %1002 = vmatmul.mubr.f32.gmra.mxu0 %v880
    %v1003 = vpop.f32.mrf.mxu0
    %v1004 = vadd.f32 0.0, %v1003
    %v1005 = vpop.f32.mrf.mxu0
    %1006 = vdwg.mxu0
    %v1007 = vld [vmem:[%s2] sm:$0xff]
    %v1008 = vld [vmem:[%s2 + $0x8] sm:$0xff]
    %v1009 = vld [vmem:[%s2 + $0x10] sm:$0xff]
    %v1010 = vld [vmem:[%s2 + $0x18] sm:$0xff]
    %v1011 = vld [vmem:[%s2 + $0x20] sm:$0xff]
    %v1012 = vld [vmem:[%s2 + $0x28] sm:$0xff]
    %v1013 = vld [vmem:[%s2 + $0x30] sm:$0xff]
    %v1014 = vld [vmem:[%s2 + $0x38] sm:$0xff]
    %s1015 = scalar_lea.vmem %s2, 64
    %v1016 = vld [vmem:[%s1015] sm:$0xff]
    %v1017 = vld [vmem:[%s1015 + $0x8] sm:$0xff]
    %v1018 = vld [vmem:[%s1015 + $0x10] sm:$0xff]
    %v1019 = vld [vmem:[%s1015 + $0x18] sm:$0xff]
    %v1020 = vld [vmem:[%s1015 + $0x20] sm:$0xff]
    %v1021 = vld [vmem:[%s1015 + $0x28] sm:$0xff]
    %v1022 = vld [vmem:[%s1015 + $0x30] sm:$0xff]
    %v1023 = vld [vmem:[%s1015 + $0x38] sm:$0xff]
    %vm1024 = vcmask 523264
    %v1026 = vsel %vm1024, %v969, 0
    %v1029 = vsel %vm1024, %v974, 0
    %v1032 = vsel %vm1024, %v979, 0
    %v1035 = vsel %vm1024, %v984, 0
    %1037 = vmatprep.subr.mxu0 0.0
    %1038 = vmatpush1.msra.mxu0 0.0
    %1039 = vmatprep.subr.mxu0 0.0
    %1040 = vmatpush1.msra.mxu0 0.0
    %1041 = vmatprep.subr.mxu0 0.0
    %1042 = vmatpush1.msra.mxu0 0.0
    %1043 = vmatprep.subr.mxu0 0.0
    %1044 = vmatpush1.msra.mxu0 0.0
    %1045 = vmatprep.subr.mxu0 0.0
    %1046 = vmatpush1.msra.mxu0 0.0
    %1047 = vmatprep.subr.mxu0 0.0
    %1048 = vmatpush1.msra.mxu0 0.0
    %1049 = vmatprep.subr.mxu0 0.0
    %1050 = vmatpush1.msra.mxu0 0.0
    %1051 = vmatprep.subr.mxu0 0.0
    %1052 = vmatpush1.msra.mxu0 0.0
    %1053 = vmatprep.subr.mxu0 0.0
    %1054 = vmatpush1.msra.mxu0 %v1023
    %1055 = vmatprep.subr.mxu0 0.0
    %1056 = vmatpush1.msra.mxu0 %v1022
    %1057 = vmatprep.subr.mxu0 0.0
    %1058 = vmatpush1.msra.mxu0 %v1021
    %1059 = vmatprep.subr.mxu0 0.0
    %1060 = vmatpush1.msra.mxu0 %v1020
    %1061 = vmatprep.subr.mxu0 0.0
    %1062 = vmatpush1.msra.mxu0 %v1019
    %1063 = vmatprep.subr.mxu0 0.0
    %1064 = vmatpush1.msra.mxu0 %v1018
    %1065 = vmatprep.subr.mxu0 0.0
    %1066 = vmatpush1.msra.mxu0 %v1017
    %1067 = vmatprep.subr.mxu0 0.0
    %1068 = vmatpush1.msra.mxu0 %v1016
    %1069 = vmatprep.subr.mxu0 0.0
    %1070 = vmatpush2.msra.mxu0 0.0
    %1071 = vmatprep.subr.mxu0 0.0
    %1072 = vmatpush2.msra.mxu0 0.0
    %1073 = vmatprep.subr.mxu0 0.0
    %1074 = vmatpush2.msra.mxu0 0.0
    %1075 = vmatprep.subr.mxu0 0.0
    %1076 = vmatpush2.msra.mxu0 0.0
    %1077 = vmatprep.subr.mxu0 0.0
    %1078 = vmatpush2.msra.mxu0 0.0
    %1079 = vmatprep.subr.mxu0 0.0
    %1080 = vmatpush2.msra.mxu0 0.0
    %1081 = vmatprep.subr.mxu0 0.0
    %1082 = vmatpush2.msra.mxu0 0.0
    %1083 = vmatprep.subr.mxu0 0.0
    %1084 = vmatpush2.msra.mxu0 0.0
    %1085 = vmatprep.subr.mxu0 0.0
    %1086 = vmatpush2.msra.mxu0 0.0
    %1087 = vmatprep.subr.mxu0 0.0
    %1088 = vmatpush2.msra.mxu0 0.0
    %1089 = vmatprep.subr.mxu0 0.0
    %1090 = vmatpush2.msra.mxu0 0.0
    %1091 = vmatprep.subr.mxu0 0.0
    %1092 = vmatpush2.msra.mxu0 0.0
    %1093 = vmatprep.subr.mxu0 0.0
    %1094 = vmatpush2.msra.mxu0 0.0
    %1095 = vmatprep.subr.mxu0 0.0
    %1096 = vmatpush2.msra.mxu0 0.0
    %1097 = vmatprep.subr.mxu0 0.0
    %1098 = vmatpush2.msra.mxu0 0.0
    %1099 = vmatprep.subr.mxu0 0.0
    %1100 = vmatpush2.msra.mxu0 0.0
    %1101 = vmatprep.mubr.f32.mxu0 0.0
    %1102 = vmatmul.mubr.f32.gmra.mxu0 %v1026
    %v1103 = vpop.f32.mrf.mxu0
    %v1104 = vadd.f32 0.0, %v1103
    %v1105 = vpop.f32.mrf.mxu0
    %1106 = vmatprep.mubr.f32.mxu0 0.0
    %1107 = vmatmul.mubr.f32.gmra.mxu0 %v1029
    %v1108 = vpop.f32.mrf.mxu0
    %v1109 = vadd.f32 0.0, %v1108
    %v1110 = vpop.f32.mrf.mxu0
    %1111 = vmatprep.mubr.f32.mxu0 0.0
    %1112 = vmatmul.mubr.f32.gmra.mxu0 %v1032
    %v1113 = vpop.f32.mrf.mxu0
    %v1114 = vadd.f32 0.0, %v1113
    %v1115 = vpop.f32.mrf.mxu0
    %1116 = vmatprep.mubr.f32.mxu0 0.0
    %1117 = vmatmul.mubr.f32.gmra.mxu0 %v1035
    %v1118 = vpop.f32.mrf.mxu0
    %v1119 = vadd.f32 0.0, %v1118
    %v1120 = vpop.f32.mrf.mxu0
    %1121 = vdwg.mxu0
    %v1123 = vsel %vm1024, %v949, 0
    %v1126 = vsel %vm1024, %v954, 0
    %v1129 = vsel %vm1024, %v959, 0
    %v1132 = vsel %vm1024, %v964, 0
    %1134 = vmatprep.subr.mxu0 0.0
    %1135 = vmatpush1.msra.mxu0 0.0
    %1136 = vmatprep.subr.mxu0 0.0
    %1137 = vmatpush1.msra.mxu0 0.0
    %1138 = vmatprep.subr.mxu0 0.0
    %1139 = vmatpush1.msra.mxu0 0.0
    %1140 = vmatprep.subr.mxu0 0.0
    %1141 = vmatpush1.msra.mxu0 0.0
    %1142 = vmatprep.subr.mxu0 0.0
    %1143 = vmatpush1.msra.mxu0 0.0
    %1144 = vmatprep.subr.mxu0 0.0
    %1145 = vmatpush1.msra.mxu0 0.0
    %1146 = vmatprep.subr.mxu0 0.0
    %1147 = vmatpush1.msra.mxu0 0.0
    %1148 = vmatprep.subr.mxu0 0.0
    %1149 = vmatpush1.msra.mxu0 0.0
    %1150 = vmatprep.subr.mxu0 0.0
    %1151 = vmatpush1.msra.mxu0 %v1014
    %1152 = vmatprep.subr.mxu0 0.0
    %1153 = vmatpush1.msra.mxu0 %v1013
    %1154 = vmatprep.subr.mxu0 0.0
    %1155 = vmatpush1.msra.mxu0 %v1012
    %1156 = vmatprep.subr.mxu0 0.0
    %1157 = vmatpush1.msra.mxu0 %v1011
    %1158 = vmatprep.subr.mxu0 0.0
    %1159 = vmatpush1.msra.mxu0 %v1010
    %1160 = vmatprep.subr.mxu0 0.0
    %1161 = vmatpush1.msra.mxu0 %v1009
    %1162 = vmatprep.subr.mxu0 0.0
    %1163 = vmatpush1.msra.mxu0 %v1008
    %1164 = vmatprep.subr.mxu0 0.0
    %1165 = vmatpush1.msra.mxu0 %v1007
    %1166 = vmatprep.subr.mxu0 0.0
    %1167 = vmatpush2.msra.mxu0 0.0
    %1168 = vmatprep.subr.mxu0 0.0
    %1169 = vmatpush2.msra.mxu0 0.0
    %1170 = vmatprep.subr.mxu0 0.0
    %1171 = vmatpush2.msra.mxu0 0.0
    %1172 = vmatprep.subr.mxu0 0.0
    %1173 = vmatpush2.msra.mxu0 0.0
    %1174 = vmatprep.subr.mxu0 0.0
    %1175 = vmatpush2.msra.mxu0 0.0
    %1176 = vmatprep.subr.mxu0 0.0
    %1177 = vmatpush2.msra.mxu0 0.0
    %1178 = vmatprep.subr.mxu0 0.0
    %1179 = vmatpush2.msra.mxu0 0.0
    %1180 = vmatprep.subr.mxu0 0.0
    %1181 = vmatpush2.msra.mxu0 0.0
    %1182 = vmatprep.subr.mxu0 0.0
    %1183 = vmatpush2.msra.mxu0 0.0
    %1184 = vmatprep.subr.mxu0 0.0
    %1185 = vmatpush2.msra.mxu0 0.0
    %1186 = vmatprep.subr.mxu0 0.0
    %1187 = vmatpush2.msra.mxu0 0.0
    %1188 = vmatprep.subr.mxu0 0.0
    %1189 = vmatpush2.msra.mxu0 0.0
    %1190 = vmatprep.subr.mxu0 0.0
    %1191 = vmatpush2.msra.mxu0 0.0
    %1192 = vmatprep.subr.mxu0 0.0
    %1193 = vmatpush2.msra.mxu0 0.0
    %1194 = vmatprep.subr.mxu0 0.0
    %1195 = vmatpush2.msra.mxu0 0.0
    %1196 = vmatprep.subr.mxu0 0.0
    %1197 = vmatpush2.msra.mxu0 0.0
    %1198 = vmatprep.mubr.f32.mxu0 0.0
    %1199 = vmatmul.mubr.f32.gmra.mxu0 %v1123
    %v1200 = vpop.f32.mrf.mxu0
    %v1201 = vadd.f32 %v1104, %v1200
    %v1202 = vpop.f32.mrf.mxu0
    %1203 = vmatprep.mubr.f32.mxu0 0.0
    %1204 = vmatmul.mubr.f32.gmra.mxu0 %v1126
    %v1205 = vpop.f32.mrf.mxu0
    %v1206 = vadd.f32 %v1109, %v1205
    %v1207 = vpop.f32.mrf.mxu0
    %1208 = vmatprep.mubr.f32.mxu0 0.0
    %1209 = vmatmul.mubr.f32.gmra.mxu0 %v1129
    %v1210 = vpop.f32.mrf.mxu0
    %v1211 = vadd.f32 %v1114, %v1210
    %v1212 = vpop.f32.mrf.mxu0
    %1213 = vmatprep.mubr.f32.mxu0 0.0
    %1214 = vmatmul.mubr.f32.gmra.mxu0 %v1132
    %v1215 = vpop.f32.mrf.mxu0
    %v1216 = vadd.f32 %v1119, %v1215
    %v1217 = vpop.f32.mrf.mxu0
    %1218 = vdwg.mxu0
    %s1219 = scalar_lea.vmem %s2, 128
    %v1220 = vld [vmem:[%s1219] sm:$0xff]
    %v1221 = vld [vmem:[%s1219 + $0x8] sm:$0xff]
    %v1222 = vld [vmem:[%s1219 + $0x10] sm:$0xff]
    %v1223 = vld [vmem:[%s1219 + $0x18] sm:$0xff]
    %v1224 = vld [vmem:[%s1219 + $0x20] sm:$0xff]
    %v1225 = vld [vmem:[%s1219 + $0x28] sm:$0xff]
    %v1226 = vld [vmem:[%s1219 + $0x30] sm:$0xff]
    %v1227 = vld [vmem:[%s1219 + $0x38] sm:$0xff]
    %v1229 = vsel %vm1024, %v989, 0
    %v1232 = vsel %vm1024, %v994, 0
    %v1235 = vsel %vm1024, %v999, 0
    %v1238 = vsel %vm1024, %v1004, 0
    %1240 = vmatprep.subr.mxu0 0.0
    %1241 = vmatpush1.msra.mxu0 0.0
    %1242 = vmatprep.subr.mxu0 0.0
    %1243 = vmatpush1.msra.mxu0 0.0
    %1244 = vmatprep.subr.mxu0 0.0
    %1245 = vmatpush1.msra.mxu0 0.0
    %1246 = vmatprep.subr.mxu0 0.0
    %1247 = vmatpush1.msra.mxu0 0.0
    %1248 = vmatprep.subr.mxu0 0.0
    %1249 = vmatpush1.msra.mxu0 0.0
    %1250 = vmatprep.subr.mxu0 0.0
    %1251 = vmatpush1.msra.mxu0 0.0
    %1252 = vmatprep.subr.mxu0 0.0
    %1253 = vmatpush1.msra.mxu0 0.0
    %1254 = vmatprep.subr.mxu0 0.0
    %1255 = vmatpush1.msra.mxu0 0.0
    %1256 = vmatprep.subr.mxu0 0.0
    %1257 = vmatpush1.msra.mxu0 %v1227
    %1258 = vmatprep.subr.mxu0 0.0
    %1259 = vmatpush1.msra.mxu0 %v1226
    %1260 = vmatprep.subr.mxu0 0.0
    %1261 = vmatpush1.msra.mxu0 %v1225
    %1262 = vmatprep.subr.mxu0 0.0
    %1263 = vmatpush1.msra.mxu0 %v1224
    %1264 = vmatprep.subr.mxu0 0.0
    %1265 = vmatpush1.msra.mxu0 %v1223
    %1266 = vmatprep.subr.mxu0 0.0
    %1267 = vmatpush1.msra.mxu0 %v1222
    %1268 = vmatprep.subr.mxu0 0.0
    %1269 = vmatpush1.msra.mxu0 %v1221
    %1270 = vmatprep.subr.mxu0 0.0
    %1271 = vmatpush1.msra.mxu0 %v1220
    %1272 = vmatprep.subr.mxu0 0.0
    %1273 = vmatpush2.msra.mxu0 0.0
    %1274 = vmatprep.subr.mxu0 0.0
    %1275 = vmatpush2.msra.mxu0 0.0
    %1276 = vmatprep.subr.mxu0 0.0
    %1277 = vmatpush2.msra.mxu0 0.0
    %1278 = vmatprep.subr.mxu0 0.0
    %1279 = vmatpush2.msra.mxu0 0.0
    %1280 = vmatprep.subr.mxu0 0.0
    %1281 = vmatpush2.msra.mxu0 0.0
    %1282 = vmatprep.subr.mxu0 0.0
    %1283 = vmatpush2.msra.mxu0 0.0
    %1284 = vmatprep.subr.mxu0 0.0
    %1285 = vmatpush2.msra.mxu0 0.0
    %1286 = vmatprep.subr.mxu0 0.0
    %1287 = vmatpush2.msra.mxu0 0.0
    %1288 = vmatprep.subr.mxu0 0.0
    %1289 = vmatpush2.msra.mxu0 0.0
    %1290 = vmatprep.subr.mxu0 0.0
    %1291 = vmatpush2.msra.mxu0 0.0
    %1292 = vmatprep.subr.mxu0 0.0
    %1293 = vmatpush2.msra.mxu0 0.0
    %1294 = vmatprep.subr.mxu0 0.0
    %1295 = vmatpush2.msra.mxu0 0.0
    %1296 = vmatprep.subr.mxu0 0.0
    %1297 = vmatpush2.msra.mxu0 0.0
    %1298 = vmatprep.subr.mxu0 0.0
    %1299 = vmatpush2.msra.mxu0 0.0
    %1300 = vmatprep.subr.mxu0 0.0
    %1301 = vmatpush2.msra.mxu0 0.0
    %1302 = vmatprep.subr.mxu0 0.0
    %1303 = vmatpush2.msra.mxu0 0.0
    %1304 = vmatprep.mubr.f32.mxu0 0.0
    %1305 = vmatmul.mubr.f32.gmra.mxu0 %v1229
    %v1306 = vpop.f32.mrf.mxu0
    %v1307 = vadd.f32 0.0, %v1306
    %v1308 = vpop.f32.mrf.mxu0
    %1309 = vmatprep.mubr.f32.mxu0 0.0
    %1310 = vmatmul.mubr.f32.gmra.mxu0 %v1232
    %v1311 = vpop.f32.mrf.mxu0
    %v1312 = vadd.f32 0.0, %v1311
    %v1313 = vpop.f32.mrf.mxu0
    %1314 = vmatprep.mubr.f32.mxu0 0.0
    %1315 = vmatmul.mubr.f32.gmra.mxu0 %v1235
    %v1316 = vpop.f32.mrf.mxu0
    %v1317 = vadd.f32 0.0, %v1316
    %v1318 = vpop.f32.mrf.mxu0
    %1319 = vmatprep.mubr.f32.mxu0 0.0
    %1320 = vmatmul.mubr.f32.gmra.mxu0 %v1238
    %v1321 = vpop.f32.mrf.mxu0
    %v1322 = vadd.f32 0.0, %v1321
    %v1323 = vpop.f32.mrf.mxu0
    %1324 = vdwg.mxu0
    %v1325 = vadd.f32 %v1201, %v1307
    %v1326 = vadd.f32 %v1206, %v1312
    %v1327 = vadd.f32 %v1211, %v1317
    %v1328 = vadd.f32 %v1216, %v1322
    %v1329 = vld [vmem:[#allocation2] sm:$0xff]
    %v1330 = vld [vmem:[#allocation2 + $0x8] sm:$0xff]
    %v1331 = vld [vmem:[#allocation2 + $0x10] sm:$0xff]
    %v1332 = vld [vmem:[#allocation2 + $0x18] sm:$0xff]
    %v1333 = vld [vmem:[#allocation2 + $0x20] sm:$0xff]
    %v1334 = vld [vmem:[#allocation2 + $0x28] sm:$0xff]
    %v1335 = vld [vmem:[#allocation2 + $0x30] sm:$0xff]
    %v1336 = vld [vmem:[#allocation2 + $0x38] sm:$0xff]
    %v1338 = vsel %vm1024, %v1325, 0
    %v1341 = vsel %vm1024, %v1326, 0
    %v1344 = vsel %vm1024, %v1327, 0
    %v1347 = vsel %vm1024, %v1328, 0
    %1349 = vmatprep.subr.mxu0 0.0
    %1350 = vmatpush1.msra.mxu0 0.0
    %1351 = vmatprep.subr.mxu0 0.0
    %1352 = vmatpush1.msra.mxu0 0.0
    %1353 = vmatprep.subr.mxu0 0.0
    %1354 = vmatpush1.msra.mxu0 0.0
    %1355 = vmatprep.subr.mxu0 0.0
    %1356 = vmatpush1.msra.mxu0 0.0
    %1357 = vmatprep.subr.mxu0 0.0
    %1358 = vmatpush1.msra.mxu0 0.0
    %1359 = vmatprep.subr.mxu0 0.0
    %1360 = vmatpush1.msra.mxu0 0.0
    %1361 = vmatprep.subr.mxu0 0.0
    %1362 = vmatpush1.msra.mxu0 0.0
    %1363 = vmatprep.subr.mxu0 0.0
    %1364 = vmatpush1.msra.mxu0 0.0
    %1365 = vmatprep.subr.mxu0 0.0
    %1366 = vmatpush1.msra.mxu0 %v1336
    %1367 = vmatprep.subr.mxu0 0.0
    %1368 = vmatpush1.msra.mxu0 %v1335
    %1369 = vmatprep.subr.mxu0 0.0
    %1370 = vmatpush1.msra.mxu0 %v1334
    %1371 = vmatprep.subr.mxu0 0.0
    %1372 = vmatpush1.msra.mxu0 %v1333
    %1373 = vmatprep.subr.mxu0 0.0
    %1374 = vmatpush1.msra.mxu0 %v1332
    %1375 = vmatprep.subr.mxu0 0.0
    %1376 = vmatpush1.msra.mxu0 %v1331
    %1377 = vmatprep.subr.mxu0 0.0
    %1378 = vmatpush1.msra.mxu0 %v1330
    %1379 = vmatprep.subr.mxu0 0.0
    %1380 = vmatpush1.msra.mxu0 %v1329
    %1381 = vmatprep.subr.mxu0 0.0
    %1382 = vmatpush2.msra.mxu0 0.0
    %1383 = vmatprep.subr.mxu0 0.0
    %1384 = vmatpush2.msra.mxu0 0.0
    %1385 = vmatprep.subr.mxu0 0.0
    %1386 = vmatpush2.msra.mxu0 0.0
    %1387 = vmatprep.subr.mxu0 0.0
    %1388 = vmatpush2.msra.mxu0 0.0
    %1389 = vmatprep.subr.mxu0 0.0
    %1390 = vmatpush2.msra.mxu0 0.0
    %1391 = vmatprep.subr.mxu0 0.0
    %1392 = vmatpush2.msra.mxu0 0.0
    %1393 = vmatprep.subr.mxu0 0.0
    %1394 = vmatpush2.msra.mxu0 0.0
    %1395 = vmatprep.subr.mxu0 0.0
    %1396 = vmatpush2.msra.mxu0 0.0
    %1397 = vmatprep.subr.mxu0 0.0
    %1398 = vmatpush2.msra.mxu0 0.0
    %1399 = vmatprep.subr.mxu0 0.0
    %1400 = vmatpush2.msra.mxu0 0.0
    %1401 = vmatprep.subr.mxu0 0.0
    %1402 = vmatpush2.msra.mxu0 0.0
    %1403 = vmatprep.subr.mxu0 0.0
    %1404 = vmatpush2.msra.mxu0 0.0
    %1405 = vmatprep.subr.mxu0 0.0
    %1406 = vmatpush2.msra.mxu0 0.0
    %1407 = vmatprep.subr.mxu0 0.0
    %1408 = vmatpush2.msra.mxu0 0.0
    %1409 = vmatprep.subr.mxu0 0.0
    %1410 = vmatpush2.msra.mxu0 0.0
    %1411 = vmatprep.subr.mxu0 0.0
    %1412 = vmatpush2.msra.mxu0 0.0
    %1413 = vmatprep.mubr.f32.mxu0 0.0
    %1414 = vmatmul.mubr.f32.gmra.mxu0 %v1338
    %v1415 = vpop.f32.mrf.mxu0
    %v1416 = vadd.f32 0.0, %v1415
    %v1417 = vpop.f32.mrf.mxu0
    %1418 = vmatprep.mubr.f32.mxu0 0.0
    %1419 = vmatmul.mubr.f32.gmra.mxu0 %v1341
    %v1420 = vpop.f32.mrf.mxu0
    %v1421 = vadd.f32 0.0, %v1420
    %v1422 = vpop.f32.mrf.mxu0
    %1423 = vmatprep.mubr.f32.mxu0 0.0
    %1424 = vmatmul.mubr.f32.gmra.mxu0 %v1344
    %v1425 = vpop.f32.mrf.mxu0
    %v1426 = vadd.f32 0.0, %v1425
    %v1427 = vpop.f32.mrf.mxu0
    %1428 = vmatprep.mubr.f32.mxu0 0.0
    %1429 = vmatmul.mubr.f32.gmra.mxu0 %v1347
    %v1430 = vpop.f32.mrf.mxu0
    %v1431 = vadd.f32 0.0, %v1430
    %v1432 = vpop.f32.mrf.mxu0
    %1433 = vdwg.mxu0
    %v1434 = vsel %vm1024, %v1416, 0.0
    %v1435 = vsel %vm1024, %v1421, 0.0
    %v1436 = vadd.f32 %v1434, %v1435
    %v1437 = vsel %vm1024, %v1426, 0.0
    %v1438 = vadd.f32 %v1436, %v1437
    %v1439 = vsel %vm1024, %v1431, 0.0
    %v1440 = vadd.f32 %v1438, %v1439
    %v1441 = vrot.slane %v1440, 4
    %v1442 = vadd.f32 %v1440, %v1441
    %v1443 = vrot.slane %v1442, 2
    %v1444 = vadd.f32 %v1442, %v1443
    %v1445 = vrot.slane %v1444, 1
    %v1446 = vadd.f32 %v1444, %v1445
    %v1447 = vmul.f32 %v1325, %v1325
    %v1448 = vmul.f32 %v1326, %v1326
    %v1449 = vmul.f32 %v1327, %v1327
    %v1450 = vmul.f32 %v1328, %v1328
    %v1452 = vsel %vm1024, %v1447, 0
    %v1455 = vsel %vm1024, %v1448, 0
    %v1458 = vsel %vm1024, %v1449, 0
    %v1461 = vsel %vm1024, %v1450, 0
    %1463 = vmatprep.subr.mxu0 0.0
    %1464 = vmatpush1.msra.mxu0 0.0
    %1465 = vmatprep.subr.mxu0 0.0
    %1466 = vmatpush1.msra.mxu0 0.0
    %1467 = vmatprep.subr.mxu0 0.0
    %1468 = vmatpush1.msra.mxu0 0.0
    %1469 = vmatprep.subr.mxu0 0.0
    %1470 = vmatpush1.msra.mxu0 0.0
    %1471 = vmatprep.subr.mxu0 0.0
    %1472 = vmatpush1.msra.mxu0 0.0
    %1473 = vmatprep.subr.mxu0 0.0
    %1474 = vmatpush1.msra.mxu0 0.0
    %1475 = vmatprep.subr.mxu0 0.0
    %1476 = vmatpush1.msra.mxu0 0.0
    %1477 = vmatprep.subr.mxu0 0.0
    %1478 = vmatpush1.msra.mxu0 0.0
    %1479 = vmatprep.subr.mxu0 0.0
    %1480 = vmatpush1.msra.mxu0 %v1336
    %1481 = vmatprep.subr.mxu0 0.0
    %1482 = vmatpush1.msra.mxu0 %v1335
    %1483 = vmatprep.subr.mxu0 0.0
    %1484 = vmatpush1.msra.mxu0 %v1334
    %1485 = vmatprep.subr.mxu0 0.0
    %1486 = vmatpush1.msra.mxu0 %v1333
    %1487 = vmatprep.subr.mxu0 0.0
    %1488 = vmatpush1.msra.mxu0 %v1332
    %1489 = vmatprep.subr.mxu0 0.0
    %1490 = vmatpush1.msra.mxu0 %v1331
    %1491 = vmatprep.subr.mxu0 0.0
    %1492 = vmatpush1.msra.mxu0 %v1330
    %1493 = vmatprep.subr.mxu0 0.0
    %1494 = vmatpush1.msra.mxu0 %v1329
    %1495 = vmatprep.subr.mxu0 0.0
    %1496 = vmatpush2.msra.mxu0 0.0
    %1497 = vmatprep.subr.mxu0 0.0
    %1498 = vmatpush2.msra.mxu0 0.0
    %1499 = vmatprep.subr.mxu0 0.0
    %1500 = vmatpush2.msra.mxu0 0.0
    %1501 = vmatprep.subr.mxu0 0.0
    %1502 = vmatpush2.msra.mxu0 0.0
    %1503 = vmatprep.subr.mxu0 0.0
    %1504 = vmatpush2.msra.mxu0 0.0
    %1505 = vmatprep.subr.mxu0 0.0
    %1506 = vmatpush2.msra.mxu0 0.0
    %1507 = vmatprep.subr.mxu0 0.0
    %1508 = vmatpush2.msra.mxu0 0.0
    %1509 = vmatprep.subr.mxu0 0.0
    %1510 = vmatpush2.msra.mxu0 0.0
    %1511 = vmatprep.subr.mxu0 0.0
    %1512 = vmatpush2.msra.mxu0 0.0
    %1513 = vmatprep.subr.mxu0 0.0
    %1514 = vmatpush2.msra.mxu0 0.0
    %1515 = vmatprep.subr.mxu0 0.0
    %1516 = vmatpush2.msra.mxu0 0.0
    %1517 = vmatprep.subr.mxu0 0.0
    %1518 = vmatpush2.msra.mxu0 0.0
    %1519 = vmatprep.subr.mxu0 0.0
    %1520 = vmatpush2.msra.mxu0 0.0
    %1521 = vmatprep.subr.mxu0 0.0
    %1522 = vmatpush2.msra.mxu0 0.0
    %1523 = vmatprep.subr.mxu0 0.0
    %1524 = vmatpush2.msra.mxu0 0.0
    %1525 = vmatprep.subr.mxu0 0.0
    %1526 = vmatpush2.msra.mxu0 0.0
    %1527 = vmatprep.mubr.f32.mxu0 0.0
    %1528 = vmatmul.mubr.f32.gmra.mxu0 %v1452
    %v1529 = vpop.f32.mrf.mxu0
    %v1530 = vadd.f32 0.0, %v1529
    %v1531 = vpop.f32.mrf.mxu0
    %1532 = vmatprep.mubr.f32.mxu0 0.0
    %1533 = vmatmul.mubr.f32.gmra.mxu0 %v1455
    %v1534 = vpop.f32.mrf.mxu0
    %v1535 = vadd.f32 0.0, %v1534
    %v1536 = vpop.f32.mrf.mxu0
    %1537 = vmatprep.mubr.f32.mxu0 0.0
    %1538 = vmatmul.mubr.f32.gmra.mxu0 %v1458
    %v1539 = vpop.f32.mrf.mxu0
    %v1540 = vadd.f32 0.0, %v1539
    %v1541 = vpop.f32.mrf.mxu0
    %1542 = vmatprep.mubr.f32.mxu0 0.0
    %1543 = vmatmul.mubr.f32.gmra.mxu0 %v1461
    %v1544 = vpop.f32.mrf.mxu0
    %v1545 = vadd.f32 0.0, %v1544
    %v1546 = vpop.f32.mrf.mxu0
    %1547 = vdwg.mxu0
    %v1548 = vsel %vm1024, %v1530, 0.0
    %v1549 = vsel %vm1024, %v1535, 0.0
    %v1550 = vadd.f32 %v1548, %v1549
    %v1551 = vsel %vm1024, %v1540, 0.0
    %v1552 = vadd.f32 %v1550, %v1551
    %v1553 = vsel %vm1024, %v1545, 0.0
    %v1554 = vadd.f32 %v1552, %v1553
    %v1555 = vrot.slane %v1554, 4
    %v1556 = vadd.f32 %v1554, %v1555
    %v1557 = vrot.slane %v1556, 2
    %v1558 = vadd.f32 %v1556, %v1557
    %v1559 = vrot.slane %v1558, 1
    %v1560 = vadd.f32 %v1558, %v1559
    %v1561 = vmul.f32 %v1446, %v1446
    %v1562 = vsub.f32 %v1560, %v1561
    %v1563 = vmax.f32 %v1562, 0.0
    %v1564 = vld [vmem:[%s4] sm:$0x1]
    %v1565 = vadd.f32 %v1563, 1e-05
    %v1566 = vrsqrt.pop %v1565
    %v1567 = vmul.f32 %v1564, %v1566
    %v1568 = vld [vmem:[%s5] sm:$0x1]
    %v1569 = vmul.f32 %v1446, %v1567
    %v1570 = vsub.f32 %v1568, %v1569
    %v1572 = vlaneseq
    %v1573 = vshrl.u32 %v1572, 7
    %v1574 = vsub.s32 0, %v1573
    %v1575 = vrot.slane %v1567, %v1574
    %v1577 = vmul.f32 %v1325, %v1575
    %v1578 = vmul.f32 %v1326, %v1575
    %v1579 = vmul.f32 %v1327, %v1575
    %v1580 = vmul.f32 %v1328, %v1575
    %v1582 = vlaneseq
    %v1583 = vshrl.u32 %v1582, 7
    %v1584 = vsub.s32 0, %v1583
    %v1585 = vrot.slane %v1570, %v1584
    %v1587 = vadd.f32 %v1577, %v1585
    %v1588 = vadd.f32 %v1578, %v1585
    %v1589 = vadd.f32 %v1579, %v1585
    %v1590 = vadd.f32 %v1580, %v1585
    %v1591 = vmax.f32 %v1587, 0.0
    %v1592 = vmax.f32 %v1588, 0.0
    %v1593 = vmax.f32 %v1589, 0.0
    %v1594 = vmax.f32 %v1590, 0.0
    %s1595 = scalar_lea.vmem %s1, 96
    %v1596 = vld [vmem:[%s1595] sm:$0xff]
    %v1597 = vld [vmem:[%s1595 + $0x8] sm:$0xff]
    %v1598 = vld [vmem:[%s1595 + $0x10] sm:$0xff]
    %v1599 = vld [vmem:[%s1595 + $0x18] sm:$0xff]
    %v1600 = vld [vmem:[%s1595 + $0x20] sm:$0xff]
    %v1601 = vld [vmem:[%s1595 + $0x28] sm:$0xff]
    %v1602 = vld [vmem:[%s1595 + $0x30] sm:$0xff]
    %v1603 = vld [vmem:[%s1595 + $0x38] sm:$0xff]
    %v1604 = vld [vmem:[%s1595 + $0x40] sm:$0xff]
    %v1605 = vld [vmem:[%s1595 + $0x48] sm:$0xff]
    %v1606 = vld [vmem:[%s1595 + $0x50] sm:$0xff]
    %v1607 = vld [vmem:[%s1595 + $0x58] sm:$0xff]
    %v1609 = vsel %vm845, %v1596, 0
    %v1612 = vsel %vm845, %v1597, 0
    %v1615 = vsel %vm845, %v1598, 0
    %v1618 = vsel %vm845, %v1599, 0
    %v1621 = vsel %vm845, %v1600, 0
    %v1624 = vsel %vm845, %v1601, 0
    %v1627 = vsel %vm845, %v1602, 0
    %v1630 = vsel %vm845, %v1603, 0
    %v1633 = vsel %vm845, %v1604, 0
    %v1636 = vsel %vm845, %v1605, 0
    %v1639 = vsel %vm845, %v1606, 0
    %v1642 = vsel %vm845, %v1607, 0
    %1644 = vmatprep.subr.mxu0 0.0
    %1645 = vmatpush1.msra.mxu0 0.0
    %1646 = vmatprep.subr.mxu0 0.0
    %1647 = vmatpush1.msra.mxu0 0.0
    %1648 = vmatprep.subr.mxu0 0.0
    %1649 = vmatpush1.msra.mxu0 0.0
    %1650 = vmatprep.subr.mxu0 0.0
    %1651 = vmatpush1.msra.mxu0 0.0
    %1652 = vmatprep.subr.mxu0 0.0
    %1653 = vmatpush1.msra.mxu0 0.0
    %1654 = vmatprep.subr.mxu0 0.0
    %1655 = vmatpush1.msra.mxu0 0.0
    %1656 = vmatprep.subr.mxu0 0.0
    %1657 = vmatpush1.msra.mxu0 0.0
    %1658 = vmatprep.subr.mxu0 0.0
    %1659 = vmatpush1.msra.mxu0 0.0
    %1660 = vmatprep.subr.mxu0 0.0
    %1661 = vmatpush1.msra.mxu0 0.0
    %1662 = vmatprep.subr.mxu0 0.0
    %1663 = vmatpush1.msra.mxu0 0.0
    %1664 = vmatprep.subr.mxu0 0.0
    %1665 = vmatpush1.msra.mxu0 0.0
    %1666 = vmatprep.subr.mxu0 0.0
    %1667 = vmatpush1.msra.mxu0 0.0
    %1668 = vmatprep.subr.mxu0 0.0
    %1669 = vmatpush1.msra.mxu0 %v1594
    %1670 = vmatprep.subr.mxu0 0.0
    %1671 = vmatpush1.msra.mxu0 %v1593
    %1672 = vmatprep.subr.mxu0 0.0
    %1673 = vmatpush1.msra.mxu0 %v1592
    %1674 = vmatprep.subr.mxu0 0.0
    %1675 = vmatpush1.msra.mxu0 %v1591
    %1676 = vmatprep.subr.mxu0 0.0
    %1677 = vmatpush2.msra.mxu0 0.0
    %1678 = vmatprep.subr.mxu0 0.0
    %1679 = vmatpush2.msra.mxu0 0.0
    %1680 = vmatprep.subr.mxu0 0.0
    %1681 = vmatpush2.msra.mxu0 0.0
    %1682 = vmatprep.subr.mxu0 0.0
    %1683 = vmatpush2.msra.mxu0 0.0
    %1684 = vmatprep.subr.mxu0 0.0
    %1685 = vmatpush2.msra.mxu0 0.0
    %1686 = vmatprep.subr.mxu0 0.0
    %1687 = vmatpush2.msra.mxu0 0.0
    %1688 = vmatprep.subr.mxu0 0.0
    %1689 = vmatpush2.msra.mxu0 0.0
    %1690 = vmatprep.subr.mxu0 0.0
    %1691 = vmatpush2.msra.mxu0 0.0
    %1692 = vmatprep.subr.mxu0 0.0
    %1693 = vmatpush2.msra.mxu0 0.0
    %1694 = vmatprep.subr.mxu0 0.0
    %1695 = vmatpush2.msra.mxu0 0.0
    %1696 = vmatprep.subr.mxu0 0.0
    %1697 = vmatpush2.msra.mxu0 0.0
    %1698 = vmatprep.subr.mxu0 0.0
    %1699 = vmatpush2.msra.mxu0 0.0
    %1700 = vmatprep.subr.mxu0 0.0
    %1701 = vmatpush2.msra.mxu0 0.0
    %1702 = vmatprep.subr.mxu0 0.0
    %1703 = vmatpush2.msra.mxu0 0.0
    %1704 = vmatprep.subr.mxu0 0.0
    %1705 = vmatpush2.msra.mxu0 0.0
    %1706 = vmatprep.subr.mxu0 0.0
    %1707 = vmatpush2.msra.mxu0 0.0
    %1708 = vmatprep.mubr.f32.mxu0 0.0
    %1709 = vmatmul.mubr.f32.gmra.mxu0 %v1609
    %v1710 = vpop.f32.mrf.mxu0
    %v1711 = vadd.f32 0.0, %v1710
    %v1712 = vpop.f32.mrf.mxu0
    %1713 = vmatprep.mubr.f32.mxu0 0.0
    %1714 = vmatmul.mubr.f32.gmra.mxu0 %v1612
    %v1715 = vpop.f32.mrf.mxu0
    %v1716 = vadd.f32 0.0, %v1715
    %v1717 = vpop.f32.mrf.mxu0
    %1718 = vmatprep.mubr.f32.mxu0 0.0
    %1719 = vmatmul.mubr.f32.gmra.mxu0 %v1615
    %v1720 = vpop.f32.mrf.mxu0
    %v1721 = vadd.f32 0.0, %v1720
    %v1722 = vpop.f32.mrf.mxu0
    %1723 = vmatprep.mubr.f32.mxu0 0.0
    %1724 = vmatmul.mubr.f32.gmra.mxu0 %v1618
    %v1725 = vpop.f32.mrf.mxu0
    %v1726 = vadd.f32 0.0, %v1725
    %v1727 = vpop.f32.mrf.mxu0
    %1728 = vmatprep.mubr.f32.mxu0 0.0
    %1729 = vmatmul.mubr.f32.gmra.mxu0 %v1621
    %v1730 = vpop.f32.mrf.mxu0
    %v1731 = vadd.f32 0.0, %v1730
    %v1732 = vpop.f32.mrf.mxu0
    %1733 = vmatprep.mubr.f32.mxu0 0.0
    %1734 = vmatmul.mubr.f32.gmra.mxu0 %v1624
    %v1735 = vpop.f32.mrf.mxu0
    %v1736 = vadd.f32 0.0, %v1735
    %v1737 = vpop.f32.mrf.mxu0
    %1738 = vmatprep.mubr.f32.mxu0 0.0
    %1739 = vmatmul.mubr.f32.gmra.mxu0 %v1627
    %v1740 = vpop.f32.mrf.mxu0
    %v1741 = vadd.f32 0.0, %v1740
    %v1742 = vpop.f32.mrf.mxu0
    %1743 = vmatprep.mubr.f32.mxu0 0.0
    %1744 = vmatmul.mubr.f32.gmra.mxu0 %v1630
    %v1745 = vpop.f32.mrf.mxu0
    %v1746 = vadd.f32 0.0, %v1745
    %v1747 = vpop.f32.mrf.mxu0
    %1748 = vmatprep.mubr.f32.mxu0 0.0
    %1749 = vmatmul.mubr.f32.gmra.mxu0 %v1633
    %v1750 = vpop.f32.mrf.mxu0
    %v1751 = vadd.f32 0.0, %v1750
    %v1752 = vpop.f32.mrf.mxu0
    %1753 = vmatprep.mubr.f32.mxu0 0.0
    %1754 = vmatmul.mubr.f32.gmra.mxu0 %v1636
    %v1755 = vpop.f32.mrf.mxu0
    %v1756 = vadd.f32 0.0, %v1755
    %v1757 = vpop.f32.mrf.mxu0
    %1758 = vmatprep.mubr.f32.mxu0 0.0
    %1759 = vmatmul.mubr.f32.gmra.mxu0 %v1639
    %v1760 = vpop.f32.mrf.mxu0
    %v1761 = vadd.f32 0.0, %v1760
    %v1762 = vpop.f32.mrf.mxu0
    %1763 = vmatprep.mubr.f32.mxu0 0.0
    %1764 = vmatmul.mubr.f32.gmra.mxu0 %v1642
    %v1765 = vpop.f32.mrf.mxu0
    %v1766 = vadd.f32 0.0, %v1765
    %v1767 = vpop.f32.mrf.mxu0
    %1768 = vdwg.mxu0
    %s1769 = scalar_lea.vmem %s2, 192
    %v1770 = vld [vmem:[%s1769] sm:$0xff]
    %v1771 = vld [vmem:[%s1769 + $0x8] sm:$0xff]
    %v1772 = vld [vmem:[%s1769 + $0x10] sm:$0xff]
    %v1773 = vld [vmem:[%s1769 + $0x18] sm:$0xff]
    %v1774 = vld [vmem:[%s1769 + $0x20] sm:$0xff]
    %v1775 = vld [vmem:[%s1769 + $0x28] sm:$0xff]
    %v1776 = vld [vmem:[%s1769 + $0x30] sm:$0xff]
    %v1777 = vld [vmem:[%s1769 + $0x38] sm:$0xff]
    %s1778 = scalar_lea.vmem %s2, 256
    %v1779 = vld [vmem:[%s1778] sm:$0xff]
    %v1780 = vld [vmem:[%s1778 + $0x8] sm:$0xff]
    %v1781 = vld [vmem:[%s1778 + $0x10] sm:$0xff]
    %v1782 = vld [vmem:[%s1778 + $0x18] sm:$0xff]
    %v1783 = vld [vmem:[%s1778 + $0x20] sm:$0xff]
    %v1784 = vld [vmem:[%s1778 + $0x28] sm:$0xff]
    %v1785 = vld [vmem:[%s1778 + $0x30] sm:$0xff]
    %v1786 = vld [vmem:[%s1778 + $0x38] sm:$0xff]
    %v1788 = vsel %vm1024, %v1731, 0
    %v1791 = vsel %vm1024, %v1736, 0
    %v1794 = vsel %vm1024, %v1741, 0
    %v1797 = vsel %vm1024, %v1746, 0
    %1799 = vmatprep.subr.mxu0 0.0
    %1800 = vmatpush1.msra.mxu0 0.0
    %1801 = vmatprep.subr.mxu0 0.0
    %1802 = vmatpush1.msra.mxu0 0.0
    %1803 = vmatprep.subr.mxu0 0.0
    %1804 = vmatpush1.msra.mxu0 0.0
    %1805 = vmatprep.subr.mxu0 0.0
    %1806 = vmatpush1.msra.mxu0 0.0
    %1807 = vmatprep.subr.mxu0 0.0
    %1808 = vmatpush1.msra.mxu0 0.0
    %1809 = vmatprep.subr.mxu0 0.0
    %1810 = vmatpush1.msra.mxu0 0.0
    %1811 = vmatprep.subr.mxu0 0.0
    %1812 = vmatpush1.msra.mxu0 0.0
    %1813 = vmatprep.subr.mxu0 0.0
    %1814 = vmatpush1.msra.mxu0 0.0
    %1815 = vmatprep.subr.mxu0 0.0
    %1816 = vmatpush1.msra.mxu0 %v1786
    %1817 = vmatprep.subr.mxu0 0.0
    %1818 = vmatpush1.msra.mxu0 %v1785
    %1819 = vmatprep.subr.mxu0 0.0
    %1820 = vmatpush1.msra.mxu0 %v1784
    %1821 = vmatprep.subr.mxu0 0.0
    %1822 = vmatpush1.msra.mxu0 %v1783
    %1823 = vmatprep.subr.mxu0 0.0
    %1824 = vmatpush1.msra.mxu0 %v1782
    %1825 = vmatprep.subr.mxu0 0.0
    %1826 = vmatpush1.msra.mxu0 %v1781
    %1827 = vmatprep.subr.mxu0 0.0
    %1828 = vmatpush1.msra.mxu0 %v1780
    %1829 = vmatprep.subr.mxu0 0.0
    %1830 = vmatpush1.msra.mxu0 %v1779
    %1831 = vmatprep.subr.mxu0 0.0
    %1832 = vmatpush2.msra.mxu0 0.0
    %1833 = vmatprep.subr.mxu0 0.0
    %1834 = vmatpush2.msra.mxu0 0.0
    %1835 = vmatprep.subr.mxu0 0.0
    %1836 = vmatpush2.msra.mxu0 0.0
    %1837 = vmatprep.subr.mxu0 0.0
    %1838 = vmatpush2.msra.mxu0 0.0
    %1839 = vmatprep.subr.mxu0 0.0
    %1840 = vmatpush2.msra.mxu0 0.0
    %1841 = vmatprep.subr.mxu0 0.0
    %1842 = vmatpush2.msra.mxu0 0.0
    %1843 = vmatprep.subr.mxu0 0.0
    %1844 = vmatpush2.msra.mxu0 0.0
    %1845 = vmatprep.subr.mxu0 0.0
    %1846 = vmatpush2.msra.mxu0 0.0
    %1847 = vmatprep.subr.mxu0 0.0
    %1848 = vmatpush2.msra.mxu0 0.0
    %1849 = vmatprep.subr.mxu0 0.0
    %1850 = vmatpush2.msra.mxu0 0.0
    %1851 = vmatprep.subr.mxu0 0.0
    %1852 = vmatpush2.msra.mxu0 0.0
    %1853 = vmatprep.subr.mxu0 0.0
    %1854 = vmatpush2.msra.mxu0 0.0
    %1855 = vmatprep.subr.mxu0 0.0
    %1856 = vmatpush2.msra.mxu0 0.0
    %1857 = vmatprep.subr.mxu0 0.0
    %1858 = vmatpush2.msra.mxu0 0.0
    %1859 = vmatprep.subr.mxu0 0.0
    %1860 = vmatpush2.msra.mxu0 0.0
    %1861 = vmatprep.subr.mxu0 0.0
    %1862 = vmatpush2.msra.mxu0 0.0
    %1863 = vmatprep.mubr.f32.mxu0 0.0
    %1864 = vmatmul.mubr.f32.gmra.mxu0 %v1788
    %v1865 = vpop.f32.mrf.mxu0
    %v1866 = vadd.f32 0.0, %v1865
    %v1867 = vpop.f32.mrf.mxu0
    %1868 = vmatprep.mubr.f32.mxu0 0.0
    %1869 = vmatmul.mubr.f32.gmra.mxu0 %v1791
    %v1870 = vpop.f32.mrf.mxu0
    %v1871 = vadd.f32 0.0, %v1870
    %v1872 = vpop.f32.mrf.mxu0
    %1873 = vmatprep.mubr.f32.mxu0 0.0
    %1874 = vmatmul.mubr.f32.gmra.mxu0 %v1794
    %v1875 = vpop.f32.mrf.mxu0
    %v1876 = vadd.f32 0.0, %v1875
    %v1877 = vpop.f32.mrf.mxu0
    %1878 = vmatprep.mubr.f32.mxu0 0.0
    %1879 = vmatmul.mubr.f32.gmra.mxu0 %v1797
    %v1880 = vpop.f32.mrf.mxu0
    %v1881 = vadd.f32 0.0, %v1880
    %v1882 = vpop.f32.mrf.mxu0
    %1883 = vdwg.mxu0
    %v1885 = vsel %vm1024, %v1711, 0
    %v1888 = vsel %vm1024, %v1716, 0
    %v1891 = vsel %vm1024, %v1721, 0
    %v1894 = vsel %vm1024, %v1726, 0
    %1896 = vmatprep.subr.mxu0 0.0
    %1897 = vmatpush1.msra.mxu0 0.0
    %1898 = vmatprep.subr.mxu0 0.0
    %1899 = vmatpush1.msra.mxu0 0.0
    %1900 = vmatprep.subr.mxu0 0.0
    %1901 = vmatpush1.msra.mxu0 0.0
    %1902 = vmatprep.subr.mxu0 0.0
    %1903 = vmatpush1.msra.mxu0 0.0
    %1904 = vmatprep.subr.mxu0 0.0
    %1905 = vmatpush1.msra.mxu0 0.0
    %1906 = vmatprep.subr.mxu0 0.0
    %1907 = vmatpush1.msra.mxu0 0.0
    %1908 = vmatprep.subr.mxu0 0.0
    %1909 = vmatpush1.msra.mxu0 0.0
    %1910 = vmatprep.subr.mxu0 0.0
    %1911 = vmatpush1.msra.mxu0 0.0
    %1912 = vmatprep.subr.mxu0 0.0
    %1913 = vmatpush1.msra.mxu0 %v1777
    %1914 = vmatprep.subr.mxu0 0.0
    %1915 = vmatpush1.msra.mxu0 %v1776
    %1916 = vmatprep.subr.mxu0 0.0
    %1917 = vmatpush1.msra.mxu0 %v1775
    %1918 = vmatprep.subr.mxu0 0.0
    %1919 = vmatpush1.msra.mxu0 %v1774
    %1920 = vmatprep.subr.mxu0 0.0
    %1921 = vmatpush1.msra.mxu0 %v1773
    %1922 = vmatprep.subr.mxu0 0.0
    %1923 = vmatpush1.msra.mxu0 %v1772
    %1924 = vmatprep.subr.mxu0 0.0
    %1925 = vmatpush1.msra.mxu0 %v1771
    %1926 = vmatprep.subr.mxu0 0.0
    %1927 = vmatpush1.msra.mxu0 %v1770
    %1928 = vmatprep.subr.mxu0 0.0
    %1929 = vmatpush2.msra.mxu0 0.0
    %1930 = vmatprep.subr.mxu0 0.0
    %1931 = vmatpush2.msra.mxu0 0.0
    %1932 = vmatprep.subr.mxu0 0.0
    %1933 = vmatpush2.msra.mxu0 0.0
    %1934 = vmatprep.subr.mxu0 0.0
    %1935 = vmatpush2.msra.mxu0 0.0
    %1936 = vmatprep.subr.mxu0 0.0
    %1937 = vmatpush2.msra.mxu0 0.0
    %1938 = vmatprep.subr.mxu0 0.0
    %1939 = vmatpush2.msra.mxu0 0.0
    %1940 = vmatprep.subr.mxu0 0.0
    %1941 = vmatpush2.msra.mxu0 0.0
    %1942 = vmatprep.subr.mxu0 0.0
    %1943 = vmatpush2.msra.mxu0 0.0
    %1944 = vmatprep.subr.mxu0 0.0
    %1945 = vmatpush2.msra.mxu0 0.0
    %1946 = vmatprep.subr.mxu0 0.0
    %1947 = vmatpush2.msra.mxu0 0.0
    %1948 = vmatprep.subr.mxu0 0.0
    %1949 = vmatpush2.msra.mxu0 0.0
    %1950 = vmatprep.subr.mxu0 0.0
    %1951 = vmatpush2.msra.mxu0 0.0
    %1952 = vmatprep.subr.mxu0 0.0
    %1953 = vmatpush2.msra.mxu0 0.0
    %1954 = vmatprep.subr.mxu0 0.0
    %1955 = vmatpush2.msra.mxu0 0.0
    %1956 = vmatprep.subr.mxu0 0.0
    %1957 = vmatpush2.msra.mxu0 0.0
    %1958 = vmatprep.subr.mxu0 0.0
    %1959 = vmatpush2.msra.mxu0 0.0
    %1960 = vmatprep.mubr.f32.mxu0 0.0
    %1961 = vmatmul.mubr.f32.gmra.mxu0 %v1885
    %v1962 = vpop.f32.mrf.mxu0
    %v1963 = vadd.f32 %v1866, %v1962
    %v1964 = vpop.f32.mrf.mxu0
    %1965 = vmatprep.mubr.f32.mxu0 0.0
    %1966 = vmatmul.mubr.f32.gmra.mxu0 %v1888
    %v1967 = vpop.f32.mrf.mxu0
    %v1968 = vadd.f32 %v1871, %v1967
    %v1969 = vpop.f32.mrf.mxu0
    %1970 = vmatprep.mubr.f32.mxu0 0.0
    %1971 = vmatmul.mubr.f32.gmra.mxu0 %v1891
    %v1972 = vpop.f32.mrf.mxu0
    %v1973 = vadd.f32 %v1876, %v1972
    %v1974 = vpop.f32.mrf.mxu0
    %1975 = vmatprep.mubr.f32.mxu0 0.0
    %1976 = vmatmul.mubr.f32.gmra.mxu0 %v1894
    %v1977 = vpop.f32.mrf.mxu0
    %v1978 = vadd.f32 %v1881, %v1977
    %v1979 = vpop.f32.mrf.mxu0
    %1980 = vdwg.mxu0
    %s1981 = scalar_lea.vmem %s2, 320
    %v1982 = vld [vmem:[%s1981] sm:$0xff]
    %v1983 = vld [vmem:[%s1981 + $0x8] sm:$0xff]
    %v1984 = vld [vmem:[%s1981 + $0x10] sm:$0xff]
    %v1985 = vld [vmem:[%s1981 + $0x18] sm:$0xff]
    %v1986 = vld [vmem:[%s1981 + $0x20] sm:$0xff]
    %v1987 = vld [vmem:[%s1981 + $0x28] sm:$0xff]
    %v1988 = vld [vmem:[%s1981 + $0x30] sm:$0xff]
    %v1989 = vld [vmem:[%s1981 + $0x38] sm:$0xff]
    %v1991 = vsel %vm1024, %v1751, 0
    %v1994 = vsel %vm1024, %v1756, 0
    %v1997 = vsel %vm1024, %v1761, 0
    %v2000 = vsel %vm1024, %v1766, 0
    %2002 = vmatprep.subr.mxu0 0.0
    %2003 = vmatpush1.msra.mxu0 0.0
    %2004 = vmatprep.subr.mxu0 0.0
    %2005 = vmatpush1.msra.mxu0 0.0
    %2006 = vmatprep.subr.mxu0 0.0
    %2007 = vmatpush1.msra.mxu0 0.0
    %2008 = vmatprep.subr.mxu0 0.0
    %2009 = vmatpush1.msra.mxu0 0.0
    %2010 = vmatprep.subr.mxu0 0.0
    %2011 = vmatpush1.msra.mxu0 0.0
    %2012 = vmatprep.subr.mxu0 0.0
    %2013 = vmatpush1.msra.mxu0 0.0
    %2014 = vmatprep.subr.mxu0 0.0
    %2015 = vmatpush1.msra.mxu0 0.0
    %2016 = vmatprep.subr.mxu0 0.0
    %2017 = vmatpush1.msra.mxu0 0.0
    %2018 = vmatprep.subr.mxu0 0.0
    %2019 = vmatpush1.msra.mxu0 %v1989
    %2020 = vmatprep.subr.mxu0 0.0
    %2021 = vmatpush1.msra.mxu0 %v1988
    %2022 = vmatprep.subr.mxu0 0.0
    %2023 = vmatpush1.msra.mxu0 %v1987
    %2024 = vmatprep.subr.mxu0 0.0
    %2025 = vmatpush1.msra.mxu0 %v1986
    %2026 = vmatprep.subr.mxu0 0.0
    %2027 = vmatpush1.msra.mxu0 %v1985
    %2028 = vmatprep.subr.mxu0 0.0
    %2029 = vmatpush1.msra.mxu0 %v1984
    %2030 = vmatprep.subr.mxu0 0.0
    %2031 = vmatpush1.msra.mxu0 %v1983
    %2032 = vmatprep.subr.mxu0 0.0
    %2033 = vmatpush1.msra.mxu0 %v1982
    %2034 = vmatprep.subr.mxu0 0.0
    %2035 = vmatpush2.msra.mxu0 0.0
    %2036 = vmatprep.subr.mxu0 0.0
    %2037 = vmatpush2.msra.mxu0 0.0
    %2038 = vmatprep.subr.mxu0 0.0
    %2039 = vmatpush2.msra.mxu0 0.0
    %2040 = vmatprep.subr.mxu0 0.0
    %2041 = vmatpush2.msra.mxu0 0.0
    %2042 = vmatprep.subr.mxu0 0.0
    %2043 = vmatpush2.msra.mxu0 0.0
    %2044 = vmatprep.subr.mxu0 0.0
    %2045 = vmatpush2.msra.mxu0 0.0
    %2046 = vmatprep.subr.mxu0 0.0
    %2047 = vmatpush2.msra.mxu0 0.0
    %2048 = vmatprep.subr.mxu0 0.0
    %2049 = vmatpush2.msra.mxu0 0.0
    %2050 = vmatprep.subr.mxu0 0.0
    %2051 = vmatpush2.msra.mxu0 0.0
    %2052 = vmatprep.subr.mxu0 0.0
    %2053 = vmatpush2.msra.mxu0 0.0
    %2054 = vmatprep.subr.mxu0 0.0
    %2055 = vmatpush2.msra.mxu0 0.0
    %2056 = vmatprep.subr.mxu0 0.0
    %2057 = vmatpush2.msra.mxu0 0.0
    %2058 = vmatprep.subr.mxu0 0.0
    %2059 = vmatpush2.msra.mxu0 0.0
    %2060 = vmatprep.subr.mxu0 0.0
    %2061 = vmatpush2.msra.mxu0 0.0
    %2062 = vmatprep.subr.mxu0 0.0
    %2063 = vmatpush2.msra.mxu0 0.0
    %2064 = vmatprep.subr.mxu0 0.0
    %2065 = vmatpush2.msra.mxu0 0.0
    %2066 = vmatprep.mubr.f32.mxu0 0.0
    %2067 = vmatmul.mubr.f32.gmra.mxu0 %v1991
    %v2068 = vpop.f32.mrf.mxu0
    %v2069 = vadd.f32 0.0, %v2068
    %v2070 = vpop.f32.mrf.mxu0
    %2071 = vmatprep.mubr.f32.mxu0 0.0
    %2072 = vmatmul.mubr.f32.gmra.mxu0 %v1994
    %v2073 = vpop.f32.mrf.mxu0
    %v2074 = vadd.f32 0.0, %v2073
    %v2075 = vpop.f32.mrf.mxu0
    %2076 = vmatprep.mubr.f32.mxu0 0.0
    %2077 = vmatmul.mubr.f32.gmra.mxu0 %v1997
    %v2078 = vpop.f32.mrf.mxu0
    %v2079 = vadd.f32 0.0, %v2078
    %v2080 = vpop.f32.mrf.mxu0
    %2081 = vmatprep.mubr.f32.mxu0 0.0
    %2082 = vmatmul.mubr.f32.gmra.mxu0 %v2000
    %v2083 = vpop.f32.mrf.mxu0
    %v2084 = vadd.f32 0.0, %v2083
    %v2085 = vpop.f32.mrf.mxu0
    %2086 = vdwg.mxu0
    %v2087 = vadd.f32 %v1963, %v2069
    %v2088 = vadd.f32 %v1968, %v2074
    %v2089 = vadd.f32 %v1973, %v2079
    %v2090 = vadd.f32 %v1978, %v2084
    %s2091 = scalar_lea.vmem [#allocation2], 64
    %v2092 = vld [vmem:[%s2091] sm:$0xff]
    %v2093 = vld [vmem:[%s2091 + $0x8] sm:$0xff]
    %v2094 = vld [vmem:[%s2091 + $0x10] sm:$0xff]
    %v2095 = vld [vmem:[%s2091 + $0x18] sm:$0xff]
    %v2096 = vld [vmem:[%s2091 + $0x20] sm:$0xff]
    %v2097 = vld [vmem:[%s2091 + $0x28] sm:$0xff]
    %v2098 = vld [vmem:[%s2091 + $0x30] sm:$0xff]
    %v2099 = vld [vmem:[%s2091 + $0x38] sm:$0xff]
    %v2101 = vsel %vm1024, %v2087, 0
    %v2104 = vsel %vm1024, %v2088, 0
    %v2107 = vsel %vm1024, %v2089, 0
    %v2110 = vsel %vm1024, %v2090, 0
    %2112 = vmatprep.subr.mxu0 0.0
    %2113 = vmatpush1.msra.mxu0 0.0
    %2114 = vmatprep.subr.mxu0 0.0
    %2115 = vmatpush1.msra.mxu0 0.0
    %2116 = vmatprep.subr.mxu0 0.0
    %2117 = vmatpush1.msra.mxu0 0.0
    %2118 = vmatprep.subr.mxu0 0.0
    %2119 = vmatpush1.msra.mxu0 0.0
    %2120 = vmatprep.subr.mxu0 0.0
    %2121 = vmatpush1.msra.mxu0 0.0
    %2122 = vmatprep.subr.mxu0 0.0
    %2123 = vmatpush1.msra.mxu0 0.0
    %2124 = vmatprep.subr.mxu0 0.0
    %2125 = vmatpush1.msra.mxu0 0.0
    %2126 = vmatprep.subr.mxu0 0.0
    %2127 = vmatpush1.msra.mxu0 0.0
    %2128 = vmatprep.subr.mxu0 0.0
    %2129 = vmatpush1.msra.mxu0 %v2099
    %2130 = vmatprep.subr.mxu0 0.0
    %2131 = vmatpush1.msra.mxu0 %v2098
    %2132 = vmatprep.subr.mxu0 0.0
    %2133 = vmatpush1.msra.mxu0 %v2097
    %2134 = vmatprep.subr.mxu0 0.0
    %2135 = vmatpush1.msra.mxu0 %v2096
    %2136 = vmatprep.subr.mxu0 0.0
    %2137 = vmatpush1.msra.mxu0 %v2095
    %2138 = vmatprep.subr.mxu0 0.0
    %2139 = vmatpush1.msra.mxu0 %v2094
    %2140 = vmatprep.subr.mxu0 0.0
    %2141 = vmatpush1.msra.mxu0 %v2093
    %2142 = vmatprep.subr.mxu0 0.0
    %2143 = vmatpush1.msra.mxu0 %v2092
    %2144 = vmatprep.subr.mxu0 0.0
    %2145 = vmatpush2.msra.mxu0 0.0
    %2146 = vmatprep.subr.mxu0 0.0
    %2147 = vmatpush2.msra.mxu0 0.0
    %2148 = vmatprep.subr.mxu0 0.0
    %2149 = vmatpush2.msra.mxu0 0.0
    %2150 = vmatprep.subr.mxu0 0.0
    %2151 = vmatpush2.msra.mxu0 0.0
    %2152 = vmatprep.subr.mxu0 0.0
    %2153 = vmatpush2.msra.mxu0 0.0
    %2154 = vmatprep.subr.mxu0 0.0
    %2155 = vmatpush2.msra.mxu0 0.0
    %2156 = vmatprep.subr.mxu0 0.0
    %2157 = vmatpush2.msra.mxu0 0.0
    %2158 = vmatprep.subr.mxu0 0.0
    %2159 = vmatpush2.msra.mxu0 0.0
    %2160 = vmatprep.subr.mxu0 0.0
    %2161 = vmatpush2.msra.mxu0 0.0
    %2162 = vmatprep.subr.mxu0 0.0
    %2163 = vmatpush2.msra.mxu0 0.0
    %2164 = vmatprep.subr.mxu0 0.0
    %2165 = vmatpush2.msra.mxu0 0.0
    %2166 = vmatprep.subr.mxu0 0.0
    %2167 = vmatpush2.msra.mxu0 0.0
    %2168 = vmatprep.subr.mxu0 0.0
    %2169 = vmatpush2.msra.mxu0 0.0
    %2170 = vmatprep.subr.mxu0 0.0
    %2171 = vmatpush2.msra.mxu0 0.0
    %2172 = vmatprep.subr.mxu0 0.0
    %2173 = vmatpush2.msra.mxu0 0.0
    %2174 = vmatprep.subr.mxu0 0.0
    %2175 = vmatpush2.msra.mxu0 0.0
    %2176 = vmatprep.mubr.f32.mxu0 0.0
    %2177 = vmatmul.mubr.f32.gmra.mxu0 %v2101
    %v2178 = vpop.f32.mrf.mxu0
    %v2179 = vadd.f32 0.0, %v2178
    %v2180 = vpop.f32.mrf.mxu0
    %2181 = vmatprep.mubr.f32.mxu0 0.0
    %2182 = vmatmul.mubr.f32.gmra.mxu0 %v2104
    %v2183 = vpop.f32.mrf.mxu0
    %v2184 = vadd.f32 0.0, %v2183
    %v2185 = vpop.f32.mrf.mxu0
    %2186 = vmatprep.mubr.f32.mxu0 0.0
    %2187 = vmatmul.mubr.f32.gmra.mxu0 %v2107
    %v2188 = vpop.f32.mrf.mxu0
    %v2189 = vadd.f32 0.0, %v2188
    %v2190 = vpop.f32.mrf.mxu0
    %2191 = vmatprep.mubr.f32.mxu0 0.0
    %2192 = vmatmul.mubr.f32.gmra.mxu0 %v2110
    %v2193 = vpop.f32.mrf.mxu0
    %v2194 = vadd.f32 0.0, %v2193
    %v2195 = vpop.f32.mrf.mxu0
    %2196 = vdwg.mxu0
    %v2197 = vsel %vm1024, %v2179, 0.0
    %v2198 = vsel %vm1024, %v2184, 0.0
    %v2199 = vadd.f32 %v2197, %v2198
    %v2200 = vsel %vm1024, %v2189, 0.0
    %v2201 = vadd.f32 %v2199, %v2200
    %v2202 = vsel %vm1024, %v2194, 0.0
    %v2203 = vadd.f32 %v2201, %v2202
    %v2204 = vrot.slane %v2203, 4
    %v2205 = vadd.f32 %v2203, %v2204
    %v2206 = vrot.slane %v2205, 2
    %v2207 = vadd.f32 %v2205, %v2206
    %v2208 = vrot.slane %v2207, 1
    %v2209 = vadd.f32 %v2207, %v2208
    %v2210 = vmul.f32 %v2087, %v2087
    %v2211 = vmul.f32 %v2088, %v2088
    %v2212 = vmul.f32 %v2089, %v2089
    %v2213 = vmul.f32 %v2090, %v2090
    %v2215 = vsel %vm1024, %v2210, 0
    %v2218 = vsel %vm1024, %v2211, 0
    %v2221 = vsel %vm1024, %v2212, 0
    %v2224 = vsel %vm1024, %v2213, 0
    %2226 = vmatprep.subr.mxu0 0.0
    %2227 = vmatpush1.msra.mxu0 0.0
    %2228 = vmatprep.subr.mxu0 0.0
    %2229 = vmatpush1.msra.mxu0 0.0
    %2230 = vmatprep.subr.mxu0 0.0
    %2231 = vmatpush1.msra.mxu0 0.0
    %2232 = vmatprep.subr.mxu0 0.0
    %2233 = vmatpush1.msra.mxu0 0.0
    %2234 = vmatprep.subr.mxu0 0.0
    %2235 = vmatpush1.msra.mxu0 0.0
    %2236 = vmatprep.subr.mxu0 0.0
    %2237 = vmatpush1.msra.mxu0 0.0
    %2238 = vmatprep.subr.mxu0 0.0
    %2239 = vmatpush1.msra.mxu0 0.0
    %2240 = vmatprep.subr.mxu0 0.0
    %2241 = vmatpush1.msra.mxu0 0.0
    %2242 = vmatprep.subr.mxu0 0.0
    %2243 = vmatpush1.msra.mxu0 %v2099
    %2244 = vmatprep.subr.mxu0 0.0
    %2245 = vmatpush1.msra.mxu0 %v2098
    %2246 = vmatprep.subr.mxu0 0.0
    %2247 = vmatpush1.msra.mxu0 %v2097
    %2248 = vmatprep.subr.mxu0 0.0
    %2249 = vmatpush1.msra.mxu0 %v2096
    %2250 = vmatprep.subr.mxu0 0.0
    %2251 = vmatpush1.msra.mxu0 %v2095
    %2252 = vmatprep.subr.mxu0 0.0
    %2253 = vmatpush1.msra.mxu0 %v2094
    %2254 = vmatprep.subr.mxu0 0.0
    %2255 = vmatpush1.msra.mxu0 %v2093
    %2256 = vmatprep.subr.mxu0 0.0
    %2257 = vmatpush1.msra.mxu0 %v2092
    %2258 = vmatprep.subr.mxu0 0.0
    %2259 = vmatpush2.msra.mxu0 0.0
    %2260 = vmatprep.subr.mxu0 0.0
    %2261 = vmatpush2.msra.mxu0 0.0
    %2262 = vmatprep.subr.mxu0 0.0
    %2263 = vmatpush2.msra.mxu0 0.0
    %2264 = vmatprep.subr.mxu0 0.0
    %2265 = vmatpush2.msra.mxu0 0.0
    %2266 = vmatprep.subr.mxu0 0.0
    %2267 = vmatpush2.msra.mxu0 0.0
    %2268 = vmatprep.subr.mxu0 0.0
    %2269 = vmatpush2.msra.mxu0 0.0
    %2270 = vmatprep.subr.mxu0 0.0
    %2271 = vmatpush2.msra.mxu0 0.0
    %2272 = vmatprep.subr.mxu0 0.0
    %2273 = vmatpush2.msra.mxu0 0.0
    %2274 = vmatprep.subr.mxu0 0.0
    %2275 = vmatpush2.msra.mxu0 0.0
    %2276 = vmatprep.subr.mxu0 0.0
    %2277 = vmatpush2.msra.mxu0 0.0
    %2278 = vmatprep.subr.mxu0 0.0
    %2279 = vmatpush2.msra.mxu0 0.0
    %2280 = vmatprep.subr.mxu0 0.0
    %2281 = vmatpush2.msra.mxu0 0.0
    %2282 = vmatprep.subr.mxu0 0.0
    %2283 = vmatpush2.msra.mxu0 0.0
    %2284 = vmatprep.subr.mxu0 0.0
    %2285 = vmatpush2.msra.mxu0 0.0
    %2286 = vmatprep.subr.mxu0 0.0
    %2287 = vmatpush2.msra.mxu0 0.0
    %2288 = vmatprep.subr.mxu0 0.0
    %2289 = vmatpush2.msra.mxu0 0.0
    %2290 = vmatprep.mubr.f32.mxu0 0.0
    %2291 = vmatmul.mubr.f32.gmra.mxu0 %v2215
    %v2292 = vpop.f32.mrf.mxu0
    %v2293 = vadd.f32 0.0, %v2292
    %v2294 = vpop.f32.mrf.mxu0
    %2295 = vmatprep.mubr.f32.mxu0 0.0
    %2296 = vmatmul.mubr.f32.gmra.mxu0 %v2218
    %v2297 = vpop.f32.mrf.mxu0
    %v2298 = vadd.f32 0.0, %v2297
    %v2299 = vpop.f32.mrf.mxu0
    %2300 = vmatprep.mubr.f32.mxu0 0.0
    %2301 = vmatmul.mubr.f32.gmra.mxu0 %v2221
    %v2302 = vpop.f32.mrf.mxu0
    %v2303 = vadd.f32 0.0, %v2302
    %v2304 = vpop.f32.mrf.mxu0
    %2305 = vmatprep.mubr.f32.mxu0 0.0
    %2306 = vmatmul.mubr.f32.gmra.mxu0 %v2224
    %v2307 = vpop.f32.mrf.mxu0
    %v2308 = vadd.f32 0.0, %v2307
    %v2309 = vpop.f32.mrf.mxu0
    %2310 = vdwg.mxu0
    %v2311 = vsel %vm1024, %v2293, 0.0
    %v2312 = vsel %vm1024, %v2298, 0.0
    %v2313 = vadd.f32 %v2311, %v2312
    %v2314 = vsel %vm1024, %v2303, 0.0
    %v2315 = vadd.f32 %v2313, %v2314
    %v2316 = vsel %vm1024, %v2308, 0.0
    %v2317 = vadd.f32 %v2315, %v2316
    %v2318 = vrot.slane %v2317, 4
    %v2319 = vadd.f32 %v2317, %v2318
    %v2320 = vrot.slane %v2319, 2
    %v2321 = vadd.f32 %v2319, %v2320
    %v2322 = vrot.slane %v2321, 1
    %v2323 = vadd.f32 %v2321, %v2322
    %v2324 = vmul.f32 %v2209, %v2209
    %v2325 = vsub.f32 %v2323, %v2324
    %v2326 = vmax.f32 %v2325, 0.0
    %s2327 = scalar_lea.vmem %s4, 1
    %v2328 = vld [vmem:[%s2327] sm:$0x1]
    %v2329 = vadd.f32 %v2326, 1e-05
    %v2330 = vrsqrt.pop %v2329
    %v2331 = vmul.f32 %v2328, %v2330
    %s2332 = scalar_lea.vmem %s5, 1
    %v2333 = vld [vmem:[%s2332] sm:$0x1]
    %v2334 = vmul.f32 %v2209, %v2331
    %v2335 = vsub.f32 %v2333, %v2334
    %v2337 = vlaneseq
    %v2338 = vshrl.u32 %v2337, 7
    %v2339 = vsub.s32 0, %v2338
    %v2340 = vrot.slane %v2331, %v2339
    %v2342 = vmul.f32 %v2087, %v2340
    %v2343 = vmul.f32 %v2088, %v2340
    %v2344 = vmul.f32 %v2089, %v2340
    %v2345 = vmul.f32 %v2090, %v2340
    %v2347 = vlaneseq
    %v2348 = vshrl.u32 %v2347, 7
    %v2349 = vsub.s32 0, %v2348
    %v2350 = vrot.slane %v2335, %v2349
    %v2352 = vadd.f32 %v2342, %v2350
    %v2353 = vadd.f32 %v2343, %v2350
    %v2354 = vadd.f32 %v2344, %v2350
    %v2355 = vadd.f32 %v2345, %v2350
    %v2356 = vmax.f32 %v2352, 0.0
    %v2357 = vmax.f32 %v2353, 0.0
    %v2358 = vmax.f32 %v2354, 0.0
    %v2359 = vmax.f32 %v2355, 0.0
    %s2360 = scalar_lea.vmem %s1, 192
    %v2361 = vld [vmem:[%s2360] sm:$0xff]
    %v2362 = vld [vmem:[%s2360 + $0x8] sm:$0xff]
    %v2363 = vld [vmem:[%s2360 + $0x10] sm:$0xff]
    %v2364 = vld [vmem:[%s2360 + $0x18] sm:$0xff]
    %v2365 = vld [vmem:[%s2360 + $0x20] sm:$0xff]
    %v2366 = vld [vmem:[%s2360 + $0x28] sm:$0xff]
    %v2367 = vld [vmem:[%s2360 + $0x30] sm:$0xff]
    %v2368 = vld [vmem:[%s2360 + $0x38] sm:$0xff]
    %v2369 = vld [vmem:[%s2360 + $0x40] sm:$0xff]
    %v2370 = vld [vmem:[%s2360 + $0x48] sm:$0xff]
    %v2371 = vld [vmem:[%s2360 + $0x50] sm:$0xff]
    %v2372 = vld [vmem:[%s2360 + $0x58] sm:$0xff]
    %v2374 = vsel %vm845, %v2361, 0
    %v2377 = vsel %vm845, %v2362, 0
    %v2380 = vsel %vm845, %v2363, 0
    %v2383 = vsel %vm845, %v2364, 0
    %v2386 = vsel %vm845, %v2365, 0
    %v2389 = vsel %vm845, %v2366, 0
    %v2392 = vsel %vm845, %v2367, 0
    %v2395 = vsel %vm845, %v2368, 0
    %v2398 = vsel %vm845, %v2369, 0
    %v2401 = vsel %vm845, %v2370, 0
    %v2404 = vsel %vm845, %v2371, 0
    %v2407 = vsel %vm845, %v2372, 0
    %2409 = vmatprep.subr.mxu0 0.0
    %2410 = vmatpush1.msra.mxu0 0.0
    %2411 = vmatprep.subr.mxu0 0.0
    %2412 = vmatpush1.msra.mxu0 0.0
    %2413 = vmatprep.subr.mxu0 0.0
    %2414 = vmatpush1.msra.mxu0 0.0
    %2415 = vmatprep.subr.mxu0 0.0
    %2416 = vmatpush1.msra.mxu0 0.0
    %2417 = vmatprep.subr.mxu0 0.0
    %2418 = vmatpush1.msra.mxu0 0.0
    %2419 = vmatprep.subr.mxu0 0.0
    %2420 = vmatpush1.msra.mxu0 0.0
    %2421 = vmatprep.subr.mxu0 0.0
    %2422 = vmatpush1.msra.mxu0 0.0
    %2423 = vmatprep.subr.mxu0 0.0
    %2424 = vmatpush1.msra.mxu0 0.0
    %2425 = vmatprep.subr.mxu0 0.0
    %2426 = vmatpush1.msra.mxu0 0.0
    %2427 = vmatprep.subr.mxu0 0.0
    %2428 = vmatpush1.msra.mxu0 0.0
    %2429 = vmatprep.subr.mxu0 0.0
    %2430 = vmatpush1.msra.mxu0 0.0
    %2431 = vmatprep.subr.mxu0 0.0
    %2432 = vmatpush1.msra.mxu0 0.0
    %2433 = vmatprep.subr.mxu0 0.0
    %2434 = vmatpush1.msra.mxu0 %v2359
    %2435 = vmatprep.subr.mxu0 0.0
    %2436 = vmatpush1.msra.mxu0 %v2358
    %2437 = vmatprep.subr.mxu0 0.0
    %2438 = vmatpush1.msra.mxu0 %v2357
    %2439 = vmatprep.subr.mxu0 0.0
    %2440 = vmatpush1.msra.mxu0 %v2356
    %2441 = vmatprep.subr.mxu0 0.0
    %2442 = vmatpush2.msra.mxu0 0.0
    %2443 = vmatprep.subr.mxu0 0.0
    %2444 = vmatpush2.msra.mxu0 0.0
    %2445 = vmatprep.subr.mxu0 0.0
    %2446 = vmatpush2.msra.mxu0 0.0
    %2447 = vmatprep.subr.mxu0 0.0
    %2448 = vmatpush2.msra.mxu0 0.0
    %2449 = vmatprep.subr.mxu0 0.0
    %2450 = vmatpush2.msra.mxu0 0.0
    %2451 = vmatprep.subr.mxu0 0.0
    %2452 = vmatpush2.msra.mxu0 0.0
    %2453 = vmatprep.subr.mxu0 0.0
    %2454 = vmatpush2.msra.mxu0 0.0
    %2455 = vmatprep.subr.mxu0 0.0
    %2456 = vmatpush2.msra.mxu0 0.0
    %2457 = vmatprep.subr.mxu0 0.0
    %2458 = vmatpush2.msra.mxu0 0.0
    %2459 = vmatprep.subr.mxu0 0.0
    %2460 = vmatpush2.msra.mxu0 0.0
    %2461 = vmatprep.subr.mxu0 0.0
    %2462 = vmatpush2.msra.mxu0 0.0
    %2463 = vmatprep.subr.mxu0 0.0
    %2464 = vmatpush2.msra.mxu0 0.0
    %2465 = vmatprep.subr.mxu0 0.0
    %2466 = vmatpush2.msra.mxu0 0.0
    %2467 = vmatprep.subr.mxu0 0.0
    %2468 = vmatpush2.msra.mxu0 0.0
    %2469 = vmatprep.subr.mxu0 0.0
    %2470 = vmatpush2.msra.mxu0 0.0
    %2471 = vmatprep.subr.mxu0 0.0
    %2472 = vmatpush2.msra.mxu0 0.0
    %2473 = vmatprep.mubr.f32.mxu0 0.0
    %2474 = vmatmul.mubr.f32.gmra.mxu0 %v2374
    %v2475 = vpop.f32.mrf.mxu0
    %v2476 = vadd.f32 0.0, %v2475
    %v2477 = vpop.f32.mrf.mxu0
    %2478 = vmatprep.mubr.f32.mxu0 0.0
    %2479 = vmatmul.mubr.f32.gmra.mxu0 %v2377
    %v2480 = vpop.f32.mrf.mxu0
    %v2481 = vadd.f32 0.0, %v2480
    %v2482 = vpop.f32.mrf.mxu0
    %2483 = vmatprep.mubr.f32.mxu0 0.0
    %2484 = vmatmul.mubr.f32.gmra.mxu0 %v2380
    %v2485 = vpop.f32.mrf.mxu0
    %v2486 = vadd.f32 0.0, %v2485
    %v2487 = vpop.f32.mrf.mxu0
    %2488 = vmatprep.mubr.f32.mxu0 0.0
    %2489 = vmatmul.mubr.f32.gmra.mxu0 %v2383
    %v2490 = vpop.f32.mrf.mxu0
    %v2491 = vadd.f32 0.0, %v2490
    %v2492 = vpop.f32.mrf.mxu0
    %2493 = vmatprep.mubr.f32.mxu0 0.0
    %2494 = vmatmul.mubr.f32.gmra.mxu0 %v2386
    %v2495 = vpop.f32.mrf.mxu0
    %v2496 = vadd.f32 0.0, %v2495
    %v2497 = vpop.f32.mrf.mxu0
    %2498 = vmatprep.mubr.f32.mxu0 0.0
    %2499 = vmatmul.mubr.f32.gmra.mxu0 %v2389
    %v2500 = vpop.f32.mrf.mxu0
    %v2501 = vadd.f32 0.0, %v2500
    %v2502 = vpop.f32.mrf.mxu0
    %2503 = vmatprep.mubr.f32.mxu0 0.0
    %2504 = vmatmul.mubr.f32.gmra.mxu0 %v2392
    %v2505 = vpop.f32.mrf.mxu0
    %v2506 = vadd.f32 0.0, %v2505
    %v2507 = vpop.f32.mrf.mxu0
    %2508 = vmatprep.mubr.f32.mxu0 0.0
    %2509 = vmatmul.mubr.f32.gmra.mxu0 %v2395
    %v2510 = vpop.f32.mrf.mxu0
    %v2511 = vadd.f32 0.0, %v2510
    %v2512 = vpop.f32.mrf.mxu0
    %2513 = vmatprep.mubr.f32.mxu0 0.0
    %2514 = vmatmul.mubr.f32.gmra.mxu0 %v2398
    %v2515 = vpop.f32.mrf.mxu0
    %v2516 = vadd.f32 0.0, %v2515
    %v2517 = vpop.f32.mrf.mxu0
    %2518 = vmatprep.mubr.f32.mxu0 0.0
    %2519 = vmatmul.mubr.f32.gmra.mxu0 %v2401
    %v2520 = vpop.f32.mrf.mxu0
    %v2521 = vadd.f32 0.0, %v2520
    %v2522 = vpop.f32.mrf.mxu0
    %2523 = vmatprep.mubr.f32.mxu0 0.0
    %2524 = vmatmul.mubr.f32.gmra.mxu0 %v2404
    %v2525 = vpop.f32.mrf.mxu0
    %v2526 = vadd.f32 0.0, %v2525
    %v2527 = vpop.f32.mrf.mxu0
    %2528 = vmatprep.mubr.f32.mxu0 0.0
    %2529 = vmatmul.mubr.f32.gmra.mxu0 %v2407
    %v2530 = vpop.f32.mrf.mxu0
    %v2531 = vadd.f32 0.0, %v2530
    %v2532 = vpop.f32.mrf.mxu0
    %2533 = vdwg.mxu0
    %s2534 = scalar_lea.vmem %s2, 384
    %v2535 = vld [vmem:[%s2534] sm:$0xff]
    %v2536 = vld [vmem:[%s2534 + $0x8] sm:$0xff]
    %v2537 = vld [vmem:[%s2534 + $0x10] sm:$0xff]
    %v2538 = vld [vmem:[%s2534 + $0x18] sm:$0xff]
    %v2539 = vld [vmem:[%s2534 + $0x20] sm:$0xff]
    %v2540 = vld [vmem:[%s2534 + $0x28] sm:$0xff]
    %v2541 = vld [vmem:[%s2534 + $0x30] sm:$0xff]
    %v2542 = vld [vmem:[%s2534 + $0x38] sm:$0xff]
    %s2543 = scalar_lea.vmem %s2, 448
    %v2544 = vld [vmem:[%s2543] sm:$0xff]
    %v2545 = vld [vmem:[%s2543 + $0x8] sm:$0xff]
    %v2546 = vld [vmem:[%s2543 + $0x10] sm:$0xff]
    %v2547 = vld [vmem:[%s2543 + $0x18] sm:$0xff]
    %v2548 = vld [vmem:[%s2543 + $0x20] sm:$0xff]
    %v2549 = vld [vmem:[%s2543 + $0x28] sm:$0xff]
    %v2550 = vld [vmem:[%s2543 + $0x30] sm:$0xff]
    %v2551 = vld [vmem:[%s2543 + $0x38] sm:$0xff]
    %v2553 = vsel %vm1024, %v2496, 0
    %v2556 = vsel %vm1024, %v2501, 0
    %v2559 = vsel %vm1024, %v2506, 0
    %v2562 = vsel %vm1024, %v2511, 0
    %2564 = vmatprep.subr.mxu0 0.0
    %2565 = vmatpush1.msra.mxu0 0.0
    %2566 = vmatprep.subr.mxu0 0.0
    %2567 = vmatpush1.msra.mxu0 0.0
    %2568 = vmatprep.subr.mxu0 0.0
    %2569 = vmatpush1.msra.mxu0 0.0
    %2570 = vmatprep.subr.mxu0 0.0
    %2571 = vmatpush1.msra.mxu0 0.0
    %2572 = vmatprep.subr.mxu0 0.0
    %2573 = vmatpush1.msra.mxu0 0.0
    %2574 = vmatprep.subr.mxu0 0.0
    %2575 = vmatpush1.msra.mxu0 0.0
    %2576 = vmatprep.subr.mxu0 0.0
    %2577 = vmatpush1.msra.mxu0 0.0
    %2578 = vmatprep.subr.mxu0 0.0
    %2579 = vmatpush1.msra.mxu0 0.0
    %2580 = vmatprep.subr.mxu0 0.0
    %2581 = vmatpush1.msra.mxu0 %v2551
    %2582 = vmatprep.subr.mxu0 0.0
    %2583 = vmatpush1.msra.mxu0 %v2550
    %2584 = vmatprep.subr.mxu0 0.0
    %2585 = vmatpush1.msra.mxu0 %v2549
    %2586 = vmatprep.subr.mxu0 0.0
    %2587 = vmatpush1.msra.mxu0 %v2548
    %2588 = vmatprep.subr.mxu0 0.0
    %2589 = vmatpush1.msra.mxu0 %v2547
    %2590 = vmatprep.subr.mxu0 0.0
    %2591 = vmatpush1.msra.mxu0 %v2546
    %2592 = vmatprep.subr.mxu0 0.0
    %2593 = vmatpush1.msra.mxu0 %v2545
    %2594 = vmatprep.subr.mxu0 0.0
    %2595 = vmatpush1.msra.mxu0 %v2544
    %2596 = vmatprep.subr.mxu0 0.0
    %2597 = vmatpush2.msra.mxu0 0.0
    %2598 = vmatprep.subr.mxu0 0.0
    %2599 = vmatpush2.msra.mxu0 0.0
    %2600 = vmatprep.subr.mxu0 0.0
    %2601 = vmatpush2.msra.mxu0 0.0
    %2602 = vmatprep.subr.mxu0 0.0
    %2603 = vmatpush2.msra.mxu0 0.0
    %2604 = vmatprep.subr.mxu0 0.0
    %2605 = vmatpush2.msra.mxu0 0.0
    %2606 = vmatprep.subr.mxu0 0.0
    %2607 = vmatpush2.msra.mxu0 0.0
    %2608 = vmatprep.subr.mxu0 0.0
    %2609 = vmatpush2.msra.mxu0 0.0
    %2610 = vmatprep.subr.mxu0 0.0
    %2611 = vmatpush2.msra.mxu0 0.0
    %2612 = vmatprep.subr.mxu0 0.0
    %2613 = vmatpush2.msra.mxu0 0.0
    %2614 = vmatprep.subr.mxu0 0.0
    %2615 = vmatpush2.msra.mxu0 0.0
    %2616 = vmatprep.subr.mxu0 0.0
    %2617 = vmatpush2.msra.mxu0 0.0
    %2618 = vmatprep.subr.mxu0 0.0
    %2619 = vmatpush2.msra.mxu0 0.0
    %2620 = vmatprep.subr.mxu0 0.0
    %2621 = vmatpush2.msra.mxu0 0.0
    %2622 = vmatprep.subr.mxu0 0.0
    %2623 = vmatpush2.msra.mxu0 0.0
    %2624 = vmatprep.subr.mxu0 0.0
    %2625 = vmatpush2.msra.mxu0 0.0
    %2626 = vmatprep.subr.mxu0 0.0
    %2627 = vmatpush2.msra.mxu0 0.0
    %2628 = vmatprep.mubr.f32.mxu0 0.0
    %2629 = vmatmul.mubr.f32.gmra.mxu0 %v2553
    %v2630 = vpop.f32.mrf.mxu0
    %v2631 = vadd.f32 0.0, %v2630
    %v2632 = vpop.f32.mrf.mxu0
    %2633 = vmatprep.mubr.f32.mxu0 0.0
    %2634 = vmatmul.mubr.f32.gmra.mxu0 %v2556
    %v2635 = vpop.f32.mrf.mxu0
    %v2636 = vadd.f32 0.0, %v2635
    %v2637 = vpop.f32.mrf.mxu0
    %2638 = vmatprep.mubr.f32.mxu0 0.0
    %2639 = vmatmul.mubr.f32.gmra.mxu0 %v2559
    %v2640 = vpop.f32.mrf.mxu0
    %v2641 = vadd.f32 0.0, %v2640
    %v2642 = vpop.f32.mrf.mxu0
    %2643 = vmatprep.mubr.f32.mxu0 0.0
    %2644 = vmatmul.mubr.f32.gmra.mxu0 %v2562
    %v2645 = vpop.f32.mrf.mxu0
    %v2646 = vadd.f32 0.0, %v2645
    %v2647 = vpop.f32.mrf.mxu0
    %2648 = vdwg.mxu0
    %v2650 = vsel %vm1024, %v2476, 0
    %v2653 = vsel %vm1024, %v2481, 0
    %v2656 = vsel %vm1024, %v2486, 0
    %v2659 = vsel %vm1024, %v2491, 0
    %2661 = vmatprep.subr.mxu0 0.0
    %2662 = vmatpush1.msra.mxu0 0.0
    %2663 = vmatprep.subr.mxu0 0.0
    %2664 = vmatpush1.msra.mxu0 0.0
    %2665 = vmatprep.subr.mxu0 0.0
    %2666 = vmatpush1.msra.mxu0 0.0
    %2667 = vmatprep.subr.mxu0 0.0
    %2668 = vmatpush1.msra.mxu0 0.0
    %2669 = vmatprep.subr.mxu0 0.0
    %2670 = vmatpush1.msra.mxu0 0.0
    %2671 = vmatprep.subr.mxu0 0.0
    %2672 = vmatpush1.msra.mxu0 0.0
    %2673 = vmatprep.subr.mxu0 0.0
    %2674 = vmatpush1.msra.mxu0 0.0
    %2675 = vmatprep.subr.mxu0 0.0
    %2676 = vmatpush1.msra.mxu0 0.0
    %2677 = vmatprep.subr.mxu0 0.0
    %2678 = vmatpush1.msra.mxu0 %v2542
    %2679 = vmatprep.subr.mxu0 0.0
    %2680 = vmatpush1.msra.mxu0 %v2541
    %2681 = vmatprep.subr.mxu0 0.0
    %2682 = vmatpush1.msra.mxu0 %v2540
    %2683 = vmatprep.subr.mxu0 0.0
    %2684 = vmatpush1.msra.mxu0 %v2539
    %2685 = vmatprep.subr.mxu0 0.0
    %2686 = vmatpush1.msra.mxu0 %v2538
    %2687 = vmatprep.subr.mxu0 0.0
    %2688 = vmatpush1.msra.mxu0 %v2537
    %2689 = vmatprep.subr.mxu0 0.0
    %2690 = vmatpush1.msra.mxu0 %v2536
    %2691 = vmatprep.subr.mxu0 0.0
    %2692 = vmatpush1.msra.mxu0 %v2535
    %2693 = vmatprep.subr.mxu0 0.0
    %2694 = vmatpush2.msra.mxu0 0.0
    %2695 = vmatprep.subr.mxu0 0.0
    %2696 = vmatpush2.msra.mxu0 0.0
    %2697 = vmatprep.subr.mxu0 0.0
    %2698 = vmatpush2.msra.mxu0 0.0
    %2699 = vmatprep.subr.mxu0 0.0
    %2700 = vmatpush2.msra.mxu0 0.0
    %2701 = vmatprep.subr.mxu0 0.0
    %2702 = vmatpush2.msra.mxu0 0.0
    %2703 = vmatprep.subr.mxu0 0.0
    %2704 = vmatpush2.msra.mxu0 0.0
    %2705 = vmatprep.subr.mxu0 0.0
    %2706 = vmatpush2.msra.mxu0 0.0
    %2707 = vmatprep.subr.mxu0 0.0
    %2708 = vmatpush2.msra.mxu0 0.0
    %2709 = vmatprep.subr.mxu0 0.0
    %2710 = vmatpush2.msra.mxu0 0.0
    %2711 = vmatprep.subr.mxu0 0.0
    %2712 = vmatpush2.msra.mxu0 0.0
    %2713 = vmatprep.subr.mxu0 0.0
    %2714 = vmatpush2.msra.mxu0 0.0
    %2715 = vmatprep.subr.mxu0 0.0
    %2716 = vmatpush2.msra.mxu0 0.0
    %2717 = vmatprep.subr.mxu0 0.0
    %2718 = vmatpush2.msra.mxu0 0.0
    %2719 = vmatprep.subr.mxu0 0.0
    %2720 = vmatpush2.msra.mxu0 0.0
    %2721 = vmatprep.subr.mxu0 0.0
    %2722 = vmatpush2.msra.mxu0 0.0
    %2723 = vmatprep.subr.mxu0 0.0
    %2724 = vmatpush2.msra.mxu0 0.0
    %2725 = vmatprep.mubr.f32.mxu0 0.0
    %2726 = vmatmul.mubr.f32.gmra.mxu0 %v2650
    %v2727 = vpop.f32.mrf.mxu0
    %v2728 = vadd.f32 %v2631, %v2727
    %v2729 = vpop.f32.mrf.mxu0
    %2730 = vmatprep.mubr.f32.mxu0 0.0
    %2731 = vmatmul.mubr.f32.gmra.mxu0 %v2653
    %v2732 = vpop.f32.mrf.mxu0
    %v2733 = vadd.f32 %v2636, %v2732
    %v2734 = vpop.f32.mrf.mxu0
    %2735 = vmatprep.mubr.f32.mxu0 0.0
    %2736 = vmatmul.mubr.f32.gmra.mxu0 %v2656
    %v2737 = vpop.f32.mrf.mxu0
    %v2738 = vadd.f32 %v2641, %v2737
    %v2739 = vpop.f32.mrf.mxu0
    %2740 = vmatprep.mubr.f32.mxu0 0.0
    %2741 = vmatmul.mubr.f32.gmra.mxu0 %v2659
    %v2742 = vpop.f32.mrf.mxu0
    %v2743 = vadd.f32 %v2646, %v2742
    %v2744 = vpop.f32.mrf.mxu0
    %2745 = vdwg.mxu0
    %s2746 = scalar_lea.vmem %s2, 512
    %v2747 = vld [vmem:[%s2746] sm:$0xff]
    %v2748 = vld [vmem:[%s2746 + $0x8] sm:$0xff]
    %v2749 = vld [vmem:[%s2746 + $0x10] sm:$0xff]
    %v2750 = vld [vmem:[%s2746 + $0x18] sm:$0xff]
    %v2751 = vld [vmem:[%s2746 + $0x20] sm:$0xff]
    %v2752 = vld [vmem:[%s2746 + $0x28] sm:$0xff]
    %v2753 = vld [vmem:[%s2746 + $0x30] sm:$0xff]
    %v2754 = vld [vmem:[%s2746 + $0x38] sm:$0xff]
    %v2756 = vsel %vm1024, %v2516, 0
    %v2759 = vsel %vm1024, %v2521, 0
    %v2762 = vsel %vm1024, %v2526, 0
    %v2765 = vsel %vm1024, %v2531, 0
    %2767 = vmatprep.subr.mxu0 0.0
    %2768 = vmatpush1.msra.mxu0 0.0
    %2769 = vmatprep.subr.mxu0 0.0
    %2770 = vmatpush1.msra.mxu0 0.0
    %2771 = vmatprep.subr.mxu0 0.0
    %2772 = vmatpush1.msra.mxu0 0.0
    %2773 = vmatprep.subr.mxu0 0.0
    %2774 = vmatpush1.msra.mxu0 0.0
    %2775 = vmatprep.subr.mxu0 0.0
    %2776 = vmatpush1.msra.mxu0 0.0
    %2777 = vmatprep.subr.mxu0 0.0
    %2778 = vmatpush1.msra.mxu0 0.0
    %2779 = vmatprep.subr.mxu0 0.0
    %2780 = vmatpush1.msra.mxu0 0.0
    %2781 = vmatprep.subr.mxu0 0.0
    %2782 = vmatpush1.msra.mxu0 0.0
    %2783 = vmatprep.subr.mxu0 0.0
    %2784 = vmatpush1.msra.mxu0 %v2754
    %2785 = vmatprep.subr.mxu0 0.0
    %2786 = vmatpush1.msra.mxu0 %v2753
    %2787 = vmatprep.subr.mxu0 0.0
    %2788 = vmatpush1.msra.mxu0 %v2752
    %2789 = vmatprep.subr.mxu0 0.0
    %2790 = vmatpush1.msra.mxu0 %v2751
    %2791 = vmatprep.subr.mxu0 0.0
    %2792 = vmatpush1.msra.mxu0 %v2750
    %2793 = vmatprep.subr.mxu0 0.0
    %2794 = vmatpush1.msra.mxu0 %v2749
    %2795 = vmatprep.subr.mxu0 0.0
    %2796 = vmatpush1.msra.mxu0 %v2748
    %2797 = vmatprep.subr.mxu0 0.0
    %2798 = vmatpush1.msra.mxu0 %v2747
    %2799 = vmatprep.subr.mxu0 0.0
    %2800 = vmatpush2.msra.mxu0 0.0
    %2801 = vmatprep.subr.mxu0 0.0
    %2802 = vmatpush2.msra.mxu0 0.0
    %2803 = vmatprep.subr.mxu0 0.0
    %2804 = vmatpush2.msra.mxu0 0.0
    %2805 = vmatprep.subr.mxu0 0.0
    %2806 = vmatpush2.msra.mxu0 0.0
    %2807 = vmatprep.subr.mxu0 0.0
    %2808 = vmatpush2.msra.mxu0 0.0
    %2809 = vmatprep.subr.mxu0 0.0
    %2810 = vmatpush2.msra.mxu0 0.0
    %2811 = vmatprep.subr.mxu0 0.0
    %2812 = vmatpush2.msra.mxu0 0.0
    %2813 = vmatprep.subr.mxu0 0.0
    %2814 = vmatpush2.msra.mxu0 0.0
    %2815 = vmatprep.subr.mxu0 0.0
    %2816 = vmatpush2.msra.mxu0 0.0
    %2817 = vmatprep.subr.mxu0 0.0
    %2818 = vmatpush2.msra.mxu0 0.0
    %2819 = vmatprep.subr.mxu0 0.0
    %2820 = vmatpush2.msra.mxu0 0.0
    %2821 = vmatprep.subr.mxu0 0.0
    %2822 = vmatpush2.msra.mxu0 0.0
    %2823 = vmatprep.subr.mxu0 0.0
    %2824 = vmatpush2.msra.mxu0 0.0
    %2825 = vmatprep.subr.mxu0 0.0
    %2826 = vmatpush2.msra.mxu0 0.0
    %2827 = vmatprep.subr.mxu0 0.0
    %2828 = vmatpush2.msra.mxu0 0.0
    %2829 = vmatprep.subr.mxu0 0.0
    %2830 = vmatpush2.msra.mxu0 0.0
    %2831 = vmatprep.mubr.f32.mxu0 0.0
    %2832 = vmatmul.mubr.f32.gmra.mxu0 %v2756
    %v2833 = vpop.f32.mrf.mxu0
    %v2834 = vadd.f32 0.0, %v2833
    %v2835 = vpop.f32.mrf.mxu0
    %2836 = vmatprep.mubr.f32.mxu0 0.0
    %2837 = vmatmul.mubr.f32.gmra.mxu0 %v2759
    %v2838 = vpop.f32.mrf.mxu0
    %v2839 = vadd.f32 0.0, %v2838
    %v2840 = vpop.f32.mrf.mxu0
    %2841 = vmatprep.mubr.f32.mxu0 0.0
    %2842 = vmatmul.mubr.f32.gmra.mxu0 %v2762
    %v2843 = vpop.f32.mrf.mxu0
    %v2844 = vadd.f32 0.0, %v2843
    %v2845 = vpop.f32.mrf.mxu0
    %2846 = vmatprep.mubr.f32.mxu0 0.0
    %2847 = vmatmul.mubr.f32.gmra.mxu0 %v2765
    %v2848 = vpop.f32.mrf.mxu0
    %v2849 = vadd.f32 0.0, %v2848
    %v2850 = vpop.f32.mrf.mxu0
    %2851 = vdwg.mxu0
    %v2852 = vadd.f32 %v2728, %v2834
    %v2853 = vadd.f32 %v2733, %v2839
    %v2854 = vadd.f32 %v2738, %v2844
    %v2855 = vadd.f32 %v2743, %v2849
    %s2856 = scalar_lea.vmem [#allocation2], 128
    %v2857 = vld [vmem:[%s2856] sm:$0xff]
    %v2858 = vld [vmem:[%s2856 + $0x8] sm:$0xff]
    %v2859 = vld [vmem:[%s2856 + $0x10] sm:$0xff]
    %v2860 = vld [vmem:[%s2856 + $0x18] sm:$0xff]
    %v2861 = vld [vmem:[%s2856 + $0x20] sm:$0xff]
    %v2862 = vld [vmem:[%s2856 + $0x28] sm:$0xff]
    %v2863 = vld [vmem:[%s2856 + $0x30] sm:$0xff]
    %v2864 = vld [vmem:[%s2856 + $0x38] sm:$0xff]
    %v2866 = vsel %vm1024, %v2852, 0
    %v2869 = vsel %vm1024, %v2853, 0
    %v2872 = vsel %vm1024, %v2854, 0
    %v2875 = vsel %vm1024, %v2855, 0
    %2877 = vmatprep.subr.mxu0 0.0
    %2878 = vmatpush1.msra.mxu0 0.0
    %2879 = vmatprep.subr.mxu0 0.0
    %2880 = vmatpush1.msra.mxu0 0.0
    %2881 = vmatprep.subr.mxu0 0.0
    %2882 = vmatpush1.msra.mxu0 0.0
    %2883 = vmatprep.subr.mxu0 0.0
    %2884 = vmatpush1.msra.mxu0 0.0
    %2885 = vmatprep.subr.mxu0 0.0
    %2886 = vmatpush1.msra.mxu0 0.0
    %2887 = vmatprep.subr.mxu0 0.0
    %2888 = vmatpush1.msra.mxu0 0.0
    %2889 = vmatprep.subr.mxu0 0.0
    %2890 = vmatpush1.msra.mxu0 0.0
    %2891 = vmatprep.subr.mxu0 0.0
    %2892 = vmatpush1.msra.mxu0 0.0
    %2893 = vmatprep.subr.mxu0 0.0
    %2894 = vmatpush1.msra.mxu0 %v2864
    %2895 = vmatprep.subr.mxu0 0.0
    %2896 = vmatpush1.msra.mxu0 %v2863
    %2897 = vmatprep.subr.mxu0 0.0
    %2898 = vmatpush1.msra.mxu0 %v2862
    %2899 = vmatprep.subr.mxu0 0.0
    %2900 = vmatpush1.msra.mxu0 %v2861
    %2901 = vmatprep.subr.mxu0 0.0
    %2902 = vmatpush1.msra.mxu0 %v2860
    %2903 = vmatprep.subr.mxu0 0.0
    %2904 = vmatpush1.msra.mxu0 %v2859
    %2905 = vmatprep.subr.mxu0 0.0
    %2906 = vmatpush1.msra.mxu0 %v2858
    %2907 = vmatprep.subr.mxu0 0.0
    %2908 = vmatpush1.msra.mxu0 %v2857
    %2909 = vmatprep.subr.mxu0 0.0
    %2910 = vmatpush2.msra.mxu0 0.0
    %2911 = vmatprep.subr.mxu0 0.0
    %2912 = vmatpush2.msra.mxu0 0.0
    %2913 = vmatprep.subr.mxu0 0.0
    %2914 = vmatpush2.msra.mxu0 0.0
    %2915 = vmatprep.subr.mxu0 0.0
    %2916 = vmatpush2.msra.mxu0 0.0
    %2917 = vmatprep.subr.mxu0 0.0
    %2918 = vmatpush2.msra.mxu0 0.0
    %2919 = vmatprep.subr.mxu0 0.0
    %2920 = vmatpush2.msra.mxu0 0.0
    %2921 = vmatprep.subr.mxu0 0.0
    %2922 = vmatpush2.msra.mxu0 0.0
    %2923 = vmatprep.subr.mxu0 0.0
    %2924 = vmatpush2.msra.mxu0 0.0
    %2925 = vmatprep.subr.mxu0 0.0
    %2926 = vmatpush2.msra.mxu0 0.0
    %2927 = vmatprep.subr.mxu0 0.0
    %2928 = vmatpush2.msra.mxu0 0.0
    %2929 = vmatprep.subr.mxu0 0.0
    %2930 = vmatpush2.msra.mxu0 0.0
    %2931 = vmatprep.subr.mxu0 0.0
    %2932 = vmatpush2.msra.mxu0 0.0
    %2933 = vmatprep.subr.mxu0 0.0
    %2934 = vmatpush2.msra.mxu0 0.0
    %2935 = vmatprep.subr.mxu0 0.0
    %2936 = vmatpush2.msra.mxu0 0.0
    %2937 = vmatprep.subr.mxu0 0.0
    %2938 = vmatpush2.msra.mxu0 0.0
    %2939 = vmatprep.subr.mxu0 0.0
    %2940 = vmatpush2.msra.mxu0 0.0
    %2941 = vmatprep.mubr.f32.mxu0 0.0
    %2942 = vmatmul.mubr.f32.gmra.mxu0 %v2866
    %v2943 = vpop.f32.mrf.mxu0
    %v2944 = vadd.f32 0.0, %v2943
    %v2945 = vpop.f32.mrf.mxu0
    %2946 = vmatprep.mubr.f32.mxu0 0.0
    %2947 = vmatmul.mubr.f32.gmra.mxu0 %v2869
    %v2948 = vpop.f32.mrf.mxu0
    %v2949 = vadd.f32 0.0, %v2948
    %v2950 = vpop.f32.mrf.mxu0
    %2951 = vmatprep.mubr.f32.mxu0 0.0
    %2952 = vmatmul.mubr.f32.gmra.mxu0 %v2872
    %v2953 = vpop.f32.mrf.mxu0
    %v2954 = vadd.f32 0.0, %v2953
    %v2955 = vpop.f32.mrf.mxu0
    %2956 = vmatprep.mubr.f32.mxu0 0.0
    %2957 = vmatmul.mubr.f32.gmra.mxu0 %v2875
    %v2958 = vpop.f32.mrf.mxu0
    %v2959 = vadd.f32 0.0, %v2958
    %v2960 = vpop.f32.mrf.mxu0
    %2961 = vdwg.mxu0
    %v2962 = vsel %vm1024, %v2944, 0.0
    %v2963 = vsel %vm1024, %v2949, 0.0
    %v2964 = vadd.f32 %v2962, %v2963
    %v2965 = vsel %vm1024, %v2954, 0.0
    %v2966 = vadd.f32 %v2964, %v2965
    %v2967 = vsel %vm1024, %v2959, 0.0
    %v2968 = vadd.f32 %v2966, %v2967
    %v2969 = vrot.slane %v2968, 4
    %v2970 = vadd.f32 %v2968, %v2969
    %v2971 = vrot.slane %v2970, 2
    %v2972 = vadd.f32 %v2970, %v2971
    %v2973 = vrot.slane %v2972, 1
    %v2974 = vadd.f32 %v2972, %v2973
    %v2975 = vmul.f32 %v2852, %v2852
    %v2976 = vmul.f32 %v2853, %v2853
    %v2977 = vmul.f32 %v2854, %v2854
    %v2978 = vmul.f32 %v2855, %v2855
    %v2980 = vsel %vm1024, %v2975, 0
    %v2983 = vsel %vm1024, %v2976, 0
    %v2986 = vsel %vm1024, %v2977, 0
    %v2989 = vsel %vm1024, %v2978, 0
    %2991 = vmatprep.subr.mxu0 0.0
    %2992 = vmatpush1.msra.mxu0 0.0
    %2993 = vmatprep.subr.mxu0 0.0
    %2994 = vmatpush1.msra.mxu0 0.0
    %2995 = vmatprep.subr.mxu0 0.0
    %2996 = vmatpush1.msra.mxu0 0.0
    %2997 = vmatprep.subr.mxu0 0.0
    %2998 = vmatpush1.msra.mxu0 0.0
    %2999 = vmatprep.subr.mxu0 0.0
    %3000 = vmatpush1.msra.mxu0 0.0
    %3001 = vmatprep.subr.mxu0 0.0
    %3002 = vmatpush1.msra.mxu0 0.0
    %3003 = vmatprep.subr.mxu0 0.0
    %3004 = vmatpush1.msra.mxu0 0.0
    %3005 = vmatprep.subr.mxu0 0.0
    %3006 = vmatpush1.msra.mxu0 0.0
    %3007 = vmatprep.subr.mxu0 0.0
    %3008 = vmatpush1.msra.mxu0 %v2864
    %3009 = vmatprep.subr.mxu0 0.0
    %3010 = vmatpush1.msra.mxu0 %v2863
    %3011 = vmatprep.subr.mxu0 0.0
    %3012 = vmatpush1.msra.mxu0 %v2862
    %3013 = vmatprep.subr.mxu0 0.0
    %3014 = vmatpush1.msra.mxu0 %v2861
    %3015 = vmatprep.subr.mxu0 0.0
    %3016 = vmatpush1.msra.mxu0 %v2860
    %3017 = vmatprep.subr.mxu0 0.0
    %3018 = vmatpush1.msra.mxu0 %v2859
    %3019 = vmatprep.subr.mxu0 0.0
    %3020 = vmatpush1.msra.mxu0 %v2858
    %3021 = vmatprep.subr.mxu0 0.0
    %3022 = vmatpush1.msra.mxu0 %v2857
    %3023 = vmatprep.subr.mxu0 0.0
    %3024 = vmatpush2.msra.mxu0 0.0
    %3025 = vmatprep.subr.mxu0 0.0
    %3026 = vmatpush2.msra.mxu0 0.0
    %3027 = vmatprep.subr.mxu0 0.0
    %3028 = vmatpush2.msra.mxu0 0.0
    %3029 = vmatprep.subr.mxu0 0.0
    %3030 = vmatpush2.msra.mxu0 0.0
    %3031 = vmatprep.subr.mxu0 0.0
    %3032 = vmatpush2.msra.mxu0 0.0
    %3033 = vmatprep.subr.mxu0 0.0
    %3034 = vmatpush2.msra.mxu0 0.0
    %3035 = vmatprep.subr.mxu0 0.0
    %3036 = vmatpush2.msra.mxu0 0.0
    %3037 = vmatprep.subr.mxu0 0.0
    %3038 = vmatpush2.msra.mxu0 0.0
    %3039 = vmatprep.subr.mxu0 0.0
    %3040 = vmatpush2.msra.mxu0 0.0
    %3041 = vmatprep.subr.mxu0 0.0
    %3042 = vmatpush2.msra.mxu0 0.0
    %3043 = vmatprep.subr.mxu0 0.0
    %3044 = vmatpush2.msra.mxu0 0.0
    %3045 = vmatprep.subr.mxu0 0.0
    %3046 = vmatpush2.msra.mxu0 0.0
    %3047 = vmatprep.subr.mxu0 0.0
    %3048 = vmatpush2.msra.mxu0 0.0
    %3049 = vmatprep.subr.mxu0 0.0
    %3050 = vmatpush2.msra.mxu0 0.0
    %3051 = vmatprep.subr.mxu0 0.0
    %3052 = vmatpush2.msra.mxu0 0.0
    %3053 = vmatprep.subr.mxu0 0.0
    %3054 = vmatpush2.msra.mxu0 0.0
    %3055 = vmatprep.mubr.f32.mxu0 0.0
    %3056 = vmatmul.mubr.f32.gmra.mxu0 %v2980
    %v3057 = vpop.f32.mrf.mxu0
    %v3058 = vadd.f32 0.0, %v3057
    %v3059 = vpop.f32.mrf.mxu0
    %3060 = vmatprep.mubr.f32.mxu0 0.0
    %3061 = vmatmul.mubr.f32.gmra.mxu0 %v2983
    %v3062 = vpop.f32.mrf.mxu0
    %v3063 = vadd.f32 0.0, %v3062
    %v3064 = vpop.f32.mrf.mxu0
    %3065 = vmatprep.mubr.f32.mxu0 0.0
    %3066 = vmatmul.mubr.f32.gmra.mxu0 %v2986
    %v3067 = vpop.f32.mrf.mxu0
    %v3068 = vadd.f32 0.0, %v3067
    %v3069 = vpop.f32.mrf.mxu0
    %3070 = vmatprep.mubr.f32.mxu0 0.0
    %3071 = vmatmul.mubr.f32.gmra.mxu0 %v2989
    %v3072 = vpop.f32.mrf.mxu0
    %v3073 = vadd.f32 0.0, %v3072
    %v3074 = vpop.f32.mrf.mxu0
    %3075 = vdwg.mxu0
    %v3076 = vsel %vm1024, %v3058, 0.0
    %v3077 = vsel %vm1024, %v3063, 0.0
    %v3078 = vadd.f32 %v3076, %v3077
    %v3079 = vsel %vm1024, %v3068, 0.0
    %v3080 = vadd.f32 %v3078, %v3079
    %v3081 = vsel %vm1024, %v3073, 0.0
    %v3082 = vadd.f32 %v3080, %v3081
    %v3083 = vrot.slane %v3082, 4
    %v3084 = vadd.f32 %v3082, %v3083
    %v3085 = vrot.slane %v3084, 2
    %v3086 = vadd.f32 %v3084, %v3085
    %v3087 = vrot.slane %v3086, 1
    %v3088 = vadd.f32 %v3086, %v3087
    %v3089 = vmul.f32 %v2974, %v2974
    %v3090 = vsub.f32 %v3088, %v3089
    %v3091 = vmax.f32 %v3090, 0.0
    %s3092 = scalar_lea.vmem %s4, 2
    %v3093 = vld [vmem:[%s3092] sm:$0x1]
    %v3094 = vadd.f32 %v3091, 1e-05
    %v3095 = vrsqrt.pop %v3094
    %v3096 = vmul.f32 %v3093, %v3095
    %s3097 = scalar_lea.vmem %s5, 2
    %v3098 = vld [vmem:[%s3097] sm:$0x1]
    %v3099 = vmul.f32 %v2974, %v3096
    %v3100 = vsub.f32 %v3098, %v3099
    %v3102 = vlaneseq
    %v3103 = vshrl.u32 %v3102, 7
    %v3104 = vsub.s32 0, %v3103
    %v3105 = vrot.slane %v3096, %v3104
    %v3107 = vmul.f32 %v2852, %v3105
    %v3108 = vmul.f32 %v2853, %v3105
    %v3109 = vmul.f32 %v2854, %v3105
    %v3110 = vmul.f32 %v2855, %v3105
    %v3112 = vlaneseq
    %v3113 = vshrl.u32 %v3112, 7
    %v3114 = vsub.s32 0, %v3113
    %v3115 = vrot.slane %v3100, %v3114
    %v3117 = vadd.f32 %v3107, %v3115
    %v3118 = vadd.f32 %v3108, %v3115
    %v3119 = vadd.f32 %v3109, %v3115
    %v3120 = vadd.f32 %v3110, %v3115
    %v3121 = vmax.f32 %v3117, 0.0
    %v3122 = vmax.f32 %v3118, 0.0
    %v3123 = vmax.f32 %v3119, 0.0
    %v3124 = vmax.f32 %v3120, 0.0
    %s3125 = scalar_lea.vmem %s1, 288
    %v3126 = vld [vmem:[%s3125] sm:$0xff]
    %v3127 = vld [vmem:[%s3125 + $0x8] sm:$0xff]
    %v3128 = vld [vmem:[%s3125 + $0x10] sm:$0xff]
    %v3129 = vld [vmem:[%s3125 + $0x18] sm:$0xff]
    %v3130 = vld [vmem:[%s3125 + $0x20] sm:$0xff]
    %v3131 = vld [vmem:[%s3125 + $0x28] sm:$0xff]
    %v3132 = vld [vmem:[%s3125 + $0x30] sm:$0xff]
    %v3133 = vld [vmem:[%s3125 + $0x38] sm:$0xff]
    %v3134 = vld [vmem:[%s3125 + $0x40] sm:$0xff]
    %v3135 = vld [vmem:[%s3125 + $0x48] sm:$0xff]
    %v3136 = vld [vmem:[%s3125 + $0x50] sm:$0xff]
    %v3137 = vld [vmem:[%s3125 + $0x58] sm:$0xff]
    %v3139 = vsel %vm845, %v3126, 0
    %v3142 = vsel %vm845, %v3127, 0
    %v3145 = vsel %vm845, %v3128, 0
    %v3148 = vsel %vm845, %v3129, 0
    %v3151 = vsel %vm845, %v3130, 0
    %v3154 = vsel %vm845, %v3131, 0
    %v3157 = vsel %vm845, %v3132, 0
    %v3160 = vsel %vm845, %v3133, 0
    %v3163 = vsel %vm845, %v3134, 0
    %v3166 = vsel %vm845, %v3135, 0
    %v3169 = vsel %vm845, %v3136, 0
    %v3172 = vsel %vm845, %v3137, 0
    %3174 = vmatprep.subr.mxu0 0.0
    %3175 = vmatpush1.msra.mxu0 0.0
    %3176 = vmatprep.subr.mxu0 0.0
    %3177 = vmatpush1.msra.mxu0 0.0
    %3178 = vmatprep.subr.mxu0 0.0
    %3179 = vmatpush1.msra.mxu0 0.0
    %3180 = vmatprep.subr.mxu0 0.0
    %3181 = vmatpush1.msra.mxu0 0.0
    %3182 = vmatprep.subr.mxu0 0.0
    %3183 = vmatpush1.msra.mxu0 0.0
    %3184 = vmatprep.subr.mxu0 0.0
    %3185 = vmatpush1.msra.mxu0 0.0
    %3186 = vmatprep.subr.mxu0 0.0
    %3187 = vmatpush1.msra.mxu0 0.0
    %3188 = vmatprep.subr.mxu0 0.0
    %3189 = vmatpush1.msra.mxu0 0.0
    %3190 = vmatprep.subr.mxu0 0.0
    %3191 = vmatpush1.msra.mxu0 0.0
    %3192 = vmatprep.subr.mxu0 0.0
    %3193 = vmatpush1.msra.mxu0 0.0
    %3194 = vmatprep.subr.mxu0 0.0
    %3195 = vmatpush1.msra.mxu0 0.0
    %3196 = vmatprep.subr.mxu0 0.0
    %3197 = vmatpush1.msra.mxu0 0.0
    %3198 = vmatprep.subr.mxu0 0.0
    %3199 = vmatpush1.msra.mxu0 %v3124
    %3200 = vmatprep.subr.mxu0 0.0
    %3201 = vmatpush1.msra.mxu0 %v3123
    %3202 = vmatprep.subr.mxu0 0.0
    %3203 = vmatpush1.msra.mxu0 %v3122
    %3204 = vmatprep.subr.mxu0 0.0
    %3205 = vmatpush1.msra.mxu0 %v3121
    %3206 = vmatprep.subr.mxu0 0.0
    %3207 = vmatpush2.msra.mxu0 0.0
    %3208 = vmatprep.subr.mxu0 0.0
    %3209 = vmatpush2.msra.mxu0 0.0
    %3210 = vmatprep.subr.mxu0 0.0
    %3211 = vmatpush2.msra.mxu0 0.0
    %3212 = vmatprep.subr.mxu0 0.0
    %3213 = vmatpush2.msra.mxu0 0.0
    %3214 = vmatprep.subr.mxu0 0.0
    %3215 = vmatpush2.msra.mxu0 0.0
    %3216 = vmatprep.subr.mxu0 0.0
    %3217 = vmatpush2.msra.mxu0 0.0
    %3218 = vmatprep.subr.mxu0 0.0
    %3219 = vmatpush2.msra.mxu0 0.0
    %3220 = vmatprep.subr.mxu0 0.0
    %3221 = vmatpush2.msra.mxu0 0.0
    %3222 = vmatprep.subr.mxu0 0.0
    %3223 = vmatpush2.msra.mxu0 0.0
    %3224 = vmatprep.subr.mxu0 0.0
    %3225 = vmatpush2.msra.mxu0 0.0
    %3226 = vmatprep.subr.mxu0 0.0
    %3227 = vmatpush2.msra.mxu0 0.0
    %3228 = vmatprep.subr.mxu0 0.0
    %3229 = vmatpush2.msra.mxu0 0.0
    %3230 = vmatprep.subr.mxu0 0.0
    %3231 = vmatpush2.msra.mxu0 0.0
    %3232 = vmatprep.subr.mxu0 0.0
    %3233 = vmatpush2.msra.mxu0 0.0
    %3234 = vmatprep.subr.mxu0 0.0
    %3235 = vmatpush2.msra.mxu0 0.0
    %3236 = vmatprep.subr.mxu0 0.0
    %3237 = vmatpush2.msra.mxu0 0.0
    %3238 = vmatprep.mubr.f32.mxu0 0.0
    %3239 = vmatmul.mubr.f32.gmra.mxu0 %v3139
    %v3240 = vpop.f32.mrf.mxu0
    %v3241 = vadd.f32 0.0, %v3240
    %v3242 = vpop.f32.mrf.mxu0
    %3243 = vmatprep.mubr.f32.mxu0 0.0
    %3244 = vmatmul.mubr.f32.gmra.mxu0 %v3142
    %v3245 = vpop.f32.mrf.mxu0
    %v3246 = vadd.f32 0.0, %v3245
    %v3247 = vpop.f32.mrf.mxu0
    %3248 = vmatprep.mubr.f32.mxu0 0.0
    %3249 = vmatmul.mubr.f32.gmra.mxu0 %v3145
    %v3250 = vpop.f32.mrf.mxu0
    %v3251 = vadd.f32 0.0, %v3250
    %v3252 = vpop.f32.mrf.mxu0
    %3253 = vmatprep.mubr.f32.mxu0 0.0
    %3254 = vmatmul.mubr.f32.gmra.mxu0 %v3148
    %v3255 = vpop.f32.mrf.mxu0
    %v3256 = vadd.f32 0.0, %v3255
    %v3257 = vpop.f32.mrf.mxu0
    %3258 = vmatprep.mubr.f32.mxu0 0.0
    %3259 = vmatmul.mubr.f32.gmra.mxu0 %v3151
    %v3260 = vpop.f32.mrf.mxu0
    %v3261 = vadd.f32 0.0, %v3260
    %v3262 = vpop.f32.mrf.mxu0
    %3263 = vmatprep.mubr.f32.mxu0 0.0
    %3264 = vmatmul.mubr.f32.gmra.mxu0 %v3154
    %v3265 = vpop.f32.mrf.mxu0
    %v3266 = vadd.f32 0.0, %v3265
    %v3267 = vpop.f32.mrf.mxu0
    %3268 = vmatprep.mubr.f32.mxu0 0.0
    %3269 = vmatmul.mubr.f32.gmra.mxu0 %v3157
    %v3270 = vpop.f32.mrf.mxu0
    %v3271 = vadd.f32 0.0, %v3270
    %v3272 = vpop.f32.mrf.mxu0
    %3273 = vmatprep.mubr.f32.mxu0 0.0
    %3274 = vmatmul.mubr.f32.gmra.mxu0 %v3160
    %v3275 = vpop.f32.mrf.mxu0
    %v3276 = vadd.f32 0.0, %v3275
    %v3277 = vpop.f32.mrf.mxu0
    %3278 = vmatprep.mubr.f32.mxu0 0.0
    %3279 = vmatmul.mubr.f32.gmra.mxu0 %v3163
    %v3280 = vpop.f32.mrf.mxu0
    %v3281 = vadd.f32 0.0, %v3280
    %v3282 = vpop.f32.mrf.mxu0
    %3283 = vmatprep.mubr.f32.mxu0 0.0
    %3284 = vmatmul.mubr.f32.gmra.mxu0 %v3166
    %v3285 = vpop.f32.mrf.mxu0
    %v3286 = vadd.f32 0.0, %v3285
    %v3287 = vpop.f32.mrf.mxu0
    %3288 = vmatprep.mubr.f32.mxu0 0.0
    %3289 = vmatmul.mubr.f32.gmra.mxu0 %v3169
    %v3290 = vpop.f32.mrf.mxu0
    %v3291 = vadd.f32 0.0, %v3290
    %v3292 = vpop.f32.mrf.mxu0
    %3293 = vmatprep.mubr.f32.mxu0 0.0
    %3294 = vmatmul.mubr.f32.gmra.mxu0 %v3172
    %v3295 = vpop.f32.mrf.mxu0
    %v3296 = vadd.f32 0.0, %v3295
    %v3297 = vpop.f32.mrf.mxu0
    %3298 = vdwg.mxu0
    %s3299 = scalar_lea.vmem %s2, 576
    %v3300 = vld [vmem:[%s3299] sm:$0xff]
    %v3301 = vld [vmem:[%s3299 + $0x8] sm:$0xff]
    %v3302 = vld [vmem:[%s3299 + $0x10] sm:$0xff]
    %v3303 = vld [vmem:[%s3299 + $0x18] sm:$0xff]
    %v3304 = vld [vmem:[%s3299 + $0x20] sm:$0xff]
    %v3305 = vld [vmem:[%s3299 + $0x28] sm:$0xff]
    %v3306 = vld [vmem:[%s3299 + $0x30] sm:$0xff]
    %v3307 = vld [vmem:[%s3299 + $0x38] sm:$0xff]
    %s3308 = scalar_lea.vmem %s2, 640
    %v3309 = vld [vmem:[%s3308] sm:$0xff]
    %v3310 = vld [vmem:[%s3308 + $0x8] sm:$0xff]
    %v3311 = vld [vmem:[%s3308 + $0x10] sm:$0xff]
    %v3312 = vld [vmem:[%s3308 + $0x18] sm:$0xff]
    %v3313 = vld [vmem:[%s3308 + $0x20] sm:$0xff]
    %v3314 = vld [vmem:[%s3308 + $0x28] sm:$0xff]
    %v3315 = vld [vmem:[%s3308 + $0x30] sm:$0xff]
    %v3316 = vld [vmem:[%s3308 + $0x38] sm:$0xff]
    %v3318 = vsel %vm1024, %v3261, 0
    %v3321 = vsel %vm1024, %v3266, 0
    %v3324 = vsel %vm1024, %v3271, 0
    %v3327 = vsel %vm1024, %v3276, 0
    %3329 = vmatprep.subr.mxu0 0.0
    %3330 = vmatpush1.msra.mxu0 0.0
    %3331 = vmatprep.subr.mxu0 0.0
    %3332 = vmatpush1.msra.mxu0 0.0
    %3333 = vmatprep.subr.mxu0 0.0
    %3334 = vmatpush1.msra.mxu0 0.0
    %3335 = vmatprep.subr.mxu0 0.0
    %3336 = vmatpush1.msra.mxu0 0.0
    %3337 = vmatprep.subr.mxu0 0.0
    %3338 = vmatpush1.msra.mxu0 0.0
    %3339 = vmatprep.subr.mxu0 0.0
    %3340 = vmatpush1.msra.mxu0 0.0
    %3341 = vmatprep.subr.mxu0 0.0
    %3342 = vmatpush1.msra.mxu0 0.0
    %3343 = vmatprep.subr.mxu0 0.0
    %3344 = vmatpush1.msra.mxu0 0.0
    %3345 = vmatprep.subr.mxu0 0.0
    %3346 = vmatpush1.msra.mxu0 %v3316
    %3347 = vmatprep.subr.mxu0 0.0
    %3348 = vmatpush1.msra.mxu0 %v3315
    %3349 = vmatprep.subr.mxu0 0.0
    %3350 = vmatpush1.msra.mxu0 %v3314
    %3351 = vmatprep.subr.mxu0 0.0
    %3352 = vmatpush1.msra.mxu0 %v3313
    %3353 = vmatprep.subr.mxu0 0.0
    %3354 = vmatpush1.msra.mxu0 %v3312
    %3355 = vmatprep.subr.mxu0 0.0
    %3356 = vmatpush1.msra.mxu0 %v3311
    %3357 = vmatprep.subr.mxu0 0.0
    %3358 = vmatpush1.msra.mxu0 %v3310
    %3359 = vmatprep.subr.mxu0 0.0
    %3360 = vmatpush1.msra.mxu0 %v3309
    %3361 = vmatprep.subr.mxu0 0.0
    %3362 = vmatpush2.msra.mxu0 0.0
    %3363 = vmatprep.subr.mxu0 0.0
    %3364 = vmatpush2.msra.mxu0 0.0
    %3365 = vmatprep.subr.mxu0 0.0
    %3366 = vmatpush2.msra.mxu0 0.0
    %3367 = vmatprep.subr.mxu0 0.0
    %3368 = vmatpush2.msra.mxu0 0.0
    %3369 = vmatprep.subr.mxu0 0.0
    %3370 = vmatpush2.msra.mxu0 0.0
    %3371 = vmatprep.subr.mxu0 0.0
    %3372 = vmatpush2.msra.mxu0 0.0
    %3373 = vmatprep.subr.mxu0 0.0
    %3374 = vmatpush2.msra.mxu0 0.0
    %3375 = vmatprep.subr.mxu0 0.0
    %3376 = vmatpush2.msra.mxu0 0.0
    %3377 = vmatprep.subr.mxu0 0.0
    %3378 = vmatpush2.msra.mxu0 0.0
    %3379 = vmatprep.subr.mxu0 0.0
    %3380 = vmatpush2.msra.mxu0 0.0
    %3381 = vmatprep.subr.mxu0 0.0
    %3382 = vmatpush2.msra.mxu0 0.0
    %3383 = vmatprep.subr.mxu0 0.0
    %3384 = vmatpush2.msra.mxu0 0.0
    %3385 = vmatprep.subr.mxu0 0.0
    %3386 = vmatpush2.msra.mxu0 0.0
    %3387 = vmatprep.subr.mxu0 0.0
    %3388 = vmatpush2.msra.mxu0 0.0
    %3389 = vmatprep.subr.mxu0 0.0
    %3390 = vmatpush2.msra.mxu0 0.0
    %3391 = vmatprep.subr.mxu0 0.0
    %3392 = vmatpush2.msra.mxu0 0.0
    %3393 = vmatprep.mubr.f32.mxu0 0.0
    %3394 = vmatmul.mubr.f32.gmra.mxu0 %v3318
    %v3395 = vpop.f32.mrf.mxu0
    %v3396 = vadd.f32 0.0, %v3395
    %v3397 = vpop.f32.mrf.mxu0
    %3398 = vmatprep.mubr.f32.mxu0 0.0
    %3399 = vmatmul.mubr.f32.gmra.mxu0 %v3321
    %v3400 = vpop.f32.mrf.mxu0
    %v3401 = vadd.f32 0.0, %v3400
    %v3402 = vpop.f32.mrf.mxu0
    %3403 = vmatprep.mubr.f32.mxu0 0.0
    %3404 = vmatmul.mubr.f32.gmra.mxu0 %v3324
    %v3405 = vpop.f32.mrf.mxu0
    %v3406 = vadd.f32 0.0, %v3405
    %v3407 = vpop.f32.mrf.mxu0
    %3408 = vmatprep.mubr.f32.mxu0 0.0
    %3409 = vmatmul.mubr.f32.gmra.mxu0 %v3327
    %v3410 = vpop.f32.mrf.mxu0
    %v3411 = vadd.f32 0.0, %v3410
    %v3412 = vpop.f32.mrf.mxu0
    %3413 = vdwg.mxu0
    %v3415 = vsel %vm1024, %v3241, 0
    %v3418 = vsel %vm1024, %v3246, 0
    %v3421 = vsel %vm1024, %v3251, 0
    %v3424 = vsel %vm1024, %v3256, 0
    %3426 = vmatprep.subr.mxu0 0.0
    %3427 = vmatpush1.msra.mxu0 0.0
    %3428 = vmatprep.subr.mxu0 0.0
    %3429 = vmatpush1.msra.mxu0 0.0
    %3430 = vmatprep.subr.mxu0 0.0
    %3431 = vmatpush1.msra.mxu0 0.0
    %3432 = vmatprep.subr.mxu0 0.0
    %3433 = vmatpush1.msra.mxu0 0.0
    %3434 = vmatprep.subr.mxu0 0.0
    %3435 = vmatpush1.msra.mxu0 0.0
    %3436 = vmatprep.subr.mxu0 0.0
    %3437 = vmatpush1.msra.mxu0 0.0
    %3438 = vmatprep.subr.mxu0 0.0
    %3439 = vmatpush1.msra.mxu0 0.0
    %3440 = vmatprep.subr.mxu0 0.0
    %3441 = vmatpush1.msra.mxu0 0.0
    %3442 = vmatprep.subr.mxu0 0.0
    %3443 = vmatpush1.msra.mxu0 %v3307
    %3444 = vmatprep.subr.mxu0 0.0
    %3445 = vmatpush1.msra.mxu0 %v3306
    %3446 = vmatprep.subr.mxu0 0.0
    %3447 = vmatpush1.msra.mxu0 %v3305
    %3448 = vmatprep.subr.mxu0 0.0
    %3449 = vmatpush1.msra.mxu0 %v3304
    %3450 = vmatprep.subr.mxu0 0.0
    %3451 = vmatpush1.msra.mxu0 %v3303
    %3452 = vmatprep.subr.mxu0 0.0
    %3453 = vmatpush1.msra.mxu0 %v3302
    %3454 = vmatprep.subr.mxu0 0.0
    %3455 = vmatpush1.msra.mxu0 %v3301
    %3456 = vmatprep.subr.mxu0 0.0
    %3457 = vmatpush1.msra.mxu0 %v3300
    %3458 = vmatprep.subr.mxu0 0.0
    %3459 = vmatpush2.msra.mxu0 0.0
    %3460 = vmatprep.subr.mxu0 0.0
    %3461 = vmatpush2.msra.mxu0 0.0
    %3462 = vmatprep.subr.mxu0 0.0
    %3463 = vmatpush2.msra.mxu0 0.0
    %3464 = vmatprep.subr.mxu0 0.0
    %3465 = vmatpush2.msra.mxu0 0.0
    %3466 = vmatprep.subr.mxu0 0.0
    %3467 = vmatpush2.msra.mxu0 0.0
    %3468 = vmatprep.subr.mxu0 0.0
    %3469 = vmatpush2.msra.mxu0 0.0
    %3470 = vmatprep.subr.mxu0 0.0
    %3471 = vmatpush2.msra.mxu0 0.0
    %3472 = vmatprep.subr.mxu0 0.0
    %3473 = vmatpush2.msra.mxu0 0.0
    %3474 = vmatprep.subr.mxu0 0.0
    %3475 = vmatpush2.msra.mxu0 0.0
    %3476 = vmatprep.subr.mxu0 0.0
    %3477 = vmatpush2.msra.mxu0 0.0
    %3478 = vmatprep.subr.mxu0 0.0
    %3479 = vmatpush2.msra.mxu0 0.0
    %3480 = vmatprep.subr.mxu0 0.0
    %3481 = vmatpush2.msra.mxu0 0.0
    %3482 = vmatprep.subr.mxu0 0.0
    %3483 = vmatpush2.msra.mxu0 0.0
    %3484 = vmatprep.subr.mxu0 0.0
    %3485 = vmatpush2.msra.mxu0 0.0
    %3486 = vmatprep.subr.mxu0 0.0
    %3487 = vmatpush2.msra.mxu0 0.0
    %3488 = vmatprep.subr.mxu0 0.0
    %3489 = vmatpush2.msra.mxu0 0.0
    %3490 = vmatprep.mubr.f32.mxu0 0.0
    %3491 = vmatmul.mubr.f32.gmra.mxu0 %v3415
    %v3492 = vpop.f32.mrf.mxu0
    %v3493 = vadd.f32 %v3396, %v3492
    %v3494 = vpop.f32.mrf.mxu0
    %3495 = vmatprep.mubr.f32.mxu0 0.0
    %3496 = vmatmul.mubr.f32.gmra.mxu0 %v3418
    %v3497 = vpop.f32.mrf.mxu0
    %v3498 = vadd.f32 %v3401, %v3497
    %v3499 = vpop.f32.mrf.mxu0
    %3500 = vmatprep.mubr.f32.mxu0 0.0
    %3501 = vmatmul.mubr.f32.gmra.mxu0 %v3421
    %v3502 = vpop.f32.mrf.mxu0
    %v3503 = vadd.f32 %v3406, %v3502
    %v3504 = vpop.f32.mrf.mxu0
    %3505 = vmatprep.mubr.f32.mxu0 0.0
    %3506 = vmatmul.mubr.f32.gmra.mxu0 %v3424
    %v3507 = vpop.f32.mrf.mxu0
    %v3508 = vadd.f32 %v3411, %v3507
    %v3509 = vpop.f32.mrf.mxu0
    %3510 = vdwg.mxu0
    %s3511 = scalar_lea.vmem %s2, 704
    %v3512 = vld [vmem:[%s3511] sm:$0xff]
    %v3513 = vld [vmem:[%s3511 + $0x8] sm:$0xff]
    %v3514 = vld [vmem:[%s3511 + $0x10] sm:$0xff]
    %v3515 = vld [vmem:[%s3511 + $0x18] sm:$0xff]
    %v3516 = vld [vmem:[%s3511 + $0x20] sm:$0xff]
    %v3517 = vld [vmem:[%s3511 + $0x28] sm:$0xff]
    %v3518 = vld [vmem:[%s3511 + $0x30] sm:$0xff]
    %v3519 = vld [vmem:[%s3511 + $0x38] sm:$0xff]
    %v3521 = vsel %vm1024, %v3281, 0
    %v3524 = vsel %vm1024, %v3286, 0
    %v3527 = vsel %vm1024, %v3291, 0
    %v3530 = vsel %vm1024, %v3296, 0
    %3532 = vmatprep.subr.mxu0 0.0
    %3533 = vmatpush1.msra.mxu0 0.0
    %3534 = vmatprep.subr.mxu0 0.0
    %3535 = vmatpush1.msra.mxu0 0.0
    %3536 = vmatprep.subr.mxu0 0.0
    %3537 = vmatpush1.msra.mxu0 0.0
    %3538 = vmatprep.subr.mxu0 0.0
    %3539 = vmatpush1.msra.mxu0 0.0
    %3540 = vmatprep.subr.mxu0 0.0
    %3541 = vmatpush1.msra.mxu0 0.0
    %3542 = vmatprep.subr.mxu0 0.0
    %3543 = vmatpush1.msra.mxu0 0.0
    %3544 = vmatprep.subr.mxu0 0.0
    %3545 = vmatpush1.msra.mxu0 0.0
    %3546 = vmatprep.subr.mxu0 0.0
    %3547 = vmatpush1.msra.mxu0 0.0
    %3548 = vmatprep.subr.mxu0 0.0
    %3549 = vmatpush1.msra.mxu0 %v3519
    %3550 = vmatprep.subr.mxu0 0.0
    %3551 = vmatpush1.msra.mxu0 %v3518
    %3552 = vmatprep.subr.mxu0 0.0
    %3553 = vmatpush1.msra.mxu0 %v3517
    %3554 = vmatprep.subr.mxu0 0.0
    %3555 = vmatpush1.msra.mxu0 %v3516
    %3556 = vmatprep.subr.mxu0 0.0
    %3557 = vmatpush1.msra.mxu0 %v3515
    %3558 = vmatprep.subr.mxu0 0.0
    %3559 = vmatpush1.msra.mxu0 %v3514
    %3560 = vmatprep.subr.mxu0 0.0
    %3561 = vmatpush1.msra.mxu0 %v3513
    %3562 = vmatprep.subr.mxu0 0.0
    %3563 = vmatpush1.msra.mxu0 %v3512
    %3564 = vmatprep.subr.mxu0 0.0
    %3565 = vmatpush2.msra.mxu0 0.0
    %3566 = vmatprep.subr.mxu0 0.0
    %3567 = vmatpush2.msra.mxu0 0.0
    %3568 = vmatprep.subr.mxu0 0.0
    %3569 = vmatpush2.msra.mxu0 0.0
    %3570 = vmatprep.subr.mxu0 0.0
    %3571 = vmatpush2.msra.mxu0 0.0
    %3572 = vmatprep.subr.mxu0 0.0
    %3573 = vmatpush2.msra.mxu0 0.0
    %3574 = vmatprep.subr.mxu0 0.0
    %3575 = vmatpush2.msra.mxu0 0.0
    %3576 = vmatprep.subr.mxu0 0.0
    %3577 = vmatpush2.msra.mxu0 0.0
    %3578 = vmatprep.subr.mxu0 0.0
    %3579 = vmatpush2.msra.mxu0 0.0
    %3580 = vmatprep.subr.mxu0 0.0
    %3581 = vmatpush2.msra.mxu0 0.0
    %3582 = vmatprep.subr.mxu0 0.0
    %3583 = vmatpush2.msra.mxu0 0.0
    %3584 = vmatprep.subr.mxu0 0.0
    %3585 = vmatpush2.msra.mxu0 0.0
    %3586 = vmatprep.subr.mxu0 0.0
    %3587 = vmatpush2.msra.mxu0 0.0
    %3588 = vmatprep.subr.mxu0 0.0
    %3589 = vmatpush2.msra.mxu0 0.0
    %3590 = vmatprep.subr.mxu0 0.0
    %3591 = vmatpush2.msra.mxu0 0.0
    %3592 = vmatprep.subr.mxu0 0.0
    %3593 = vmatpush2.msra.mxu0 0.0
    %3594 = vmatprep.subr.mxu0 0.0
    %3595 = vmatpush2.msra.mxu0 0.0
    %3596 = vmatprep.mubr.f32.mxu0 0.0
    %3597 = vmatmul.mubr.f32.gmra.mxu0 %v3521
    %v3598 = vpop.f32.mrf.mxu0
    %v3599 = vadd.f32 0.0, %v3598
    %v3600 = vpop.f32.mrf.mxu0
    %3601 = vmatprep.mubr.f32.mxu0 0.0
    %3602 = vmatmul.mubr.f32.gmra.mxu0 %v3524
    %v3603 = vpop.f32.mrf.mxu0
    %v3604 = vadd.f32 0.0, %v3603
    %v3605 = vpop.f32.mrf.mxu0
    %3606 = vmatprep.mubr.f32.mxu0 0.0
    %3607 = vmatmul.mubr.f32.gmra.mxu0 %v3527
    %v3608 = vpop.f32.mrf.mxu0
    %v3609 = vadd.f32 0.0, %v3608
    %v3610 = vpop.f32.mrf.mxu0
    %3611 = vmatprep.mubr.f32.mxu0 0.0
    %3612 = vmatmul.mubr.f32.gmra.mxu0 %v3530
    %v3613 = vpop.f32.mrf.mxu0
    %v3614 = vadd.f32 0.0, %v3613
    %v3615 = vpop.f32.mrf.mxu0
    %3616 = vdwg.mxu0
    %v3617 = vadd.f32 %v3493, %v3599
    %v3618 = vadd.f32 %v3498, %v3604
    %v3619 = vadd.f32 %v3503, %v3609
    %v3620 = vadd.f32 %v3508, %v3614
    %s3621 = scalar_lea.vmem [#allocation2], 192
    %v3622 = vld [vmem:[%s3621] sm:$0xff]
    %v3623 = vld [vmem:[%s3621 + $0x8] sm:$0xff]
    %v3624 = vld [vmem:[%s3621 + $0x10] sm:$0xff]
    %v3625 = vld [vmem:[%s3621 + $0x18] sm:$0xff]
    %v3626 = vld [vmem:[%s3621 + $0x20] sm:$0xff]
    %v3627 = vld [vmem:[%s3621 + $0x28] sm:$0xff]
    %v3628 = vld [vmem:[%s3621 + $0x30] sm:$0xff]
    %v3629 = vld [vmem:[%s3621 + $0x38] sm:$0xff]
    %v3631 = vsel %vm1024, %v3617, 0
    %v3634 = vsel %vm1024, %v3618, 0
    %v3637 = vsel %vm1024, %v3619, 0
    %v3640 = vsel %vm1024, %v3620, 0
    %3642 = vmatprep.subr.mxu0 0.0
    %3643 = vmatpush1.msra.mxu0 0.0
    %3644 = vmatprep.subr.mxu0 0.0
    %3645 = vmatpush1.msra.mxu0 0.0
    %3646 = vmatprep.subr.mxu0 0.0
    %3647 = vmatpush1.msra.mxu0 0.0
    %3648 = vmatprep.subr.mxu0 0.0
    %3649 = vmatpush1.msra.mxu0 0.0
    %3650 = vmatprep.subr.mxu0 0.0
    %3651 = vmatpush1.msra.mxu0 0.0
    %3652 = vmatprep.subr.mxu0 0.0
    %3653 = vmatpush1.msra.mxu0 0.0
    %3654 = vmatprep.subr.mxu0 0.0
    %3655 = vmatpush1.msra.mxu0 0.0
    %3656 = vmatprep.subr.mxu0 0.0
    %3657 = vmatpush1.msra.mxu0 0.0
    %3658 = vmatprep.subr.mxu0 0.0
    %3659 = vmatpush1.msra.mxu0 %v3629
    %3660 = vmatprep.subr.mxu0 0.0
    %3661 = vmatpush1.msra.mxu0 %v3628
    %3662 = vmatprep.subr.mxu0 0.0
    %3663 = vmatpush1.msra.mxu0 %v3627
    %3664 = vmatprep.subr.mxu0 0.0
    %3665 = vmatpush1.msra.mxu0 %v3626
    %3666 = vmatprep.subr.mxu0 0.0
    %3667 = vmatpush1.msra.mxu0 %v3625
    %3668 = vmatprep.subr.mxu0 0.0
    %3669 = vmatpush1.msra.mxu0 %v3624
    %3670 = vmatprep.subr.mxu0 0.0
    %3671 = vmatpush1.msra.mxu0 %v3623
    %3672 = vmatprep.subr.mxu0 0.0
    %3673 = vmatpush1.msra.mxu0 %v3622
    %3674 = vmatprep.subr.mxu0 0.0
    %3675 = vmatpush2.msra.mxu0 0.0
    %3676 = vmatprep.subr.mxu0 0.0
    %3677 = vmatpush2.msra.mxu0 0.0
    %3678 = vmatprep.subr.mxu0 0.0
    %3679 = vmatpush2.msra.mxu0 0.0
    %3680 = vmatprep.subr.mxu0 0.0
    %3681 = vmatpush2.msra.mxu0 0.0
    %3682 = vmatprep.subr.mxu0 0.0
    %3683 = vmatpush2.msra.mxu0 0.0
    %3684 = vmatprep.subr.mxu0 0.0
    %3685 = vmatpush2.msra.mxu0 0.0
    %3686 = vmatprep.subr.mxu0 0.0
    %3687 = vmatpush2.msra.mxu0 0.0
    %3688 = vmatprep.subr.mxu0 0.0
    %3689 = vmatpush2.msra.mxu0 0.0
    %3690 = vmatprep.subr.mxu0 0.0
    %3691 = vmatpush2.msra.mxu0 0.0
    %3692 = vmatprep.subr.mxu0 0.0
    %3693 = vmatpush2.msra.mxu0 0.0
    %3694 = vmatprep.subr.mxu0 0.0
    %3695 = vmatpush2.msra.mxu0 0.0
    %3696 = vmatprep.subr.mxu0 0.0
    %3697 = vmatpush2.msra.mxu0 0.0
    %3698 = vmatprep.subr.mxu0 0.0
    %3699 = vmatpush2.msra.mxu0 0.0
    %3700 = vmatprep.subr.mxu0 0.0
    %3701 = vmatpush2.msra.mxu0 0.0
    %3702 = vmatprep.subr.mxu0 0.0
    %3703 = vmatpush2.msra.mxu0 0.0
    %3704 = vmatprep.subr.mxu0 0.0
    %3705 = vmatpush2.msra.mxu0 0.0
    %3706 = vmatprep.mubr.f32.mxu0 0.0
    %3707 = vmatmul.mubr.f32.gmra.mxu0 %v3631
    %v3708 = vpop.f32.mrf.mxu0
    %v3709 = vadd.f32 0.0, %v3708
    %v3710 = vpop.f32.mrf.mxu0
    %3711 = vmatprep.mubr.f32.mxu0 0.0
    %3712 = vmatmul.mubr.f32.gmra.mxu0 %v3634
    %v3713 = vpop.f32.mrf.mxu0
    %v3714 = vadd.f32 0.0, %v3713
    %v3715 = vpop.f32.mrf.mxu0
    %3716 = vmatprep.mubr.f32.mxu0 0.0
    %3717 = vmatmul.mubr.f32.gmra.mxu0 %v3637
    %v3718 = vpop.f32.mrf.mxu0
    %v3719 = vadd.f32 0.0, %v3718
    %v3720 = vpop.f32.mrf.mxu0
    %3721 = vmatprep.mubr.f32.mxu0 0.0
    %3722 = vmatmul.mubr.f32.gmra.mxu0 %v3640
    %v3723 = vpop.f32.mrf.mxu0
    %v3724 = vadd.f32 0.0, %v3723
    %v3725 = vpop.f32.mrf.mxu0
    %3726 = vdwg.mxu0
    %v3727 = vsel %vm1024, %v3709, 0.0
    %v3728 = vsel %vm1024, %v3714, 0.0
    %v3729 = vadd.f32 %v3727, %v3728
    %v3730 = vsel %vm1024, %v3719, 0.0
    %v3731 = vadd.f32 %v3729, %v3730
    %v3732 = vsel %vm1024, %v3724, 0.0
    %v3733 = vadd.f32 %v3731, %v3732
    %v3734 = vrot.slane %v3733, 4
    %v3735 = vadd.f32 %v3733, %v3734
    %v3736 = vrot.slane %v3735, 2
    %v3737 = vadd.f32 %v3735, %v3736
    %v3738 = vrot.slane %v3737, 1
    %v3739 = vadd.f32 %v3737, %v3738
    %v3740 = vmul.f32 %v3617, %v3617
    %v3741 = vmul.f32 %v3618, %v3618
    %v3742 = vmul.f32 %v3619, %v3619
    %v3743 = vmul.f32 %v3620, %v3620
    %v3745 = vsel %vm1024, %v3740, 0
    %v3748 = vsel %vm1024, %v3741, 0
    %v3751 = vsel %vm1024, %v3742, 0
    %v3754 = vsel %vm1024, %v3743, 0
    %3756 = vmatprep.subr.mxu0 0.0
    %3757 = vmatpush1.msra.mxu0 0.0
    %3758 = vmatprep.subr.mxu0 0.0
    %3759 = vmatpush1.msra.mxu0 0.0
    %3760 = vmatprep.subr.mxu0 0.0
    %3761 = vmatpush1.msra.mxu0 0.0
    %3762 = vmatprep.subr.mxu0 0.0
    %3763 = vmatpush1.msra.mxu0 0.0
    %3764 = vmatprep.subr.mxu0 0.0
    %3765 = vmatpush1.msra.mxu0 0.0
    %3766 = vmatprep.subr.mxu0 0.0
    %3767 = vmatpush1.msra.mxu0 0.0
    %3768 = vmatprep.subr.mxu0 0.0
    %3769 = vmatpush1.msra.mxu0 0.0
    %3770 = vmatprep.subr.mxu0 0.0
    %3771 = vmatpush1.msra.mxu0 0.0
    %3772 = vmatprep.subr.mxu0 0.0
    %3773 = vmatpush1.msra.mxu0 %v3629
    %3774 = vmatprep.subr.mxu0 0.0
    %3775 = vmatpush1.msra.mxu0 %v3628
    %3776 = vmatprep.subr.mxu0 0.0
    %3777 = vmatpush1.msra.mxu0 %v3627
    %3778 = vmatprep.subr.mxu0 0.0
    %3779 = vmatpush1.msra.mxu0 %v3626
    %3780 = vmatprep.subr.mxu0 0.0
    %3781 = vmatpush1.msra.mxu0 %v3625
    %3782 = vmatprep.subr.mxu0 0.0
    %3783 = vmatpush1.msra.mxu0 %v3624
    %3784 = vmatprep.subr.mxu0 0.0
    %3785 = vmatpush1.msra.mxu0 %v3623
    %3786 = vmatprep.subr.mxu0 0.0
    %3787 = vmatpush1.msra.mxu0 %v3622
    %3788 = vmatprep.subr.mxu0 0.0
    %3789 = vmatpush2.msra.mxu0 0.0
    %3790 = vmatprep.subr.mxu0 0.0
    %3791 = vmatpush2.msra.mxu0 0.0
    %3792 = vmatprep.subr.mxu0 0.0
    %3793 = vmatpush2.msra.mxu0 0.0
    %3794 = vmatprep.subr.mxu0 0.0
    %3795 = vmatpush2.msra.mxu0 0.0
    %3796 = vmatprep.subr.mxu0 0.0
    %3797 = vmatpush2.msra.mxu0 0.0
    %3798 = vmatprep.subr.mxu0 0.0
    %3799 = vmatpush2.msra.mxu0 0.0
    %3800 = vmatprep.subr.mxu0 0.0
    %3801 = vmatpush2.msra.mxu0 0.0
    %3802 = vmatprep.subr.mxu0 0.0
    %3803 = vmatpush2.msra.mxu0 0.0
    %3804 = vmatprep.subr.mxu0 0.0
    %3805 = vmatpush2.msra.mxu0 0.0
    %3806 = vmatprep.subr.mxu0 0.0
    %3807 = vmatpush2.msra.mxu0 0.0
    %3808 = vmatprep.subr.mxu0 0.0
    %3809 = vmatpush2.msra.mxu0 0.0
    %3810 = vmatprep.subr.mxu0 0.0
    %3811 = vmatpush2.msra.mxu0 0.0
    %3812 = vmatprep.subr.mxu0 0.0
    %3813 = vmatpush2.msra.mxu0 0.0
    %3814 = vmatprep.subr.mxu0 0.0
    %3815 = vmatpush2.msra.mxu0 0.0
    %3816 = vmatprep.subr.mxu0 0.0
    %3817 = vmatpush2.msra.mxu0 0.0
    %3818 = vmatprep.subr.mxu0 0.0
    %3819 = vmatpush2.msra.mxu0 0.0
    %3820 = vmatprep.mubr.f32.mxu0 0.0
    %3821 = vmatmul.mubr.f32.gmra.mxu0 %v3745
    %v3822 = vpop.f32.mrf.mxu0
    %v3823 = vadd.f32 0.0, %v3822
    %v3824 = vpop.f32.mrf.mxu0
    %3825 = vmatprep.mubr.f32.mxu0 0.0
    %3826 = vmatmul.mubr.f32.gmra.mxu0 %v3748
    %v3827 = vpop.f32.mrf.mxu0
    %v3828 = vadd.f32 0.0, %v3827
    %v3829 = vpop.f32.mrf.mxu0
    %3830 = vmatprep.mubr.f32.mxu0 0.0
    %3831 = vmatmul.mubr.f32.gmra.mxu0 %v3751
    %v3832 = vpop.f32.mrf.mxu0
    %v3833 = vadd.f32 0.0, %v3832
    %v3834 = vpop.f32.mrf.mxu0
    %3835 = vmatprep.mubr.f32.mxu0 0.0
    %3836 = vmatmul.mubr.f32.gmra.mxu0 %v3754
    %v3837 = vpop.f32.mrf.mxu0
    %v3838 = vadd.f32 0.0, %v3837
    %v3839 = vpop.f32.mrf.mxu0
    %3840 = vdwg.mxu0
    %v3841 = vsel %vm1024, %v3823, 0.0
    %v3842 = vsel %vm1024, %v3828, 0.0
    %v3843 = vadd.f32 %v3841, %v3842
    %v3844 = vsel %vm1024, %v3833, 0.0
    %v3845 = vadd.f32 %v3843, %v3844
    %v3846 = vsel %vm1024, %v3838, 0.0
    %v3847 = vadd.f32 %v3845, %v3846
    %v3848 = vrot.slane %v3847, 4
    %v3849 = vadd.f32 %v3847, %v3848
    %v3850 = vrot.slane %v3849, 2
    %v3851 = vadd.f32 %v3849, %v3850
    %v3852 = vrot.slane %v3851, 1
    %v3853 = vadd.f32 %v3851, %v3852
    %v3854 = vmul.f32 %v3739, %v3739
    %v3855 = vsub.f32 %v3853, %v3854
    %v3856 = vmax.f32 %v3855, 0.0
    %s3857 = scalar_lea.vmem %s4, 3
    %v3858 = vld [vmem:[%s3857] sm:$0x1]
    %v3859 = vadd.f32 %v3856, 1e-05
    %v3860 = vrsqrt.pop %v3859
    %v3861 = vmul.f32 %v3858, %v3860
    %s3862 = scalar_lea.vmem %s5, 3
    %v3863 = vld [vmem:[%s3862] sm:$0x1]
    %v3864 = vmul.f32 %v3739, %v3861
    %v3865 = vsub.f32 %v3863, %v3864
    %v3867 = vlaneseq
    %v3868 = vshrl.u32 %v3867, 7
    %v3869 = vsub.s32 0, %v3868
    %v3870 = vrot.slane %v3861, %v3869
    %v3872 = vmul.f32 %v3617, %v3870
    %v3873 = vmul.f32 %v3618, %v3870
    %v3874 = vmul.f32 %v3619, %v3870
    %v3875 = vmul.f32 %v3620, %v3870
    %v3877 = vlaneseq
    %v3878 = vshrl.u32 %v3877, 7
    %v3879 = vsub.s32 0, %v3878
    %v3880 = vrot.slane %v3865, %v3879
    %v3882 = vadd.f32 %v3872, %v3880
    %v3883 = vadd.f32 %v3873, %v3880
    %v3884 = vadd.f32 %v3874, %v3880
    %v3885 = vadd.f32 %v3875, %v3880
    %v3886 = vmax.f32 %v3882, 0.0
    %v3887 = vmax.f32 %v3883, 0.0
    %v3888 = vmax.f32 %v3884, 0.0
    %v3889 = vmax.f32 %v3885, 0.0
    %s3890 = scalar_lea.vmem %s1, 384
    %v3891 = vld [vmem:[%s3890] sm:$0xff]
    %v3892 = vld [vmem:[%s3890 + $0x8] sm:$0xff]
    %v3893 = vld [vmem:[%s3890 + $0x10] sm:$0xff]
    %v3894 = vld [vmem:[%s3890 + $0x18] sm:$0xff]
    %v3895 = vld [vmem:[%s3890 + $0x20] sm:$0xff]
    %v3896 = vld [vmem:[%s3890 + $0x28] sm:$0xff]
    %v3897 = vld [vmem:[%s3890 + $0x30] sm:$0xff]
    %v3898 = vld [vmem:[%s3890 + $0x38] sm:$0xff]
    %v3899 = vld [vmem:[%s3890 + $0x40] sm:$0xff]
    %v3900 = vld [vmem:[%s3890 + $0x48] sm:$0xff]
    %v3901 = vld [vmem:[%s3890 + $0x50] sm:$0xff]
    %v3902 = vld [vmem:[%s3890 + $0x58] sm:$0xff]
    %v3904 = vsel %vm845, %v3891, 0
    %v3907 = vsel %vm845, %v3892, 0
    %v3910 = vsel %vm845, %v3893, 0
    %v3913 = vsel %vm845, %v3894, 0
    %v3916 = vsel %vm845, %v3895, 0
    %v3919 = vsel %vm845, %v3896, 0
    %v3922 = vsel %vm845, %v3897, 0
    %v3925 = vsel %vm845, %v3898, 0
    %v3928 = vsel %vm845, %v3899, 0
    %v3931 = vsel %vm845, %v3900, 0
    %v3934 = vsel %vm845, %v3901, 0
    %v3937 = vsel %vm845, %v3902, 0
    %3939 = vmatprep.subr.mxu0 0.0
    %3940 = vmatpush1.msra.mxu0 0.0
    %3941 = vmatprep.subr.mxu0 0.0
    %3942 = vmatpush1.msra.mxu0 0.0
    %3943 = vmatprep.subr.mxu0 0.0
    %3944 = vmatpush1.msra.mxu0 0.0
    %3945 = vmatprep.subr.mxu0 0.0
    %3946 = vmatpush1.msra.mxu0 0.0
    %3947 = vmatprep.subr.mxu0 0.0
    %3948 = vmatpush1.msra.mxu0 0.0
    %3949 = vmatprep.subr.mxu0 0.0
    %3950 = vmatpush1.msra.mxu0 0.0
    %3951 = vmatprep.subr.mxu0 0.0
    %3952 = vmatpush1.msra.mxu0 0.0
    %3953 = vmatprep.subr.mxu0 0.0
    %3954 = vmatpush1.msra.mxu0 0.0
    %3955 = vmatprep.subr.mxu0 0.0
    %3956 = vmatpush1.msra.mxu0 0.0
    %3957 = vmatprep.subr.mxu0 0.0
    %3958 = vmatpush1.msra.mxu0 0.0
    %3959 = vmatprep.subr.mxu0 0.0
    %3960 = vmatpush1.msra.mxu0 0.0
    %3961 = vmatprep.subr.mxu0 0.0
    %3962 = vmatpush1.msra.mxu0 0.0
    %3963 = vmatprep.subr.mxu0 0.0
    %3964 = vmatpush1.msra.mxu0 %v3889
    %3965 = vmatprep.subr.mxu0 0.0
    %3966 = vmatpush1.msra.mxu0 %v3888
    %3967 = vmatprep.subr.mxu0 0.0
    %3968 = vmatpush1.msra.mxu0 %v3887
    %3969 = vmatprep.subr.mxu0 0.0
    %3970 = vmatpush1.msra.mxu0 %v3886
    %3971 = vmatprep.subr.mxu0 0.0
    %3972 = vmatpush2.msra.mxu0 0.0
    %3973 = vmatprep.subr.mxu0 0.0
    %3974 = vmatpush2.msra.mxu0 0.0
    %3975 = vmatprep.subr.mxu0 0.0
    %3976 = vmatpush2.msra.mxu0 0.0
    %3977 = vmatprep.subr.mxu0 0.0
    %3978 = vmatpush2.msra.mxu0 0.0
    %3979 = vmatprep.subr.mxu0 0.0
    %3980 = vmatpush2.msra.mxu0 0.0
    %3981 = vmatprep.subr.mxu0 0.0
    %3982 = vmatpush2.msra.mxu0 0.0
    %3983 = vmatprep.subr.mxu0 0.0
    %3984 = vmatpush2.msra.mxu0 0.0
    %3985 = vmatprep.subr.mxu0 0.0
    %3986 = vmatpush2.msra.mxu0 0.0
    %3987 = vmatprep.subr.mxu0 0.0
    %3988 = vmatpush2.msra.mxu0 0.0
    %3989 = vmatprep.subr.mxu0 0.0
    %3990 = vmatpush2.msra.mxu0 0.0
    %3991 = vmatprep.subr.mxu0 0.0
    %3992 = vmatpush2.msra.mxu0 0.0
    %3993 = vmatprep.subr.mxu0 0.0
    %3994 = vmatpush2.msra.mxu0 0.0
    %3995 = vmatprep.subr.mxu0 0.0
    %3996 = vmatpush2.msra.mxu0 0.0
    %3997 = vmatprep.subr.mxu0 0.0
    %3998 = vmatpush2.msra.mxu0 0.0
    %3999 = vmatprep.subr.mxu0 0.0
    %4000 = vmatpush2.msra.mxu0 0.0
    %4001 = vmatprep.subr.mxu0 0.0
    %4002 = vmatpush2.msra.mxu0 0.0
    %4003 = vmatprep.mubr.f32.mxu0 0.0
    %4004 = vmatmul.mubr.f32.gmra.mxu0 %v3904
    %v4005 = vpop.f32.mrf.mxu0
    %v4006 = vadd.f32 0.0, %v4005
    %v4007 = vpop.f32.mrf.mxu0
    %4008 = vmatprep.mubr.f32.mxu0 0.0
    %4009 = vmatmul.mubr.f32.gmra.mxu0 %v3907
    %v4010 = vpop.f32.mrf.mxu0
    %v4011 = vadd.f32 0.0, %v4010
    %v4012 = vpop.f32.mrf.mxu0
    %4013 = vmatprep.mubr.f32.mxu0 0.0
    %4014 = vmatmul.mubr.f32.gmra.mxu0 %v3910
    %v4015 = vpop.f32.mrf.mxu0
    %v4016 = vadd.f32 0.0, %v4015
    %v4017 = vpop.f32.mrf.mxu0
    %4018 = vmatprep.mubr.f32.mxu0 0.0
    %4019 = vmatmul.mubr.f32.gmra.mxu0 %v3913
    %v4020 = vpop.f32.mrf.mxu0
    %v4021 = vadd.f32 0.0, %v4020
    %v4022 = vpop.f32.mrf.mxu0
    %4023 = vmatprep.mubr.f32.mxu0 0.0
    %4024 = vmatmul.mubr.f32.gmra.mxu0 %v3916
    %v4025 = vpop.f32.mrf.mxu0
    %v4026 = vadd.f32 0.0, %v4025
    %v4027 = vpop.f32.mrf.mxu0
    %4028 = vmatprep.mubr.f32.mxu0 0.0
    %4029 = vmatmul.mubr.f32.gmra.mxu0 %v3919
    %v4030 = vpop.f32.mrf.mxu0
    %v4031 = vadd.f32 0.0, %v4030
    %v4032 = vpop.f32.mrf.mxu0
    %4033 = vmatprep.mubr.f32.mxu0 0.0
    %4034 = vmatmul.mubr.f32.gmra.mxu0 %v3922
    %v4035 = vpop.f32.mrf.mxu0
    %v4036 = vadd.f32 0.0, %v4035
    %v4037 = vpop.f32.mrf.mxu0
    %4038 = vmatprep.mubr.f32.mxu0 0.0
    %4039 = vmatmul.mubr.f32.gmra.mxu0 %v3925
    %v4040 = vpop.f32.mrf.mxu0
    %v4041 = vadd.f32 0.0, %v4040
    %v4042 = vpop.f32.mrf.mxu0
    %4043 = vmatprep.mubr.f32.mxu0 0.0
    %4044 = vmatmul.mubr.f32.gmra.mxu0 %v3928
    %v4045 = vpop.f32.mrf.mxu0
    %v4046 = vadd.f32 0.0, %v4045
    %v4047 = vpop.f32.mrf.mxu0
    %4048 = vmatprep.mubr.f32.mxu0 0.0
    %4049 = vmatmul.mubr.f32.gmra.mxu0 %v3931
    %v4050 = vpop.f32.mrf.mxu0
    %v4051 = vadd.f32 0.0, %v4050
    %v4052 = vpop.f32.mrf.mxu0
    %4053 = vmatprep.mubr.f32.mxu0 0.0
    %4054 = vmatmul.mubr.f32.gmra.mxu0 %v3934
    %v4055 = vpop.f32.mrf.mxu0
    %v4056 = vadd.f32 0.0, %v4055
    %v4057 = vpop.f32.mrf.mxu0
    %4058 = vmatprep.mubr.f32.mxu0 0.0
    %4059 = vmatmul.mubr.f32.gmra.mxu0 %v3937
    %v4060 = vpop.f32.mrf.mxu0
    %v4061 = vadd.f32 0.0, %v4060
    %v4062 = vpop.f32.mrf.mxu0
    %4063 = vdwg.mxu0
    %s4064 = scalar_lea.vmem %s2, 768
    %v4065 = vld [vmem:[%s4064] sm:$0xff]
    %v4066 = vld [vmem:[%s4064 + $0x8] sm:$0xff]
    %v4067 = vld [vmem:[%s4064 + $0x10] sm:$0xff]
    %v4068 = vld [vmem:[%s4064 + $0x18] sm:$0xff]
    %v4069 = vld [vmem:[%s4064 + $0x20] sm:$0xff]
    %v4070 = vld [vmem:[%s4064 + $0x28] sm:$0xff]
    %v4071 = vld [vmem:[%s4064 + $0x30] sm:$0xff]
    %v4072 = vld [vmem:[%s4064 + $0x38] sm:$0xff]
    %s4073 = scalar_lea.vmem %s2, 832
    %v4074 = vld [vmem:[%s4073] sm:$0xff]
    %v4075 = vld [vmem:[%s4073 + $0x8] sm:$0xff]
    %v4076 = vld [vmem:[%s4073 + $0x10] sm:$0xff]
    %v4077 = vld [vmem:[%s4073 + $0x18] sm:$0xff]
    %v4078 = vld [vmem:[%s4073 + $0x20] sm:$0xff]
    %v4079 = vld [vmem:[%s4073 + $0x28] sm:$0xff]
    %v4080 = vld [vmem:[%s4073 + $0x30] sm:$0xff]
    %v4081 = vld [vmem:[%s4073 + $0x38] sm:$0xff]
    %v4083 = vsel %vm1024, %v4026, 0
    %v4086 = vsel %vm1024, %v4031, 0
    %v4089 = vsel %vm1024, %v4036, 0
    %v4092 = vsel %vm1024, %v4041, 0
    %4094 = vmatprep.subr.mxu0 0.0
    %4095 = vmatpush1.msra.mxu0 0.0
    %4096 = vmatprep.subr.mxu0 0.0
    %4097 = vmatpush1.msra.mxu0 0.0
    %4098 = vmatprep.subr.mxu0 0.0
    %4099 = vmatpush1.msra.mxu0 0.0
    %4100 = vmatprep.subr.mxu0 0.0
    %4101 = vmatpush1.msra.mxu0 0.0
    %4102 = vmatprep.subr.mxu0 0.0
    %4103 = vmatpush1.msra.mxu0 0.0
    %4104 = vmatprep.subr.mxu0 0.0
    %4105 = vmatpush1.msra.mxu0 0.0
    %4106 = vmatprep.subr.mxu0 0.0
    %4107 = vmatpush1.msra.mxu0 0.0
    %4108 = vmatprep.subr.mxu0 0.0
    %4109 = vmatpush1.msra.mxu0 0.0
    %4110 = vmatprep.subr.mxu0 0.0
    %4111 = vmatpush1.msra.mxu0 %v4081
    %4112 = vmatprep.subr.mxu0 0.0
    %4113 = vmatpush1.msra.mxu0 %v4080
    %4114 = vmatprep.subr.mxu0 0.0
    %4115 = vmatpush1.msra.mxu0 %v4079
    %4116 = vmatprep.subr.mxu0 0.0
    %4117 = vmatpush1.msra.mxu0 %v4078
    %4118 = vmatprep.subr.mxu0 0.0
    %4119 = vmatpush1.msra.mxu0 %v4077
    %4120 = vmatprep.subr.mxu0 0.0
    %4121 = vmatpush1.msra.mxu0 %v4076
    %4122 = vmatprep.subr.mxu0 0.0
    %4123 = vmatpush1.msra.mxu0 %v4075
    %4124 = vmatprep.subr.mxu0 0.0
    %4125 = vmatpush1.msra.mxu0 %v4074
    %4126 = vmatprep.subr.mxu0 0.0
    %4127 = vmatpush2.msra.mxu0 0.0
    %4128 = vmatprep.subr.mxu0 0.0
    %4129 = vmatpush2.msra.mxu0 0.0
    %4130 = vmatprep.subr.mxu0 0.0
    %4131 = vmatpush2.msra.mxu0 0.0
    %4132 = vmatprep.subr.mxu0 0.0
    %4133 = vmatpush2.msra.mxu0 0.0
    %4134 = vmatprep.subr.mxu0 0.0
    %4135 = vmatpush2.msra.mxu0 0.0
    %4136 = vmatprep.subr.mxu0 0.0
    %4137 = vmatpush2.msra.mxu0 0.0
    %4138 = vmatprep.subr.mxu0 0.0
    %4139 = vmatpush2.msra.mxu0 0.0
    %4140 = vmatprep.subr.mxu0 0.0
    %4141 = vmatpush2.msra.mxu0 0.0
    %4142 = vmatprep.subr.mxu0 0.0
    %4143 = vmatpush2.msra.mxu0 0.0
    %4144 = vmatprep.subr.mxu0 0.0
    %4145 = vmatpush2.msra.mxu0 0.0
    %4146 = vmatprep.subr.mxu0 0.0
    %4147 = vmatpush2.msra.mxu0 0.0
    %4148 = vmatprep.subr.mxu0 0.0
    %4149 = vmatpush2.msra.mxu0 0.0
    %4150 = vmatprep.subr.mxu0 0.0
    %4151 = vmatpush2.msra.mxu0 0.0
    %4152 = vmatprep.subr.mxu0 0.0
    %4153 = vmatpush2.msra.mxu0 0.0
    %4154 = vmatprep.subr.mxu0 0.0
    %4155 = vmatpush2.msra.mxu0 0.0
    %4156 = vmatprep.subr.mxu0 0.0
    %4157 = vmatpush2.msra.mxu0 0.0
    %4158 = vmatprep.mubr.f32.mxu0 0.0
    %4159 = vmatmul.mubr.f32.gmra.mxu0 %v4083
    %v4160 = vpop.f32.mrf.mxu0
    %v4161 = vadd.f32 0.0, %v4160
    %v4162 = vpop.f32.mrf.mxu0
    %4163 = vmatprep.mubr.f32.mxu0 0.0
    %4164 = vmatmul.mubr.f32.gmra.mxu0 %v4086
    %v4165 = vpop.f32.mrf.mxu0
    %v4166 = vadd.f32 0.0, %v4165
    %v4167 = vpop.f32.mrf.mxu0
    %4168 = vmatprep.mubr.f32.mxu0 0.0
    %4169 = vmatmul.mubr.f32.gmra.mxu0 %v4089
    %v4170 = vpop.f32.mrf.mxu0
    %v4171 = vadd.f32 0.0, %v4170
    %v4172 = vpop.f32.mrf.mxu0
    %4173 = vmatprep.mubr.f32.mxu0 0.0
    %4174 = vmatmul.mubr.f32.gmra.mxu0 %v4092
    %v4175 = vpop.f32.mrf.mxu0
    %v4176 = vadd.f32 0.0, %v4175
    %v4177 = vpop.f32.mrf.mxu0
    %4178 = vdwg.mxu0
    %v4180 = vsel %vm1024, %v4006, 0
    %v4183 = vsel %vm1024, %v4011, 0
    %v4186 = vsel %vm1024, %v4016, 0
    %v4189 = vsel %vm1024, %v4021, 0
    %4191 = vmatprep.subr.mxu0 0.0
    %4192 = vmatpush1.msra.mxu0 0.0
    %4193 = vmatprep.subr.mxu0 0.0
    %4194 = vmatpush1.msra.mxu0 0.0
    %4195 = vmatprep.subr.mxu0 0.0
    %4196 = vmatpush1.msra.mxu0 0.0
    %4197 = vmatprep.subr.mxu0 0.0
    %4198 = vmatpush1.msra.mxu0 0.0
    %4199 = vmatprep.subr.mxu0 0.0
    %4200 = vmatpush1.msra.mxu0 0.0
    %4201 = vmatprep.subr.mxu0 0.0
    %4202 = vmatpush1.msra.mxu0 0.0
    %4203 = vmatprep.subr.mxu0 0.0
    %4204 = vmatpush1.msra.mxu0 0.0
    %4205 = vmatprep.subr.mxu0 0.0
    %4206 = vmatpush1.msra.mxu0 0.0
    %4207 = vmatprep.subr.mxu0 0.0
    %4208 = vmatpush1.msra.mxu0 %v4072
    %4209 = vmatprep.subr.mxu0 0.0
    %4210 = vmatpush1.msra.mxu0 %v4071
    %4211 = vmatprep.subr.mxu0 0.0
    %4212 = vmatpush1.msra.mxu0 %v4070
    %4213 = vmatprep.subr.mxu0 0.0
    %4214 = vmatpush1.msra.mxu0 %v4069
    %4215 = vmatprep.subr.mxu0 0.0
    %4216 = vmatpush1.msra.mxu0 %v4068
    %4217 = vmatprep.subr.mxu0 0.0
    %4218 = vmatpush1.msra.mxu0 %v4067
    %4219 = vmatprep.subr.mxu0 0.0
    %4220 = vmatpush1.msra.mxu0 %v4066
    %4221 = vmatprep.subr.mxu0 0.0
    %4222 = vmatpush1.msra.mxu0 %v4065
    %4223 = vmatprep.subr.mxu0 0.0
    %4224 = vmatpush2.msra.mxu0 0.0
    %4225 = vmatprep.subr.mxu0 0.0
    %4226 = vmatpush2.msra.mxu0 0.0
    %4227 = vmatprep.subr.mxu0 0.0
    %4228 = vmatpush2.msra.mxu0 0.0
    %4229 = vmatprep.subr.mxu0 0.0
    %4230 = vmatpush2.msra.mxu0 0.0
    %4231 = vmatprep.subr.mxu0 0.0
    %4232 = vmatpush2.msra.mxu0 0.0
    %4233 = vmatprep.subr.mxu0 0.0
    %4234 = vmatpush2.msra.mxu0 0.0
    %4235 = vmatprep.subr.mxu0 0.0
    %4236 = vmatpush2.msra.mxu0 0.0
    %4237 = vmatprep.subr.mxu0 0.0
    %4238 = vmatpush2.msra.mxu0 0.0
    %4239 = vmatprep.subr.mxu0 0.0
    %4240 = vmatpush2.msra.mxu0 0.0
    %4241 = vmatprep.subr.mxu0 0.0
    %4242 = vmatpush2.msra.mxu0 0.0
    %4243 = vmatprep.subr.mxu0 0.0
    %4244 = vmatpush2.msra.mxu0 0.0
    %4245 = vmatprep.subr.mxu0 0.0
    %4246 = vmatpush2.msra.mxu0 0.0
    %4247 = vmatprep.subr.mxu0 0.0
    %4248 = vmatpush2.msra.mxu0 0.0
    %4249 = vmatprep.subr.mxu0 0.0
    %4250 = vmatpush2.msra.mxu0 0.0
    %4251 = vmatprep.subr.mxu0 0.0
    %4252 = vmatpush2.msra.mxu0 0.0
    %4253 = vmatprep.subr.mxu0 0.0
    %4254 = vmatpush2.msra.mxu0 0.0
    %4255 = vmatprep.mubr.f32.mxu0 0.0
    %4256 = vmatmul.mubr.f32.gmra.mxu0 %v4180
    %v4257 = vpop.f32.mrf.mxu0
    %v4258 = vadd.f32 %v4161, %v4257
    %v4259 = vpop.f32.mrf.mxu0
    %4260 = vmatprep.mubr.f32.mxu0 0.0
    %4261 = vmatmul.mubr.f32.gmra.mxu0 %v4183
    %v4262 = vpop.f32.mrf.mxu0
    %v4263 = vadd.f32 %v4166, %v4262
    %v4264 = vpop.f32.mrf.mxu0
    %4265 = vmatprep.mubr.f32.mxu0 0.0
    %4266 = vmatmul.mubr.f32.gmra.mxu0 %v4186
    %v4267 = vpop.f32.mrf.mxu0
    %v4268 = vadd.f32 %v4171, %v4267
    %v4269 = vpop.f32.mrf.mxu0
    %4270 = vmatprep.mubr.f32.mxu0 0.0
    %4271 = vmatmul.mubr.f32.gmra.mxu0 %v4189
    %v4272 = vpop.f32.mrf.mxu0
    %v4273 = vadd.f32 %v4176, %v4272
    %v4274 = vpop.f32.mrf.mxu0
    %4275 = vdwg.mxu0
    %s4276 = scalar_lea.vmem %s2, 896
    %v4277 = vld [vmem:[%s4276] sm:$0xff]
    %v4278 = vld [vmem:[%s4276 + $0x8] sm:$0xff]
    %v4279 = vld [vmem:[%s4276 + $0x10] sm:$0xff]
    %v4280 = vld [vmem:[%s4276 + $0x18] sm:$0xff]
    %v4281 = vld [vmem:[%s4276 + $0x20] sm:$0xff]
    %v4282 = vld [vmem:[%s4276 + $0x28] sm:$0xff]
    %v4283 = vld [vmem:[%s4276 + $0x30] sm:$0xff]
    %v4284 = vld [vmem:[%s4276 + $0x38] sm:$0xff]
    %v4286 = vsel %vm1024, %v4046, 0
    %v4289 = vsel %vm1024, %v4051, 0
    %v4292 = vsel %vm1024, %v4056, 0
    %v4295 = vsel %vm1024, %v4061, 0
    %4297 = vmatprep.subr.mxu0 0.0
    %4298 = vmatpush1.msra.mxu0 0.0
    %4299 = vmatprep.subr.mxu0 0.0
    %4300 = vmatpush1.msra.mxu0 0.0
    %4301 = vmatprep.subr.mxu0 0.0
    %4302 = vmatpush1.msra.mxu0 0.0
    %4303 = vmatprep.subr.mxu0 0.0
    %4304 = vmatpush1.msra.mxu0 0.0
    %4305 = vmatprep.subr.mxu0 0.0
    %4306 = vmatpush1.msra.mxu0 0.0
    %4307 = vmatprep.subr.mxu0 0.0
    %4308 = vmatpush1.msra.mxu0 0.0
    %4309 = vmatprep.subr.mxu0 0.0
    %4310 = vmatpush1.msra.mxu0 0.0
    %4311 = vmatprep.subr.mxu0 0.0
    %4312 = vmatpush1.msra.mxu0 0.0
    %4313 = vmatprep.subr.mxu0 0.0
    %4314 = vmatpush1.msra.mxu0 %v4284
    %4315 = vmatprep.subr.mxu0 0.0
    %4316 = vmatpush1.msra.mxu0 %v4283
    %4317 = vmatprep.subr.mxu0 0.0
    %4318 = vmatpush1.msra.mxu0 %v4282
    %4319 = vmatprep.subr.mxu0 0.0
    %4320 = vmatpush1.msra.mxu0 %v4281
    %4321 = vmatprep.subr.mxu0 0.0
    %4322 = vmatpush1.msra.mxu0 %v4280
    %4323 = vmatprep.subr.mxu0 0.0
    %4324 = vmatpush1.msra.mxu0 %v4279
    %4325 = vmatprep.subr.mxu0 0.0
    %4326 = vmatpush1.msra.mxu0 %v4278
    %4327 = vmatprep.subr.mxu0 0.0
    %4328 = vmatpush1.msra.mxu0 %v4277
    %4329 = vmatprep.subr.mxu0 0.0
    %4330 = vmatpush2.msra.mxu0 0.0
    %4331 = vmatprep.subr.mxu0 0.0
    %4332 = vmatpush2.msra.mxu0 0.0
    %4333 = vmatprep.subr.mxu0 0.0
    %4334 = vmatpush2.msra.mxu0 0.0
    %4335 = vmatprep.subr.mxu0 0.0
    %4336 = vmatpush2.msra.mxu0 0.0
    %4337 = vmatprep.subr.mxu0 0.0
    %4338 = vmatpush2.msra.mxu0 0.0
    %4339 = vmatprep.subr.mxu0 0.0
    %4340 = vmatpush2.msra.mxu0 0.0
    %4341 = vmatprep.subr.mxu0 0.0
    %4342 = vmatpush2.msra.mxu0 0.0
    %4343 = vmatprep.subr.mxu0 0.0
    %4344 = vmatpush2.msra.mxu0 0.0
    %4345 = vmatprep.subr.mxu0 0.0
    %4346 = vmatpush2.msra.mxu0 0.0
    %4347 = vmatprep.subr.mxu0 0.0
    %4348 = vmatpush2.msra.mxu0 0.0
    %4349 = vmatprep.subr.mxu0 0.0
    %4350 = vmatpush2.msra.mxu0 0.0
    %4351 = vmatprep.subr.mxu0 0.0
    %4352 = vmatpush2.msra.mxu0 0.0
    %4353 = vmatprep.subr.mxu0 0.0
    %4354 = vmatpush2.msra.mxu0 0.0
    %4355 = vmatprep.subr.mxu0 0.0
    %4356 = vmatpush2.msra.mxu0 0.0
    %4357 = vmatprep.subr.mxu0 0.0
    %4358 = vmatpush2.msra.mxu0 0.0
    %4359 = vmatprep.subr.mxu0 0.0
    %4360 = vmatpush2.msra.mxu0 0.0
    %4361 = vmatprep.mubr.f32.mxu0 0.0
    %4362 = vmatmul.mubr.f32.gmra.mxu0 %v4286
    %v4363 = vpop.f32.mrf.mxu0
    %v4364 = vadd.f32 0.0, %v4363
    %v4365 = vpop.f32.mrf.mxu0
    %4366 = vmatprep.mubr.f32.mxu0 0.0
    %4367 = vmatmul.mubr.f32.gmra.mxu0 %v4289
    %v4368 = vpop.f32.mrf.mxu0
    %v4369 = vadd.f32 0.0, %v4368
    %v4370 = vpop.f32.mrf.mxu0
    %4371 = vmatprep.mubr.f32.mxu0 0.0
    %4372 = vmatmul.mubr.f32.gmra.mxu0 %v4292
    %v4373 = vpop.f32.mrf.mxu0
    %v4374 = vadd.f32 0.0, %v4373
    %v4375 = vpop.f32.mrf.mxu0
    %4376 = vmatprep.mubr.f32.mxu0 0.0
    %4377 = vmatmul.mubr.f32.gmra.mxu0 %v4295
    %v4378 = vpop.f32.mrf.mxu0
    %v4379 = vadd.f32 0.0, %v4378
    %v4380 = vpop.f32.mrf.mxu0
    %4381 = vdwg.mxu0
    %v4382 = vadd.f32 %v4258, %v4364
    %v4383 = vadd.f32 %v4263, %v4369
    %v4384 = vadd.f32 %v4268, %v4374
    %v4385 = vadd.f32 %v4273, %v4379
    %s4386 = scalar_lea.vmem [#allocation2], 256
    %v4387 = vld [vmem:[%s4386] sm:$0xff]
    %v4388 = vld [vmem:[%s4386 + $0x8] sm:$0xff]
    %v4389 = vld [vmem:[%s4386 + $0x10] sm:$0xff]
    %v4390 = vld [vmem:[%s4386 + $0x18] sm:$0xff]
    %v4391 = vld [vmem:[%s4386 + $0x20] sm:$0xff]
    %v4392 = vld [vmem:[%s4386 + $0x28] sm:$0xff]
    %v4393 = vld [vmem:[%s4386 + $0x30] sm:$0xff]
    %v4394 = vld [vmem:[%s4386 + $0x38] sm:$0xff]
    %v4396 = vsel %vm1024, %v4382, 0
    %v4399 = vsel %vm1024, %v4383, 0
    %v4402 = vsel %vm1024, %v4384, 0
    %v4405 = vsel %vm1024, %v4385, 0
    %4407 = vmatprep.subr.mxu0 0.0
    %4408 = vmatpush1.msra.mxu0 0.0
    %4409 = vmatprep.subr.mxu0 0.0
    %4410 = vmatpush1.msra.mxu0 0.0
    %4411 = vmatprep.subr.mxu0 0.0
    %4412 = vmatpush1.msra.mxu0 0.0
    %4413 = vmatprep.subr.mxu0 0.0
    %4414 = vmatpush1.msra.mxu0 0.0
    %4415 = vmatprep.subr.mxu0 0.0
    %4416 = vmatpush1.msra.mxu0 0.0
    %4417 = vmatprep.subr.mxu0 0.0
    %4418 = vmatpush1.msra.mxu0 0.0
    %4419 = vmatprep.subr.mxu0 0.0
    %4420 = vmatpush1.msra.mxu0 0.0
    %4421 = vmatprep.subr.mxu0 0.0
    %4422 = vmatpush1.msra.mxu0 0.0
    %4423 = vmatprep.subr.mxu0 0.0
    %4424 = vmatpush1.msra.mxu0 %v4394
    %4425 = vmatprep.subr.mxu0 0.0
    %4426 = vmatpush1.msra.mxu0 %v4393
    %4427 = vmatprep.subr.mxu0 0.0
    %4428 = vmatpush1.msra.mxu0 %v4392
    %4429 = vmatprep.subr.mxu0 0.0
    %4430 = vmatpush1.msra.mxu0 %v4391
    %4431 = vmatprep.subr.mxu0 0.0
    %4432 = vmatpush1.msra.mxu0 %v4390
    %4433 = vmatprep.subr.mxu0 0.0
    %4434 = vmatpush1.msra.mxu0 %v4389
    %4435 = vmatprep.subr.mxu0 0.0
    %4436 = vmatpush1.msra.mxu0 %v4388
    %4437 = vmatprep.subr.mxu0 0.0
    %4438 = vmatpush1.msra.mxu0 %v4387
    %4439 = vmatprep.subr.mxu0 0.0
    %4440 = vmatpush2.msra.mxu0 0.0
    %4441 = vmatprep.subr.mxu0 0.0
    %4442 = vmatpush2.msra.mxu0 0.0
    %4443 = vmatprep.subr.mxu0 0.0
    %4444 = vmatpush2.msra.mxu0 0.0
    %4445 = vmatprep.subr.mxu0 0.0
    %4446 = vmatpush2.msra.mxu0 0.0
    %4447 = vmatprep.subr.mxu0 0.0
    %4448 = vmatpush2.msra.mxu0 0.0
    %4449 = vmatprep.subr.mxu0 0.0
    %4450 = vmatpush2.msra.mxu0 0.0
    %4451 = vmatprep.subr.mxu0 0.0
    %4452 = vmatpush2.msra.mxu0 0.0
    %4453 = vmatprep.subr.mxu0 0.0
    %4454 = vmatpush2.msra.mxu0 0.0
    %4455 = vmatprep.subr.mxu0 0.0
    %4456 = vmatpush2.msra.mxu0 0.0
    %4457 = vmatprep.subr.mxu0 0.0
    %4458 = vmatpush2.msra.mxu0 0.0
    %4459 = vmatprep.subr.mxu0 0.0
    %4460 = vmatpush2.msra.mxu0 0.0
    %4461 = vmatprep.subr.mxu0 0.0
    %4462 = vmatpush2.msra.mxu0 0.0
    %4463 = vmatprep.subr.mxu0 0.0
    %4464 = vmatpush2.msra.mxu0 0.0
    %4465 = vmatprep.subr.mxu0 0.0
    %4466 = vmatpush2.msra.mxu0 0.0
    %4467 = vmatprep.subr.mxu0 0.0
    %4468 = vmatpush2.msra.mxu0 0.0
    %4469 = vmatprep.subr.mxu0 0.0
    %4470 = vmatpush2.msra.mxu0 0.0
    %4471 = vmatprep.mubr.f32.mxu0 0.0
    %4472 = vmatmul.mubr.f32.gmra.mxu0 %v4396
    %v4473 = vpop.f32.mrf.mxu0
    %v4474 = vadd.f32 0.0, %v4473
    %v4475 = vpop.f32.mrf.mxu0
    %4476 = vmatprep.mubr.f32.mxu0 0.0
    %4477 = vmatmul.mubr.f32.gmra.mxu0 %v4399
    %v4478 = vpop.f32.mrf.mxu0
    %v4479 = vadd.f32 0.0, %v4478
    %v4480 = vpop.f32.mrf.mxu0
    %4481 = vmatprep.mubr.f32.mxu0 0.0
    %4482 = vmatmul.mubr.f32.gmra.mxu0 %v4402
    %v4483 = vpop.f32.mrf.mxu0
    %v4484 = vadd.f32 0.0, %v4483
    %v4485 = vpop.f32.mrf.mxu0
    %4486 = vmatprep.mubr.f32.mxu0 0.0
    %4487 = vmatmul.mubr.f32.gmra.mxu0 %v4405
    %v4488 = vpop.f32.mrf.mxu0
    %v4489 = vadd.f32 0.0, %v4488
    %v4490 = vpop.f32.mrf.mxu0
    %4491 = vdwg.mxu0
    %v4492 = vsel %vm1024, %v4474, 0.0
    %v4493 = vsel %vm1024, %v4479, 0.0
    %v4494 = vadd.f32 %v4492, %v4493
    %v4495 = vsel %vm1024, %v4484, 0.0
    %v4496 = vadd.f32 %v4494, %v4495
    %v4497 = vsel %vm1024, %v4489, 0.0
    %v4498 = vadd.f32 %v4496, %v4497
    %v4499 = vrot.slane %v4498, 4
    %v4500 = vadd.f32 %v4498, %v4499
    %v4501 = vrot.slane %v4500, 2
    %v4502 = vadd.f32 %v4500, %v4501
    %v4503 = vrot.slane %v4502, 1
    %v4504 = vadd.f32 %v4502, %v4503
    %v4505 = vmul.f32 %v4382, %v4382
    %v4506 = vmul.f32 %v4383, %v4383
    %v4507 = vmul.f32 %v4384, %v4384
    %v4508 = vmul.f32 %v4385, %v4385
    %v4510 = vsel %vm1024, %v4505, 0
    %v4513 = vsel %vm1024, %v4506, 0
    %v4516 = vsel %vm1024, %v4507, 0
    %v4519 = vsel %vm1024, %v4508, 0
    %4521 = vmatprep.subr.mxu0 0.0
    %4522 = vmatpush1.msra.mxu0 0.0
    %4523 = vmatprep.subr.mxu0 0.0
    %4524 = vmatpush1.msra.mxu0 0.0
    %4525 = vmatprep.subr.mxu0 0.0
    %4526 = vmatpush1.msra.mxu0 0.0
    %4527 = vmatprep.subr.mxu0 0.0
    %4528 = vmatpush1.msra.mxu0 0.0
    %4529 = vmatprep.subr.mxu0 0.0
    %4530 = vmatpush1.msra.mxu0 0.0
    %4531 = vmatprep.subr.mxu0 0.0
    %4532 = vmatpush1.msra.mxu0 0.0
    %4533 = vmatprep.subr.mxu0 0.0
    %4534 = vmatpush1.msra.mxu0 0.0
    %4535 = vmatprep.subr.mxu0 0.0
    %4536 = vmatpush1.msra.mxu0 0.0
    %4537 = vmatprep.subr.mxu0 0.0
    %4538 = vmatpush1.msra.mxu0 %v4394
    %4539 = vmatprep.subr.mxu0 0.0
    %4540 = vmatpush1.msra.mxu0 %v4393
    %4541 = vmatprep.subr.mxu0 0.0
    %4542 = vmatpush1.msra.mxu0 %v4392
    %4543 = vmatprep.subr.mxu0 0.0
    %4544 = vmatpush1.msra.mxu0 %v4391
    %4545 = vmatprep.subr.mxu0 0.0
    %4546 = vmatpush1.msra.mxu0 %v4390
    %4547 = vmatprep.subr.mxu0 0.0
    %4548 = vmatpush1.msra.mxu0 %v4389
    %4549 = vmatprep.subr.mxu0 0.0
    %4550 = vmatpush1.msra.mxu0 %v4388
    %4551 = vmatprep.subr.mxu0 0.0
    %4552 = vmatpush1.msra.mxu0 %v4387
    %4553 = vmatprep.subr.mxu0 0.0
    %4554 = vmatpush2.msra.mxu0 0.0
    %4555 = vmatprep.subr.mxu0 0.0
    %4556 = vmatpush2.msra.mxu0 0.0
    %4557 = vmatprep.subr.mxu0 0.0
    %4558 = vmatpush2.msra.mxu0 0.0
    %4559 = vmatprep.subr.mxu0 0.0
    %4560 = vmatpush2.msra.mxu0 0.0
    %4561 = vmatprep.subr.mxu0 0.0
    %4562 = vmatpush2.msra.mxu0 0.0
    %4563 = vmatprep.subr.mxu0 0.0
    %4564 = vmatpush2.msra.mxu0 0.0
    %4565 = vmatprep.subr.mxu0 0.0
    %4566 = vmatpush2.msra.mxu0 0.0
    %4567 = vmatprep.subr.mxu0 0.0
    %4568 = vmatpush2.msra.mxu0 0.0
    %4569 = vmatprep.subr.mxu0 0.0
    %4570 = vmatpush2.msra.mxu0 0.0
    %4571 = vmatprep.subr.mxu0 0.0
    %4572 = vmatpush2.msra.mxu0 0.0
    %4573 = vmatprep.subr.mxu0 0.0
    %4574 = vmatpush2.msra.mxu0 0.0
    %4575 = vmatprep.subr.mxu0 0.0
    %4576 = vmatpush2.msra.mxu0 0.0
    %4577 = vmatprep.subr.mxu0 0.0
    %4578 = vmatpush2.msra.mxu0 0.0
    %4579 = vmatprep.subr.mxu0 0.0
    %4580 = vmatpush2.msra.mxu0 0.0
    %4581 = vmatprep.subr.mxu0 0.0
    %4582 = vmatpush2.msra.mxu0 0.0
    %4583 = vmatprep.subr.mxu0 0.0
    %4584 = vmatpush2.msra.mxu0 0.0
    %4585 = vmatprep.mubr.f32.mxu0 0.0
    %4586 = vmatmul.mubr.f32.gmra.mxu0 %v4510
    %v4587 = vpop.f32.mrf.mxu0
    %v4588 = vadd.f32 0.0, %v4587
    %v4589 = vpop.f32.mrf.mxu0
    %4590 = vmatprep.mubr.f32.mxu0 0.0
    %4591 = vmatmul.mubr.f32.gmra.mxu0 %v4513
    %v4592 = vpop.f32.mrf.mxu0
    %v4593 = vadd.f32 0.0, %v4592
    %v4594 = vpop.f32.mrf.mxu0
    %4595 = vmatprep.mubr.f32.mxu0 0.0
    %4596 = vmatmul.mubr.f32.gmra.mxu0 %v4516
    %v4597 = vpop.f32.mrf.mxu0
    %v4598 = vadd.f32 0.0, %v4597
    %v4599 = vpop.f32.mrf.mxu0
    %4600 = vmatprep.mubr.f32.mxu0 0.0
    %4601 = vmatmul.mubr.f32.gmra.mxu0 %v4519
    %v4602 = vpop.f32.mrf.mxu0
    %v4603 = vadd.f32 0.0, %v4602
    %v4604 = vpop.f32.mrf.mxu0
    %4605 = vdwg.mxu0
    %v4606 = vsel %vm1024, %v4588, 0.0
    %v4607 = vsel %vm1024, %v4593, 0.0
    %v4608 = vadd.f32 %v4606, %v4607
    %v4609 = vsel %vm1024, %v4598, 0.0
    %v4610 = vadd.f32 %v4608, %v4609
    %v4611 = vsel %vm1024, %v4603, 0.0
    %v4612 = vadd.f32 %v4610, %v4611
    %v4613 = vrot.slane %v4612, 4
    %v4614 = vadd.f32 %v4612, %v4613
    %v4615 = vrot.slane %v4614, 2
    %v4616 = vadd.f32 %v4614, %v4615
    %v4617 = vrot.slane %v4616, 1
    %v4618 = vadd.f32 %v4616, %v4617
    %v4619 = vmul.f32 %v4504, %v4504
    %v4620 = vsub.f32 %v4618, %v4619
    %v4621 = vmax.f32 %v4620, 0.0
    %s4622 = scalar_lea.vmem %s4, 4
    %v4623 = vld [vmem:[%s4622] sm:$0x1]
    %v4624 = vadd.f32 %v4621, 1e-05
    %v4625 = vrsqrt.pop %v4624
    %v4626 = vmul.f32 %v4623, %v4625
    %s4627 = scalar_lea.vmem %s5, 4
    %v4628 = vld [vmem:[%s4627] sm:$0x1]
    %v4629 = vmul.f32 %v4504, %v4626
    %v4630 = vsub.f32 %v4628, %v4629
    %v4632 = vlaneseq
    %v4633 = vshrl.u32 %v4632, 7
    %v4634 = vsub.s32 0, %v4633
    %v4635 = vrot.slane %v4626, %v4634
    %v4637 = vmul.f32 %v4382, %v4635
    %v4638 = vmul.f32 %v4383, %v4635
    %v4639 = vmul.f32 %v4384, %v4635
    %v4640 = vmul.f32 %v4385, %v4635
    %v4642 = vlaneseq
    %v4643 = vshrl.u32 %v4642, 7
    %v4644 = vsub.s32 0, %v4643
    %v4645 = vrot.slane %v4630, %v4644
    %v4647 = vadd.f32 %v4637, %v4645
    %v4648 = vadd.f32 %v4638, %v4645
    %v4649 = vadd.f32 %v4639, %v4645
    %v4650 = vadd.f32 %v4640, %v4645
    %v4651 = vmax.f32 %v4647, 0.0
    %v4652 = vmax.f32 %v4648, 0.0
    %v4653 = vmax.f32 %v4649, 0.0
    %v4654 = vmax.f32 %v4650, 0.0
    %v4655 = vadd.f32 %v4651, %v3886
    %v4656 = vadd.f32 %v4652, %v3887
    %v4657 = vadd.f32 %v4653, %v3888
    %v4658 = vadd.f32 %v4654, %v3889
    %s4659 = scalar_lea.vmem %s1, 480
    %v4660 = vld [vmem:[%s4659] sm:$0xff]
    %v4661 = vld [vmem:[%s4659 + $0x8] sm:$0xff]
    %v4662 = vld [vmem:[%s4659 + $0x10] sm:$0xff]
    %v4663 = vld [vmem:[%s4659 + $0x18] sm:$0xff]
    %v4664 = vld [vmem:[%s4659 + $0x20] sm:$0xff]
    %v4665 = vld [vmem:[%s4659 + $0x28] sm:$0xff]
    %v4666 = vld [vmem:[%s4659 + $0x30] sm:$0xff]
    %v4667 = vld [vmem:[%s4659 + $0x38] sm:$0xff]
    %v4668 = vld [vmem:[%s4659 + $0x40] sm:$0xff]
    %v4669 = vld [vmem:[%s4659 + $0x48] sm:$0xff]
    %v4670 = vld [vmem:[%s4659 + $0x50] sm:$0xff]
    %v4671 = vld [vmem:[%s4659 + $0x58] sm:$0xff]
    %v4673 = vsel %vm845, %v4660, 0
    %v4676 = vsel %vm845, %v4661, 0
    %v4679 = vsel %vm845, %v4662, 0
    %v4682 = vsel %vm845, %v4663, 0
    %v4685 = vsel %vm845, %v4664, 0
    %v4688 = vsel %vm845, %v4665, 0
    %v4691 = vsel %vm845, %v4666, 0
    %v4694 = vsel %vm845, %v4667, 0
    %v4697 = vsel %vm845, %v4668, 0
    %v4700 = vsel %vm845, %v4669, 0
    %v4703 = vsel %vm845, %v4670, 0
    %v4706 = vsel %vm845, %v4671, 0
    %4708 = vmatprep.subr.mxu0 0.0
    %4709 = vmatpush1.msra.mxu0 0.0
    %4710 = vmatprep.subr.mxu0 0.0
    %4711 = vmatpush1.msra.mxu0 0.0
    %4712 = vmatprep.subr.mxu0 0.0
    %4713 = vmatpush1.msra.mxu0 0.0
    %4714 = vmatprep.subr.mxu0 0.0
    %4715 = vmatpush1.msra.mxu0 0.0
    %4716 = vmatprep.subr.mxu0 0.0
    %4717 = vmatpush1.msra.mxu0 0.0
    %4718 = vmatprep.subr.mxu0 0.0
    %4719 = vmatpush1.msra.mxu0 0.0
    %4720 = vmatprep.subr.mxu0 0.0
    %4721 = vmatpush1.msra.mxu0 0.0
    %4722 = vmatprep.subr.mxu0 0.0
    %4723 = vmatpush1.msra.mxu0 0.0
    %4724 = vmatprep.subr.mxu0 0.0
    %4725 = vmatpush1.msra.mxu0 0.0
    %4726 = vmatprep.subr.mxu0 0.0
    %4727 = vmatpush1.msra.mxu0 0.0
    %4728 = vmatprep.subr.mxu0 0.0
    %4729 = vmatpush1.msra.mxu0 0.0
    %4730 = vmatprep.subr.mxu0 0.0
    %4731 = vmatpush1.msra.mxu0 0.0
    %4732 = vmatprep.subr.mxu0 0.0
    %4733 = vmatpush1.msra.mxu0 %v4658
    %4734 = vmatprep.subr.mxu0 0.0
    %4735 = vmatpush1.msra.mxu0 %v4657
    %4736 = vmatprep.subr.mxu0 0.0
    %4737 = vmatpush1.msra.mxu0 %v4656
    %4738 = vmatprep.subr.mxu0 0.0
    %4739 = vmatpush1.msra.mxu0 %v4655
    %4740 = vmatprep.subr.mxu0 0.0
    %4741 = vmatpush2.msra.mxu0 0.0
    %4742 = vmatprep.subr.mxu0 0.0
    %4743 = vmatpush2.msra.mxu0 0.0
    %4744 = vmatprep.subr.mxu0 0.0
    %4745 = vmatpush2.msra.mxu0 0.0
    %4746 = vmatprep.subr.mxu0 0.0
    %4747 = vmatpush2.msra.mxu0 0.0
    %4748 = vmatprep.subr.mxu0 0.0
    %4749 = vmatpush2.msra.mxu0 0.0
    %4750 = vmatprep.subr.mxu0 0.0
    %4751 = vmatpush2.msra.mxu0 0.0
    %4752 = vmatprep.subr.mxu0 0.0
    %4753 = vmatpush2.msra.mxu0 0.0
    %4754 = vmatprep.subr.mxu0 0.0
    %4755 = vmatpush2.msra.mxu0 0.0
    %4756 = vmatprep.subr.mxu0 0.0
    %4757 = vmatpush2.msra.mxu0 0.0
    %4758 = vmatprep.subr.mxu0 0.0
    %4759 = vmatpush2.msra.mxu0 0.0
    %4760 = vmatprep.subr.mxu0 0.0
    %4761 = vmatpush2.msra.mxu0 0.0
    %4762 = vmatprep.subr.mxu0 0.0
    %4763 = vmatpush2.msra.mxu0 0.0
    %4764 = vmatprep.subr.mxu0 0.0
    %4765 = vmatpush2.msra.mxu0 0.0
    %4766 = vmatprep.subr.mxu0 0.0
    %4767 = vmatpush2.msra.mxu0 0.0
    %4768 = vmatprep.subr.mxu0 0.0
    %4769 = vmatpush2.msra.mxu0 0.0
    %4770 = vmatprep.subr.mxu0 0.0
    %4771 = vmatpush2.msra.mxu0 0.0
    %4772 = vmatprep.mubr.f32.mxu0 0.0
    %4773 = vmatmul.mubr.f32.gmra.mxu0 %v4673
    %v4774 = vpop.f32.mrf.mxu0
    %v4775 = vadd.f32 0.0, %v4774
    %v4776 = vpop.f32.mrf.mxu0
    %4777 = vmatprep.mubr.f32.mxu0 0.0
    %4778 = vmatmul.mubr.f32.gmra.mxu0 %v4676
    %v4779 = vpop.f32.mrf.mxu0
    %v4780 = vadd.f32 0.0, %v4779
    %v4781 = vpop.f32.mrf.mxu0
    %4782 = vmatprep.mubr.f32.mxu0 0.0
    %4783 = vmatmul.mubr.f32.gmra.mxu0 %v4679
    %v4784 = vpop.f32.mrf.mxu0
    %v4785 = vadd.f32 0.0, %v4784
    %v4786 = vpop.f32.mrf.mxu0
    %4787 = vmatprep.mubr.f32.mxu0 0.0
    %4788 = vmatmul.mubr.f32.gmra.mxu0 %v4682
    %v4789 = vpop.f32.mrf.mxu0
    %v4790 = vadd.f32 0.0, %v4789
    %v4791 = vpop.f32.mrf.mxu0
    %4792 = vmatprep.mubr.f32.mxu0 0.0
    %4793 = vmatmul.mubr.f32.gmra.mxu0 %v4685
    %v4794 = vpop.f32.mrf.mxu0
    %v4795 = vadd.f32 0.0, %v4794
    %v4796 = vpop.f32.mrf.mxu0
    %4797 = vmatprep.mubr.f32.mxu0 0.0
    %4798 = vmatmul.mubr.f32.gmra.mxu0 %v4688
    %v4799 = vpop.f32.mrf.mxu0
    %v4800 = vadd.f32 0.0, %v4799
    %v4801 = vpop.f32.mrf.mxu0
    %4802 = vmatprep.mubr.f32.mxu0 0.0
    %4803 = vmatmul.mubr.f32.gmra.mxu0 %v4691
    %v4804 = vpop.f32.mrf.mxu0
    %v4805 = vadd.f32 0.0, %v4804
    %v4806 = vpop.f32.mrf.mxu0
    %4807 = vmatprep.mubr.f32.mxu0 0.0
    %4808 = vmatmul.mubr.f32.gmra.mxu0 %v4694
    %v4809 = vpop.f32.mrf.mxu0
    %v4810 = vadd.f32 0.0, %v4809
    %v4811 = vpop.f32.mrf.mxu0
    %4812 = vmatprep.mubr.f32.mxu0 0.0
    %4813 = vmatmul.mubr.f32.gmra.mxu0 %v4697
    %v4814 = vpop.f32.mrf.mxu0
    %v4815 = vadd.f32 0.0, %v4814
    %v4816 = vpop.f32.mrf.mxu0
    %4817 = vmatprep.mubr.f32.mxu0 0.0
    %4818 = vmatmul.mubr.f32.gmra.mxu0 %v4700
    %v4819 = vpop.f32.mrf.mxu0
    %v4820 = vadd.f32 0.0, %v4819
    %v4821 = vpop.f32.mrf.mxu0
    %4822 = vmatprep.mubr.f32.mxu0 0.0
    %4823 = vmatmul.mubr.f32.gmra.mxu0 %v4703
    %v4824 = vpop.f32.mrf.mxu0
    %v4825 = vadd.f32 0.0, %v4824
    %v4826 = vpop.f32.mrf.mxu0
    %4827 = vmatprep.mubr.f32.mxu0 0.0
    %4828 = vmatmul.mubr.f32.gmra.mxu0 %v4706
    %v4829 = vpop.f32.mrf.mxu0
    %v4830 = vadd.f32 0.0, %v4829
    %v4831 = vpop.f32.mrf.mxu0
    %4832 = vdwg.mxu0
    %s4833 = scalar_lea.vmem %s2, 960
    %v4834 = vld [vmem:[%s4833] sm:$0xff]
    %v4835 = vld [vmem:[%s4833 + $0x8] sm:$0xff]
    %v4836 = vld [vmem:[%s4833 + $0x10] sm:$0xff]
    %v4837 = vld [vmem:[%s4833 + $0x18] sm:$0xff]
    %v4838 = vld [vmem:[%s4833 + $0x20] sm:$0xff]
    %v4839 = vld [vmem:[%s4833 + $0x28] sm:$0xff]
    %v4840 = vld [vmem:[%s4833 + $0x30] sm:$0xff]
    %v4841 = vld [vmem:[%s4833 + $0x38] sm:$0xff]
    %s4842 = scalar_lea.vmem %s2, 1024
    %v4843 = vld [vmem:[%s4842] sm:$0xff]
    %v4844 = vld [vmem:[%s4842 + $0x8] sm:$0xff]
    %v4845 = vld [vmem:[%s4842 + $0x10] sm:$0xff]
    %v4846 = vld [vmem:[%s4842 + $0x18] sm:$0xff]
    %v4847 = vld [vmem:[%s4842 + $0x20] sm:$0xff]
    %v4848 = vld [vmem:[%s4842 + $0x28] sm:$0xff]
    %v4849 = vld [vmem:[%s4842 + $0x30] sm:$0xff]
    %v4850 = vld [vmem:[%s4842 + $0x38] sm:$0xff]
    %v4852 = vsel %vm1024, %v4795, 0
    %v4855 = vsel %vm1024, %v4800, 0
    %v4858 = vsel %vm1024, %v4805, 0
    %v4861 = vsel %vm1024, %v4810, 0
    %4863 = vmatprep.subr.mxu0 0.0
    %4864 = vmatpush1.msra.mxu0 0.0
    %4865 = vmatprep.subr.mxu0 0.0
    %4866 = vmatpush1.msra.mxu0 0.0
    %4867 = vmatprep.subr.mxu0 0.0
    %4868 = vmatpush1.msra.mxu0 0.0
    %4869 = vmatprep.subr.mxu0 0.0
    %4870 = vmatpush1.msra.mxu0 0.0
    %4871 = vmatprep.subr.mxu0 0.0
    %4872 = vmatpush1.msra.mxu0 0.0
    %4873 = vmatprep.subr.mxu0 0.0
    %4874 = vmatpush1.msra.mxu0 0.0
    %4875 = vmatprep.subr.mxu0 0.0
    %4876 = vmatpush1.msra.mxu0 0.0
    %4877 = vmatprep.subr.mxu0 0.0
    %4878 = vmatpush1.msra.mxu0 0.0
    %4879 = vmatprep.subr.mxu0 0.0
    %4880 = vmatpush1.msra.mxu0 %v4850
    %4881 = vmatprep.subr.mxu0 0.0
    %4882 = vmatpush1.msra.mxu0 %v4849
    %4883 = vmatprep.subr.mxu0 0.0
    %4884 = vmatpush1.msra.mxu0 %v4848
    %4885 = vmatprep.subr.mxu0 0.0
    %4886 = vmatpush1.msra.mxu0 %v4847
    %4887 = vmatprep.subr.mxu0 0.0
    %4888 = vmatpush1.msra.mxu0 %v4846
    %4889 = vmatprep.subr.mxu0 0.0
    %4890 = vmatpush1.msra.mxu0 %v4845
    %4891 = vmatprep.subr.mxu0 0.0
    %4892 = vmatpush1.msra.mxu0 %v4844
    %4893 = vmatprep.subr.mxu0 0.0
    %4894 = vmatpush1.msra.mxu0 %v4843
    %4895 = vmatprep.subr.mxu0 0.0
    %4896 = vmatpush2.msra.mxu0 0.0
    %4897 = vmatprep.subr.mxu0 0.0
    %4898 = vmatpush2.msra.mxu0 0.0
    %4899 = vmatprep.subr.mxu0 0.0
    %4900 = vmatpush2.msra.mxu0 0.0
    %4901 = vmatprep.subr.mxu0 0.0
    %4902 = vmatpush2.msra.mxu0 0.0
    %4903 = vmatprep.subr.mxu0 0.0
    %4904 = vmatpush2.msra.mxu0 0.0
    %4905 = vmatprep.subr.mxu0 0.0
    %4906 = vmatpush2.msra.mxu0 0.0
    %4907 = vmatprep.subr.mxu0 0.0
    %4908 = vmatpush2.msra.mxu0 0.0
    %4909 = vmatprep.subr.mxu0 0.0
    %4910 = vmatpush2.msra.mxu0 0.0
    %4911 = vmatprep.subr.mxu0 0.0
    %4912 = vmatpush2.msra.mxu0 0.0
    %4913 = vmatprep.subr.mxu0 0.0
    %4914 = vmatpush2.msra.mxu0 0.0
    %4915 = vmatprep.subr.mxu0 0.0
    %4916 = vmatpush2.msra.mxu0 0.0
    %4917 = vmatprep.subr.mxu0 0.0
    %4918 = vmatpush2.msra.mxu0 0.0
    %4919 = vmatprep.subr.mxu0 0.0
    %4920 = vmatpush2.msra.mxu0 0.0
    %4921 = vmatprep.subr.mxu0 0.0
    %4922 = vmatpush2.msra.mxu0 0.0
    %4923 = vmatprep.subr.mxu0 0.0
    %4924 = vmatpush2.msra.mxu0 0.0
    %4925 = vmatprep.subr.mxu0 0.0
    %4926 = vmatpush2.msra.mxu0 0.0
    %4927 = vmatprep.mubr.f32.mxu0 0.0
    %4928 = vmatmul.mubr.f32.gmra.mxu0 %v4852
    %v4929 = vpop.f32.mrf.mxu0
    %v4930 = vadd.f32 0.0, %v4929
    %v4931 = vpop.f32.mrf.mxu0
    %4932 = vmatprep.mubr.f32.mxu0 0.0
    %4933 = vmatmul.mubr.f32.gmra.mxu0 %v4855
    %v4934 = vpop.f32.mrf.mxu0
    %v4935 = vadd.f32 0.0, %v4934
    %v4936 = vpop.f32.mrf.mxu0
    %4937 = vmatprep.mubr.f32.mxu0 0.0
    %4938 = vmatmul.mubr.f32.gmra.mxu0 %v4858
    %v4939 = vpop.f32.mrf.mxu0
    %v4940 = vadd.f32 0.0, %v4939
    %v4941 = vpop.f32.mrf.mxu0
    %4942 = vmatprep.mubr.f32.mxu0 0.0
    %4943 = vmatmul.mubr.f32.gmra.mxu0 %v4861
    %v4944 = vpop.f32.mrf.mxu0
    %v4945 = vadd.f32 0.0, %v4944
    %v4946 = vpop.f32.mrf.mxu0
    %4947 = vdwg.mxu0
    %v4949 = vsel %vm1024, %v4775, 0
    %v4952 = vsel %vm1024, %v4780, 0
    %v4955 = vsel %vm1024, %v4785, 0
    %v4958 = vsel %vm1024, %v4790, 0
    %4960 = vmatprep.subr.mxu0 0.0
    %4961 = vmatpush1.msra.mxu0 0.0
    %4962 = vmatprep.subr.mxu0 0.0
    %4963 = vmatpush1.msra.mxu0 0.0
    %4964 = vmatprep.subr.mxu0 0.0
    %4965 = vmatpush1.msra.mxu0 0.0
    %4966 = vmatprep.subr.mxu0 0.0
    %4967 = vmatpush1.msra.mxu0 0.0
    %4968 = vmatprep.subr.mxu0 0.0
    %4969 = vmatpush1.msra.mxu0 0.0
    %4970 = vmatprep.subr.mxu0 0.0
    %4971 = vmatpush1.msra.mxu0 0.0
    %4972 = vmatprep.subr.mxu0 0.0
    %4973 = vmatpush1.msra.mxu0 0.0
    %4974 = vmatprep.subr.mxu0 0.0
    %4975 = vmatpush1.msra.mxu0 0.0
    %4976 = vmatprep.subr.mxu0 0.0
    %4977 = vmatpush1.msra.mxu0 %v4841
    %4978 = vmatprep.subr.mxu0 0.0
    %4979 = vmatpush1.msra.mxu0 %v4840
    %4980 = vmatprep.subr.mxu0 0.0
    %4981 = vmatpush1.msra.mxu0 %v4839
    %4982 = vmatprep.subr.mxu0 0.0
    %4983 = vmatpush1.msra.mxu0 %v4838
    %4984 = vmatprep.subr.mxu0 0.0
    %4985 = vmatpush1.msra.mxu0 %v4837
    %4986 = vmatprep.subr.mxu0 0.0
    %4987 = vmatpush1.msra.mxu0 %v4836
    %4988 = vmatprep.subr.mxu0 0.0
    %4989 = vmatpush1.msra.mxu0 %v4835
    %4990 = vmatprep.subr.mxu0 0.0
    %4991 = vmatpush1.msra.mxu0 %v4834
    %4992 = vmatprep.subr.mxu0 0.0
    %4993 = vmatpush2.msra.mxu0 0.0
    %4994 = vmatprep.subr.mxu0 0.0
    %4995 = vmatpush2.msra.mxu0 0.0
    %4996 = vmatprep.subr.mxu0 0.0
    %4997 = vmatpush2.msra.mxu0 0.0
    %4998 = vmatprep.subr.mxu0 0.0
    %4999 = vmatpush2.msra.mxu0 0.0
    %5000 = vmatprep.subr.mxu0 0.0
    %5001 = vmatpush2.msra.mxu0 0.0
    %5002 = vmatprep.subr.mxu0 0.0
    %5003 = vmatpush2.msra.mxu0 0.0
    %5004 = vmatprep.subr.mxu0 0.0
    %5005 = vmatpush2.msra.mxu0 0.0
    %5006 = vmatprep.subr.mxu0 0.0
    %5007 = vmatpush2.msra.mxu0 0.0
    %5008 = vmatprep.subr.mxu0 0.0
    %5009 = vmatpush2.msra.mxu0 0.0
    %5010 = vmatprep.subr.mxu0 0.0
    %5011 = vmatpush2.msra.mxu0 0.0
    %5012 = vmatprep.subr.mxu0 0.0
    %5013 = vmatpush2.msra.mxu0 0.0
    %5014 = vmatprep.subr.mxu0 0.0
    %5015 = vmatpush2.msra.mxu0 0.0
    %5016 = vmatprep.subr.mxu0 0.0
    %5017 = vmatpush2.msra.mxu0 0.0
    %5018 = vmatprep.subr.mxu0 0.0
    %5019 = vmatpush2.msra.mxu0 0.0
    %5020 = vmatprep.subr.mxu0 0.0
    %5021 = vmatpush2.msra.mxu0 0.0
    %5022 = vmatprep.subr.mxu0 0.0
    %5023 = vmatpush2.msra.mxu0 0.0
    %5024 = vmatprep.mubr.f32.mxu0 0.0
    %5025 = vmatmul.mubr.f32.gmra.mxu0 %v4949
    %v5026 = vpop.f32.mrf.mxu0
    %v5027 = vadd.f32 %v4930, %v5026
    %v5028 = vpop.f32.mrf.mxu0
    %5029 = vmatprep.mubr.f32.mxu0 0.0
    %5030 = vmatmul.mubr.f32.gmra.mxu0 %v4952
    %v5031 = vpop.f32.mrf.mxu0
    %v5032 = vadd.f32 %v4935, %v5031
    %v5033 = vpop.f32.mrf.mxu0
    %5034 = vmatprep.mubr.f32.mxu0 0.0
    %5035 = vmatmul.mubr.f32.gmra.mxu0 %v4955
    %v5036 = vpop.f32.mrf.mxu0
    %v5037 = vadd.f32 %v4940, %v5036
    %v5038 = vpop.f32.mrf.mxu0
    %5039 = vmatprep.mubr.f32.mxu0 0.0
    %5040 = vmatmul.mubr.f32.gmra.mxu0 %v4958
    %v5041 = vpop.f32.mrf.mxu0
    %v5042 = vadd.f32 %v4945, %v5041
    %v5043 = vpop.f32.mrf.mxu0
    %5044 = vdwg.mxu0
    %s5045 = scalar_lea.vmem %s2, 1088
    %v5046 = vld [vmem:[%s5045] sm:$0xff]
    %v5047 = vld [vmem:[%s5045 + $0x8] sm:$0xff]
    %v5048 = vld [vmem:[%s5045 + $0x10] sm:$0xff]
    %v5049 = vld [vmem:[%s5045 + $0x18] sm:$0xff]
    %v5050 = vld [vmem:[%s5045 + $0x20] sm:$0xff]
    %v5051 = vld [vmem:[%s5045 + $0x28] sm:$0xff]
    %v5052 = vld [vmem:[%s5045 + $0x30] sm:$0xff]
    %v5053 = vld [vmem:[%s5045 + $0x38] sm:$0xff]
    %v5055 = vsel %vm1024, %v4815, 0
    %v5058 = vsel %vm1024, %v4820, 0
    %v5061 = vsel %vm1024, %v4825, 0
    %v5064 = vsel %vm1024, %v4830, 0
    %5066 = vmatprep.subr.mxu0 0.0
    %5067 = vmatpush1.msra.mxu0 0.0
    %5068 = vmatprep.subr.mxu0 0.0
    %5069 = vmatpush1.msra.mxu0 0.0
    %5070 = vmatprep.subr.mxu0 0.0
    %5071 = vmatpush1.msra.mxu0 0.0
    %5072 = vmatprep.subr.mxu0 0.0
    %5073 = vmatpush1.msra.mxu0 0.0
    %5074 = vmatprep.subr.mxu0 0.0
    %5075 = vmatpush1.msra.mxu0 0.0
    %5076 = vmatprep.subr.mxu0 0.0
    %5077 = vmatpush1.msra.mxu0 0.0
    %5078 = vmatprep.subr.mxu0 0.0
    %5079 = vmatpush1.msra.mxu0 0.0
    %5080 = vmatprep.subr.mxu0 0.0
    %5081 = vmatpush1.msra.mxu0 0.0
    %5082 = vmatprep.subr.mxu0 0.0
    %5083 = vmatpush1.msra.mxu0 %v5053
    %5084 = vmatprep.subr.mxu0 0.0
    %5085 = vmatpush1.msra.mxu0 %v5052
    %5086 = vmatprep.subr.mxu0 0.0
    %5087 = vmatpush1.msra.mxu0 %v5051
    %5088 = vmatprep.subr.mxu0 0.0
    %5089 = vmatpush1.msra.mxu0 %v5050
    %5090 = vmatprep.subr.mxu0 0.0
    %5091 = vmatpush1.msra.mxu0 %v5049
    %5092 = vmatprep.subr.mxu0 0.0
    %5093 = vmatpush1.msra.mxu0 %v5048
    %5094 = vmatprep.subr.mxu0 0.0
    %5095 = vmatpush1.msra.mxu0 %v5047
    %5096 = vmatprep.subr.mxu0 0.0
    %5097 = vmatpush1.msra.mxu0 %v5046
    %5098 = vmatprep.subr.mxu0 0.0
    %5099 = vmatpush2.msra.mxu0 0.0
    %5100 = vmatprep.subr.mxu0 0.0
    %5101 = vmatpush2.msra.mxu0 0.0
    %5102 = vmatprep.subr.mxu0 0.0
    %5103 = vmatpush2.msra.mxu0 0.0
    %5104 = vmatprep.subr.mxu0 0.0
    %5105 = vmatpush2.msra.mxu0 0.0
    %5106 = vmatprep.subr.mxu0 0.0
    %5107 = vmatpush2.msra.mxu0 0.0
    %5108 = vmatprep.subr.mxu0 0.0
    %5109 = vmatpush2.msra.mxu0 0.0
    %5110 = vmatprep.subr.mxu0 0.0
    %5111 = vmatpush2.msra.mxu0 0.0
    %5112 = vmatprep.subr.mxu0 0.0
    %5113 = vmatpush2.msra.mxu0 0.0
    %5114 = vmatprep.subr.mxu0 0.0
    %5115 = vmatpush2.msra.mxu0 0.0
    %5116 = vmatprep.subr.mxu0 0.0
    %5117 = vmatpush2.msra.mxu0 0.0
    %5118 = vmatprep.subr.mxu0 0.0
    %5119 = vmatpush2.msra.mxu0 0.0
    %5120 = vmatprep.subr.mxu0 0.0
    %5121 = vmatpush2.msra.mxu0 0.0
    %5122 = vmatprep.subr.mxu0 0.0
    %5123 = vmatpush2.msra.mxu0 0.0
    %5124 = vmatprep.subr.mxu0 0.0
    %5125 = vmatpush2.msra.mxu0 0.0
    %5126 = vmatprep.subr.mxu0 0.0
    %5127 = vmatpush2.msra.mxu0 0.0
    %5128 = vmatprep.subr.mxu0 0.0
    %5129 = vmatpush2.msra.mxu0 0.0
    %5130 = vmatprep.mubr.f32.mxu0 0.0
    %5131 = vmatmul.mubr.f32.gmra.mxu0 %v5055
    %v5132 = vpop.f32.mrf.mxu0
    %v5133 = vadd.f32 0.0, %v5132
    %v5134 = vpop.f32.mrf.mxu0
    %5135 = vmatprep.mubr.f32.mxu0 0.0
    %5136 = vmatmul.mubr.f32.gmra.mxu0 %v5058
    %v5137 = vpop.f32.mrf.mxu0
    %v5138 = vadd.f32 0.0, %v5137
    %v5139 = vpop.f32.mrf.mxu0
    %5140 = vmatprep.mubr.f32.mxu0 0.0
    %5141 = vmatmul.mubr.f32.gmra.mxu0 %v5061
    %v5142 = vpop.f32.mrf.mxu0
    %v5143 = vadd.f32 0.0, %v5142
    %v5144 = vpop.f32.mrf.mxu0
    %5145 = vmatprep.mubr.f32.mxu0 0.0
    %5146 = vmatmul.mubr.f32.gmra.mxu0 %v5064
    %v5147 = vpop.f32.mrf.mxu0
    %v5148 = vadd.f32 0.0, %v5147
    %v5149 = vpop.f32.mrf.mxu0
    %5150 = vdwg.mxu0
    %v5151 = vadd.f32 %v5027, %v5133
    %v5152 = vadd.f32 %v5032, %v5138
    %v5153 = vadd.f32 %v5037, %v5143
    %v5154 = vadd.f32 %v5042, %v5148
    %s5155 = scalar_lea.vmem [#allocation2], 320
    %v5156 = vld [vmem:[%s5155] sm:$0xff]
    %v5157 = vld [vmem:[%s5155 + $0x8] sm:$0xff]
    %v5158 = vld [vmem:[%s5155 + $0x10] sm:$0xff]
    %v5159 = vld [vmem:[%s5155 + $0x18] sm:$0xff]
    %v5160 = vld [vmem:[%s5155 + $0x20] sm:$0xff]
    %v5161 = vld [vmem:[%s5155 + $0x28] sm:$0xff]
    %v5162 = vld [vmem:[%s5155 + $0x30] sm:$0xff]
    %v5163 = vld [vmem:[%s5155 + $0x38] sm:$0xff]
    %v5165 = vsel %vm1024, %v5151, 0
    %v5168 = vsel %vm1024, %v5152, 0
    %v5171 = vsel %vm1024, %v5153, 0
    %v5174 = vsel %vm1024, %v5154, 0
    %5176 = vmatprep.subr.mxu0 0.0
    %5177 = vmatpush1.msra.mxu0 0.0
    %5178 = vmatprep.subr.mxu0 0.0
    %5179 = vmatpush1.msra.mxu0 0.0
    %5180 = vmatprep.subr.mxu0 0.0
    %5181 = vmatpush1.msra.mxu0 0.0
    %5182 = vmatprep.subr.mxu0 0.0
    %5183 = vmatpush1.msra.mxu0 0.0
    %5184 = vmatprep.subr.mxu0 0.0
    %5185 = vmatpush1.msra.mxu0 0.0
    %5186 = vmatprep.subr.mxu0 0.0
    %5187 = vmatpush1.msra.mxu0 0.0
    %5188 = vmatprep.subr.mxu0 0.0
    %5189 = vmatpush1.msra.mxu0 0.0
    %5190 = vmatprep.subr.mxu0 0.0
    %5191 = vmatpush1.msra.mxu0 0.0
    %5192 = vmatprep.subr.mxu0 0.0
    %5193 = vmatpush1.msra.mxu0 %v5163
    %5194 = vmatprep.subr.mxu0 0.0
    %5195 = vmatpush1.msra.mxu0 %v5162
    %5196 = vmatprep.subr.mxu0 0.0
    %5197 = vmatpush1.msra.mxu0 %v5161
    %5198 = vmatprep.subr.mxu0 0.0
    %5199 = vmatpush1.msra.mxu0 %v5160
    %5200 = vmatprep.subr.mxu0 0.0
    %5201 = vmatpush1.msra.mxu0 %v5159
    %5202 = vmatprep.subr.mxu0 0.0
    %5203 = vmatpush1.msra.mxu0 %v5158
    %5204 = vmatprep.subr.mxu0 0.0
    %5205 = vmatpush1.msra.mxu0 %v5157
    %5206 = vmatprep.subr.mxu0 0.0
    %5207 = vmatpush1.msra.mxu0 %v5156
    %5208 = vmatprep.subr.mxu0 0.0
    %5209 = vmatpush2.msra.mxu0 0.0
    %5210 = vmatprep.subr.mxu0 0.0
    %5211 = vmatpush2.msra.mxu0 0.0
    %5212 = vmatprep.subr.mxu0 0.0
    %5213 = vmatpush2.msra.mxu0 0.0
    %5214 = vmatprep.subr.mxu0 0.0
    %5215 = vmatpush2.msra.mxu0 0.0
    %5216 = vmatprep.subr.mxu0 0.0
    %5217 = vmatpush2.msra.mxu0 0.0
    %5218 = vmatprep.subr.mxu0 0.0
    %5219 = vmatpush2.msra.mxu0 0.0
    %5220 = vmatprep.subr.mxu0 0.0
    %5221 = vmatpush2.msra.mxu0 0.0
    %5222 = vmatprep.subr.mxu0 0.0
    %5223 = vmatpush2.msra.mxu0 0.0
    %5224 = vmatprep.subr.mxu0 0.0
    %5225 = vmatpush2.msra.mxu0 0.0
    %5226 = vmatprep.subr.mxu0 0.0
    %5227 = vmatpush2.msra.mxu0 0.0
    %5228 = vmatprep.subr.mxu0 0.0
    %5229 = vmatpush2.msra.mxu0 0.0
    %5230 = vmatprep.subr.mxu0 0.0
    %5231 = vmatpush2.msra.mxu0 0.0
    %5232 = vmatprep.subr.mxu0 0.0
    %5233 = vmatpush2.msra.mxu0 0.0
    %5234 = vmatprep.subr.mxu0 0.0
    %5235 = vmatpush2.msra.mxu0 0.0
    %5236 = vmatprep.subr.mxu0 0.0
    %5237 = vmatpush2.msra.mxu0 0.0
    %5238 = vmatprep.subr.mxu0 0.0
    %5239 = vmatpush2.msra.mxu0 0.0
    %5240 = vmatprep.mubr.f32.mxu0 0.0
    %5241 = vmatmul.mubr.f32.gmra.mxu0 %v5165
    %v5242 = vpop.f32.mrf.mxu0
    %v5243 = vadd.f32 0.0, %v5242
    %v5244 = vpop.f32.mrf.mxu0
    %5245 = vmatprep.mubr.f32.mxu0 0.0
    %5246 = vmatmul.mubr.f32.gmra.mxu0 %v5168
    %v5247 = vpop.f32.mrf.mxu0
    %v5248 = vadd.f32 0.0, %v5247
    %v5249 = vpop.f32.mrf.mxu0
    %5250 = vmatprep.mubr.f32.mxu0 0.0
    %5251 = vmatmul.mubr.f32.gmra.mxu0 %v5171
    %v5252 = vpop.f32.mrf.mxu0
    %v5253 = vadd.f32 0.0, %v5252
    %v5254 = vpop.f32.mrf.mxu0
    %5255 = vmatprep.mubr.f32.mxu0 0.0
    %5256 = vmatmul.mubr.f32.gmra.mxu0 %v5174
    %v5257 = vpop.f32.mrf.mxu0
    %v5258 = vadd.f32 0.0, %v5257
    %v5259 = vpop.f32.mrf.mxu0
    %5260 = vdwg.mxu0
    %v5261 = vsel %vm1024, %v5243, 0.0
    %v5262 = vsel %vm1024, %v5248, 0.0
    %v5263 = vadd.f32 %v5261, %v5262
    %v5264 = vsel %vm1024, %v5253, 0.0
    %v5265 = vadd.f32 %v5263, %v5264
    %v5266 = vsel %vm1024, %v5258, 0.0
    %v5267 = vadd.f32 %v5265, %v5266
    %v5268 = vrot.slane %v5267, 4
    %v5269 = vadd.f32 %v5267, %v5268
    %v5270 = vrot.slane %v5269, 2
    %v5271 = vadd.f32 %v5269, %v5270
    %v5272 = vrot.slane %v5271, 1
    %v5273 = vadd.f32 %v5271, %v5272
    %v5274 = vmul.f32 %v5151, %v5151
    %v5275 = vmul.f32 %v5152, %v5152
    %v5276 = vmul.f32 %v5153, %v5153
    %v5277 = vmul.f32 %v5154, %v5154
    %v5279 = vsel %vm1024, %v5274, 0
    %v5282 = vsel %vm1024, %v5275, 0
    %v5285 = vsel %vm1024, %v5276, 0
    %v5288 = vsel %vm1024, %v5277, 0
    %5290 = vmatprep.subr.mxu0 0.0
    %5291 = vmatpush1.msra.mxu0 0.0
    %5292 = vmatprep.subr.mxu0 0.0
    %5293 = vmatpush1.msra.mxu0 0.0
    %5294 = vmatprep.subr.mxu0 0.0
    %5295 = vmatpush1.msra.mxu0 0.0
    %5296 = vmatprep.subr.mxu0 0.0
    %5297 = vmatpush1.msra.mxu0 0.0
    %5298 = vmatprep.subr.mxu0 0.0
    %5299 = vmatpush1.msra.mxu0 0.0
    %5300 = vmatprep.subr.mxu0 0.0
    %5301 = vmatpush1.msra.mxu0 0.0
    %5302 = vmatprep.subr.mxu0 0.0
    %5303 = vmatpush1.msra.mxu0 0.0
    %5304 = vmatprep.subr.mxu0 0.0
    %5305 = vmatpush1.msra.mxu0 0.0
    %5306 = vmatprep.subr.mxu0 0.0
    %5307 = vmatpush1.msra.mxu0 %v5163
    %5308 = vmatprep.subr.mxu0 0.0
    %5309 = vmatpush1.msra.mxu0 %v5162
    %5310 = vmatprep.subr.mxu0 0.0
    %5311 = vmatpush1.msra.mxu0 %v5161
    %5312 = vmatprep.subr.mxu0 0.0
    %5313 = vmatpush1.msra.mxu0 %v5160
    %5314 = vmatprep.subr.mxu0 0.0
    %5315 = vmatpush1.msra.mxu0 %v5159
    %5316 = vmatprep.subr.mxu0 0.0
    %5317 = vmatpush1.msra.mxu0 %v5158
    %5318 = vmatprep.subr.mxu0 0.0
    %5319 = vmatpush1.msra.mxu0 %v5157
    %5320 = vmatprep.subr.mxu0 0.0
    %5321 = vmatpush1.msra.mxu0 %v5156
    %5322 = vmatprep.subr.mxu0 0.0
    %5323 = vmatpush2.msra.mxu0 0.0
    %5324 = vmatprep.subr.mxu0 0.0
    %5325 = vmatpush2.msra.mxu0 0.0
    %5326 = vmatprep.subr.mxu0 0.0
    %5327 = vmatpush2.msra.mxu0 0.0
    %5328 = vmatprep.subr.mxu0 0.0
    %5329 = vmatpush2.msra.mxu0 0.0
    %5330 = vmatprep.subr.mxu0 0.0
    %5331 = vmatpush2.msra.mxu0 0.0
    %5332 = vmatprep.subr.mxu0 0.0
    %5333 = vmatpush2.msra.mxu0 0.0
    %5334 = vmatprep.subr.mxu0 0.0
    %5335 = vmatpush2.msra.mxu0 0.0
    %5336 = vmatprep.subr.mxu0 0.0
    %5337 = vmatpush2.msra.mxu0 0.0
    %5338 = vmatprep.subr.mxu0 0.0
    %5339 = vmatpush2.msra.mxu0 0.0
    %5340 = vmatprep.subr.mxu0 0.0
    %5341 = vmatpush2.msra.mxu0 0.0
    %5342 = vmatprep.subr.mxu0 0.0
    %5343 = vmatpush2.msra.mxu0 0.0
    %5344 = vmatprep.subr.mxu0 0.0
    %5345 = vmatpush2.msra.mxu0 0.0
    %5346 = vmatprep.subr.mxu0 0.0
    %5347 = vmatpush2.msra.mxu0 0.0
    %5348 = vmatprep.subr.mxu0 0.0
    %5349 = vmatpush2.msra.mxu0 0.0
    %5350 = vmatprep.subr.mxu0 0.0
    %5351 = vmatpush2.msra.mxu0 0.0
    %5352 = vmatprep.subr.mxu0 0.0
    %5353 = vmatpush2.msra.mxu0 0.0
    %5354 = vmatprep.mubr.f32.mxu0 0.0
    %5355 = vmatmul.mubr.f32.gmra.mxu0 %v5279
    %v5356 = vpop.f32.mrf.mxu0
    %v5357 = vadd.f32 0.0, %v5356
    %v5358 = vpop.f32.mrf.mxu0
    %5359 = vmatprep.mubr.f32.mxu0 0.0
    %5360 = vmatmul.mubr.f32.gmra.mxu0 %v5282
    %v5361 = vpop.f32.mrf.mxu0
    %v5362 = vadd.f32 0.0, %v5361
    %v5363 = vpop.f32.mrf.mxu0
    %5364 = vmatprep.mubr.f32.mxu0 0.0
    %5365 = vmatmul.mubr.f32.gmra.mxu0 %v5285
    %v5366 = vpop.f32.mrf.mxu0
    %v5367 = vadd.f32 0.0, %v5366
    %v5368 = vpop.f32.mrf.mxu0
    %5369 = vmatprep.mubr.f32.mxu0 0.0
    %5370 = vmatmul.mubr.f32.gmra.mxu0 %v5288
    %v5371 = vpop.f32.mrf.mxu0
    %v5372 = vadd.f32 0.0, %v5371
    %v5373 = vpop.f32.mrf.mxu0
    %5374 = vdwg.mxu0
    %v5375 = vsel %vm1024, %v5357, 0.0
    %v5376 = vsel %vm1024, %v5362, 0.0
    %v5377 = vadd.f32 %v5375, %v5376
    %v5378 = vsel %vm1024, %v5367, 0.0
    %v5379 = vadd.f32 %v5377, %v5378
    %v5380 = vsel %vm1024, %v5372, 0.0
    %v5381 = vadd.f32 %v5379, %v5380
    %v5382 = vrot.slane %v5381, 4
    %v5383 = vadd.f32 %v5381, %v5382
    %v5384 = vrot.slane %v5383, 2
    %v5385 = vadd.f32 %v5383, %v5384
    %v5386 = vrot.slane %v5385, 1
    %v5387 = vadd.f32 %v5385, %v5386
    %v5388 = vmul.f32 %v5273, %v5273
    %v5389 = vsub.f32 %v5387, %v5388
    %v5390 = vmax.f32 %v5389, 0.0
    %s5391 = scalar_lea.vmem %s4, 5
    %v5392 = vld [vmem:[%s5391] sm:$0x1]
    %v5393 = vadd.f32 %v5390, 1e-05
    %v5394 = vrsqrt.pop %v5393
    %v5395 = vmul.f32 %v5392, %v5394
    %s5396 = scalar_lea.vmem %s5, 5
    %v5397 = vld [vmem:[%s5396] sm:$0x1]
    %v5398 = vmul.f32 %v5273, %v5395
    %v5399 = vsub.f32 %v5397, %v5398
    %v5401 = vlaneseq
    %v5402 = vshrl.u32 %v5401, 7
    %v5403 = vsub.s32 0, %v5402
    %v5404 = vrot.slane %v5395, %v5403
    %v5406 = vmul.f32 %v5151, %v5404
    %v5407 = vmul.f32 %v5152, %v5404
    %v5408 = vmul.f32 %v5153, %v5404
    %v5409 = vmul.f32 %v5154, %v5404
    %v5411 = vlaneseq
    %v5412 = vshrl.u32 %v5411, 7
    %v5413 = vsub.s32 0, %v5412
    %v5414 = vrot.slane %v5399, %v5413
    %v5416 = vadd.f32 %v5406, %v5414
    %v5417 = vadd.f32 %v5407, %v5414
    %v5418 = vadd.f32 %v5408, %v5414
    %v5419 = vadd.f32 %v5409, %v5414
    %v5420 = vmax.f32 %v5416, 0.0
    %v5421 = vmax.f32 %v5417, 0.0
    %v5422 = vmax.f32 %v5418, 0.0
    %v5423 = vmax.f32 %v5419, 0.0
    %v5424 = vadd.f32 %v5420, %v3121
    %v5425 = vadd.f32 %v5421, %v3122
    %v5426 = vadd.f32 %v5422, %v3123
    %v5427 = vadd.f32 %v5423, %v3124
    %s5428 = scalar_lea.vmem %s1, 576
    %v5429 = vld [vmem:[%s5428] sm:$0xff]
    %v5430 = vld [vmem:[%s5428 + $0x8] sm:$0xff]
    %v5431 = vld [vmem:[%s5428 + $0x10] sm:$0xff]
    %v5432 = vld [vmem:[%s5428 + $0x18] sm:$0xff]
    %v5433 = vld [vmem:[%s5428 + $0x20] sm:$0xff]
    %v5434 = vld [vmem:[%s5428 + $0x28] sm:$0xff]
    %v5435 = vld [vmem:[%s5428 + $0x30] sm:$0xff]
    %v5436 = vld [vmem:[%s5428 + $0x38] sm:$0xff]
    %v5437 = vld [vmem:[%s5428 + $0x40] sm:$0xff]
    %v5438 = vld [vmem:[%s5428 + $0x48] sm:$0xff]
    %v5439 = vld [vmem:[%s5428 + $0x50] sm:$0xff]
    %v5440 = vld [vmem:[%s5428 + $0x58] sm:$0xff]
    %v5442 = vsel %vm845, %v5429, 0
    %v5445 = vsel %vm845, %v5430, 0
    %v5448 = vsel %vm845, %v5431, 0
    %v5451 = vsel %vm845, %v5432, 0
    %v5454 = vsel %vm845, %v5433, 0
    %v5457 = vsel %vm845, %v5434, 0
    %v5460 = vsel %vm845, %v5435, 0
    %v5463 = vsel %vm845, %v5436, 0
    %v5466 = vsel %vm845, %v5437, 0
    %v5469 = vsel %vm845, %v5438, 0
    %v5472 = vsel %vm845, %v5439, 0
    %v5475 = vsel %vm845, %v5440, 0
    %5477 = vmatprep.subr.mxu0 0.0
    %5478 = vmatpush1.msra.mxu0 0.0
    %5479 = vmatprep.subr.mxu0 0.0
    %5480 = vmatpush1.msra.mxu0 0.0
    %5481 = vmatprep.subr.mxu0 0.0
    %5482 = vmatpush1.msra.mxu0 0.0
    %5483 = vmatprep.subr.mxu0 0.0
    %5484 = vmatpush1.msra.mxu0 0.0
    %5485 = vmatprep.subr.mxu0 0.0
    %5486 = vmatpush1.msra.mxu0 0.0
    %5487 = vmatprep.subr.mxu0 0.0
    %5488 = vmatpush1.msra.mxu0 0.0
    %5489 = vmatprep.subr.mxu0 0.0
    %5490 = vmatpush1.msra.mxu0 0.0
    %5491 = vmatprep.subr.mxu0 0.0
    %5492 = vmatpush1.msra.mxu0 0.0
    %5493 = vmatprep.subr.mxu0 0.0
    %5494 = vmatpush1.msra.mxu0 0.0
    %5495 = vmatprep.subr.mxu0 0.0
    %5496 = vmatpush1.msra.mxu0 0.0
    %5497 = vmatprep.subr.mxu0 0.0
    %5498 = vmatpush1.msra.mxu0 0.0
    %5499 = vmatprep.subr.mxu0 0.0
    %5500 = vmatpush1.msra.mxu0 0.0
    %5501 = vmatprep.subr.mxu0 0.0
    %5502 = vmatpush1.msra.mxu0 %v5427
    %5503 = vmatprep.subr.mxu0 0.0
    %5504 = vmatpush1.msra.mxu0 %v5426
    %5505 = vmatprep.subr.mxu0 0.0
    %5506 = vmatpush1.msra.mxu0 %v5425
    %5507 = vmatprep.subr.mxu0 0.0
    %5508 = vmatpush1.msra.mxu0 %v5424
    %5509 = vmatprep.subr.mxu0 0.0
    %5510 = vmatpush2.msra.mxu0 0.0
    %5511 = vmatprep.subr.mxu0 0.0
    %5512 = vmatpush2.msra.mxu0 0.0
    %5513 = vmatprep.subr.mxu0 0.0
    %5514 = vmatpush2.msra.mxu0 0.0
    %5515 = vmatprep.subr.mxu0 0.0
    %5516 = vmatpush2.msra.mxu0 0.0
    %5517 = vmatprep.subr.mxu0 0.0
    %5518 = vmatpush2.msra.mxu0 0.0
    %5519 = vmatprep.subr.mxu0 0.0
    %5520 = vmatpush2.msra.mxu0 0.0
    %5521 = vmatprep.subr.mxu0 0.0
    %5522 = vmatpush2.msra.mxu0 0.0
    %5523 = vmatprep.subr.mxu0 0.0
    %5524 = vmatpush2.msra.mxu0 0.0
    %5525 = vmatprep.subr.mxu0 0.0
    %5526 = vmatpush2.msra.mxu0 0.0
    %5527 = vmatprep.subr.mxu0 0.0
    %5528 = vmatpush2.msra.mxu0 0.0
    %5529 = vmatprep.subr.mxu0 0.0
    %5530 = vmatpush2.msra.mxu0 0.0
    %5531 = vmatprep.subr.mxu0 0.0
    %5532 = vmatpush2.msra.mxu0 0.0
    %5533 = vmatprep.subr.mxu0 0.0
    %5534 = vmatpush2.msra.mxu0 0.0
    %5535 = vmatprep.subr.mxu0 0.0
    %5536 = vmatpush2.msra.mxu0 0.0
    %5537 = vmatprep.subr.mxu0 0.0
    %5538 = vmatpush2.msra.mxu0 0.0
    %5539 = vmatprep.subr.mxu0 0.0
    %5540 = vmatpush2.msra.mxu0 0.0
    %5541 = vmatprep.mubr.f32.mxu0 0.0
    %5542 = vmatmul.mubr.f32.gmra.mxu0 %v5442
    %v5543 = vpop.f32.mrf.mxu0
    %v5544 = vadd.f32 0.0, %v5543
    %v5545 = vpop.f32.mrf.mxu0
    %5546 = vmatprep.mubr.f32.mxu0 0.0
    %5547 = vmatmul.mubr.f32.gmra.mxu0 %v5445
    %v5548 = vpop.f32.mrf.mxu0
    %v5549 = vadd.f32 0.0, %v5548
    %v5550 = vpop.f32.mrf.mxu0
    %5551 = vmatprep.mubr.f32.mxu0 0.0
    %5552 = vmatmul.mubr.f32.gmra.mxu0 %v5448
    %v5553 = vpop.f32.mrf.mxu0
    %v5554 = vadd.f32 0.0, %v5553
    %v5555 = vpop.f32.mrf.mxu0
    %5556 = vmatprep.mubr.f32.mxu0 0.0
    %5557 = vmatmul.mubr.f32.gmra.mxu0 %v5451
    %v5558 = vpop.f32.mrf.mxu0
    %v5559 = vadd.f32 0.0, %v5558
    %v5560 = vpop.f32.mrf.mxu0
    %5561 = vmatprep.mubr.f32.mxu0 0.0
    %5562 = vmatmul.mubr.f32.gmra.mxu0 %v5454
    %v5563 = vpop.f32.mrf.mxu0
    %v5564 = vadd.f32 0.0, %v5563
    %v5565 = vpop.f32.mrf.mxu0
    %5566 = vmatprep.mubr.f32.mxu0 0.0
    %5567 = vmatmul.mubr.f32.gmra.mxu0 %v5457
    %v5568 = vpop.f32.mrf.mxu0
    %v5569 = vadd.f32 0.0, %v5568
    %v5570 = vpop.f32.mrf.mxu0
    %5571 = vmatprep.mubr.f32.mxu0 0.0
    %5572 = vmatmul.mubr.f32.gmra.mxu0 %v5460
    %v5573 = vpop.f32.mrf.mxu0
    %v5574 = vadd.f32 0.0, %v5573
    %v5575 = vpop.f32.mrf.mxu0
    %5576 = vmatprep.mubr.f32.mxu0 0.0
    %5577 = vmatmul.mubr.f32.gmra.mxu0 %v5463
    %v5578 = vpop.f32.mrf.mxu0
    %v5579 = vadd.f32 0.0, %v5578
    %v5580 = vpop.f32.mrf.mxu0
    %5581 = vmatprep.mubr.f32.mxu0 0.0
    %5582 = vmatmul.mubr.f32.gmra.mxu0 %v5466
    %v5583 = vpop.f32.mrf.mxu0
    %v5584 = vadd.f32 0.0, %v5583
    %v5585 = vpop.f32.mrf.mxu0
    %5586 = vmatprep.mubr.f32.mxu0 0.0
    %5587 = vmatmul.mubr.f32.gmra.mxu0 %v5469
    %v5588 = vpop.f32.mrf.mxu0
    %v5589 = vadd.f32 0.0, %v5588
    %v5590 = vpop.f32.mrf.mxu0
    %5591 = vmatprep.mubr.f32.mxu0 0.0
    %5592 = vmatmul.mubr.f32.gmra.mxu0 %v5472
    %v5593 = vpop.f32.mrf.mxu0
    %v5594 = vadd.f32 0.0, %v5593
    %v5595 = vpop.f32.mrf.mxu0
    %5596 = vmatprep.mubr.f32.mxu0 0.0
    %5597 = vmatmul.mubr.f32.gmra.mxu0 %v5475
    %v5598 = vpop.f32.mrf.mxu0
    %v5599 = vadd.f32 0.0, %v5598
    %v5600 = vpop.f32.mrf.mxu0
    %5601 = vdwg.mxu0
    %s5602 = scalar_lea.vmem %s2, 1152
    %v5603 = vld [vmem:[%s5602] sm:$0xff]
    %v5604 = vld [vmem:[%s5602 + $0x8] sm:$0xff]
    %v5605 = vld [vmem:[%s5602 + $0x10] sm:$0xff]
    %v5606 = vld [vmem:[%s5602 + $0x18] sm:$0xff]
    %v5607 = vld [vmem:[%s5602 + $0x20] sm:$0xff]
    %v5608 = vld [vmem:[%s5602 + $0x28] sm:$0xff]
    %v5609 = vld [vmem:[%s5602 + $0x30] sm:$0xff]
    %v5610 = vld [vmem:[%s5602 + $0x38] sm:$0xff]
    %s5611 = scalar_lea.vmem %s2, 1216
    %v5612 = vld [vmem:[%s5611] sm:$0xff]
    %v5613 = vld [vmem:[%s5611 + $0x8] sm:$0xff]
    %v5614 = vld [vmem:[%s5611 + $0x10] sm:$0xff]
    %v5615 = vld [vmem:[%s5611 + $0x18] sm:$0xff]
    %v5616 = vld [vmem:[%s5611 + $0x20] sm:$0xff]
    %v5617 = vld [vmem:[%s5611 + $0x28] sm:$0xff]
    %v5618 = vld [vmem:[%s5611 + $0x30] sm:$0xff]
    %v5619 = vld [vmem:[%s5611 + $0x38] sm:$0xff]
    %v5621 = vsel %vm1024, %v5564, 0
    %v5624 = vsel %vm1024, %v5569, 0
    %v5627 = vsel %vm1024, %v5574, 0
    %v5630 = vsel %vm1024, %v5579, 0
    %5632 = vmatprep.subr.mxu0 0.0
    %5633 = vmatpush1.msra.mxu0 0.0
    %5634 = vmatprep.subr.mxu0 0.0
    %5635 = vmatpush1.msra.mxu0 0.0
    %5636 = vmatprep.subr.mxu0 0.0
    %5637 = vmatpush1.msra.mxu0 0.0
    %5638 = vmatprep.subr.mxu0 0.0
    %5639 = vmatpush1.msra.mxu0 0.0
    %5640 = vmatprep.subr.mxu0 0.0
    %5641 = vmatpush1.msra.mxu0 0.0
    %5642 = vmatprep.subr.mxu0 0.0
    %5643 = vmatpush1.msra.mxu0 0.0
    %5644 = vmatprep.subr.mxu0 0.0
    %5645 = vmatpush1.msra.mxu0 0.0
    %5646 = vmatprep.subr.mxu0 0.0
    %5647 = vmatpush1.msra.mxu0 0.0
    %5648 = vmatprep.subr.mxu0 0.0
    %5649 = vmatpush1.msra.mxu0 %v5619
    %5650 = vmatprep.subr.mxu0 0.0
    %5651 = vmatpush1.msra.mxu0 %v5618
    %5652 = vmatprep.subr.mxu0 0.0
    %5653 = vmatpush1.msra.mxu0 %v5617
    %5654 = vmatprep.subr.mxu0 0.0
    %5655 = vmatpush1.msra.mxu0 %v5616
    %5656 = vmatprep.subr.mxu0 0.0
    %5657 = vmatpush1.msra.mxu0 %v5615
    %5658 = vmatprep.subr.mxu0 0.0
    %5659 = vmatpush1.msra.mxu0 %v5614
    %5660 = vmatprep.subr.mxu0 0.0
    %5661 = vmatpush1.msra.mxu0 %v5613
    %5662 = vmatprep.subr.mxu0 0.0
    %5663 = vmatpush1.msra.mxu0 %v5612
    %5664 = vmatprep.subr.mxu0 0.0
    %5665 = vmatpush2.msra.mxu0 0.0
    %5666 = vmatprep.subr.mxu0 0.0
    %5667 = vmatpush2.msra.mxu0 0.0
    %5668 = vmatprep.subr.mxu0 0.0
    %5669 = vmatpush2.msra.mxu0 0.0
    %5670 = vmatprep.subr.mxu0 0.0
    %5671 = vmatpush2.msra.mxu0 0.0
    %5672 = vmatprep.subr.mxu0 0.0
    %5673 = vmatpush2.msra.mxu0 0.0
    %5674 = vmatprep.subr.mxu0 0.0
    %5675 = vmatpush2.msra.mxu0 0.0
    %5676 = vmatprep.subr.mxu0 0.0
    %5677 = vmatpush2.msra.mxu0 0.0
    %5678 = vmatprep.subr.mxu0 0.0
    %5679 = vmatpush2.msra.mxu0 0.0
    %5680 = vmatprep.subr.mxu0 0.0
    %5681 = vmatpush2.msra.mxu0 0.0
    %5682 = vmatprep.subr.mxu0 0.0
    %5683 = vmatpush2.msra.mxu0 0.0
    %5684 = vmatprep.subr.mxu0 0.0
    %5685 = vmatpush2.msra.mxu0 0.0
    %5686 = vmatprep.subr.mxu0 0.0
    %5687 = vmatpush2.msra.mxu0 0.0
    %5688 = vmatprep.subr.mxu0 0.0
    %5689 = vmatpush2.msra.mxu0 0.0
    %5690 = vmatprep.subr.mxu0 0.0
    %5691 = vmatpush2.msra.mxu0 0.0
    %5692 = vmatprep.subr.mxu0 0.0
    %5693 = vmatpush2.msra.mxu0 0.0
    %5694 = vmatprep.subr.mxu0 0.0
    %5695 = vmatpush2.msra.mxu0 0.0
    %5696 = vmatprep.mubr.f32.mxu0 0.0
    %5697 = vmatmul.mubr.f32.gmra.mxu0 %v5621
    %v5698 = vpop.f32.mrf.mxu0
    %v5699 = vadd.f32 0.0, %v5698
    %v5700 = vpop.f32.mrf.mxu0
    %5701 = vmatprep.mubr.f32.mxu0 0.0
    %5702 = vmatmul.mubr.f32.gmra.mxu0 %v5624
    %v5703 = vpop.f32.mrf.mxu0
    %v5704 = vadd.f32 0.0, %v5703
    %v5705 = vpop.f32.mrf.mxu0
    %5706 = vmatprep.mubr.f32.mxu0 0.0
    %5707 = vmatmul.mubr.f32.gmra.mxu0 %v5627
    %v5708 = vpop.f32.mrf.mxu0
    %v5709 = vadd.f32 0.0, %v5708
    %v5710 = vpop.f32.mrf.mxu0
    %5711 = vmatprep.mubr.f32.mxu0 0.0
    %5712 = vmatmul.mubr.f32.gmra.mxu0 %v5630
    %v5713 = vpop.f32.mrf.mxu0
    %v5714 = vadd.f32 0.0, %v5713
    %v5715 = vpop.f32.mrf.mxu0
    %5716 = vdwg.mxu0
    %v5718 = vsel %vm1024, %v5544, 0
    %v5721 = vsel %vm1024, %v5549, 0
    %v5724 = vsel %vm1024, %v5554, 0
    %v5727 = vsel %vm1024, %v5559, 0
    %5729 = vmatprep.subr.mxu0 0.0
    %5730 = vmatpush1.msra.mxu0 0.0
    %5731 = vmatprep.subr.mxu0 0.0
    %5732 = vmatpush1.msra.mxu0 0.0
    %5733 = vmatprep.subr.mxu0 0.0
    %5734 = vmatpush1.msra.mxu0 0.0
    %5735 = vmatprep.subr.mxu0 0.0
    %5736 = vmatpush1.msra.mxu0 0.0
    %5737 = vmatprep.subr.mxu0 0.0
    %5738 = vmatpush1.msra.mxu0 0.0
    %5739 = vmatprep.subr.mxu0 0.0
    %5740 = vmatpush1.msra.mxu0 0.0
    %5741 = vmatprep.subr.mxu0 0.0
    %5742 = vmatpush1.msra.mxu0 0.0
    %5743 = vmatprep.subr.mxu0 0.0
    %5744 = vmatpush1.msra.mxu0 0.0
    %5745 = vmatprep.subr.mxu0 0.0
    %5746 = vmatpush1.msra.mxu0 %v5610
    %5747 = vmatprep.subr.mxu0 0.0
    %5748 = vmatpush1.msra.mxu0 %v5609
    %5749 = vmatprep.subr.mxu0 0.0
    %5750 = vmatpush1.msra.mxu0 %v5608
    %5751 = vmatprep.subr.mxu0 0.0
    %5752 = vmatpush1.msra.mxu0 %v5607
    %5753 = vmatprep.subr.mxu0 0.0
    %5754 = vmatpush1.msra.mxu0 %v5606
    %5755 = vmatprep.subr.mxu0 0.0
    %5756 = vmatpush1.msra.mxu0 %v5605
    %5757 = vmatprep.subr.mxu0 0.0
    %5758 = vmatpush1.msra.mxu0 %v5604
    %5759 = vmatprep.subr.mxu0 0.0
    %5760 = vmatpush1.msra.mxu0 %v5603
    %5761 = vmatprep.subr.mxu0 0.0
    %5762 = vmatpush2.msra.mxu0 0.0
    %5763 = vmatprep.subr.mxu0 0.0
    %5764 = vmatpush2.msra.mxu0 0.0
    %5765 = vmatprep.subr.mxu0 0.0
    %5766 = vmatpush2.msra.mxu0 0.0
    %5767 = vmatprep.subr.mxu0 0.0
    %5768 = vmatpush2.msra.mxu0 0.0
    %5769 = vmatprep.subr.mxu0 0.0
    %5770 = vmatpush2.msra.mxu0 0.0
    %5771 = vmatprep.subr.mxu0 0.0
    %5772 = vmatpush2.msra.mxu0 0.0
    %5773 = vmatprep.subr.mxu0 0.0
    %5774 = vmatpush2.msra.mxu0 0.0
    %5775 = vmatprep.subr.mxu0 0.0
    %5776 = vmatpush2.msra.mxu0 0.0
    %5777 = vmatprep.subr.mxu0 0.0
    %5778 = vmatpush2.msra.mxu0 0.0
    %5779 = vmatprep.subr.mxu0 0.0
    %5780 = vmatpush2.msra.mxu0 0.0
    %5781 = vmatprep.subr.mxu0 0.0
    %5782 = vmatpush2.msra.mxu0 0.0
    %5783 = vmatprep.subr.mxu0 0.0
    %5784 = vmatpush2.msra.mxu0 0.0
    %5785 = vmatprep.subr.mxu0 0.0
    %5786 = vmatpush2.msra.mxu0 0.0
    %5787 = vmatprep.subr.mxu0 0.0
    %5788 = vmatpush2.msra.mxu0 0.0
    %5789 = vmatprep.subr.mxu0 0.0
    %5790 = vmatpush2.msra.mxu0 0.0
    %5791 = vmatprep.subr.mxu0 0.0
    %5792 = vmatpush2.msra.mxu0 0.0
    %5793 = vmatprep.mubr.f32.mxu0 0.0
    %5794 = vmatmul.mubr.f32.gmra.mxu0 %v5718
    %v5795 = vpop.f32.mrf.mxu0
    %v5796 = vadd.f32 %v5699, %v5795
    %v5797 = vpop.f32.mrf.mxu0
    %5798 = vmatprep.mubr.f32.mxu0 0.0
    %5799 = vmatmul.mubr.f32.gmra.mxu0 %v5721
    %v5800 = vpop.f32.mrf.mxu0
    %v5801 = vadd.f32 %v5704, %v5800
    %v5802 = vpop.f32.mrf.mxu0
    %5803 = vmatprep.mubr.f32.mxu0 0.0
    %5804 = vmatmul.mubr.f32.gmra.mxu0 %v5724
    %v5805 = vpop.f32.mrf.mxu0
    %v5806 = vadd.f32 %v5709, %v5805
    %v5807 = vpop.f32.mrf.mxu0
    %5808 = vmatprep.mubr.f32.mxu0 0.0
    %5809 = vmatmul.mubr.f32.gmra.mxu0 %v5727
    %v5810 = vpop.f32.mrf.mxu0
    %v5811 = vadd.f32 %v5714, %v5810
    %v5812 = vpop.f32.mrf.mxu0
    %5813 = vdwg.mxu0
    %s5814 = scalar_lea.vmem %s2, 1280
    %v5815 = vld [vmem:[%s5814] sm:$0xff]
    %v5816 = vld [vmem:[%s5814 + $0x8] sm:$0xff]
    %v5817 = vld [vmem:[%s5814 + $0x10] sm:$0xff]
    %v5818 = vld [vmem:[%s5814 + $0x18] sm:$0xff]
    %v5819 = vld [vmem:[%s5814 + $0x20] sm:$0xff]
    %v5820 = vld [vmem:[%s5814 + $0x28] sm:$0xff]
    %v5821 = vld [vmem:[%s5814 + $0x30] sm:$0xff]
    %v5822 = vld [vmem:[%s5814 + $0x38] sm:$0xff]
    %v5824 = vsel %vm1024, %v5584, 0
    %v5827 = vsel %vm1024, %v5589, 0
    %v5830 = vsel %vm1024, %v5594, 0
    %v5833 = vsel %vm1024, %v5599, 0
    %5835 = vmatprep.subr.mxu0 0.0
    %5836 = vmatpush1.msra.mxu0 0.0
    %5837 = vmatprep.subr.mxu0 0.0
    %5838 = vmatpush1.msra.mxu0 0.0
    %5839 = vmatprep.subr.mxu0 0.0
    %5840 = vmatpush1.msra.mxu0 0.0
    %5841 = vmatprep.subr.mxu0 0.0
    %5842 = vmatpush1.msra.mxu0 0.0
    %5843 = vmatprep.subr.mxu0 0.0
    %5844 = vmatpush1.msra.mxu0 0.0
    %5845 = vmatprep.subr.mxu0 0.0
    %5846 = vmatpush1.msra.mxu0 0.0
    %5847 = vmatprep.subr.mxu0 0.0
    %5848 = vmatpush1.msra.mxu0 0.0
    %5849 = vmatprep.subr.mxu0 0.0
    %5850 = vmatpush1.msra.mxu0 0.0
    %5851 = vmatprep.subr.mxu0 0.0
    %5852 = vmatpush1.msra.mxu0 %v5822
    %5853 = vmatprep.subr.mxu0 0.0
    %5854 = vmatpush1.msra.mxu0 %v5821
    %5855 = vmatprep.subr.mxu0 0.0
    %5856 = vmatpush1.msra.mxu0 %v5820
    %5857 = vmatprep.subr.mxu0 0.0
    %5858 = vmatpush1.msra.mxu0 %v5819
    %5859 = vmatprep.subr.mxu0 0.0
    %5860 = vmatpush1.msra.mxu0 %v5818
    %5861 = vmatprep.subr.mxu0 0.0
    %5862 = vmatpush1.msra.mxu0 %v5817
    %5863 = vmatprep.subr.mxu0 0.0
    %5864 = vmatpush1.msra.mxu0 %v5816
    %5865 = vmatprep.subr.mxu0 0.0
    %5866 = vmatpush1.msra.mxu0 %v5815
    %5867 = vmatprep.subr.mxu0 0.0
    %5868 = vmatpush2.msra.mxu0 0.0
    %5869 = vmatprep.subr.mxu0 0.0
    %5870 = vmatpush2.msra.mxu0 0.0
    %5871 = vmatprep.subr.mxu0 0.0
    %5872 = vmatpush2.msra.mxu0 0.0
    %5873 = vmatprep.subr.mxu0 0.0
    %5874 = vmatpush2.msra.mxu0 0.0
    %5875 = vmatprep.subr.mxu0 0.0
    %5876 = vmatpush2.msra.mxu0 0.0
    %5877 = vmatprep.subr.mxu0 0.0
    %5878 = vmatpush2.msra.mxu0 0.0
    %5879 = vmatprep.subr.mxu0 0.0
    %5880 = vmatpush2.msra.mxu0 0.0
    %5881 = vmatprep.subr.mxu0 0.0
    %5882 = vmatpush2.msra.mxu0 0.0
    %5883 = vmatprep.subr.mxu0 0.0
    %5884 = vmatpush2.msra.mxu0 0.0
    %5885 = vmatprep.subr.mxu0 0.0
    %5886 = vmatpush2.msra.mxu0 0.0
    %5887 = vmatprep.subr.mxu0 0.0
    %5888 = vmatpush2.msra.mxu0 0.0
    %5889 = vmatprep.subr.mxu0 0.0
    %5890 = vmatpush2.msra.mxu0 0.0
    %5891 = vmatprep.subr.mxu0 0.0
    %5892 = vmatpush2.msra.mxu0 0.0
    %5893 = vmatprep.subr.mxu0 0.0
    %5894 = vmatpush2.msra.mxu0 0.0
    %5895 = vmatprep.subr.mxu0 0.0
    %5896 = vmatpush2.msra.mxu0 0.0
    %5897 = vmatprep.subr.mxu0 0.0
    %5898 = vmatpush2.msra.mxu0 0.0
    %5899 = vmatprep.mubr.f32.mxu0 0.0
    %5900 = vmatmul.mubr.f32.gmra.mxu0 %v5824
    %v5901 = vpop.f32.mrf.mxu0
    %v5902 = vadd.f32 0.0, %v5901
    %v5903 = vpop.f32.mrf.mxu0
    %5904 = vmatprep.mubr.f32.mxu0 0.0
    %5905 = vmatmul.mubr.f32.gmra.mxu0 %v5827
    %v5906 = vpop.f32.mrf.mxu0
    %v5907 = vadd.f32 0.0, %v5906
    %v5908 = vpop.f32.mrf.mxu0
    %5909 = vmatprep.mubr.f32.mxu0 0.0
    %5910 = vmatmul.mubr.f32.gmra.mxu0 %v5830
    %v5911 = vpop.f32.mrf.mxu0
    %v5912 = vadd.f32 0.0, %v5911
    %v5913 = vpop.f32.mrf.mxu0
    %5914 = vmatprep.mubr.f32.mxu0 0.0
    %5915 = vmatmul.mubr.f32.gmra.mxu0 %v5833
    %v5916 = vpop.f32.mrf.mxu0
    %v5917 = vadd.f32 0.0, %v5916
    %v5918 = vpop.f32.mrf.mxu0
    %5919 = vdwg.mxu0
    %v5920 = vadd.f32 %v5796, %v5902
    %v5921 = vadd.f32 %v5801, %v5907
    %v5922 = vadd.f32 %v5806, %v5912
    %v5923 = vadd.f32 %v5811, %v5917
    %s5924 = scalar_lea.vmem [#allocation2], 384
    %v5925 = vld [vmem:[%s5924] sm:$0xff]
    %v5926 = vld [vmem:[%s5924 + $0x8] sm:$0xff]
    %v5927 = vld [vmem:[%s5924 + $0x10] sm:$0xff]
    %v5928 = vld [vmem:[%s5924 + $0x18] sm:$0xff]
    %v5929 = vld [vmem:[%s5924 + $0x20] sm:$0xff]
    %v5930 = vld [vmem:[%s5924 + $0x28] sm:$0xff]
    %v5931 = vld [vmem:[%s5924 + $0x30] sm:$0xff]
    %v5932 = vld [vmem:[%s5924 + $0x38] sm:$0xff]
    %v5934 = vsel %vm1024, %v5920, 0
    %v5937 = vsel %vm1024, %v5921, 0
    %v5940 = vsel %vm1024, %v5922, 0
    %v5943 = vsel %vm1024, %v5923, 0
    %5945 = vmatprep.subr.mxu0 0.0
    %5946 = vmatpush1.msra.mxu0 0.0
    %5947 = vmatprep.subr.mxu0 0.0
    %5948 = vmatpush1.msra.mxu0 0.0
    %5949 = vmatprep.subr.mxu0 0.0
    %5950 = vmatpush1.msra.mxu0 0.0
    %5951 = vmatprep.subr.mxu0 0.0
    %5952 = vmatpush1.msra.mxu0 0.0
    %5953 = vmatprep.subr.mxu0 0.0
    %5954 = vmatpush1.msra.mxu0 0.0
    %5955 = vmatprep.subr.mxu0 0.0
    %5956 = vmatpush1.msra.mxu0 0.0
    %5957 = vmatprep.subr.mxu0 0.0
    %5958 = vmatpush1.msra.mxu0 0.0
    %5959 = vmatprep.subr.mxu0 0.0
    %5960 = vmatpush1.msra.mxu0 0.0
    %5961 = vmatprep.subr.mxu0 0.0
    %5962 = vmatpush1.msra.mxu0 %v5932
    %5963 = vmatprep.subr.mxu0 0.0
    %5964 = vmatpush1.msra.mxu0 %v5931
    %5965 = vmatprep.subr.mxu0 0.0
    %5966 = vmatpush1.msra.mxu0 %v5930
    %5967 = vmatprep.subr.mxu0 0.0
    %5968 = vmatpush1.msra.mxu0 %v5929
    %5969 = vmatprep.subr.mxu0 0.0
    %5970 = vmatpush1.msra.mxu0 %v5928
    %5971 = vmatprep.subr.mxu0 0.0
    %5972 = vmatpush1.msra.mxu0 %v5927
    %5973 = vmatprep.subr.mxu0 0.0
    %5974 = vmatpush1.msra.mxu0 %v5926
    %5975 = vmatprep.subr.mxu0 0.0
    %5976 = vmatpush1.msra.mxu0 %v5925
    %5977 = vmatprep.subr.mxu0 0.0
    %5978 = vmatpush2.msra.mxu0 0.0
    %5979 = vmatprep.subr.mxu0 0.0
    %5980 = vmatpush2.msra.mxu0 0.0
    %5981 = vmatprep.subr.mxu0 0.0
    %5982 = vmatpush2.msra.mxu0 0.0
    %5983 = vmatprep.subr.mxu0 0.0
    %5984 = vmatpush2.msra.mxu0 0.0
    %5985 = vmatprep.subr.mxu0 0.0
    %5986 = vmatpush2.msra.mxu0 0.0
    %5987 = vmatprep.subr.mxu0 0.0
    %5988 = vmatpush2.msra.mxu0 0.0
    %5989 = vmatprep.subr.mxu0 0.0
    %5990 = vmatpush2.msra.mxu0 0.0
    %5991 = vmatprep.subr.mxu0 0.0
    %5992 = vmatpush2.msra.mxu0 0.0
    %5993 = vmatprep.subr.mxu0 0.0
    %5994 = vmatpush2.msra.mxu0 0.0
    %5995 = vmatprep.subr.mxu0 0.0
    %5996 = vmatpush2.msra.mxu0 0.0
    %5997 = vmatprep.subr.mxu0 0.0
    %5998 = vmatpush2.msra.mxu0 0.0
    %5999 = vmatprep.subr.mxu0 0.0
    %6000 = vmatpush2.msra.mxu0 0.0
    %6001 = vmatprep.subr.mxu0 0.0
    %6002 = vmatpush2.msra.mxu0 0.0
    %6003 = vmatprep.subr.mxu0 0.0
    %6004 = vmatpush2.msra.mxu0 0.0
    %6005 = vmatprep.subr.mxu0 0.0
    %6006 = vmatpush2.msra.mxu0 0.0
    %6007 = vmatprep.subr.mxu0 0.0
    %6008 = vmatpush2.msra.mxu0 0.0
    %6009 = vmatprep.mubr.f32.mxu0 0.0
    %6010 = vmatmul.mubr.f32.gmra.mxu0 %v5934
    %v6011 = vpop.f32.mrf.mxu0
    %v6012 = vadd.f32 0.0, %v6011
    %v6013 = vpop.f32.mrf.mxu0
    %6014 = vmatprep.mubr.f32.mxu0 0.0
    %6015 = vmatmul.mubr.f32.gmra.mxu0 %v5937
    %v6016 = vpop.f32.mrf.mxu0
    %v6017 = vadd.f32 0.0, %v6016
    %v6018 = vpop.f32.mrf.mxu0
    %6019 = vmatprep.mubr.f32.mxu0 0.0
    %6020 = vmatmul.mubr.f32.gmra.mxu0 %v5940
    %v6021 = vpop.f32.mrf.mxu0
    %v6022 = vadd.f32 0.0, %v6021
    %v6023 = vpop.f32.mrf.mxu0
    %6024 = vmatprep.mubr.f32.mxu0 0.0
    %6025 = vmatmul.mubr.f32.gmra.mxu0 %v5943
    %v6026 = vpop.f32.mrf.mxu0
    %v6027 = vadd.f32 0.0, %v6026
    %v6028 = vpop.f32.mrf.mxu0
    %6029 = vdwg.mxu0
    %v6030 = vsel %vm1024, %v6012, 0.0
    %v6031 = vsel %vm1024, %v6017, 0.0
    %v6032 = vadd.f32 %v6030, %v6031
    %v6033 = vsel %vm1024, %v6022, 0.0
    %v6034 = vadd.f32 %v6032, %v6033
    %v6035 = vsel %vm1024, %v6027, 0.0
    %v6036 = vadd.f32 %v6034, %v6035
    %v6037 = vrot.slane %v6036, 4
    %v6038 = vadd.f32 %v6036, %v6037
    %v6039 = vrot.slane %v6038, 2
    %v6040 = vadd.f32 %v6038, %v6039
    %v6041 = vrot.slane %v6040, 1
    %v6042 = vadd.f32 %v6040, %v6041
    %v6043 = vmul.f32 %v5920, %v5920
    %v6044 = vmul.f32 %v5921, %v5921
    %v6045 = vmul.f32 %v5922, %v5922
    %v6046 = vmul.f32 %v5923, %v5923
    %v6048 = vsel %vm1024, %v6043, 0
    %v6051 = vsel %vm1024, %v6044, 0
    %v6054 = vsel %vm1024, %v6045, 0
    %v6057 = vsel %vm1024, %v6046, 0
    %6059 = vmatprep.subr.mxu0 0.0
    %6060 = vmatpush1.msra.mxu0 0.0
    %6061 = vmatprep.subr.mxu0 0.0
    %6062 = vmatpush1.msra.mxu0 0.0
    %6063 = vmatprep.subr.mxu0 0.0
    %6064 = vmatpush1.msra.mxu0 0.0
    %6065 = vmatprep.subr.mxu0 0.0
    %6066 = vmatpush1.msra.mxu0 0.0
    %6067 = vmatprep.subr.mxu0 0.0
    %6068 = vmatpush1.msra.mxu0 0.0
    %6069 = vmatprep.subr.mxu0 0.0
    %6070 = vmatpush1.msra.mxu0 0.0
    %6071 = vmatprep.subr.mxu0 0.0
    %6072 = vmatpush1.msra.mxu0 0.0
    %6073 = vmatprep.subr.mxu0 0.0
    %6074 = vmatpush1.msra.mxu0 0.0
    %6075 = vmatprep.subr.mxu0 0.0
    %6076 = vmatpush1.msra.mxu0 %v5932
    %6077 = vmatprep.subr.mxu0 0.0
    %6078 = vmatpush1.msra.mxu0 %v5931
    %6079 = vmatprep.subr.mxu0 0.0
    %6080 = vmatpush1.msra.mxu0 %v5930
    %6081 = vmatprep.subr.mxu0 0.0
    %6082 = vmatpush1.msra.mxu0 %v5929
    %6083 = vmatprep.subr.mxu0 0.0
    %6084 = vmatpush1.msra.mxu0 %v5928
    %6085 = vmatprep.subr.mxu0 0.0
    %6086 = vmatpush1.msra.mxu0 %v5927
    %6087 = vmatprep.subr.mxu0 0.0
    %6088 = vmatpush1.msra.mxu0 %v5926
    %6089 = vmatprep.subr.mxu0 0.0
    %6090 = vmatpush1.msra.mxu0 %v5925
    %6091 = vmatprep.subr.mxu0 0.0
    %6092 = vmatpush2.msra.mxu0 0.0
    %6093 = vmatprep.subr.mxu0 0.0
    %6094 = vmatpush2.msra.mxu0 0.0
    %6095 = vmatprep.subr.mxu0 0.0
    %6096 = vmatpush2.msra.mxu0 0.0
    %6097 = vmatprep.subr.mxu0 0.0
    %6098 = vmatpush2.msra.mxu0 0.0
    %6099 = vmatprep.subr.mxu0 0.0
    %6100 = vmatpush2.msra.mxu0 0.0
    %6101 = vmatprep.subr.mxu0 0.0
    %6102 = vmatpush2.msra.mxu0 0.0
    %6103 = vmatprep.subr.mxu0 0.0
    %6104 = vmatpush2.msra.mxu0 0.0
    %6105 = vmatprep.subr.mxu0 0.0
    %6106 = vmatpush2.msra.mxu0 0.0
    %6107 = vmatprep.subr.mxu0 0.0
    %6108 = vmatpush2.msra.mxu0 0.0
    %6109 = vmatprep.subr.mxu0 0.0
    %6110 = vmatpush2.msra.mxu0 0.0
    %6111 = vmatprep.subr.mxu0 0.0
    %6112 = vmatpush2.msra.mxu0 0.0
    %6113 = vmatprep.subr.mxu0 0.0
    %6114 = vmatpush2.msra.mxu0 0.0
    %6115 = vmatprep.subr.mxu0 0.0
    %6116 = vmatpush2.msra.mxu0 0.0
    %6117 = vmatprep.subr.mxu0 0.0
    %6118 = vmatpush2.msra.mxu0 0.0
    %6119 = vmatprep.subr.mxu0 0.0
    %6120 = vmatpush2.msra.mxu0 0.0
    %6121 = vmatprep.subr.mxu0 0.0
    %6122 = vmatpush2.msra.mxu0 0.0
    %6123 = vmatprep.mubr.f32.mxu0 0.0
    %6124 = vmatmul.mubr.f32.gmra.mxu0 %v6048
    %v6125 = vpop.f32.mrf.mxu0
    %v6126 = vadd.f32 0.0, %v6125
    %v6127 = vpop.f32.mrf.mxu0
    %6128 = vmatprep.mubr.f32.mxu0 0.0
    %6129 = vmatmul.mubr.f32.gmra.mxu0 %v6051
    %v6130 = vpop.f32.mrf.mxu0
    %v6131 = vadd.f32 0.0, %v6130
    %v6132 = vpop.f32.mrf.mxu0
    %6133 = vmatprep.mubr.f32.mxu0 0.0
    %6134 = vmatmul.mubr.f32.gmra.mxu0 %v6054
    %v6135 = vpop.f32.mrf.mxu0
    %v6136 = vadd.f32 0.0, %v6135
    %v6137 = vpop.f32.mrf.mxu0
    %6138 = vmatprep.mubr.f32.mxu0 0.0
    %6139 = vmatmul.mubr.f32.gmra.mxu0 %v6057
    %v6140 = vpop.f32.mrf.mxu0
    %v6141 = vadd.f32 0.0, %v6140
    %v6142 = vpop.f32.mrf.mxu0
    %6143 = vdwg.mxu0
    %v6144 = vsel %vm1024, %v6126, 0.0
    %v6145 = vsel %vm1024, %v6131, 0.0
    %v6146 = vadd.f32 %v6144, %v6145
    %v6147 = vsel %vm1024, %v6136, 0.0
    %v6148 = vadd.f32 %v6146, %v6147
    %v6149 = vsel %vm1024, %v6141, 0.0
    %v6150 = vadd.f32 %v6148, %v6149
    %v6151 = vrot.slane %v6150, 4
    %v6152 = vadd.f32 %v6150, %v6151
    %v6153 = vrot.slane %v6152, 2
    %v6154 = vadd.f32 %v6152, %v6153
    %v6155 = vrot.slane %v6154, 1
    %v6156 = vadd.f32 %v6154, %v6155
    %v6157 = vmul.f32 %v6042, %v6042
    %v6158 = vsub.f32 %v6156, %v6157
    %v6159 = vmax.f32 %v6158, 0.0
    %s6160 = scalar_lea.vmem %s4, 6
    %v6161 = vld [vmem:[%s6160] sm:$0x1]
    %v6162 = vadd.f32 %v6159, 1e-05
    %v6163 = vrsqrt.pop %v6162
    %v6164 = vmul.f32 %v6161, %v6163
    %s6165 = scalar_lea.vmem %s5, 6
    %v6166 = vld [vmem:[%s6165] sm:$0x1]
    %v6167 = vmul.f32 %v6042, %v6164
    %v6168 = vsub.f32 %v6166, %v6167
    %v6170 = vlaneseq
    %v6171 = vshrl.u32 %v6170, 7
    %v6172 = vsub.s32 0, %v6171
    %v6173 = vrot.slane %v6164, %v6172
    %v6175 = vmul.f32 %v5920, %v6173
    %v6176 = vmul.f32 %v5921, %v6173
    %v6177 = vmul.f32 %v5922, %v6173
    %v6178 = vmul.f32 %v5923, %v6173
    %v6180 = vlaneseq
    %v6181 = vshrl.u32 %v6180, 7
    %v6182 = vsub.s32 0, %v6181
    %v6183 = vrot.slane %v6168, %v6182
    %v6185 = vadd.f32 %v6175, %v6183
    %v6186 = vadd.f32 %v6176, %v6183
    %v6187 = vadd.f32 %v6177, %v6183
    %v6188 = vadd.f32 %v6178, %v6183
    %v6189 = vmax.f32 %v6185, 0.0
    %v6190 = vmax.f32 %v6186, 0.0
    %v6191 = vmax.f32 %v6187, 0.0
    %v6192 = vmax.f32 %v6188, 0.0
    %v6193 = vadd.f32 %v6189, %v2356
    %v6194 = vadd.f32 %v6190, %v2357
    %v6195 = vadd.f32 %v6191, %v2358
    %v6196 = vadd.f32 %v6192, %v2359
    %s6197 = scalar_lea.vmem %s1, 672
    %v6198 = vld [vmem:[%s6197] sm:$0xff]
    %v6199 = vld [vmem:[%s6197 + $0x8] sm:$0xff]
    %v6200 = vld [vmem:[%s6197 + $0x10] sm:$0xff]
    %v6201 = vld [vmem:[%s6197 + $0x18] sm:$0xff]
    %v6202 = vld [vmem:[%s6197 + $0x20] sm:$0xff]
    %v6203 = vld [vmem:[%s6197 + $0x28] sm:$0xff]
    %v6204 = vld [vmem:[%s6197 + $0x30] sm:$0xff]
    %v6205 = vld [vmem:[%s6197 + $0x38] sm:$0xff]
    %v6206 = vld [vmem:[%s6197 + $0x40] sm:$0xff]
    %v6207 = vld [vmem:[%s6197 + $0x48] sm:$0xff]
    %v6208 = vld [vmem:[%s6197 + $0x50] sm:$0xff]
    %v6209 = vld [vmem:[%s6197 + $0x58] sm:$0xff]
    %v6211 = vsel %vm845, %v6198, 0
    %v6214 = vsel %vm845, %v6199, 0
    %v6217 = vsel %vm845, %v6200, 0
    %v6220 = vsel %vm845, %v6201, 0
    %v6223 = vsel %vm845, %v6202, 0
    %v6226 = vsel %vm845, %v6203, 0
    %v6229 = vsel %vm845, %v6204, 0
    %v6232 = vsel %vm845, %v6205, 0
    %v6235 = vsel %vm845, %v6206, 0
    %v6238 = vsel %vm845, %v6207, 0
    %v6241 = vsel %vm845, %v6208, 0
    %v6244 = vsel %vm845, %v6209, 0
    %6246 = vmatprep.subr.mxu0 0.0
    %6247 = vmatpush1.msra.mxu0 0.0
    %6248 = vmatprep.subr.mxu0 0.0
    %6249 = vmatpush1.msra.mxu0 0.0
    %6250 = vmatprep.subr.mxu0 0.0
    %6251 = vmatpush1.msra.mxu0 0.0
    %6252 = vmatprep.subr.mxu0 0.0
    %6253 = vmatpush1.msra.mxu0 0.0
    %6254 = vmatprep.subr.mxu0 0.0
    %6255 = vmatpush1.msra.mxu0 0.0
    %6256 = vmatprep.subr.mxu0 0.0
    %6257 = vmatpush1.msra.mxu0 0.0
    %6258 = vmatprep.subr.mxu0 0.0
    %6259 = vmatpush1.msra.mxu0 0.0
    %6260 = vmatprep.subr.mxu0 0.0
    %6261 = vmatpush1.msra.mxu0 0.0
    %6262 = vmatprep.subr.mxu0 0.0
    %6263 = vmatpush1.msra.mxu0 0.0
    %6264 = vmatprep.subr.mxu0 0.0
    %6265 = vmatpush1.msra.mxu0 0.0
    %6266 = vmatprep.subr.mxu0 0.0
    %6267 = vmatpush1.msra.mxu0 0.0
    %6268 = vmatprep.subr.mxu0 0.0
    %6269 = vmatpush1.msra.mxu0 0.0
    %6270 = vmatprep.subr.mxu0 0.0
    %6271 = vmatpush1.msra.mxu0 %v6196
    %6272 = vmatprep.subr.mxu0 0.0
    %6273 = vmatpush1.msra.mxu0 %v6195
    %6274 = vmatprep.subr.mxu0 0.0
    %6275 = vmatpush1.msra.mxu0 %v6194
    %6276 = vmatprep.subr.mxu0 0.0
    %6277 = vmatpush1.msra.mxu0 %v6193
    %6278 = vmatprep.subr.mxu0 0.0
    %6279 = vmatpush2.msra.mxu0 0.0
    %6280 = vmatprep.subr.mxu0 0.0
    %6281 = vmatpush2.msra.mxu0 0.0
    %6282 = vmatprep.subr.mxu0 0.0
    %6283 = vmatpush2.msra.mxu0 0.0
    %6284 = vmatprep.subr.mxu0 0.0
    %6285 = vmatpush2.msra.mxu0 0.0
    %6286 = vmatprep.subr.mxu0 0.0
    %6287 = vmatpush2.msra.mxu0 0.0
    %6288 = vmatprep.subr.mxu0 0.0
    %6289 = vmatpush2.msra.mxu0 0.0
    %6290 = vmatprep.subr.mxu0 0.0
    %6291 = vmatpush2.msra.mxu0 0.0
    %6292 = vmatprep.subr.mxu0 0.0
    %6293 = vmatpush2.msra.mxu0 0.0
    %6294 = vmatprep.subr.mxu0 0.0
    %6295 = vmatpush2.msra.mxu0 0.0
    %6296 = vmatprep.subr.mxu0 0.0
    %6297 = vmatpush2.msra.mxu0 0.0
    %6298 = vmatprep.subr.mxu0 0.0
    %6299 = vmatpush2.msra.mxu0 0.0
    %6300 = vmatprep.subr.mxu0 0.0
    %6301 = vmatpush2.msra.mxu0 0.0
    %6302 = vmatprep.subr.mxu0 0.0
    %6303 = vmatpush2.msra.mxu0 0.0
    %6304 = vmatprep.subr.mxu0 0.0
    %6305 = vmatpush2.msra.mxu0 0.0
    %6306 = vmatprep.subr.mxu0 0.0
    %6307 = vmatpush2.msra.mxu0 0.0
    %6308 = vmatprep.subr.mxu0 0.0
    %6309 = vmatpush2.msra.mxu0 0.0
    %6310 = vmatprep.mubr.f32.mxu0 0.0
    %6311 = vmatmul.mubr.f32.gmra.mxu0 %v6211
    %v6312 = vpop.f32.mrf.mxu0
    %v6313 = vadd.f32 0.0, %v6312
    %v6314 = vpop.f32.mrf.mxu0
    %6315 = vmatprep.mubr.f32.mxu0 0.0
    %6316 = vmatmul.mubr.f32.gmra.mxu0 %v6214
    %v6317 = vpop.f32.mrf.mxu0
    %v6318 = vadd.f32 0.0, %v6317
    %v6319 = vpop.f32.mrf.mxu0
    %6320 = vmatprep.mubr.f32.mxu0 0.0
    %6321 = vmatmul.mubr.f32.gmra.mxu0 %v6217
    %v6322 = vpop.f32.mrf.mxu0
    %v6323 = vadd.f32 0.0, %v6322
    %v6324 = vpop.f32.mrf.mxu0
    %6325 = vmatprep.mubr.f32.mxu0 0.0
    %6326 = vmatmul.mubr.f32.gmra.mxu0 %v6220
    %v6327 = vpop.f32.mrf.mxu0
    %v6328 = vadd.f32 0.0, %v6327
    %v6329 = vpop.f32.mrf.mxu0
    %6330 = vmatprep.mubr.f32.mxu0 0.0
    %6331 = vmatmul.mubr.f32.gmra.mxu0 %v6223
    %v6332 = vpop.f32.mrf.mxu0
    %v6333 = vadd.f32 0.0, %v6332
    %v6334 = vpop.f32.mrf.mxu0
    %6335 = vmatprep.mubr.f32.mxu0 0.0
    %6336 = vmatmul.mubr.f32.gmra.mxu0 %v6226
    %v6337 = vpop.f32.mrf.mxu0
    %v6338 = vadd.f32 0.0, %v6337
    %v6339 = vpop.f32.mrf.mxu0
    %6340 = vmatprep.mubr.f32.mxu0 0.0
    %6341 = vmatmul.mubr.f32.gmra.mxu0 %v6229
    %v6342 = vpop.f32.mrf.mxu0
    %v6343 = vadd.f32 0.0, %v6342
    %v6344 = vpop.f32.mrf.mxu0
    %6345 = vmatprep.mubr.f32.mxu0 0.0
    %6346 = vmatmul.mubr.f32.gmra.mxu0 %v6232
    %v6347 = vpop.f32.mrf.mxu0
    %v6348 = vadd.f32 0.0, %v6347
    %v6349 = vpop.f32.mrf.mxu0
    %6350 = vmatprep.mubr.f32.mxu0 0.0
    %6351 = vmatmul.mubr.f32.gmra.mxu0 %v6235
    %v6352 = vpop.f32.mrf.mxu0
    %v6353 = vadd.f32 0.0, %v6352
    %v6354 = vpop.f32.mrf.mxu0
    %6355 = vmatprep.mubr.f32.mxu0 0.0
    %6356 = vmatmul.mubr.f32.gmra.mxu0 %v6238
    %v6357 = vpop.f32.mrf.mxu0
    %v6358 = vadd.f32 0.0, %v6357
    %v6359 = vpop.f32.mrf.mxu0
    %6360 = vmatprep.mubr.f32.mxu0 0.0
    %6361 = vmatmul.mubr.f32.gmra.mxu0 %v6241
    %v6362 = vpop.f32.mrf.mxu0
    %v6363 = vadd.f32 0.0, %v6362
    %v6364 = vpop.f32.mrf.mxu0
    %6365 = vmatprep.mubr.f32.mxu0 0.0
    %6366 = vmatmul.mubr.f32.gmra.mxu0 %v6244
    %v6367 = vpop.f32.mrf.mxu0
    %v6368 = vadd.f32 0.0, %v6367
    %v6369 = vpop.f32.mrf.mxu0
    %6370 = vdwg.mxu0
    %s6371 = scalar_lea.vmem %s2, 1344
    %v6372 = vld [vmem:[%s6371] sm:$0xff]
    %v6373 = vld [vmem:[%s6371 + $0x8] sm:$0xff]
    %v6374 = vld [vmem:[%s6371 + $0x10] sm:$0xff]
    %v6375 = vld [vmem:[%s6371 + $0x18] sm:$0xff]
    %v6376 = vld [vmem:[%s6371 + $0x20] sm:$0xff]
    %v6377 = vld [vmem:[%s6371 + $0x28] sm:$0xff]
    %v6378 = vld [vmem:[%s6371 + $0x30] sm:$0xff]
    %v6379 = vld [vmem:[%s6371 + $0x38] sm:$0xff]
    %s6380 = scalar_lea.vmem %s2, 1408
    %v6381 = vld [vmem:[%s6380] sm:$0xff]
    %v6382 = vld [vmem:[%s6380 + $0x8] sm:$0xff]
    %v6383 = vld [vmem:[%s6380 + $0x10] sm:$0xff]
    %v6384 = vld [vmem:[%s6380 + $0x18] sm:$0xff]
    %v6385 = vld [vmem:[%s6380 + $0x20] sm:$0xff]
    %v6386 = vld [vmem:[%s6380 + $0x28] sm:$0xff]
    %v6387 = vld [vmem:[%s6380 + $0x30] sm:$0xff]
    %v6388 = vld [vmem:[%s6380 + $0x38] sm:$0xff]
    %v6390 = vsel %vm1024, %v6333, 0
    %v6393 = vsel %vm1024, %v6338, 0
    %v6396 = vsel %vm1024, %v6343, 0
    %v6399 = vsel %vm1024, %v6348, 0
    %6401 = vmatprep.subr.mxu0 0.0
    %6402 = vmatpush1.msra.mxu0 0.0
    %6403 = vmatprep.subr.mxu0 0.0
    %6404 = vmatpush1.msra.mxu0 0.0
    %6405 = vmatprep.subr.mxu0 0.0
    %6406 = vmatpush1.msra.mxu0 0.0
    %6407 = vmatprep.subr.mxu0 0.0
    %6408 = vmatpush1.msra.mxu0 0.0
    %6409 = vmatprep.subr.mxu0 0.0
    %6410 = vmatpush1.msra.mxu0 0.0
    %6411 = vmatprep.subr.mxu0 0.0
    %6412 = vmatpush1.msra.mxu0 0.0
    %6413 = vmatprep.subr.mxu0 0.0
    %6414 = vmatpush1.msra.mxu0 0.0
    %6415 = vmatprep.subr.mxu0 0.0
    %6416 = vmatpush1.msra.mxu0 0.0
    %6417 = vmatprep.subr.mxu0 0.0
    %6418 = vmatpush1.msra.mxu0 %v6388
    %6419 = vmatprep.subr.mxu0 0.0
    %6420 = vmatpush1.msra.mxu0 %v6387
    %6421 = vmatprep.subr.mxu0 0.0
    %6422 = vmatpush1.msra.mxu0 %v6386
    %6423 = vmatprep.subr.mxu0 0.0
    %6424 = vmatpush1.msra.mxu0 %v6385
    %6425 = vmatprep.subr.mxu0 0.0
    %6426 = vmatpush1.msra.mxu0 %v6384
    %6427 = vmatprep.subr.mxu0 0.0
    %6428 = vmatpush1.msra.mxu0 %v6383
    %6429 = vmatprep.subr.mxu0 0.0
    %6430 = vmatpush1.msra.mxu0 %v6382
    %6431 = vmatprep.subr.mxu0 0.0
    %6432 = vmatpush1.msra.mxu0 %v6381
    %6433 = vmatprep.subr.mxu0 0.0
    %6434 = vmatpush2.msra.mxu0 0.0
    %6435 = vmatprep.subr.mxu0 0.0
    %6436 = vmatpush2.msra.mxu0 0.0
    %6437 = vmatprep.subr.mxu0 0.0
    %6438 = vmatpush2.msra.mxu0 0.0
    %6439 = vmatprep.subr.mxu0 0.0
    %6440 = vmatpush2.msra.mxu0 0.0
    %6441 = vmatprep.subr.mxu0 0.0
    %6442 = vmatpush2.msra.mxu0 0.0
    %6443 = vmatprep.subr.mxu0 0.0
    %6444 = vmatpush2.msra.mxu0 0.0
    %6445 = vmatprep.subr.mxu0 0.0
    %6446 = vmatpush2.msra.mxu0 0.0
    %6447 = vmatprep.subr.mxu0 0.0
    %6448 = vmatpush2.msra.mxu0 0.0
    %6449 = vmatprep.subr.mxu0 0.0
    %6450 = vmatpush2.msra.mxu0 0.0
    %6451 = vmatprep.subr.mxu0 0.0
    %6452 = vmatpush2.msra.mxu0 0.0
    %6453 = vmatprep.subr.mxu0 0.0
    %6454 = vmatpush2.msra.mxu0 0.0
    %6455 = vmatprep.subr.mxu0 0.0
    %6456 = vmatpush2.msra.mxu0 0.0
    %6457 = vmatprep.subr.mxu0 0.0
    %6458 = vmatpush2.msra.mxu0 0.0
    %6459 = vmatprep.subr.mxu0 0.0
    %6460 = vmatpush2.msra.mxu0 0.0
    %6461 = vmatprep.subr.mxu0 0.0
    %6462 = vmatpush2.msra.mxu0 0.0
    %6463 = vmatprep.subr.mxu0 0.0
    %6464 = vmatpush2.msra.mxu0 0.0
    %6465 = vmatprep.mubr.f32.mxu0 0.0
    %6466 = vmatmul.mubr.f32.gmra.mxu0 %v6390
    %v6467 = vpop.f32.mrf.mxu0
    %v6468 = vadd.f32 0.0, %v6467
    %v6469 = vpop.f32.mrf.mxu0
    %6470 = vmatprep.mubr.f32.mxu0 0.0
    %6471 = vmatmul.mubr.f32.gmra.mxu0 %v6393
    %v6472 = vpop.f32.mrf.mxu0
    %v6473 = vadd.f32 0.0, %v6472
    %v6474 = vpop.f32.mrf.mxu0
    %6475 = vmatprep.mubr.f32.mxu0 0.0
    %6476 = vmatmul.mubr.f32.gmra.mxu0 %v6396
    %v6477 = vpop.f32.mrf.mxu0
    %v6478 = vadd.f32 0.0, %v6477
    %v6479 = vpop.f32.mrf.mxu0
    %6480 = vmatprep.mubr.f32.mxu0 0.0
    %6481 = vmatmul.mubr.f32.gmra.mxu0 %v6399
    %v6482 = vpop.f32.mrf.mxu0
    %v6483 = vadd.f32 0.0, %v6482
    %v6484 = vpop.f32.mrf.mxu0
    %6485 = vdwg.mxu0
    %v6487 = vsel %vm1024, %v6313, 0
    %v6490 = vsel %vm1024, %v6318, 0
    %v6493 = vsel %vm1024, %v6323, 0
    %v6496 = vsel %vm1024, %v6328, 0
    %6498 = vmatprep.subr.mxu0 0.0
    %6499 = vmatpush1.msra.mxu0 0.0
    %6500 = vmatprep.subr.mxu0 0.0
    %6501 = vmatpush1.msra.mxu0 0.0
    %6502 = vmatprep.subr.mxu0 0.0
    %6503 = vmatpush1.msra.mxu0 0.0
    %6504 = vmatprep.subr.mxu0 0.0
    %6505 = vmatpush1.msra.mxu0 0.0
    %6506 = vmatprep.subr.mxu0 0.0
    %6507 = vmatpush1.msra.mxu0 0.0
    %6508 = vmatprep.subr.mxu0 0.0
    %6509 = vmatpush1.msra.mxu0 0.0
    %6510 = vmatprep.subr.mxu0 0.0
    %6511 = vmatpush1.msra.mxu0 0.0
    %6512 = vmatprep.subr.mxu0 0.0
    %6513 = vmatpush1.msra.mxu0 0.0
    %6514 = vmatprep.subr.mxu0 0.0
    %6515 = vmatpush1.msra.mxu0 %v6379
    %6516 = vmatprep.subr.mxu0 0.0
    %6517 = vmatpush1.msra.mxu0 %v6378
    %6518 = vmatprep.subr.mxu0 0.0
    %6519 = vmatpush1.msra.mxu0 %v6377
    %6520 = vmatprep.subr.mxu0 0.0
    %6521 = vmatpush1.msra.mxu0 %v6376
    %6522 = vmatprep.subr.mxu0 0.0
    %6523 = vmatpush1.msra.mxu0 %v6375
    %6524 = vmatprep.subr.mxu0 0.0
    %6525 = vmatpush1.msra.mxu0 %v6374
    %6526 = vmatprep.subr.mxu0 0.0
    %6527 = vmatpush1.msra.mxu0 %v6373
    %6528 = vmatprep.subr.mxu0 0.0
    %6529 = vmatpush1.msra.mxu0 %v6372
    %6530 = vmatprep.subr.mxu0 0.0
    %6531 = vmatpush2.msra.mxu0 0.0
    %6532 = vmatprep.subr.mxu0 0.0
    %6533 = vmatpush2.msra.mxu0 0.0
    %6534 = vmatprep.subr.mxu0 0.0
    %6535 = vmatpush2.msra.mxu0 0.0
    %6536 = vmatprep.subr.mxu0 0.0
    %6537 = vmatpush2.msra.mxu0 0.0
    %6538 = vmatprep.subr.mxu0 0.0
    %6539 = vmatpush2.msra.mxu0 0.0
    %6540 = vmatprep.subr.mxu0 0.0
    %6541 = vmatpush2.msra.mxu0 0.0
    %6542 = vmatprep.subr.mxu0 0.0
    %6543 = vmatpush2.msra.mxu0 0.0
    %6544 = vmatprep.subr.mxu0 0.0
    %6545 = vmatpush2.msra.mxu0 0.0
    %6546 = vmatprep.subr.mxu0 0.0
    %6547 = vmatpush2.msra.mxu0 0.0
    %6548 = vmatprep.subr.mxu0 0.0
    %6549 = vmatpush2.msra.mxu0 0.0
    %6550 = vmatprep.subr.mxu0 0.0
    %6551 = vmatpush2.msra.mxu0 0.0
    %6552 = vmatprep.subr.mxu0 0.0
    %6553 = vmatpush2.msra.mxu0 0.0
    %6554 = vmatprep.subr.mxu0 0.0
    %6555 = vmatpush2.msra.mxu0 0.0
    %6556 = vmatprep.subr.mxu0 0.0
    %6557 = vmatpush2.msra.mxu0 0.0
    %6558 = vmatprep.subr.mxu0 0.0
    %6559 = vmatpush2.msra.mxu0 0.0
    %6560 = vmatprep.subr.mxu0 0.0
    %6561 = vmatpush2.msra.mxu0 0.0
    %6562 = vmatprep.mubr.f32.mxu0 0.0
    %6563 = vmatmul.mubr.f32.gmra.mxu0 %v6487
    %v6564 = vpop.f32.mrf.mxu0
    %v6565 = vadd.f32 %v6468, %v6564
    %v6566 = vpop.f32.mrf.mxu0
    %6567 = vmatprep.mubr.f32.mxu0 0.0
    %6568 = vmatmul.mubr.f32.gmra.mxu0 %v6490
    %v6569 = vpop.f32.mrf.mxu0
    %v6570 = vadd.f32 %v6473, %v6569
    %v6571 = vpop.f32.mrf.mxu0
    %6572 = vmatprep.mubr.f32.mxu0 0.0
    %6573 = vmatmul.mubr.f32.gmra.mxu0 %v6493
    %v6574 = vpop.f32.mrf.mxu0
    %v6575 = vadd.f32 %v6478, %v6574
    %v6576 = vpop.f32.mrf.mxu0
    %6577 = vmatprep.mubr.f32.mxu0 0.0
    %6578 = vmatmul.mubr.f32.gmra.mxu0 %v6496
    %v6579 = vpop.f32.mrf.mxu0
    %v6580 = vadd.f32 %v6483, %v6579
    %v6581 = vpop.f32.mrf.mxu0
    %6582 = vdwg.mxu0
    %s6583 = scalar_lea.vmem %s2, 1472
    %v6584 = vld [vmem:[%s6583] sm:$0xff]
    %v6585 = vld [vmem:[%s6583 + $0x8] sm:$0xff]
    %v6586 = vld [vmem:[%s6583 + $0x10] sm:$0xff]
    %v6587 = vld [vmem:[%s6583 + $0x18] sm:$0xff]
    %v6588 = vld [vmem:[%s6583 + $0x20] sm:$0xff]
    %v6589 = vld [vmem:[%s6583 + $0x28] sm:$0xff]
    %v6590 = vld [vmem:[%s6583 + $0x30] sm:$0xff]
    %v6591 = vld [vmem:[%s6583 + $0x38] sm:$0xff]
    %v6593 = vsel %vm1024, %v6353, 0
    %v6596 = vsel %vm1024, %v6358, 0
    %v6599 = vsel %vm1024, %v6363, 0
    %v6602 = vsel %vm1024, %v6368, 0
    %6604 = vmatprep.subr.mxu0 0.0
    %6605 = vmatpush1.msra.mxu0 0.0
    %6606 = vmatprep.subr.mxu0 0.0
    %6607 = vmatpush1.msra.mxu0 0.0
    %6608 = vmatprep.subr.mxu0 0.0
    %6609 = vmatpush1.msra.mxu0 0.0
    %6610 = vmatprep.subr.mxu0 0.0
    %6611 = vmatpush1.msra.mxu0 0.0
    %6612 = vmatprep.subr.mxu0 0.0
    %6613 = vmatpush1.msra.mxu0 0.0
    %6614 = vmatprep.subr.mxu0 0.0
    %6615 = vmatpush1.msra.mxu0 0.0
    %6616 = vmatprep.subr.mxu0 0.0
    %6617 = vmatpush1.msra.mxu0 0.0
    %6618 = vmatprep.subr.mxu0 0.0
    %6619 = vmatpush1.msra.mxu0 0.0
    %6620 = vmatprep.subr.mxu0 0.0
    %6621 = vmatpush1.msra.mxu0 %v6591
    %6622 = vmatprep.subr.mxu0 0.0
    %6623 = vmatpush1.msra.mxu0 %v6590
    %6624 = vmatprep.subr.mxu0 0.0
    %6625 = vmatpush1.msra.mxu0 %v6589
    %6626 = vmatprep.subr.mxu0 0.0
    %6627 = vmatpush1.msra.mxu0 %v6588
    %6628 = vmatprep.subr.mxu0 0.0
    %6629 = vmatpush1.msra.mxu0 %v6587
    %6630 = vmatprep.subr.mxu0 0.0
    %6631 = vmatpush1.msra.mxu0 %v6586
    %6632 = vmatprep.subr.mxu0 0.0
    %6633 = vmatpush1.msra.mxu0 %v6585
    %6634 = vmatprep.subr.mxu0 0.0
    %6635 = vmatpush1.msra.mxu0 %v6584
    %6636 = vmatprep.subr.mxu0 0.0
    %6637 = vmatpush2.msra.mxu0 0.0
    %6638 = vmatprep.subr.mxu0 0.0
    %6639 = vmatpush2.msra.mxu0 0.0
    %6640 = vmatprep.subr.mxu0 0.0
    %6641 = vmatpush2.msra.mxu0 0.0
    %6642 = vmatprep.subr.mxu0 0.0
    %6643 = vmatpush2.msra.mxu0 0.0
    %6644 = vmatprep.subr.mxu0 0.0
    %6645 = vmatpush2.msra.mxu0 0.0
    %6646 = vmatprep.subr.mxu0 0.0
    %6647 = vmatpush2.msra.mxu0 0.0
    %6648 = vmatprep.subr.mxu0 0.0
    %6649 = vmatpush2.msra.mxu0 0.0
    %6650 = vmatprep.subr.mxu0 0.0
    %6651 = vmatpush2.msra.mxu0 0.0
    %6652 = vmatprep.subr.mxu0 0.0
    %6653 = vmatpush2.msra.mxu0 0.0
    %6654 = vmatprep.subr.mxu0 0.0
    %6655 = vmatpush2.msra.mxu0 0.0
    %6656 = vmatprep.subr.mxu0 0.0
    %6657 = vmatpush2.msra.mxu0 0.0
    %6658 = vmatprep.subr.mxu0 0.0
    %6659 = vmatpush2.msra.mxu0 0.0
    %6660 = vmatprep.subr.mxu0 0.0
    %6661 = vmatpush2.msra.mxu0 0.0
    %6662 = vmatprep.subr.mxu0 0.0
    %6663 = vmatpush2.msra.mxu0 0.0
    %6664 = vmatprep.subr.mxu0 0.0
    %6665 = vmatpush2.msra.mxu0 0.0
    %6666 = vmatprep.subr.mxu0 0.0
    %6667 = vmatpush2.msra.mxu0 0.0
    %6668 = vmatprep.mubr.f32.mxu0 0.0
    %6669 = vmatmul.mubr.f32.gmra.mxu0 %v6593
    %v6670 = vpop.f32.mrf.mxu0
    %v6671 = vadd.f32 0.0, %v6670
    %v6672 = vpop.f32.mrf.mxu0
    %6673 = vmatprep.mubr.f32.mxu0 0.0
    %6674 = vmatmul.mubr.f32.gmra.mxu0 %v6596
    %v6675 = vpop.f32.mrf.mxu0
    %v6676 = vadd.f32 0.0, %v6675
    %v6677 = vpop.f32.mrf.mxu0
    %6678 = vmatprep.mubr.f32.mxu0 0.0
    %6679 = vmatmul.mubr.f32.gmra.mxu0 %v6599
    %v6680 = vpop.f32.mrf.mxu0
    %v6681 = vadd.f32 0.0, %v6680
    %v6682 = vpop.f32.mrf.mxu0
    %6683 = vmatprep.mubr.f32.mxu0 0.0
    %6684 = vmatmul.mubr.f32.gmra.mxu0 %v6602
    %v6685 = vpop.f32.mrf.mxu0
    %v6686 = vadd.f32 0.0, %v6685
    %v6687 = vpop.f32.mrf.mxu0
    %6688 = vdwg.mxu0
    %v6689 = vadd.f32 %v6565, %v6671
    %v6690 = vadd.f32 %v6570, %v6676
    %v6691 = vadd.f32 %v6575, %v6681
    %v6692 = vadd.f32 %v6580, %v6686
    %s6693 = scalar_lea.vmem [#allocation2], 448
    %v6694 = vld [vmem:[%s6693] sm:$0xff]
    %v6695 = vld [vmem:[%s6693 + $0x8] sm:$0xff]
    %v6696 = vld [vmem:[%s6693 + $0x10] sm:$0xff]
    %v6697 = vld [vmem:[%s6693 + $0x18] sm:$0xff]
    %v6698 = vld [vmem:[%s6693 + $0x20] sm:$0xff]
    %v6699 = vld [vmem:[%s6693 + $0x28] sm:$0xff]
    %v6700 = vld [vmem:[%s6693 + $0x30] sm:$0xff]
    %v6701 = vld [vmem:[%s6693 + $0x38] sm:$0xff]
    %v6703 = vsel %vm1024, %v6689, 0
    %v6706 = vsel %vm1024, %v6690, 0
    %v6709 = vsel %vm1024, %v6691, 0
    %v6712 = vsel %vm1024, %v6692, 0
    %6714 = vmatprep.subr.mxu0 0.0
    %6715 = vmatpush1.msra.mxu0 0.0
    %6716 = vmatprep.subr.mxu0 0.0
    %6717 = vmatpush1.msra.mxu0 0.0
    %6718 = vmatprep.subr.mxu0 0.0
    %6719 = vmatpush1.msra.mxu0 0.0
    %6720 = vmatprep.subr.mxu0 0.0
    %6721 = vmatpush1.msra.mxu0 0.0
    %6722 = vmatprep.subr.mxu0 0.0
    %6723 = vmatpush1.msra.mxu0 0.0
    %6724 = vmatprep.subr.mxu0 0.0
    %6725 = vmatpush1.msra.mxu0 0.0
    %6726 = vmatprep.subr.mxu0 0.0
    %6727 = vmatpush1.msra.mxu0 0.0
    %6728 = vmatprep.subr.mxu0 0.0
    %6729 = vmatpush1.msra.mxu0 0.0
    %6730 = vmatprep.subr.mxu0 0.0
    %6731 = vmatpush1.msra.mxu0 %v6701
    %6732 = vmatprep.subr.mxu0 0.0
    %6733 = vmatpush1.msra.mxu0 %v6700
    %6734 = vmatprep.subr.mxu0 0.0
    %6735 = vmatpush1.msra.mxu0 %v6699
    %6736 = vmatprep.subr.mxu0 0.0
    %6737 = vmatpush1.msra.mxu0 %v6698
    %6738 = vmatprep.subr.mxu0 0.0
    %6739 = vmatpush1.msra.mxu0 %v6697
    %6740 = vmatprep.subr.mxu0 0.0
    %6741 = vmatpush1.msra.mxu0 %v6696
    %6742 = vmatprep.subr.mxu0 0.0
    %6743 = vmatpush1.msra.mxu0 %v6695
    %6744 = vmatprep.subr.mxu0 0.0
    %6745 = vmatpush1.msra.mxu0 %v6694
    %6746 = vmatprep.subr.mxu0 0.0
    %6747 = vmatpush2.msra.mxu0 0.0
    %6748 = vmatprep.subr.mxu0 0.0
    %6749 = vmatpush2.msra.mxu0 0.0
    %6750 = vmatprep.subr.mxu0 0.0
    %6751 = vmatpush2.msra.mxu0 0.0
    %6752 = vmatprep.subr.mxu0 0.0
    %6753 = vmatpush2.msra.mxu0 0.0
    %6754 = vmatprep.subr.mxu0 0.0
    %6755 = vmatpush2.msra.mxu0 0.0
    %6756 = vmatprep.subr.mxu0 0.0
    %6757 = vmatpush2.msra.mxu0 0.0
    %6758 = vmatprep.subr.mxu0 0.0
    %6759 = vmatpush2.msra.mxu0 0.0
    %6760 = vmatprep.subr.mxu0 0.0
    %6761 = vmatpush2.msra.mxu0 0.0
    %6762 = vmatprep.subr.mxu0 0.0
    %6763 = vmatpush2.msra.mxu0 0.0
    %6764 = vmatprep.subr.mxu0 0.0
    %6765 = vmatpush2.msra.mxu0 0.0
    %6766 = vmatprep.subr.mxu0 0.0
    %6767 = vmatpush2.msra.mxu0 0.0
    %6768 = vmatprep.subr.mxu0 0.0
    %6769 = vmatpush2.msra.mxu0 0.0
    %6770 = vmatprep.subr.mxu0 0.0
    %6771 = vmatpush2.msra.mxu0 0.0
    %6772 = vmatprep.subr.mxu0 0.0
    %6773 = vmatpush2.msra.mxu0 0.0
    %6774 = vmatprep.subr.mxu0 0.0
    %6775 = vmatpush2.msra.mxu0 0.0
    %6776 = vmatprep.subr.mxu0 0.0
    %6777 = vmatpush2.msra.mxu0 0.0
    %6778 = vmatprep.mubr.f32.mxu0 0.0
    %6779 = vmatmul.mubr.f32.gmra.mxu0 %v6703
    %v6780 = vpop.f32.mrf.mxu0
    %v6781 = vadd.f32 0.0, %v6780
    %v6782 = vpop.f32.mrf.mxu0
    %6783 = vmatprep.mubr.f32.mxu0 0.0
    %6784 = vmatmul.mubr.f32.gmra.mxu0 %v6706
    %v6785 = vpop.f32.mrf.mxu0
    %v6786 = vadd.f32 0.0, %v6785
    %v6787 = vpop.f32.mrf.mxu0
    %6788 = vmatprep.mubr.f32.mxu0 0.0
    %6789 = vmatmul.mubr.f32.gmra.mxu0 %v6709
    %v6790 = vpop.f32.mrf.mxu0
    %v6791 = vadd.f32 0.0, %v6790
    %v6792 = vpop.f32.mrf.mxu0
    %6793 = vmatprep.mubr.f32.mxu0 0.0
    %6794 = vmatmul.mubr.f32.gmra.mxu0 %v6712
    %v6795 = vpop.f32.mrf.mxu0
    %v6796 = vadd.f32 0.0, %v6795
    %v6797 = vpop.f32.mrf.mxu0
    %6798 = vdwg.mxu0
    %v6799 = vsel %vm1024, %v6781, 0.0
    %v6800 = vsel %vm1024, %v6786, 0.0
    %v6801 = vadd.f32 %v6799, %v6800
    %v6802 = vsel %vm1024, %v6791, 0.0
    %v6803 = vadd.f32 %v6801, %v6802
    %v6804 = vsel %vm1024, %v6796, 0.0
    %v6805 = vadd.f32 %v6803, %v6804
    %v6806 = vrot.slane %v6805, 4
    %v6807 = vadd.f32 %v6805, %v6806
    %v6808 = vrot.slane %v6807, 2
    %v6809 = vadd.f32 %v6807, %v6808
    %v6810 = vrot.slane %v6809, 1
    %v6811 = vadd.f32 %v6809, %v6810
    %v6812 = vmul.f32 %v6689, %v6689
    %v6813 = vmul.f32 %v6690, %v6690
    %v6814 = vmul.f32 %v6691, %v6691
    %v6815 = vmul.f32 %v6692, %v6692
    %v6817 = vsel %vm1024, %v6812, 0
    %v6820 = vsel %vm1024, %v6813, 0
    %v6823 = vsel %vm1024, %v6814, 0
    %v6826 = vsel %vm1024, %v6815, 0
    %6828 = vmatprep.subr.mxu0 0.0
    %6829 = vmatpush1.msra.mxu0 0.0
    %6830 = vmatprep.subr.mxu0 0.0
    %6831 = vmatpush1.msra.mxu0 0.0
    %6832 = vmatprep.subr.mxu0 0.0
    %6833 = vmatpush1.msra.mxu0 0.0
    %6834 = vmatprep.subr.mxu0 0.0
    %6835 = vmatpush1.msra.mxu0 0.0
    %6836 = vmatprep.subr.mxu0 0.0
    %6837 = vmatpush1.msra.mxu0 0.0
    %6838 = vmatprep.subr.mxu0 0.0
    %6839 = vmatpush1.msra.mxu0 0.0
    %6840 = vmatprep.subr.mxu0 0.0
    %6841 = vmatpush1.msra.mxu0 0.0
    %6842 = vmatprep.subr.mxu0 0.0
    %6843 = vmatpush1.msra.mxu0 0.0
    %6844 = vmatprep.subr.mxu0 0.0
    %6845 = vmatpush1.msra.mxu0 %v6701
    %6846 = vmatprep.subr.mxu0 0.0
    %6847 = vmatpush1.msra.mxu0 %v6700
    %6848 = vmatprep.subr.mxu0 0.0
    %6849 = vmatpush1.msra.mxu0 %v6699
    %6850 = vmatprep.subr.mxu0 0.0
    %6851 = vmatpush1.msra.mxu0 %v6698
    %6852 = vmatprep.subr.mxu0 0.0
    %6853 = vmatpush1.msra.mxu0 %v6697
    %6854 = vmatprep.subr.mxu0 0.0
    %6855 = vmatpush1.msra.mxu0 %v6696
    %6856 = vmatprep.subr.mxu0 0.0
    %6857 = vmatpush1.msra.mxu0 %v6695
    %6858 = vmatprep.subr.mxu0 0.0
    %6859 = vmatpush1.msra.mxu0 %v6694
    %6860 = vmatprep.subr.mxu0 0.0
    %6861 = vmatpush2.msra.mxu0 0.0
    %6862 = vmatprep.subr.mxu0 0.0
    %6863 = vmatpush2.msra.mxu0 0.0
    %6864 = vmatprep.subr.mxu0 0.0
    %6865 = vmatpush2.msra.mxu0 0.0
    %6866 = vmatprep.subr.mxu0 0.0
    %6867 = vmatpush2.msra.mxu0 0.0
    %6868 = vmatprep.subr.mxu0 0.0
    %6869 = vmatpush2.msra.mxu0 0.0
    %6870 = vmatprep.subr.mxu0 0.0
    %6871 = vmatpush2.msra.mxu0 0.0
    %6872 = vmatprep.subr.mxu0 0.0
    %6873 = vmatpush2.msra.mxu0 0.0
    %6874 = vmatprep.subr.mxu0 0.0
    %6875 = vmatpush2.msra.mxu0 0.0
    %6876 = vmatprep.subr.mxu0 0.0
    %6877 = vmatpush2.msra.mxu0 0.0
    %6878 = vmatprep.subr.mxu0 0.0
    %6879 = vmatpush2.msra.mxu0 0.0
    %6880 = vmatprep.subr.mxu0 0.0
    %6881 = vmatpush2.msra.mxu0 0.0
    %6882 = vmatprep.subr.mxu0 0.0
    %6883 = vmatpush2.msra.mxu0 0.0
    %6884 = vmatprep.subr.mxu0 0.0
    %6885 = vmatpush2.msra.mxu0 0.0
    %6886 = vmatprep.subr.mxu0 0.0
    %6887 = vmatpush2.msra.mxu0 0.0
    %6888 = vmatprep.subr.mxu0 0.0
    %6889 = vmatpush2.msra.mxu0 0.0
    %6890 = vmatprep.subr.mxu0 0.0
    %6891 = vmatpush2.msra.mxu0 0.0
    %6892 = vmatprep.mubr.f32.mxu0 0.0
    %6893 = vmatmul.mubr.f32.gmra.mxu0 %v6817
    %v6894 = vpop.f32.mrf.mxu0
    %v6895 = vadd.f32 0.0, %v6894
    %v6896 = vpop.f32.mrf.mxu0
    %6897 = vmatprep.mubr.f32.mxu0 0.0
    %6898 = vmatmul.mubr.f32.gmra.mxu0 %v6820
    %v6899 = vpop.f32.mrf.mxu0
    %v6900 = vadd.f32 0.0, %v6899
    %v6901 = vpop.f32.mrf.mxu0
    %6902 = vmatprep.mubr.f32.mxu0 0.0
    %6903 = vmatmul.mubr.f32.gmra.mxu0 %v6823
    %v6904 = vpop.f32.mrf.mxu0
    %v6905 = vadd.f32 0.0, %v6904
    %v6906 = vpop.f32.mrf.mxu0
    %6907 = vmatprep.mubr.f32.mxu0 0.0
    %6908 = vmatmul.mubr.f32.gmra.mxu0 %v6826
    %v6909 = vpop.f32.mrf.mxu0
    %v6910 = vadd.f32 0.0, %v6909
    %v6911 = vpop.f32.mrf.mxu0
    %6912 = vdwg.mxu0
    %v6913 = vsel %vm1024, %v6895, 0.0
    %v6914 = vsel %vm1024, %v6900, 0.0
    %v6915 = vadd.f32 %v6913, %v6914
    %v6916 = vsel %vm1024, %v6905, 0.0
    %v6917 = vadd.f32 %v6915, %v6916
    %v6918 = vsel %vm1024, %v6910, 0.0
    %v6919 = vadd.f32 %v6917, %v6918
    %v6920 = vrot.slane %v6919, 4
    %v6921 = vadd.f32 %v6919, %v6920
    %v6922 = vrot.slane %v6921, 2
    %v6923 = vadd.f32 %v6921, %v6922
    %v6924 = vrot.slane %v6923, 1
    %v6925 = vadd.f32 %v6923, %v6924
    %v6926 = vmul.f32 %v6811, %v6811
    %v6927 = vsub.f32 %v6925, %v6926
    %v6928 = vmax.f32 %v6927, 0.0
    %s6929 = scalar_lea.vmem %s4, 7
    %v6930 = vld [vmem:[%s6929] sm:$0x1]
    %v6931 = vadd.f32 %v6928, 1e-05
    %v6932 = vrsqrt.pop %v6931
    %v6933 = vmul.f32 %v6930, %v6932
    %s6934 = scalar_lea.vmem %s5, 7
    %v6935 = vld [vmem:[%s6934] sm:$0x1]
    %v6936 = vmul.f32 %v6811, %v6933
    %v6937 = vsub.f32 %v6935, %v6936
    %v6939 = vlaneseq
    %v6940 = vshrl.u32 %v6939, 7
    %v6941 = vsub.s32 0, %v6940
    %v6942 = vrot.slane %v6933, %v6941
    %v6944 = vmul.f32 %v6689, %v6942
    %v6945 = vmul.f32 %v6690, %v6942
    %v6946 = vmul.f32 %v6691, %v6942
    %v6947 = vmul.f32 %v6692, %v6942
    %v6949 = vlaneseq
    %v6950 = vshrl.u32 %v6949, 7
    %v6951 = vsub.s32 0, %v6950
    %v6952 = vrot.slane %v6937, %v6951
    %v6954 = vadd.f32 %v6944, %v6952
    %v6955 = vadd.f32 %v6945, %v6952
    %v6956 = vadd.f32 %v6946, %v6952
    %v6957 = vadd.f32 %v6947, %v6952
    %v6958 = vmax.f32 %v6954, 0.0
    %v6959 = vmax.f32 %v6955, 0.0
    %v6960 = vmax.f32 %v6956, 0.0
    %v6961 = vmax.f32 %v6957, 0.0
    %v6962 = vadd.f32 %v6958, %v1591
    %v6963 = vadd.f32 %v6959, %v1592
    %v6964 = vadd.f32 %v6960, %v1593
    %v6965 = vadd.f32 %v6961, %v1594
    %s6966 = scalar_lea.vmem %s1, 768
    %v6967 = vld [vmem:[%s6966] sm:$0xff]
    %v6968 = vld [vmem:[%s6966 + $0x8] sm:$0xff]
    %v6969 = vld [vmem:[%s6966 + $0x10] sm:$0xff]
    %v6970 = vld [vmem:[%s6966 + $0x18] sm:$0xff]
    %v6971 = vld [vmem:[%s6966 + $0x20] sm:$0xff]
    %v6972 = vld [vmem:[%s6966 + $0x28] sm:$0xff]
    %v6973 = vld [vmem:[%s6966 + $0x30] sm:$0xff]
    %v6974 = vld [vmem:[%s6966 + $0x38] sm:$0xff]
    %v6975 = vld [vmem:[%s6966 + $0x40] sm:$0xff]
    %v6976 = vld [vmem:[%s6966 + $0x48] sm:$0xff]
    %v6977 = vld [vmem:[%s6966 + $0x50] sm:$0xff]
    %v6978 = vld [vmem:[%s6966 + $0x58] sm:$0xff]
    %v6980 = vsel %vm845, %v6967, 0
    %v6983 = vsel %vm845, %v6968, 0
    %v6986 = vsel %vm845, %v6969, 0
    %v6989 = vsel %vm845, %v6970, 0
    %v6992 = vsel %vm845, %v6971, 0
    %v6995 = vsel %vm845, %v6972, 0
    %v6998 = vsel %vm845, %v6973, 0
    %v7001 = vsel %vm845, %v6974, 0
    %v7004 = vsel %vm845, %v6975, 0
    %v7007 = vsel %vm845, %v6976, 0
    %v7010 = vsel %vm845, %v6977, 0
    %v7013 = vsel %vm845, %v6978, 0
    %7015 = vmatprep.subr.mxu0 0.0
    %7016 = vmatpush1.msra.mxu0 0.0
    %7017 = vmatprep.subr.mxu0 0.0
    %7018 = vmatpush1.msra.mxu0 0.0
    %7019 = vmatprep.subr.mxu0 0.0
    %7020 = vmatpush1.msra.mxu0 0.0
    %7021 = vmatprep.subr.mxu0 0.0
    %7022 = vmatpush1.msra.mxu0 0.0
    %7023 = vmatprep.subr.mxu0 0.0
    %7024 = vmatpush1.msra.mxu0 0.0
    %7025 = vmatprep.subr.mxu0 0.0
    %7026 = vmatpush1.msra.mxu0 0.0
    %7027 = vmatprep.subr.mxu0 0.0
    %7028 = vmatpush1.msra.mxu0 0.0
    %7029 = vmatprep.subr.mxu0 0.0
    %7030 = vmatpush1.msra.mxu0 0.0
    %7031 = vmatprep.subr.mxu0 0.0
    %7032 = vmatpush1.msra.mxu0 0.0
    %7033 = vmatprep.subr.mxu0 0.0
    %7034 = vmatpush1.msra.mxu0 0.0
    %7035 = vmatprep.subr.mxu0 0.0
    %7036 = vmatpush1.msra.mxu0 0.0
    %7037 = vmatprep.subr.mxu0 0.0
    %7038 = vmatpush1.msra.mxu0 0.0
    %7039 = vmatprep.subr.mxu0 0.0
    %7040 = vmatpush1.msra.mxu0 %v6965
    %7041 = vmatprep.subr.mxu0 0.0
    %7042 = vmatpush1.msra.mxu0 %v6964
    %7043 = vmatprep.subr.mxu0 0.0
    %7044 = vmatpush1.msra.mxu0 %v6963
    %7045 = vmatprep.subr.mxu0 0.0
    %7046 = vmatpush1.msra.mxu0 %v6962
    %7047 = vmatprep.subr.mxu0 0.0
    %7048 = vmatpush2.msra.mxu0 0.0
    %7049 = vmatprep.subr.mxu0 0.0
    %7050 = vmatpush2.msra.mxu0 0.0
    %7051 = vmatprep.subr.mxu0 0.0
    %7052 = vmatpush2.msra.mxu0 0.0
    %7053 = vmatprep.subr.mxu0 0.0
    %7054 = vmatpush2.msra.mxu0 0.0
    %7055 = vmatprep.subr.mxu0 0.0
    %7056 = vmatpush2.msra.mxu0 0.0
    %7057 = vmatprep.subr.mxu0 0.0
    %7058 = vmatpush2.msra.mxu0 0.0
    %7059 = vmatprep.subr.mxu0 0.0
    %7060 = vmatpush2.msra.mxu0 0.0
    %7061 = vmatprep.subr.mxu0 0.0
    %7062 = vmatpush2.msra.mxu0 0.0
    %7063 = vmatprep.subr.mxu0 0.0
    %7064 = vmatpush2.msra.mxu0 0.0
    %7065 = vmatprep.subr.mxu0 0.0
    %7066 = vmatpush2.msra.mxu0 0.0
    %7067 = vmatprep.subr.mxu0 0.0
    %7068 = vmatpush2.msra.mxu0 0.0
    %7069 = vmatprep.subr.mxu0 0.0
    %7070 = vmatpush2.msra.mxu0 0.0
    %7071 = vmatprep.subr.mxu0 0.0
    %7072 = vmatpush2.msra.mxu0 0.0
    %7073 = vmatprep.subr.mxu0 0.0
    %7074 = vmatpush2.msra.mxu0 0.0
    %7075 = vmatprep.subr.mxu0 0.0
    %7076 = vmatpush2.msra.mxu0 0.0
    %7077 = vmatprep.subr.mxu0 0.0
    %7078 = vmatpush2.msra.mxu0 0.0
    %7079 = vmatprep.mubr.f32.mxu0 0.0
    %7080 = vmatmul.mubr.f32.gmra.mxu0 %v6980
    %v7081 = vpop.f32.mrf.mxu0
    %v7082 = vadd.f32 0.0, %v7081
    %v7083 = vpop.f32.mrf.mxu0
    %7084 = vmatprep.mubr.f32.mxu0 0.0
    %7085 = vmatmul.mubr.f32.gmra.mxu0 %v6983
    %v7086 = vpop.f32.mrf.mxu0
    %v7087 = vadd.f32 0.0, %v7086
    %v7088 = vpop.f32.mrf.mxu0
    %7089 = vmatprep.mubr.f32.mxu0 0.0
    %7090 = vmatmul.mubr.f32.gmra.mxu0 %v6986
    %v7091 = vpop.f32.mrf.mxu0
    %v7092 = vadd.f32 0.0, %v7091
    %v7093 = vpop.f32.mrf.mxu0
    %7094 = vmatprep.mubr.f32.mxu0 0.0
    %7095 = vmatmul.mubr.f32.gmra.mxu0 %v6989
    %v7096 = vpop.f32.mrf.mxu0
    %v7097 = vadd.f32 0.0, %v7096
    %v7098 = vpop.f32.mrf.mxu0
    %7099 = vmatprep.mubr.f32.mxu0 0.0
    %7100 = vmatmul.mubr.f32.gmra.mxu0 %v6992
    %v7101 = vpop.f32.mrf.mxu0
    %v7102 = vadd.f32 0.0, %v7101
    %v7103 = vpop.f32.mrf.mxu0
    %7104 = vmatprep.mubr.f32.mxu0 0.0
    %7105 = vmatmul.mubr.f32.gmra.mxu0 %v6995
    %v7106 = vpop.f32.mrf.mxu0
    %v7107 = vadd.f32 0.0, %v7106
    %v7108 = vpop.f32.mrf.mxu0
    %7109 = vmatprep.mubr.f32.mxu0 0.0
    %7110 = vmatmul.mubr.f32.gmra.mxu0 %v6998
    %v7111 = vpop.f32.mrf.mxu0
    %v7112 = vadd.f32 0.0, %v7111
    %v7113 = vpop.f32.mrf.mxu0
    %7114 = vmatprep.mubr.f32.mxu0 0.0
    %7115 = vmatmul.mubr.f32.gmra.mxu0 %v7001
    %v7116 = vpop.f32.mrf.mxu0
    %v7117 = vadd.f32 0.0, %v7116
    %v7118 = vpop.f32.mrf.mxu0
    %7119 = vmatprep.mubr.f32.mxu0 0.0
    %7120 = vmatmul.mubr.f32.gmra.mxu0 %v7004
    %v7121 = vpop.f32.mrf.mxu0
    %v7122 = vadd.f32 0.0, %v7121
    %v7123 = vpop.f32.mrf.mxu0
    %7124 = vmatprep.mubr.f32.mxu0 0.0
    %7125 = vmatmul.mubr.f32.gmra.mxu0 %v7007
    %v7126 = vpop.f32.mrf.mxu0
    %v7127 = vadd.f32 0.0, %v7126
    %v7128 = vpop.f32.mrf.mxu0
    %7129 = vmatprep.mubr.f32.mxu0 0.0
    %7130 = vmatmul.mubr.f32.gmra.mxu0 %v7010
    %v7131 = vpop.f32.mrf.mxu0
    %v7132 = vadd.f32 0.0, %v7131
    %v7133 = vpop.f32.mrf.mxu0
    %7134 = vmatprep.mubr.f32.mxu0 0.0
    %7135 = vmatmul.mubr.f32.gmra.mxu0 %v7013
    %v7136 = vpop.f32.mrf.mxu0
    %v7137 = vadd.f32 0.0, %v7136
    %v7138 = vpop.f32.mrf.mxu0
    %7139 = vdwg.mxu0
    %s7140 = scalar_lea.vmem %s2, 1536
    %v7141 = vld [vmem:[%s7140] sm:$0xff]
    %v7142 = vld [vmem:[%s7140 + $0x8] sm:$0xff]
    %v7143 = vld [vmem:[%s7140 + $0x10] sm:$0xff]
    %v7144 = vld [vmem:[%s7140 + $0x18] sm:$0xff]
    %v7145 = vld [vmem:[%s7140 + $0x20] sm:$0xff]
    %v7146 = vld [vmem:[%s7140 + $0x28] sm:$0xff]
    %v7147 = vld [vmem:[%s7140 + $0x30] sm:$0xff]
    %v7148 = vld [vmem:[%s7140 + $0x38] sm:$0xff]
    %s7149 = scalar_lea.vmem %s2, 1600
    %v7150 = vld [vmem:[%s7149] sm:$0xff]
    %v7151 = vld [vmem:[%s7149 + $0x8] sm:$0xff]
    %v7152 = vld [vmem:[%s7149 + $0x10] sm:$0xff]
    %v7153 = vld [vmem:[%s7149 + $0x18] sm:$0xff]
    %v7154 = vld [vmem:[%s7149 + $0x20] sm:$0xff]
    %v7155 = vld [vmem:[%s7149 + $0x28] sm:$0xff]
    %v7156 = vld [vmem:[%s7149 + $0x30] sm:$0xff]
    %v7157 = vld [vmem:[%s7149 + $0x38] sm:$0xff]
    %v7159 = vsel %vm1024, %v7102, 0
    %v7162 = vsel %vm1024, %v7107, 0
    %v7165 = vsel %vm1024, %v7112, 0
    %v7168 = vsel %vm1024, %v7117, 0
    %7170 = vmatprep.subr.mxu0 0.0
    %7171 = vmatpush1.msra.mxu0 0.0
    %7172 = vmatprep.subr.mxu0 0.0
    %7173 = vmatpush1.msra.mxu0 0.0
    %7174 = vmatprep.subr.mxu0 0.0
    %7175 = vmatpush1.msra.mxu0 0.0
    %7176 = vmatprep.subr.mxu0 0.0
    %7177 = vmatpush1.msra.mxu0 0.0
    %7178 = vmatprep.subr.mxu0 0.0
    %7179 = vmatpush1.msra.mxu0 0.0
    %7180 = vmatprep.subr.mxu0 0.0
    %7181 = vmatpush1.msra.mxu0 0.0
    %7182 = vmatprep.subr.mxu0 0.0
    %7183 = vmatpush1.msra.mxu0 0.0
    %7184 = vmatprep.subr.mxu0 0.0
    %7185 = vmatpush1.msra.mxu0 0.0
    %7186 = vmatprep.subr.mxu0 0.0
    %7187 = vmatpush1.msra.mxu0 %v7157
    %7188 = vmatprep.subr.mxu0 0.0
    %7189 = vmatpush1.msra.mxu0 %v7156
    %7190 = vmatprep.subr.mxu0 0.0
    %7191 = vmatpush1.msra.mxu0 %v7155
    %7192 = vmatprep.subr.mxu0 0.0
    %7193 = vmatpush1.msra.mxu0 %v7154
    %7194 = vmatprep.subr.mxu0 0.0
    %7195 = vmatpush1.msra.mxu0 %v7153
    %7196 = vmatprep.subr.mxu0 0.0
    %7197 = vmatpush1.msra.mxu0 %v7152
    %7198 = vmatprep.subr.mxu0 0.0
    %7199 = vmatpush1.msra.mxu0 %v7151
    %7200 = vmatprep.subr.mxu0 0.0
    %7201 = vmatpush1.msra.mxu0 %v7150
    %7202 = vmatprep.subr.mxu0 0.0
    %7203 = vmatpush2.msra.mxu0 0.0
    %7204 = vmatprep.subr.mxu0 0.0
    %7205 = vmatpush2.msra.mxu0 0.0
    %7206 = vmatprep.subr.mxu0 0.0
    %7207 = vmatpush2.msra.mxu0 0.0
    %7208 = vmatprep.subr.mxu0 0.0
    %7209 = vmatpush2.msra.mxu0 0.0
    %7210 = vmatprep.subr.mxu0 0.0
    %7211 = vmatpush2.msra.mxu0 0.0
    %7212 = vmatprep.subr.mxu0 0.0
    %7213 = vmatpush2.msra.mxu0 0.0
    %7214 = vmatprep.subr.mxu0 0.0
    %7215 = vmatpush2.msra.mxu0 0.0
    %7216 = vmatprep.subr.mxu0 0.0
    %7217 = vmatpush2.msra.mxu0 0.0
    %7218 = vmatprep.subr.mxu0 0.0
    %7219 = vmatpush2.msra.mxu0 0.0
    %7220 = vmatprep.subr.mxu0 0.0
    %7221 = vmatpush2.msra.mxu0 0.0
    %7222 = vmatprep.subr.mxu0 0.0
    %7223 = vmatpush2.msra.mxu0 0.0
    %7224 = vmatprep.subr.mxu0 0.0
    %7225 = vmatpush2.msra.mxu0 0.0
    %7226 = vmatprep.subr.mxu0 0.0
    %7227 = vmatpush2.msra.mxu0 0.0
    %7228 = vmatprep.subr.mxu0 0.0
    %7229 = vmatpush2.msra.mxu0 0.0
    %7230 = vmatprep.subr.mxu0 0.0
    %7231 = vmatpush2.msra.mxu0 0.0
    %7232 = vmatprep.subr.mxu0 0.0
    %7233 = vmatpush2.msra.mxu0 0.0
    %7234 = vmatprep.mubr.f32.mxu0 0.0
    %7235 = vmatmul.mubr.f32.gmra.mxu0 %v7159
    %v7236 = vpop.f32.mrf.mxu0
    %v7237 = vadd.f32 0.0, %v7236
    %v7238 = vpop.f32.mrf.mxu0
    %7239 = vmatprep.mubr.f32.mxu0 0.0
    %7240 = vmatmul.mubr.f32.gmra.mxu0 %v7162
    %v7241 = vpop.f32.mrf.mxu0
    %v7242 = vadd.f32 0.0, %v7241
    %v7243 = vpop.f32.mrf.mxu0
    %7244 = vmatprep.mubr.f32.mxu0 0.0
    %7245 = vmatmul.mubr.f32.gmra.mxu0 %v7165
    %v7246 = vpop.f32.mrf.mxu0
    %v7247 = vadd.f32 0.0, %v7246
    %v7248 = vpop.f32.mrf.mxu0
    %7249 = vmatprep.mubr.f32.mxu0 0.0
    %7250 = vmatmul.mubr.f32.gmra.mxu0 %v7168
    %v7251 = vpop.f32.mrf.mxu0
    %v7252 = vadd.f32 0.0, %v7251
    %v7253 = vpop.f32.mrf.mxu0
    %7254 = vdwg.mxu0
    %v7256 = vsel %vm1024, %v7082, 0
    %v7259 = vsel %vm1024, %v7087, 0
    %v7262 = vsel %vm1024, %v7092, 0
    %v7265 = vsel %vm1024, %v7097, 0
    %7267 = vmatprep.subr.mxu0 0.0
    %7268 = vmatpush1.msra.mxu0 0.0
    %7269 = vmatprep.subr.mxu0 0.0
    %7270 = vmatpush1.msra.mxu0 0.0
    %7271 = vmatprep.subr.mxu0 0.0
    %7272 = vmatpush1.msra.mxu0 0.0
    %7273 = vmatprep.subr.mxu0 0.0
    %7274 = vmatpush1.msra.mxu0 0.0
    %7275 = vmatprep.subr.mxu0 0.0
    %7276 = vmatpush1.msra.mxu0 0.0
    %7277 = vmatprep.subr.mxu0 0.0
    %7278 = vmatpush1.msra.mxu0 0.0
    %7279 = vmatprep.subr.mxu0 0.0
    %7280 = vmatpush1.msra.mxu0 0.0
    %7281 = vmatprep.subr.mxu0 0.0
    %7282 = vmatpush1.msra.mxu0 0.0
    %7283 = vmatprep.subr.mxu0 0.0
    %7284 = vmatpush1.msra.mxu0 %v7148
    %7285 = vmatprep.subr.mxu0 0.0
    %7286 = vmatpush1.msra.mxu0 %v7147
    %7287 = vmatprep.subr.mxu0 0.0
    %7288 = vmatpush1.msra.mxu0 %v7146
    %7289 = vmatprep.subr.mxu0 0.0
    %7290 = vmatpush1.msra.mxu0 %v7145
    %7291 = vmatprep.subr.mxu0 0.0
    %7292 = vmatpush1.msra.mxu0 %v7144
    %7293 = vmatprep.subr.mxu0 0.0
    %7294 = vmatpush1.msra.mxu0 %v7143
    %7295 = vmatprep.subr.mxu0 0.0
    %7296 = vmatpush1.msra.mxu0 %v7142
    %7297 = vmatprep.subr.mxu0 0.0
    %7298 = vmatpush1.msra.mxu0 %v7141
    %7299 = vmatprep.subr.mxu0 0.0
    %7300 = vmatpush2.msra.mxu0 0.0
    %7301 = vmatprep.subr.mxu0 0.0
    %7302 = vmatpush2.msra.mxu0 0.0
    %7303 = vmatprep.subr.mxu0 0.0
    %7304 = vmatpush2.msra.mxu0 0.0
    %7305 = vmatprep.subr.mxu0 0.0
    %7306 = vmatpush2.msra.mxu0 0.0
    %7307 = vmatprep.subr.mxu0 0.0
    %7308 = vmatpush2.msra.mxu0 0.0
    %7309 = vmatprep.subr.mxu0 0.0
    %7310 = vmatpush2.msra.mxu0 0.0
    %7311 = vmatprep.subr.mxu0 0.0
    %7312 = vmatpush2.msra.mxu0 0.0
    %7313 = vmatprep.subr.mxu0 0.0
    %7314 = vmatpush2.msra.mxu0 0.0
    %7315 = vmatprep.subr.mxu0 0.0
    %7316 = vmatpush2.msra.mxu0 0.0
    %7317 = vmatprep.subr.mxu0 0.0
    %7318 = vmatpush2.msra.mxu0 0.0
    %7319 = vmatprep.subr.mxu0 0.0
    %7320 = vmatpush2.msra.mxu0 0.0
    %7321 = vmatprep.subr.mxu0 0.0
    %7322 = vmatpush2.msra.mxu0 0.0
    %7323 = vmatprep.subr.mxu0 0.0
    %7324 = vmatpush2.msra.mxu0 0.0
    %7325 = vmatprep.subr.mxu0 0.0
    %7326 = vmatpush2.msra.mxu0 0.0
    %7327 = vmatprep.subr.mxu0 0.0
    %7328 = vmatpush2.msra.mxu0 0.0
    %7329 = vmatprep.subr.mxu0 0.0
    %7330 = vmatpush2.msra.mxu0 0.0
    %7331 = vmatprep.mubr.f32.mxu0 0.0
    %7332 = vmatmul.mubr.f32.gmra.mxu0 %v7256
    %v7333 = vpop.f32.mrf.mxu0
    %v7334 = vadd.f32 %v7237, %v7333
    %v7335 = vpop.f32.mrf.mxu0
    %7336 = vmatprep.mubr.f32.mxu0 0.0
    %7337 = vmatmul.mubr.f32.gmra.mxu0 %v7259
    %v7338 = vpop.f32.mrf.mxu0
    %v7339 = vadd.f32 %v7242, %v7338
    %v7340 = vpop.f32.mrf.mxu0
    %7341 = vmatprep.mubr.f32.mxu0 0.0
    %7342 = vmatmul.mubr.f32.gmra.mxu0 %v7262
    %v7343 = vpop.f32.mrf.mxu0
    %v7344 = vadd.f32 %v7247, %v7343
    %v7345 = vpop.f32.mrf.mxu0
    %7346 = vmatprep.mubr.f32.mxu0 0.0
    %7347 = vmatmul.mubr.f32.gmra.mxu0 %v7265
    %v7348 = vpop.f32.mrf.mxu0
    %v7349 = vadd.f32 %v7252, %v7348
    %v7350 = vpop.f32.mrf.mxu0
    %7351 = vdwg.mxu0
    %s7352 = scalar_lea.vmem %s2, 1664
    %v7353 = vld [vmem:[%s7352] sm:$0xff]
    %v7354 = vld [vmem:[%s7352 + $0x8] sm:$0xff]
    %v7355 = vld [vmem:[%s7352 + $0x10] sm:$0xff]
    %v7356 = vld [vmem:[%s7352 + $0x18] sm:$0xff]
    %v7357 = vld [vmem:[%s7352 + $0x20] sm:$0xff]
    %v7358 = vld [vmem:[%s7352 + $0x28] sm:$0xff]
    %v7359 = vld [vmem:[%s7352 + $0x30] sm:$0xff]
    %v7360 = vld [vmem:[%s7352 + $0x38] sm:$0xff]
    %v7362 = vsel %vm1024, %v7122, 0
    %v7365 = vsel %vm1024, %v7127, 0
    %v7368 = vsel %vm1024, %v7132, 0
    %v7371 = vsel %vm1024, %v7137, 0
    %7373 = vmatprep.subr.mxu0 0.0
    %7374 = vmatpush1.msra.mxu0 0.0
    %7375 = vmatprep.subr.mxu0 0.0
    %7376 = vmatpush1.msra.mxu0 0.0
    %7377 = vmatprep.subr.mxu0 0.0
    %7378 = vmatpush1.msra.mxu0 0.0
    %7379 = vmatprep.subr.mxu0 0.0
    %7380 = vmatpush1.msra.mxu0 0.0
    %7381 = vmatprep.subr.mxu0 0.0
    %7382 = vmatpush1.msra.mxu0 0.0
    %7383 = vmatprep.subr.mxu0 0.0
    %7384 = vmatpush1.msra.mxu0 0.0
    %7385 = vmatprep.subr.mxu0 0.0
    %7386 = vmatpush1.msra.mxu0 0.0
    %7387 = vmatprep.subr.mxu0 0.0
    %7388 = vmatpush1.msra.mxu0 0.0
    %7389 = vmatprep.subr.mxu0 0.0
    %7390 = vmatpush1.msra.mxu0 %v7360
    %7391 = vmatprep.subr.mxu0 0.0
    %7392 = vmatpush1.msra.mxu0 %v7359
    %7393 = vmatprep.subr.mxu0 0.0
    %7394 = vmatpush1.msra.mxu0 %v7358
    %7395 = vmatprep.subr.mxu0 0.0
    %7396 = vmatpush1.msra.mxu0 %v7357
    %7397 = vmatprep.subr.mxu0 0.0
    %7398 = vmatpush1.msra.mxu0 %v7356
    %7399 = vmatprep.subr.mxu0 0.0
    %7400 = vmatpush1.msra.mxu0 %v7355
    %7401 = vmatprep.subr.mxu0 0.0
    %7402 = vmatpush1.msra.mxu0 %v7354
    %7403 = vmatprep.subr.mxu0 0.0
    %7404 = vmatpush1.msra.mxu0 %v7353
    %7405 = vmatprep.subr.mxu0 0.0
    %7406 = vmatpush2.msra.mxu0 0.0
    %7407 = vmatprep.subr.mxu0 0.0
    %7408 = vmatpush2.msra.mxu0 0.0
    %7409 = vmatprep.subr.mxu0 0.0
    %7410 = vmatpush2.msra.mxu0 0.0
    %7411 = vmatprep.subr.mxu0 0.0
    %7412 = vmatpush2.msra.mxu0 0.0
    %7413 = vmatprep.subr.mxu0 0.0
    %7414 = vmatpush2.msra.mxu0 0.0
    %7415 = vmatprep.subr.mxu0 0.0
    %7416 = vmatpush2.msra.mxu0 0.0
    %7417 = vmatprep.subr.mxu0 0.0
    %7418 = vmatpush2.msra.mxu0 0.0
    %7419 = vmatprep.subr.mxu0 0.0
    %7420 = vmatpush2.msra.mxu0 0.0
    %7421 = vmatprep.subr.mxu0 0.0
    %7422 = vmatpush2.msra.mxu0 0.0
    %7423 = vmatprep.subr.mxu0 0.0
    %7424 = vmatpush2.msra.mxu0 0.0
    %7425 = vmatprep.subr.mxu0 0.0
    %7426 = vmatpush2.msra.mxu0 0.0
    %7427 = vmatprep.subr.mxu0 0.0
    %7428 = vmatpush2.msra.mxu0 0.0
    %7429 = vmatprep.subr.mxu0 0.0
    %7430 = vmatpush2.msra.mxu0 0.0
    %7431 = vmatprep.subr.mxu0 0.0
    %7432 = vmatpush2.msra.mxu0 0.0
    %7433 = vmatprep.subr.mxu0 0.0
    %7434 = vmatpush2.msra.mxu0 0.0
    %7435 = vmatprep.subr.mxu0 0.0
    %7436 = vmatpush2.msra.mxu0 0.0
    %7437 = vmatprep.mubr.f32.mxu0 0.0
    %7438 = vmatmul.mubr.f32.gmra.mxu0 %v7362
    %v7439 = vpop.f32.mrf.mxu0
    %v7440 = vadd.f32 0.0, %v7439
    %v7441 = vpop.f32.mrf.mxu0
    %7442 = vmatprep.mubr.f32.mxu0 0.0
    %7443 = vmatmul.mubr.f32.gmra.mxu0 %v7365
    %v7444 = vpop.f32.mrf.mxu0
    %v7445 = vadd.f32 0.0, %v7444
    %v7446 = vpop.f32.mrf.mxu0
    %7447 = vmatprep.mubr.f32.mxu0 0.0
    %7448 = vmatmul.mubr.f32.gmra.mxu0 %v7368
    %v7449 = vpop.f32.mrf.mxu0
    %v7450 = vadd.f32 0.0, %v7449
    %v7451 = vpop.f32.mrf.mxu0
    %7452 = vmatprep.mubr.f32.mxu0 0.0
    %7453 = vmatmul.mubr.f32.gmra.mxu0 %v7371
    %v7454 = vpop.f32.mrf.mxu0
    %v7455 = vadd.f32 0.0, %v7454
    %v7456 = vpop.f32.mrf.mxu0
    %7457 = vdwg.mxu0
    %v7458 = vadd.f32 %v7334, %v7440
    %v7459 = vadd.f32 %v7339, %v7445
    %v7460 = vadd.f32 %v7344, %v7450
    %v7461 = vadd.f32 %v7349, %v7455
    %s7462 = scalar_lea.vmem [#allocation2], 512
    %v7463 = vld [vmem:[%s7462] sm:$0xff]
    %v7464 = vld [vmem:[%s7462 + $0x8] sm:$0xff]
    %v7465 = vld [vmem:[%s7462 + $0x10] sm:$0xff]
    %v7466 = vld [vmem:[%s7462 + $0x18] sm:$0xff]
    %v7467 = vld [vmem:[%s7462 + $0x20] sm:$0xff]
    %v7468 = vld [vmem:[%s7462 + $0x28] sm:$0xff]
    %v7469 = vld [vmem:[%s7462 + $0x30] sm:$0xff]
    %v7470 = vld [vmem:[%s7462 + $0x38] sm:$0xff]
    %v7472 = vsel %vm1024, %v7458, 0
    %v7475 = vsel %vm1024, %v7459, 0
    %v7478 = vsel %vm1024, %v7460, 0
    %v7481 = vsel %vm1024, %v7461, 0
    %7483 = vmatprep.subr.mxu0 0.0
    %7484 = vmatpush1.msra.mxu0 0.0
    %7485 = vmatprep.subr.mxu0 0.0
    %7486 = vmatpush1.msra.mxu0 0.0
    %7487 = vmatprep.subr.mxu0 0.0
    %7488 = vmatpush1.msra.mxu0 0.0
    %7489 = vmatprep.subr.mxu0 0.0
    %7490 = vmatpush1.msra.mxu0 0.0
    %7491 = vmatprep.subr.mxu0 0.0
    %7492 = vmatpush1.msra.mxu0 0.0
    %7493 = vmatprep.subr.mxu0 0.0
    %7494 = vmatpush1.msra.mxu0 0.0
    %7495 = vmatprep.subr.mxu0 0.0
    %7496 = vmatpush1.msra.mxu0 0.0
    %7497 = vmatprep.subr.mxu0 0.0
    %7498 = vmatpush1.msra.mxu0 0.0
    %7499 = vmatprep.subr.mxu0 0.0
    %7500 = vmatpush1.msra.mxu0 %v7470
    %7501 = vmatprep.subr.mxu0 0.0
    %7502 = vmatpush1.msra.mxu0 %v7469
    %7503 = vmatprep.subr.mxu0 0.0
    %7504 = vmatpush1.msra.mxu0 %v7468
    %7505 = vmatprep.subr.mxu0 0.0
    %7506 = vmatpush1.msra.mxu0 %v7467
    %7507 = vmatprep.subr.mxu0 0.0
    %7508 = vmatpush1.msra.mxu0 %v7466
    %7509 = vmatprep.subr.mxu0 0.0
    %7510 = vmatpush1.msra.mxu0 %v7465
    %7511 = vmatprep.subr.mxu0 0.0
    %7512 = vmatpush1.msra.mxu0 %v7464
    %7513 = vmatprep.subr.mxu0 0.0
    %7514 = vmatpush1.msra.mxu0 %v7463
    %7515 = vmatprep.subr.mxu0 0.0
    %7516 = vmatpush2.msra.mxu0 0.0
    %7517 = vmatprep.subr.mxu0 0.0
    %7518 = vmatpush2.msra.mxu0 0.0
    %7519 = vmatprep.subr.mxu0 0.0
    %7520 = vmatpush2.msra.mxu0 0.0
    %7521 = vmatprep.subr.mxu0 0.0
    %7522 = vmatpush2.msra.mxu0 0.0
    %7523 = vmatprep.subr.mxu0 0.0
    %7524 = vmatpush2.msra.mxu0 0.0
    %7525 = vmatprep.subr.mxu0 0.0
    %7526 = vmatpush2.msra.mxu0 0.0
    %7527 = vmatprep.subr.mxu0 0.0
    %7528 = vmatpush2.msra.mxu0 0.0
    %7529 = vmatprep.subr.mxu0 0.0
    %7530 = vmatpush2.msra.mxu0 0.0
    %7531 = vmatprep.subr.mxu0 0.0
    %7532 = vmatpush2.msra.mxu0 0.0
    %7533 = vmatprep.subr.mxu0 0.0
    %7534 = vmatpush2.msra.mxu0 0.0
    %7535 = vmatprep.subr.mxu0 0.0
    %7536 = vmatpush2.msra.mxu0 0.0
    %7537 = vmatprep.subr.mxu0 0.0
    %7538 = vmatpush2.msra.mxu0 0.0
    %7539 = vmatprep.subr.mxu0 0.0
    %7540 = vmatpush2.msra.mxu0 0.0
    %7541 = vmatprep.subr.mxu0 0.0
    %7542 = vmatpush2.msra.mxu0 0.0
    %7543 = vmatprep.subr.mxu0 0.0
    %7544 = vmatpush2.msra.mxu0 0.0
    %7545 = vmatprep.subr.mxu0 0.0
    %7546 = vmatpush2.msra.mxu0 0.0
    %7547 = vmatprep.mubr.f32.mxu0 0.0
    %7548 = vmatmul.mubr.f32.gmra.mxu0 %v7472
    %v7549 = vpop.f32.mrf.mxu0
    %v7550 = vadd.f32 0.0, %v7549
    %v7551 = vpop.f32.mrf.mxu0
    %7552 = vmatprep.mubr.f32.mxu0 0.0
    %7553 = vmatmul.mubr.f32.gmra.mxu0 %v7475
    %v7554 = vpop.f32.mrf.mxu0
    %v7555 = vadd.f32 0.0, %v7554
    %v7556 = vpop.f32.mrf.mxu0
    %7557 = vmatprep.mubr.f32.mxu0 0.0
    %7558 = vmatmul.mubr.f32.gmra.mxu0 %v7478
    %v7559 = vpop.f32.mrf.mxu0
    %v7560 = vadd.f32 0.0, %v7559
    %v7561 = vpop.f32.mrf.mxu0
    %7562 = vmatprep.mubr.f32.mxu0 0.0
    %7563 = vmatmul.mubr.f32.gmra.mxu0 %v7481
    %v7564 = vpop.f32.mrf.mxu0
    %v7565 = vadd.f32 0.0, %v7564
    %v7566 = vpop.f32.mrf.mxu0
    %7567 = vdwg.mxu0
    %v7568 = vsel %vm1024, %v7550, 0.0
    %v7569 = vsel %vm1024, %v7555, 0.0
    %v7570 = vadd.f32 %v7568, %v7569
    %v7571 = vsel %vm1024, %v7560, 0.0
    %v7572 = vadd.f32 %v7570, %v7571
    %v7573 = vsel %vm1024, %v7565, 0.0
    %v7574 = vadd.f32 %v7572, %v7573
    %v7575 = vrot.slane %v7574, 4
    %v7576 = vadd.f32 %v7574, %v7575
    %v7577 = vrot.slane %v7576, 2
    %v7578 = vadd.f32 %v7576, %v7577
    %v7579 = vrot.slane %v7578, 1
    %v7580 = vadd.f32 %v7578, %v7579
    %v7581 = vmul.f32 %v7458, %v7458
    %v7582 = vmul.f32 %v7459, %v7459
    %v7583 = vmul.f32 %v7460, %v7460
    %v7584 = vmul.f32 %v7461, %v7461
    %v7586 = vsel %vm1024, %v7581, 0
    %v7589 = vsel %vm1024, %v7582, 0
    %v7592 = vsel %vm1024, %v7583, 0
    %v7595 = vsel %vm1024, %v7584, 0
    %7597 = vmatprep.subr.mxu0 0.0
    %7598 = vmatpush1.msra.mxu0 0.0
    %7599 = vmatprep.subr.mxu0 0.0
    %7600 = vmatpush1.msra.mxu0 0.0
    %7601 = vmatprep.subr.mxu0 0.0
    %7602 = vmatpush1.msra.mxu0 0.0
    %7603 = vmatprep.subr.mxu0 0.0
    %7604 = vmatpush1.msra.mxu0 0.0
    %7605 = vmatprep.subr.mxu0 0.0
    %7606 = vmatpush1.msra.mxu0 0.0
    %7607 = vmatprep.subr.mxu0 0.0
    %7608 = vmatpush1.msra.mxu0 0.0
    %7609 = vmatprep.subr.mxu0 0.0
    %7610 = vmatpush1.msra.mxu0 0.0
    %7611 = vmatprep.subr.mxu0 0.0
    %7612 = vmatpush1.msra.mxu0 0.0
    %7613 = vmatprep.subr.mxu0 0.0
    %7614 = vmatpush1.msra.mxu0 %v7470
    %7615 = vmatprep.subr.mxu0 0.0
    %7616 = vmatpush1.msra.mxu0 %v7469
    %7617 = vmatprep.subr.mxu0 0.0
    %7618 = vmatpush1.msra.mxu0 %v7468
    %7619 = vmatprep.subr.mxu0 0.0
    %7620 = vmatpush1.msra.mxu0 %v7467
    %7621 = vmatprep.subr.mxu0 0.0
    %7622 = vmatpush1.msra.mxu0 %v7466
    %7623 = vmatprep.subr.mxu0 0.0
    %7624 = vmatpush1.msra.mxu0 %v7465
    %7625 = vmatprep.subr.mxu0 0.0
    %7626 = vmatpush1.msra.mxu0 %v7464
    %7627 = vmatprep.subr.mxu0 0.0
    %7628 = vmatpush1.msra.mxu0 %v7463
    %7629 = vmatprep.subr.mxu0 0.0
    %7630 = vmatpush2.msra.mxu0 0.0
    %7631 = vmatprep.subr.mxu0 0.0
    %7632 = vmatpush2.msra.mxu0 0.0
    %7633 = vmatprep.subr.mxu0 0.0
    %7634 = vmatpush2.msra.mxu0 0.0
    %7635 = vmatprep.subr.mxu0 0.0
    %7636 = vmatpush2.msra.mxu0 0.0
    %7637 = vmatprep.subr.mxu0 0.0
    %7638 = vmatpush2.msra.mxu0 0.0
    %7639 = vmatprep.subr.mxu0 0.0
    %7640 = vmatpush2.msra.mxu0 0.0
    %7641 = vmatprep.subr.mxu0 0.0
    %7642 = vmatpush2.msra.mxu0 0.0
    %7643 = vmatprep.subr.mxu0 0.0
    %7644 = vmatpush2.msra.mxu0 0.0
    %7645 = vmatprep.subr.mxu0 0.0
    %7646 = vmatpush2.msra.mxu0 0.0
    %7647 = vmatprep.subr.mxu0 0.0
    %7648 = vmatpush2.msra.mxu0 0.0
    %7649 = vmatprep.subr.mxu0 0.0
    %7650 = vmatpush2.msra.mxu0 0.0
    %7651 = vmatprep.subr.mxu0 0.0
    %7652 = vmatpush2.msra.mxu0 0.0
    %7653 = vmatprep.subr.mxu0 0.0
    %7654 = vmatpush2.msra.mxu0 0.0
    %7655 = vmatprep.subr.mxu0 0.0
    %7656 = vmatpush2.msra.mxu0 0.0
    %7657 = vmatprep.subr.mxu0 0.0
    %7658 = vmatpush2.msra.mxu0 0.0
    %7659 = vmatprep.subr.mxu0 0.0
    %7660 = vmatpush2.msra.mxu0 0.0
    %7661 = vmatprep.mubr.f32.mxu0 0.0
    %7662 = vmatmul.mubr.f32.gmra.mxu0 %v7586
    %v7663 = vpop.f32.mrf.mxu0
    %v7664 = vadd.f32 0.0, %v7663
    %v7665 = vpop.f32.mrf.mxu0
    %7666 = vmatprep.mubr.f32.mxu0 0.0
    %7667 = vmatmul.mubr.f32.gmra.mxu0 %v7589
    %v7668 = vpop.f32.mrf.mxu0
    %v7669 = vadd.f32 0.0, %v7668
    %v7670 = vpop.f32.mrf.mxu0
    %7671 = vmatprep.mubr.f32.mxu0 0.0
    %7672 = vmatmul.mubr.f32.gmra.mxu0 %v7592
    %v7673 = vpop.f32.mrf.mxu0
    %v7674 = vadd.f32 0.0, %v7673
    %v7675 = vpop.f32.mrf.mxu0
    %7676 = vmatprep.mubr.f32.mxu0 0.0
    %7677 = vmatmul.mubr.f32.gmra.mxu0 %v7595
    %v7678 = vpop.f32.mrf.mxu0
    %v7679 = vadd.f32 0.0, %v7678
    %v7680 = vpop.f32.mrf.mxu0
    %7681 = vdwg.mxu0
    %v7682 = vsel %vm1024, %v7664, 0.0
    %v7683 = vsel %vm1024, %v7669, 0.0
    %v7684 = vadd.f32 %v7682, %v7683
    %v7685 = vsel %vm1024, %v7674, 0.0
    %v7686 = vadd.f32 %v7684, %v7685
    %v7687 = vsel %vm1024, %v7679, 0.0
    %v7688 = vadd.f32 %v7686, %v7687
    %v7689 = vrot.slane %v7688, 4
    %v7690 = vadd.f32 %v7688, %v7689
    %v7691 = vrot.slane %v7690, 2
    %v7692 = vadd.f32 %v7690, %v7691
    %v7693 = vrot.slane %v7692, 1
    %v7694 = vadd.f32 %v7692, %v7693
    %v7695 = vmul.f32 %v7580, %v7580
    %v7696 = vsub.f32 %v7694, %v7695
    %v7697 = vmax.f32 %v7696, 0.0
    %s7698 = scalar_lea.vmem %s4, 8
    %v7699 = vld [vmem:[%s7698] sm:$0x1]
    %v7700 = vadd.f32 %v7697, 1e-05
    %v7701 = vrsqrt.pop %v7700
    %v7702 = vmul.f32 %v7699, %v7701
    %s7703 = scalar_lea.vmem %s5, 8
    %v7704 = vld [vmem:[%s7703] sm:$0x1]
    %v7705 = vmul.f32 %v7580, %v7702
    %v7706 = vsub.f32 %v7704, %v7705
    %v7708 = vlaneseq
    %v7709 = vshrl.u32 %v7708, 7
    %v7710 = vsub.s32 0, %v7709
    %v7711 = vrot.slane %v7702, %v7710
    %v7713 = vmul.f32 %v7458, %v7711
    %v7714 = vmul.f32 %v7459, %v7711
    %v7715 = vmul.f32 %v7460, %v7711
    %v7716 = vmul.f32 %v7461, %v7711
    %v7718 = vlaneseq
    %v7719 = vshrl.u32 %v7718, 7
    %v7720 = vsub.s32 0, %v7719
    %v7721 = vrot.slane %v7706, %v7720
    %v7723 = vadd.f32 %v7713, %v7721
    %v7724 = vadd.f32 %v7714, %v7721
    %v7725 = vadd.f32 %v7715, %v7721
    %v7726 = vadd.f32 %v7716, %v7721
    %v7727 = vmax.f32 %v7723, 0.0
    %v7728 = vmax.f32 %v7724, 0.0
    %v7729 = vmax.f32 %v7725, 0.0
    %v7730 = vmax.f32 %v7726, 0.0
    %v7731 = vld [vmem:[%s8] sm:$0xff]
    %v7732 = vld [vmem:[%s8 + $0x8] sm:$0xff]
    %v7733 = vld [vmem:[%s8 + $0x10] sm:$0xff]
    %v7734 = vld [vmem:[%s8 + $0x18] sm:$0xff]
    %v7735 = vld [vmem:[%s8 + $0x20] sm:$0xff]
    %v7736 = vld [vmem:[%s8 + $0x28] sm:$0xff]
    %v7737 = vld [vmem:[%s8 + $0x30] sm:$0xff]
    %v7738 = vld [vmem:[%s8 + $0x38] sm:$0xff]
    %v7739 = vld [vmem:[%s8 + $0x40] sm:$0xff]
    %v7740 = vld [vmem:[%s8 + $0x48] sm:$0xff]
    %v7741 = vld [vmem:[%s8 + $0x50] sm:$0xff]
    %v7742 = vld [vmem:[%s8 + $0x58] sm:$0xff]
    %v7743 = vld [vmem:[%s8 + $0x60] sm:$0xff]
    %v7744 = vld [vmem:[%s8 + $0x68] sm:$0xff]
    %v7745 = vld [vmem:[%s8 + $0x70] sm:$0xff]
    %v7746 = vld [vmem:[%s8 + $0x78] sm:$0xff]
    %v7747 = vld [vmem:[%s9] sm:$0xff]
    %v7748 = vld [vmem:[%s9 + $0x8] sm:$0xff]
    %v7749 = vld [vmem:[%s9 + $0x10] sm:$0xff]
    %v7750 = vld [vmem:[%s9 + $0x18] sm:$0xff]
    %v7751 = vld [vmem:[%s9 + $0x20] sm:$0xff]
    %v7752 = vld [vmem:[%s9 + $0x28] sm:$0xff]
    %v7753 = vld [vmem:[%s9 + $0x30] sm:$0xff]
    %v7754 = vld [vmem:[%s9 + $0x38] sm:$0xff]
    %v7756 = vsel %vm1024, %v7727, 0
    %v7759 = vsel %vm1024, %v7728, 0
    %v7762 = vsel %vm1024, %v7729, 0
    %v7765 = vsel %vm1024, %v7730, 0
    %7767 = vmatprep.subr.mxu0 0.0
    %7768 = vmatpush1.msra.mxu0 0.0
    %7769 = vmatprep.subr.mxu0 0.0
    %7770 = vmatpush1.msra.mxu0 0.0
    %7771 = vmatprep.subr.mxu0 0.0
    %7772 = vmatpush1.msra.mxu0 0.0
    %7773 = vmatprep.subr.mxu0 0.0
    %7774 = vmatpush1.msra.mxu0 0.0
    %7775 = vmatprep.subr.mxu0 0.0
    %7776 = vmatpush1.msra.mxu0 0.0
    %7777 = vmatprep.subr.mxu0 0.0
    %7778 = vmatpush1.msra.mxu0 0.0
    %7779 = vmatprep.subr.mxu0 0.0
    %7780 = vmatpush1.msra.mxu0 0.0
    %7781 = vmatprep.subr.mxu0 0.0
    %7782 = vmatpush1.msra.mxu0 0.0
    %7783 = vmatprep.subr.mxu0 0.0
    %7784 = vmatpush1.msra.mxu0 %v7754
    %7785 = vmatprep.subr.mxu0 0.0
    %7786 = vmatpush1.msra.mxu0 %v7753
    %7787 = vmatprep.subr.mxu0 0.0
    %7788 = vmatpush1.msra.mxu0 %v7752
    %7789 = vmatprep.subr.mxu0 0.0
    %7790 = vmatpush1.msra.mxu0 %v7751
    %7791 = vmatprep.subr.mxu0 0.0
    %7792 = vmatpush1.msra.mxu0 %v7750
    %7793 = vmatprep.subr.mxu0 0.0
    %7794 = vmatpush1.msra.mxu0 %v7749
    %7795 = vmatprep.subr.mxu0 0.0
    %7796 = vmatpush1.msra.mxu0 %v7748
    %7797 = vmatprep.subr.mxu0 0.0
    %7798 = vmatpush1.msra.mxu0 %v7747
    %7799 = vmatprep.subr.mxu0 0.0
    %7800 = vmatpush2.msra.mxu0 0.0
    %7801 = vmatprep.subr.mxu0 0.0
    %7802 = vmatpush2.msra.mxu0 0.0
    %7803 = vmatprep.subr.mxu0 0.0
    %7804 = vmatpush2.msra.mxu0 0.0
    %7805 = vmatprep.subr.mxu0 0.0
    %7806 = vmatpush2.msra.mxu0 0.0
    %7807 = vmatprep.subr.mxu0 0.0
    %7808 = vmatpush2.msra.mxu0 0.0
    %7809 = vmatprep.subr.mxu0 0.0
    %7810 = vmatpush2.msra.mxu0 0.0
    %7811 = vmatprep.subr.mxu0 0.0
    %7812 = vmatpush2.msra.mxu0 0.0
    %7813 = vmatprep.subr.mxu0 0.0
    %7814 = vmatpush2.msra.mxu0 0.0
    %7815 = vmatprep.subr.mxu0 0.0
    %7816 = vmatpush2.msra.mxu0 0.0
    %7817 = vmatprep.subr.mxu0 0.0
    %7818 = vmatpush2.msra.mxu0 0.0
    %7819 = vmatprep.subr.mxu0 0.0
    %7820 = vmatpush2.msra.mxu0 0.0
    %7821 = vmatprep.subr.mxu0 0.0
    %7822 = vmatpush2.msra.mxu0 0.0
    %7823 = vmatprep.subr.mxu0 0.0
    %7824 = vmatpush2.msra.mxu0 0.0
    %7825 = vmatprep.subr.mxu0 0.0
    %7826 = vmatpush2.msra.mxu0 0.0
    %7827 = vmatprep.subr.mxu0 0.0
    %7828 = vmatpush2.msra.mxu0 0.0
    %7829 = vmatprep.subr.mxu0 0.0
    %7830 = vmatpush2.msra.mxu0 0.0
    %7831 = vmatprep.mubr.f32.mxu0 0.0
    %7832 = vmatmul.mubr.f32.gmra.mxu0 %v7756
    %v7833 = vpop.f32.mrf.mxu0
    %v7834 = vadd.f32 0.0, %v7833
    %v7835 = vpop.f32.mrf.mxu0
    %7836 = vmatprep.mubr.f32.mxu0 0.0
    %7837 = vmatmul.mubr.f32.gmra.mxu0 %v7759
    %v7838 = vpop.f32.mrf.mxu0
    %v7839 = vadd.f32 0.0, %v7838
    %v7840 = vpop.f32.mrf.mxu0
    %7841 = vmatprep.mubr.f32.mxu0 0.0
    %7842 = vmatmul.mubr.f32.gmra.mxu0 %v7762
    %v7843 = vpop.f32.mrf.mxu0
    %v7844 = vadd.f32 0.0, %v7843
    %v7845 = vpop.f32.mrf.mxu0
    %7846 = vmatprep.mubr.f32.mxu0 0.0
    %7847 = vmatmul.mubr.f32.gmra.mxu0 %v7765
    %v7848 = vpop.f32.mrf.mxu0
    %v7849 = vadd.f32 0.0, %v7848
    %v7850 = vpop.f32.mrf.mxu0
    %7851 = vdwg.mxu0
    %s7852 = scalar_lea.vmem %s8, 128
    %v7853 = vld [vmem:[%s7852] sm:$0xff]
    %v7854 = vld [vmem:[%s7852 + $0x8] sm:$0xff]
    %v7855 = vld [vmem:[%s7852 + $0x10] sm:$0xff]
    %v7856 = vld [vmem:[%s7852 + $0x18] sm:$0xff]
    %v7857 = vld [vmem:[%s7852 + $0x20] sm:$0xff]
    %v7858 = vld [vmem:[%s7852 + $0x28] sm:$0xff]
    %v7859 = vld [vmem:[%s7852 + $0x30] sm:$0xff]
    %v7860 = vld [vmem:[%s7852 + $0x38] sm:$0xff]
    %v7861 = vld [vmem:[%s7852 + $0x40] sm:$0xff]
    %v7862 = vld [vmem:[%s7852 + $0x48] sm:$0xff]
    %v7863 = vld [vmem:[%s7852 + $0x50] sm:$0xff]
    %v7864 = vld [vmem:[%s7852 + $0x58] sm:$0xff]
    %v7865 = vld [vmem:[%s7852 + $0x60] sm:$0xff]
    %v7866 = vld [vmem:[%s7852 + $0x68] sm:$0xff]
    %v7867 = vld [vmem:[%s7852 + $0x70] sm:$0xff]
    %v7868 = vld [vmem:[%s7852 + $0x78] sm:$0xff]
    %s7869 = scalar_lea.vmem %s9, 64
    %v7870 = vld [vmem:[%s7869] sm:$0xff]
    %v7871 = vld [vmem:[%s7869 + $0x8] sm:$0xff]
    %v7872 = vld [vmem:[%s7869 + $0x10] sm:$0xff]
    %v7873 = vld [vmem:[%s7869 + $0x18] sm:$0xff]
    %v7874 = vld [vmem:[%s7869 + $0x20] sm:$0xff]
    %v7875 = vld [vmem:[%s7869 + $0x28] sm:$0xff]
    %v7876 = vld [vmem:[%s7869 + $0x30] sm:$0xff]
    %v7877 = vld [vmem:[%s7869 + $0x38] sm:$0xff]
    %7878 = vmatprep.subr.mxu0 0.0
    %7879 = vmatpush1.msra.mxu0 0.0
    %7880 = vmatprep.subr.mxu0 0.0
    %7881 = vmatpush1.msra.mxu0 0.0
    %7882 = vmatprep.subr.mxu0 0.0
    %7883 = vmatpush1.msra.mxu0 0.0
    %7884 = vmatprep.subr.mxu0 0.0
    %7885 = vmatpush1.msra.mxu0 0.0
    %7886 = vmatprep.subr.mxu0 0.0
    %7887 = vmatpush1.msra.mxu0 0.0
    %7888 = vmatprep.subr.mxu0 0.0
    %7889 = vmatpush1.msra.mxu0 0.0
    %7890 = vmatprep.subr.mxu0 0.0
    %7891 = vmatpush1.msra.mxu0 0.0
    %7892 = vmatprep.subr.mxu0 0.0
    %7893 = vmatpush1.msra.mxu0 0.0
    %7894 = vmatprep.subr.mxu0 0.0
    %7895 = vmatpush1.msra.mxu0 %v7877
    %7896 = vmatprep.subr.mxu0 0.0
    %7897 = vmatpush1.msra.mxu0 %v7876
    %7898 = vmatprep.subr.mxu0 0.0
    %7899 = vmatpush1.msra.mxu0 %v7875
    %7900 = vmatprep.subr.mxu0 0.0
    %7901 = vmatpush1.msra.mxu0 %v7874
    %7902 = vmatprep.subr.mxu0 0.0
    %7903 = vmatpush1.msra.mxu0 %v7873
    %7904 = vmatprep.subr.mxu0 0.0
    %7905 = vmatpush1.msra.mxu0 %v7872
    %7906 = vmatprep.subr.mxu0 0.0
    %7907 = vmatpush1.msra.mxu0 %v7871
    %7908 = vmatprep.subr.mxu0 0.0
    %7909 = vmatpush1.msra.mxu0 %v7870
    %7910 = vmatprep.subr.mxu0 0.0
    %7911 = vmatpush2.msra.mxu0 0.0
    %7912 = vmatprep.subr.mxu0 0.0
    %7913 = vmatpush2.msra.mxu0 0.0
    %7914 = vmatprep.subr.mxu0 0.0
    %7915 = vmatpush2.msra.mxu0 0.0
    %7916 = vmatprep.subr.mxu0 0.0
    %7917 = vmatpush2.msra.mxu0 0.0
    %7918 = vmatprep.subr.mxu0 0.0
    %7919 = vmatpush2.msra.mxu0 0.0
    %7920 = vmatprep.subr.mxu0 0.0
    %7921 = vmatpush2.msra.mxu0 0.0
    %7922 = vmatprep.subr.mxu0 0.0
    %7923 = vmatpush2.msra.mxu0 0.0
    %7924 = vmatprep.subr.mxu0 0.0
    %7925 = vmatpush2.msra.mxu0 0.0
    %7926 = vmatprep.subr.mxu0 0.0
    %7927 = vmatpush2.msra.mxu0 0.0
    %7928 = vmatprep.subr.mxu0 0.0
    %7929 = vmatpush2.msra.mxu0 0.0
    %7930 = vmatprep.subr.mxu0 0.0
    %7931 = vmatpush2.msra.mxu0 0.0
    %7932 = vmatprep.subr.mxu0 0.0
    %7933 = vmatpush2.msra.mxu0 0.0
    %7934 = vmatprep.subr.mxu0 0.0
    %7935 = vmatpush2.msra.mxu0 0.0
    %7936 = vmatprep.subr.mxu0 0.0
    %7937 = vmatpush2.msra.mxu0 0.0
    %7938 = vmatprep.subr.mxu0 0.0
    %7939 = vmatpush2.msra.mxu0 0.0
    %7940 = vmatprep.subr.mxu0 0.0
    %7941 = vmatpush2.msra.mxu0 0.0
    %7942 = vmatprep.mubr.f32.mxu0 0.0
    %7943 = vmatmul.mubr.f32.gmra.mxu0 %v7756
    %v7944 = vpop.f32.mrf.mxu0
    %v7945 = vadd.f32 0.0, %v7944
    %v7946 = vpop.f32.mrf.mxu0
    %7947 = vmatprep.mubr.f32.mxu0 0.0
    %7948 = vmatmul.mubr.f32.gmra.mxu0 %v7759
    %v7949 = vpop.f32.mrf.mxu0
    %v7950 = vadd.f32 0.0, %v7949
    %v7951 = vpop.f32.mrf.mxu0
    %7952 = vmatprep.mubr.f32.mxu0 0.0
    %7953 = vmatmul.mubr.f32.gmra.mxu0 %v7762
    %v7954 = vpop.f32.mrf.mxu0
    %v7955 = vadd.f32 0.0, %v7954
    %v7956 = vpop.f32.mrf.mxu0
    %7957 = vmatprep.mubr.f32.mxu0 0.0
    %7958 = vmatmul.mubr.f32.gmra.mxu0 %v7765
    %v7959 = vpop.f32.mrf.mxu0
    %v7960 = vadd.f32 0.0, %v7959
    %v7961 = vpop.f32.mrf.mxu0
    %7962 = vdwg.mxu0
    %v7964 = vsel %vm845, %v7853, 0
    %v7967 = vsel %vm845, %v7854, 0
    %v7970 = vsel %vm845, %v7855, 0
    %v7973 = vsel %vm845, %v7856, 0
    %v7976 = vsel %vm845, %v7857, 0
    %v7979 = vsel %vm845, %v7858, 0
    %v7982 = vsel %vm845, %v7859, 0
    %v7985 = vsel %vm845, %v7860, 0
    %v7988 = vsel %vm845, %v7861, 0
    %v7991 = vsel %vm845, %v7862, 0
    %v7994 = vsel %vm845, %v7863, 0
    %v7997 = vsel %vm845, %v7864, 0
    %v8000 = vsel %vm845, %v7865, 0
    %v8003 = vsel %vm845, %v7866, 0
    %v8006 = vsel %vm845, %v7867, 0
    %v8009 = vsel %vm845, %v7868, 0
    %8011 = vmatprep.subr.mxu0 0.0
    %8012 = vmatpush1.msra.mxu0 0.0
    %8013 = vmatprep.subr.mxu0 0.0
    %8014 = vmatpush1.msra.mxu0 0.0
    %8015 = vmatprep.subr.mxu0 0.0
    %8016 = vmatpush1.msra.mxu0 0.0
    %8017 = vmatprep.subr.mxu0 0.0
    %8018 = vmatpush1.msra.mxu0 0.0
    %8019 = vmatprep.subr.mxu0 0.0
    %8020 = vmatpush1.msra.mxu0 0.0
    %8021 = vmatprep.subr.mxu0 0.0
    %8022 = vmatpush1.msra.mxu0 0.0
    %8023 = vmatprep.subr.mxu0 0.0
    %8024 = vmatpush1.msra.mxu0 0.0
    %8025 = vmatprep.subr.mxu0 0.0
    %8026 = vmatpush1.msra.mxu0 0.0
    %8027 = vmatprep.subr.mxu0 0.0
    %8028 = vmatpush1.msra.mxu0 0.0
    %8029 = vmatprep.subr.mxu0 0.0
    %8030 = vmatpush1.msra.mxu0 0.0
    %8031 = vmatprep.subr.mxu0 0.0
    %8032 = vmatpush1.msra.mxu0 0.0
    %8033 = vmatprep.subr.mxu0 0.0
    %8034 = vmatpush1.msra.mxu0 0.0
    %8035 = vmatprep.subr.mxu0 0.0
    %8036 = vmatpush1.msra.mxu0 %v7960
    %8037 = vmatprep.subr.mxu0 0.0
    %8038 = vmatpush1.msra.mxu0 %v7955
    %8039 = vmatprep.subr.mxu0 0.0
    %8040 = vmatpush1.msra.mxu0 %v7950
    %8041 = vmatprep.subr.mxu0 0.0
    %8042 = vmatpush1.msra.mxu0 %v7945
    %8043 = vmatprep.subr.mxu0 0.0
    %8044 = vmatpush2.msra.mxu0 0.0
    %8045 = vmatprep.subr.mxu0 0.0
    %8046 = vmatpush2.msra.mxu0 0.0
    %8047 = vmatprep.subr.mxu0 0.0
    %8048 = vmatpush2.msra.mxu0 0.0
    %8049 = vmatprep.subr.mxu0 0.0
    %8050 = vmatpush2.msra.mxu0 0.0
    %8051 = vmatprep.subr.mxu0 0.0
    %8052 = vmatpush2.msra.mxu0 0.0
    %8053 = vmatprep.subr.mxu0 0.0
    %8054 = vmatpush2.msra.mxu0 0.0
    %8055 = vmatprep.subr.mxu0 0.0
    %8056 = vmatpush2.msra.mxu0 0.0
    %8057 = vmatprep.subr.mxu0 0.0
    %8058 = vmatpush2.msra.mxu0 0.0
    %8059 = vmatprep.subr.mxu0 0.0
    %8060 = vmatpush2.msra.mxu0 0.0
    %8061 = vmatprep.subr.mxu0 0.0
    %8062 = vmatpush2.msra.mxu0 0.0
    %8063 = vmatprep.subr.mxu0 0.0
    %8064 = vmatpush2.msra.mxu0 0.0
    %8065 = vmatprep.subr.mxu0 0.0
    %8066 = vmatpush2.msra.mxu0 0.0
    %8067 = vmatprep.subr.mxu0 0.0
    %8068 = vmatpush2.msra.mxu0 0.0
    %8069 = vmatprep.subr.mxu0 0.0
    %8070 = vmatpush2.msra.mxu0 0.0
    %8071 = vmatprep.subr.mxu0 0.0
    %8072 = vmatpush2.msra.mxu0 0.0
    %8073 = vmatprep.subr.mxu0 0.0
    %8074 = vmatpush2.msra.mxu0 0.0
    %8075 = vmatprep.mubr.f32.mxu0 0.0
    %8076 = vmatmul.mubr.f32.gmra.mxu0 %v7964
    %v8077 = vpop.f32.mrf.mxu0
    %v8078 = vadd.f32 0.0, %v8077
    %v8079 = vpop.f32.mrf.mxu0
    %8080 = vmatprep.mubr.f32.mxu0 0.0
    %8081 = vmatmul.mubr.f32.gmra.mxu0 %v7967
    %v8082 = vpop.f32.mrf.mxu0
    %v8083 = vadd.f32 0.0, %v8082
    %v8084 = vpop.f32.mrf.mxu0
    %8085 = vmatprep.mubr.f32.mxu0 0.0
    %8086 = vmatmul.mubr.f32.gmra.mxu0 %v7970
    %v8087 = vpop.f32.mrf.mxu0
    %v8088 = vadd.f32 0.0, %v8087
    %v8089 = vpop.f32.mrf.mxu0
    %8090 = vmatprep.mubr.f32.mxu0 0.0
    %8091 = vmatmul.mubr.f32.gmra.mxu0 %v7973
    %v8092 = vpop.f32.mrf.mxu0
    %v8093 = vadd.f32 0.0, %v8092
    %v8094 = vpop.f32.mrf.mxu0
    %8095 = vmatprep.mubr.f32.mxu0 0.0
    %8096 = vmatmul.mubr.f32.gmra.mxu0 %v7976
    %v8097 = vpop.f32.mrf.mxu0
    %v8098 = vadd.f32 0.0, %v8097
    %v8099 = vpop.f32.mrf.mxu0
    %8100 = vmatprep.mubr.f32.mxu0 0.0
    %8101 = vmatmul.mubr.f32.gmra.mxu0 %v7979
    %v8102 = vpop.f32.mrf.mxu0
    %v8103 = vadd.f32 0.0, %v8102
    %v8104 = vpop.f32.mrf.mxu0
    %8105 = vmatprep.mubr.f32.mxu0 0.0
    %8106 = vmatmul.mubr.f32.gmra.mxu0 %v7982
    %v8107 = vpop.f32.mrf.mxu0
    %v8108 = vadd.f32 0.0, %v8107
    %v8109 = vpop.f32.mrf.mxu0
    %8110 = vmatprep.mubr.f32.mxu0 0.0
    %8111 = vmatmul.mubr.f32.gmra.mxu0 %v7985
    %v8112 = vpop.f32.mrf.mxu0
    %v8113 = vadd.f32 0.0, %v8112
    %v8114 = vpop.f32.mrf.mxu0
    %8115 = vmatprep.mubr.f32.mxu0 0.0
    %8116 = vmatmul.mubr.f32.gmra.mxu0 %v7988
    %v8117 = vpop.f32.mrf.mxu0
    %v8118 = vadd.f32 0.0, %v8117
    %v8119 = vpop.f32.mrf.mxu0
    %8120 = vmatprep.mubr.f32.mxu0 0.0
    %8121 = vmatmul.mubr.f32.gmra.mxu0 %v7991
    %v8122 = vpop.f32.mrf.mxu0
    %v8123 = vadd.f32 0.0, %v8122
    %v8124 = vpop.f32.mrf.mxu0
    %8125 = vmatprep.mubr.f32.mxu0 0.0
    %8126 = vmatmul.mubr.f32.gmra.mxu0 %v7994
    %v8127 = vpop.f32.mrf.mxu0
    %v8128 = vadd.f32 0.0, %v8127
    %v8129 = vpop.f32.mrf.mxu0
    %8130 = vmatprep.mubr.f32.mxu0 0.0
    %8131 = vmatmul.mubr.f32.gmra.mxu0 %v7997
    %v8132 = vpop.f32.mrf.mxu0
    %v8133 = vadd.f32 0.0, %v8132
    %v8134 = vpop.f32.mrf.mxu0
    %8135 = vmatprep.mubr.f32.mxu0 0.0
    %8136 = vmatmul.mubr.f32.gmra.mxu0 %v8000
    %v8137 = vpop.f32.mrf.mxu0
    %v8138 = vadd.f32 0.0, %v8137
    %v8139 = vpop.f32.mrf.mxu0
    %8140 = vmatprep.mubr.f32.mxu0 0.0
    %8141 = vmatmul.mubr.f32.gmra.mxu0 %v8003
    %v8142 = vpop.f32.mrf.mxu0
    %v8143 = vadd.f32 0.0, %v8142
    %v8144 = vpop.f32.mrf.mxu0
    %8145 = vmatprep.mubr.f32.mxu0 0.0
    %8146 = vmatmul.mubr.f32.gmra.mxu0 %v8006
    %v8147 = vpop.f32.mrf.mxu0
    %v8148 = vadd.f32 0.0, %v8147
    %v8149 = vpop.f32.mrf.mxu0
    %8150 = vmatprep.mubr.f32.mxu0 0.0
    %8151 = vmatmul.mubr.f32.gmra.mxu0 %v8009
    %v8152 = vpop.f32.mrf.mxu0
    %v8153 = vadd.f32 0.0, %v8152
    %v8154 = vpop.f32.mrf.mxu0
    %8155 = vdwg.mxu0
    %v8157 = vsel %vm845, %v7731, 0
    %v8160 = vsel %vm845, %v7732, 0
    %v8163 = vsel %vm845, %v7733, 0
    %v8166 = vsel %vm845, %v7734, 0
    %v8169 = vsel %vm845, %v7735, 0
    %v8172 = vsel %vm845, %v7736, 0
    %v8175 = vsel %vm845, %v7737, 0
    %v8178 = vsel %vm845, %v7738, 0
    %v8181 = vsel %vm845, %v7739, 0
    %v8184 = vsel %vm845, %v7740, 0
    %v8187 = vsel %vm845, %v7741, 0
    %v8190 = vsel %vm845, %v7742, 0
    %v8193 = vsel %vm845, %v7743, 0
    %v8196 = vsel %vm845, %v7744, 0
    %v8199 = vsel %vm845, %v7745, 0
    %v8202 = vsel %vm845, %v7746, 0
    %8204 = vmatprep.subr.mxu0 0.0
    %8205 = vmatpush1.msra.mxu0 0.0
    %8206 = vmatprep.subr.mxu0 0.0
    %8207 = vmatpush1.msra.mxu0 0.0
    %8208 = vmatprep.subr.mxu0 0.0
    %8209 = vmatpush1.msra.mxu0 0.0
    %8210 = vmatprep.subr.mxu0 0.0
    %8211 = vmatpush1.msra.mxu0 0.0
    %8212 = vmatprep.subr.mxu0 0.0
    %8213 = vmatpush1.msra.mxu0 0.0
    %8214 = vmatprep.subr.mxu0 0.0
    %8215 = vmatpush1.msra.mxu0 0.0
    %8216 = vmatprep.subr.mxu0 0.0
    %8217 = vmatpush1.msra.mxu0 0.0
    %8218 = vmatprep.subr.mxu0 0.0
    %8219 = vmatpush1.msra.mxu0 0.0
    %8220 = vmatprep.subr.mxu0 0.0
    %8221 = vmatpush1.msra.mxu0 0.0
    %8222 = vmatprep.subr.mxu0 0.0
    %8223 = vmatpush1.msra.mxu0 0.0
    %8224 = vmatprep.subr.mxu0 0.0
    %8225 = vmatpush1.msra.mxu0 0.0
    %8226 = vmatprep.subr.mxu0 0.0
    %8227 = vmatpush1.msra.mxu0 0.0
    %8228 = vmatprep.subr.mxu0 0.0
    %8229 = vmatpush1.msra.mxu0 %v7849
    %8230 = vmatprep.subr.mxu0 0.0
    %8231 = vmatpush1.msra.mxu0 %v7844
    %8232 = vmatprep.subr.mxu0 0.0
    %8233 = vmatpush1.msra.mxu0 %v7839
    %8234 = vmatprep.subr.mxu0 0.0
    %8235 = vmatpush1.msra.mxu0 %v7834
    %8236 = vmatprep.subr.mxu0 0.0
    %8237 = vmatpush2.msra.mxu0 0.0
    %8238 = vmatprep.subr.mxu0 0.0
    %8239 = vmatpush2.msra.mxu0 0.0
    %8240 = vmatprep.subr.mxu0 0.0
    %8241 = vmatpush2.msra.mxu0 0.0
    %8242 = vmatprep.subr.mxu0 0.0
    %8243 = vmatpush2.msra.mxu0 0.0
    %8244 = vmatprep.subr.mxu0 0.0
    %8245 = vmatpush2.msra.mxu0 0.0
    %8246 = vmatprep.subr.mxu0 0.0
    %8247 = vmatpush2.msra.mxu0 0.0
    %8248 = vmatprep.subr.mxu0 0.0
    %8249 = vmatpush2.msra.mxu0 0.0
    %8250 = vmatprep.subr.mxu0 0.0
    %8251 = vmatpush2.msra.mxu0 0.0
    %8252 = vmatprep.subr.mxu0 0.0
    %8253 = vmatpush2.msra.mxu0 0.0
    %8254 = vmatprep.subr.mxu0 0.0
    %8255 = vmatpush2.msra.mxu0 0.0
    %8256 = vmatprep.subr.mxu0 0.0
    %8257 = vmatpush2.msra.mxu0 0.0
    %8258 = vmatprep.subr.mxu0 0.0
    %8259 = vmatpush2.msra.mxu0 0.0
    %8260 = vmatprep.subr.mxu0 0.0
    %8261 = vmatpush2.msra.mxu0 0.0
    %8262 = vmatprep.subr.mxu0 0.0
    %8263 = vmatpush2.msra.mxu0 0.0
    %8264 = vmatprep.subr.mxu0 0.0
    %8265 = vmatpush2.msra.mxu0 0.0
    %8266 = vmatprep.subr.mxu0 0.0
    %8267 = vmatpush2.msra.mxu0 0.0
    %8268 = vmatprep.mubr.f32.mxu0 0.0
    %8269 = vmatmul.mubr.f32.gmra.mxu0 %v8157
    %v8270 = vpop.f32.mrf.mxu0
    %v8271 = vadd.f32 %v8078, %v8270
    %v8272 = vpop.f32.mrf.mxu0
    %8273 = vmatprep.mubr.f32.mxu0 0.0
    %8274 = vmatmul.mubr.f32.gmra.mxu0 %v8160
    %v8275 = vpop.f32.mrf.mxu0
    %v8276 = vadd.f32 %v8083, %v8275
    %v8277 = vpop.f32.mrf.mxu0
    %8278 = vmatprep.mubr.f32.mxu0 0.0
    %8279 = vmatmul.mubr.f32.gmra.mxu0 %v8163
    %v8280 = vpop.f32.mrf.mxu0
    %v8281 = vadd.f32 %v8088, %v8280
    %v8282 = vpop.f32.mrf.mxu0
    %8283 = vmatprep.mubr.f32.mxu0 0.0
    %8284 = vmatmul.mubr.f32.gmra.mxu0 %v8166
    %v8285 = vpop.f32.mrf.mxu0
    %v8286 = vadd.f32 %v8093, %v8285
    %v8287 = vpop.f32.mrf.mxu0
    %8288 = vmatprep.mubr.f32.mxu0 0.0
    %8289 = vmatmul.mubr.f32.gmra.mxu0 %v8169
    %v8290 = vpop.f32.mrf.mxu0
    %v8291 = vadd.f32 %v8098, %v8290
    %v8292 = vpop.f32.mrf.mxu0
    %8293 = vmatprep.mubr.f32.mxu0 0.0
    %8294 = vmatmul.mubr.f32.gmra.mxu0 %v8172
    %v8295 = vpop.f32.mrf.mxu0
    %v8296 = vadd.f32 %v8103, %v8295
    %v8297 = vpop.f32.mrf.mxu0
    %8298 = vmatprep.mubr.f32.mxu0 0.0
    %8299 = vmatmul.mubr.f32.gmra.mxu0 %v8175
    %v8300 = vpop.f32.mrf.mxu0
    %v8301 = vadd.f32 %v8108, %v8300
    %v8302 = vpop.f32.mrf.mxu0
    %8303 = vmatprep.mubr.f32.mxu0 0.0
    %8304 = vmatmul.mubr.f32.gmra.mxu0 %v8178
    %v8305 = vpop.f32.mrf.mxu0
    %v8306 = vadd.f32 %v8113, %v8305
    %v8307 = vpop.f32.mrf.mxu0
    %8308 = vmatprep.mubr.f32.mxu0 0.0
    %8309 = vmatmul.mubr.f32.gmra.mxu0 %v8181
    %v8310 = vpop.f32.mrf.mxu0
    %v8311 = vadd.f32 %v8118, %v8310
    %v8312 = vpop.f32.mrf.mxu0
    %8313 = vmatprep.mubr.f32.mxu0 0.0
    %8314 = vmatmul.mubr.f32.gmra.mxu0 %v8184
    %v8315 = vpop.f32.mrf.mxu0
    %v8316 = vadd.f32 %v8123, %v8315
    %v8317 = vpop.f32.mrf.mxu0
    %8318 = vmatprep.mubr.f32.mxu0 0.0
    %8319 = vmatmul.mubr.f32.gmra.mxu0 %v8187
    %v8320 = vpop.f32.mrf.mxu0
    %v8321 = vadd.f32 %v8128, %v8320
    %v8322 = vpop.f32.mrf.mxu0
    %8323 = vmatprep.mubr.f32.mxu0 0.0
    %8324 = vmatmul.mubr.f32.gmra.mxu0 %v8190
    %v8325 = vpop.f32.mrf.mxu0
    %v8326 = vadd.f32 %v8133, %v8325
    %v8327 = vpop.f32.mrf.mxu0
    %8328 = vmatprep.mubr.f32.mxu0 0.0
    %8329 = vmatmul.mubr.f32.gmra.mxu0 %v8193
    %v8330 = vpop.f32.mrf.mxu0
    %v8331 = vadd.f32 %v8138, %v8330
    %v8332 = vpop.f32.mrf.mxu0
    %8333 = vmatprep.mubr.f32.mxu0 0.0
    %8334 = vmatmul.mubr.f32.gmra.mxu0 %v8196
    %v8335 = vpop.f32.mrf.mxu0
    %v8336 = vadd.f32 %v8143, %v8335
    %v8337 = vpop.f32.mrf.mxu0
    %8338 = vmatprep.mubr.f32.mxu0 0.0
    %8339 = vmatmul.mubr.f32.gmra.mxu0 %v8199
    %v8340 = vpop.f32.mrf.mxu0
    %v8341 = vadd.f32 %v8148, %v8340
    %v8342 = vpop.f32.mrf.mxu0
    %8343 = vmatprep.mubr.f32.mxu0 0.0
    %8344 = vmatmul.mubr.f32.gmra.mxu0 %v8202
    %v8345 = vpop.f32.mrf.mxu0
    %v8346 = vadd.f32 %v8153, %v8345
    %v8347 = vpop.f32.mrf.mxu0
    %8348 = vdwg.mxu0
    %s8349 = scalar_lea.vmem %s8, 256
    %v8350 = vld [vmem:[%s8349] sm:$0xff]
    %v8351 = vld [vmem:[%s8349 + $0x8] sm:$0xff]
    %v8352 = vld [vmem:[%s8349 + $0x10] sm:$0xff]
    %v8353 = vld [vmem:[%s8349 + $0x18] sm:$0xff]
    %v8354 = vld [vmem:[%s8349 + $0x20] sm:$0xff]
    %v8355 = vld [vmem:[%s8349 + $0x28] sm:$0xff]
    %v8356 = vld [vmem:[%s8349 + $0x30] sm:$0xff]
    %v8357 = vld [vmem:[%s8349 + $0x38] sm:$0xff]
    %v8358 = vld [vmem:[%s8349 + $0x40] sm:$0xff]
    %v8359 = vld [vmem:[%s8349 + $0x48] sm:$0xff]
    %v8360 = vld [vmem:[%s8349 + $0x50] sm:$0xff]
    %v8361 = vld [vmem:[%s8349 + $0x58] sm:$0xff]
    %v8362 = vld [vmem:[%s8349 + $0x60] sm:$0xff]
    %v8363 = vld [vmem:[%s8349 + $0x68] sm:$0xff]
    %v8364 = vld [vmem:[%s8349 + $0x70] sm:$0xff]
    %v8365 = vld [vmem:[%s8349 + $0x78] sm:$0xff]
    %s8366 = scalar_lea.vmem %s9, 128
    %v8367 = vld [vmem:[%s8366] sm:$0xff]
    %v8368 = vld [vmem:[%s8366 + $0x8] sm:$0xff]
    %v8369 = vld [vmem:[%s8366 + $0x10] sm:$0xff]
    %v8370 = vld [vmem:[%s8366 + $0x18] sm:$0xff]
    %v8371 = vld [vmem:[%s8366 + $0x20] sm:$0xff]
    %v8372 = vld [vmem:[%s8366 + $0x28] sm:$0xff]
    %v8373 = vld [vmem:[%s8366 + $0x30] sm:$0xff]
    %v8374 = vld [vmem:[%s8366 + $0x38] sm:$0xff]
    %8375 = vmatprep.subr.mxu0 0.0
    %8376 = vmatpush1.msra.mxu0 0.0
    %8377 = vmatprep.subr.mxu0 0.0
    %8378 = vmatpush1.msra.mxu0 0.0
    %8379 = vmatprep.subr.mxu0 0.0
    %8380 = vmatpush1.msra.mxu0 0.0
    %8381 = vmatprep.subr.mxu0 0.0
    %8382 = vmatpush1.msra.mxu0 0.0
    %8383 = vmatprep.subr.mxu0 0.0
    %8384 = vmatpush1.msra.mxu0 0.0
    %8385 = vmatprep.subr.mxu0 0.0
    %8386 = vmatpush1.msra.mxu0 0.0
    %8387 = vmatprep.subr.mxu0 0.0
    %8388 = vmatpush1.msra.mxu0 0.0
    %8389 = vmatprep.subr.mxu0 0.0
    %8390 = vmatpush1.msra.mxu0 0.0
    %8391 = vmatprep.subr.mxu0 0.0
    %8392 = vmatpush1.msra.mxu0 %v8374
    %8393 = vmatprep.subr.mxu0 0.0
    %8394 = vmatpush1.msra.mxu0 %v8373
    %8395 = vmatprep.subr.mxu0 0.0
    %8396 = vmatpush1.msra.mxu0 %v8372
    %8397 = vmatprep.subr.mxu0 0.0
    %8398 = vmatpush1.msra.mxu0 %v8371
    %8399 = vmatprep.subr.mxu0 0.0
    %8400 = vmatpush1.msra.mxu0 %v8370
    %8401 = vmatprep.subr.mxu0 0.0
    %8402 = vmatpush1.msra.mxu0 %v8369
    %8403 = vmatprep.subr.mxu0 0.0
    %8404 = vmatpush1.msra.mxu0 %v8368
    %8405 = vmatprep.subr.mxu0 0.0
    %8406 = vmatpush1.msra.mxu0 %v8367
    %8407 = vmatprep.subr.mxu0 0.0
    %8408 = vmatpush2.msra.mxu0 0.0
    %8409 = vmatprep.subr.mxu0 0.0
    %8410 = vmatpush2.msra.mxu0 0.0
    %8411 = vmatprep.subr.mxu0 0.0
    %8412 = vmatpush2.msra.mxu0 0.0
    %8413 = vmatprep.subr.mxu0 0.0
    %8414 = vmatpush2.msra.mxu0 0.0
    %8415 = vmatprep.subr.mxu0 0.0
    %8416 = vmatpush2.msra.mxu0 0.0
    %8417 = vmatprep.subr.mxu0 0.0
    %8418 = vmatpush2.msra.mxu0 0.0
    %8419 = vmatprep.subr.mxu0 0.0
    %8420 = vmatpush2.msra.mxu0 0.0
    %8421 = vmatprep.subr.mxu0 0.0
    %8422 = vmatpush2.msra.mxu0 0.0
    %8423 = vmatprep.subr.mxu0 0.0
    %8424 = vmatpush2.msra.mxu0 0.0
    %8425 = vmatprep.subr.mxu0 0.0
    %8426 = vmatpush2.msra.mxu0 0.0
    %8427 = vmatprep.subr.mxu0 0.0
    %8428 = vmatpush2.msra.mxu0 0.0
    %8429 = vmatprep.subr.mxu0 0.0
    %8430 = vmatpush2.msra.mxu0 0.0
    %8431 = vmatprep.subr.mxu0 0.0
    %8432 = vmatpush2.msra.mxu0 0.0
    %8433 = vmatprep.subr.mxu0 0.0
    %8434 = vmatpush2.msra.mxu0 0.0
    %8435 = vmatprep.subr.mxu0 0.0
    %8436 = vmatpush2.msra.mxu0 0.0
    %8437 = vmatprep.subr.mxu0 0.0
    %8438 = vmatpush2.msra.mxu0 0.0
    %8439 = vmatprep.mubr.f32.mxu0 0.0
    %8440 = vmatmul.mubr.f32.gmra.mxu0 %v7756
    %v8441 = vpop.f32.mrf.mxu0
    %v8442 = vadd.f32 0.0, %v8441
    %v8443 = vpop.f32.mrf.mxu0
    %8444 = vmatprep.mubr.f32.mxu0 0.0
    %8445 = vmatmul.mubr.f32.gmra.mxu0 %v7759
    %v8446 = vpop.f32.mrf.mxu0
    %v8447 = vadd.f32 0.0, %v8446
    %v8448 = vpop.f32.mrf.mxu0
    %8449 = vmatprep.mubr.f32.mxu0 0.0
    %8450 = vmatmul.mubr.f32.gmra.mxu0 %v7762
    %v8451 = vpop.f32.mrf.mxu0
    %v8452 = vadd.f32 0.0, %v8451
    %v8453 = vpop.f32.mrf.mxu0
    %8454 = vmatprep.mubr.f32.mxu0 0.0
    %8455 = vmatmul.mubr.f32.gmra.mxu0 %v7765
    %v8456 = vpop.f32.mrf.mxu0
    %v8457 = vadd.f32 0.0, %v8456
    %v8458 = vpop.f32.mrf.mxu0
    %8459 = vdwg.mxu0
    %v8461 = vsel %vm845, %v8350, 0
    %v8464 = vsel %vm845, %v8351, 0
    %v8467 = vsel %vm845, %v8352, 0
    %v8470 = vsel %vm845, %v8353, 0
    %v8473 = vsel %vm845, %v8354, 0
    %v8476 = vsel %vm845, %v8355, 0
    %v8479 = vsel %vm845, %v8356, 0
    %v8482 = vsel %vm845, %v8357, 0
    %v8485 = vsel %vm845, %v8358, 0
    %v8488 = vsel %vm845, %v8359, 0
    %v8491 = vsel %vm845, %v8360, 0
    %v8494 = vsel %vm845, %v8361, 0
    %v8497 = vsel %vm845, %v8362, 0
    %v8500 = vsel %vm845, %v8363, 0
    %v8503 = vsel %vm845, %v8364, 0
    %v8506 = vsel %vm845, %v8365, 0
    %8508 = vmatprep.subr.mxu0 0.0
    %8509 = vmatpush1.msra.mxu0 0.0
    %8510 = vmatprep.subr.mxu0 0.0
    %8511 = vmatpush1.msra.mxu0 0.0
    %8512 = vmatprep.subr.mxu0 0.0
    %8513 = vmatpush1.msra.mxu0 0.0
    %8514 = vmatprep.subr.mxu0 0.0
    %8515 = vmatpush1.msra.mxu0 0.0
    %8516 = vmatprep.subr.mxu0 0.0
    %8517 = vmatpush1.msra.mxu0 0.0
    %8518 = vmatprep.subr.mxu0 0.0
    %8519 = vmatpush1.msra.mxu0 0.0
    %8520 = vmatprep.subr.mxu0 0.0
    %8521 = vmatpush1.msra.mxu0 0.0
    %8522 = vmatprep.subr.mxu0 0.0
    %8523 = vmatpush1.msra.mxu0 0.0
    %8524 = vmatprep.subr.mxu0 0.0
    %8525 = vmatpush1.msra.mxu0 0.0
    %8526 = vmatprep.subr.mxu0 0.0
    %8527 = vmatpush1.msra.mxu0 0.0
    %8528 = vmatprep.subr.mxu0 0.0
    %8529 = vmatpush1.msra.mxu0 0.0
    %8530 = vmatprep.subr.mxu0 0.0
    %8531 = vmatpush1.msra.mxu0 0.0
    %8532 = vmatprep.subr.mxu0 0.0
    %8533 = vmatpush1.msra.mxu0 %v8457
    %8534 = vmatprep.subr.mxu0 0.0
    %8535 = vmatpush1.msra.mxu0 %v8452
    %8536 = vmatprep.subr.mxu0 0.0
    %8537 = vmatpush1.msra.mxu0 %v8447
    %8538 = vmatprep.subr.mxu0 0.0
    %8539 = vmatpush1.msra.mxu0 %v8442
    %8540 = vmatprep.subr.mxu0 0.0
    %8541 = vmatpush2.msra.mxu0 0.0
    %8542 = vmatprep.subr.mxu0 0.0
    %8543 = vmatpush2.msra.mxu0 0.0
    %8544 = vmatprep.subr.mxu0 0.0
    %8545 = vmatpush2.msra.mxu0 0.0
    %8546 = vmatprep.subr.mxu0 0.0
    %8547 = vmatpush2.msra.mxu0 0.0
    %8548 = vmatprep.subr.mxu0 0.0
    %8549 = vmatpush2.msra.mxu0 0.0
    %8550 = vmatprep.subr.mxu0 0.0
    %8551 = vmatpush2.msra.mxu0 0.0
    %8552 = vmatprep.subr.mxu0 0.0
    %8553 = vmatpush2.msra.mxu0 0.0
    %8554 = vmatprep.subr.mxu0 0.0
    %8555 = vmatpush2.msra.mxu0 0.0
    %8556 = vmatprep.subr.mxu0 0.0
    %8557 = vmatpush2.msra.mxu0 0.0
    %8558 = vmatprep.subr.mxu0 0.0
    %8559 = vmatpush2.msra.mxu0 0.0
    %8560 = vmatprep.subr.mxu0 0.0
    %8561 = vmatpush2.msra.mxu0 0.0
    %8562 = vmatprep.subr.mxu0 0.0
    %8563 = vmatpush2.msra.mxu0 0.0
    %8564 = vmatprep.subr.mxu0 0.0
    %8565 = vmatpush2.msra.mxu0 0.0
    %8566 = vmatprep.subr.mxu0 0.0
    %8567 = vmatpush2.msra.mxu0 0.0
    %8568 = vmatprep.subr.mxu0 0.0
    %8569 = vmatpush2.msra.mxu0 0.0
    %8570 = vmatprep.subr.mxu0 0.0
    %8571 = vmatpush2.msra.mxu0 0.0
    %8572 = vmatprep.mubr.f32.mxu0 0.0
    %8573 = vmatmul.mubr.f32.gmra.mxu0 %v8461
    %v8574 = vpop.f32.mrf.mxu0
    %v8575 = vadd.f32 0.0, %v8574
    %v8576 = vpop.f32.mrf.mxu0
    %8577 = vmatprep.mubr.f32.mxu0 0.0
    %8578 = vmatmul.mubr.f32.gmra.mxu0 %v8464
    %v8579 = vpop.f32.mrf.mxu0
    %v8580 = vadd.f32 0.0, %v8579
    %v8581 = vpop.f32.mrf.mxu0
    %8582 = vmatprep.mubr.f32.mxu0 0.0
    %8583 = vmatmul.mubr.f32.gmra.mxu0 %v8467
    %v8584 = vpop.f32.mrf.mxu0
    %v8585 = vadd.f32 0.0, %v8584
    %v8586 = vpop.f32.mrf.mxu0
    %8587 = vmatprep.mubr.f32.mxu0 0.0
    %8588 = vmatmul.mubr.f32.gmra.mxu0 %v8470
    %v8589 = vpop.f32.mrf.mxu0
    %v8590 = vadd.f32 0.0, %v8589
    %v8591 = vpop.f32.mrf.mxu0
    %8592 = vmatprep.mubr.f32.mxu0 0.0
    %8593 = vmatmul.mubr.f32.gmra.mxu0 %v8473
    %v8594 = vpop.f32.mrf.mxu0
    %v8595 = vadd.f32 0.0, %v8594
    %v8596 = vpop.f32.mrf.mxu0
    %8597 = vmatprep.mubr.f32.mxu0 0.0
    %8598 = vmatmul.mubr.f32.gmra.mxu0 %v8476
    %v8599 = vpop.f32.mrf.mxu0
    %v8600 = vadd.f32 0.0, %v8599
    %v8601 = vpop.f32.mrf.mxu0
    %8602 = vmatprep.mubr.f32.mxu0 0.0
    %8603 = vmatmul.mubr.f32.gmra.mxu0 %v8479
    %v8604 = vpop.f32.mrf.mxu0
    %v8605 = vadd.f32 0.0, %v8604
    %v8606 = vpop.f32.mrf.mxu0
    %8607 = vmatprep.mubr.f32.mxu0 0.0
    %8608 = vmatmul.mubr.f32.gmra.mxu0 %v8482
    %v8609 = vpop.f32.mrf.mxu0
    %v8610 = vadd.f32 0.0, %v8609
    %v8611 = vpop.f32.mrf.mxu0
    %8612 = vmatprep.mubr.f32.mxu0 0.0
    %8613 = vmatmul.mubr.f32.gmra.mxu0 %v8485
    %v8614 = vpop.f32.mrf.mxu0
    %v8615 = vadd.f32 0.0, %v8614
    %v8616 = vpop.f32.mrf.mxu0
    %8617 = vmatprep.mubr.f32.mxu0 0.0
    %8618 = vmatmul.mubr.f32.gmra.mxu0 %v8488
    %v8619 = vpop.f32.mrf.mxu0
    %v8620 = vadd.f32 0.0, %v8619
    %v8621 = vpop.f32.mrf.mxu0
    %8622 = vmatprep.mubr.f32.mxu0 0.0
    %8623 = vmatmul.mubr.f32.gmra.mxu0 %v8491
    %v8624 = vpop.f32.mrf.mxu0
    %v8625 = vadd.f32 0.0, %v8624
    %v8626 = vpop.f32.mrf.mxu0
    %8627 = vmatprep.mubr.f32.mxu0 0.0
    %8628 = vmatmul.mubr.f32.gmra.mxu0 %v8494
    %v8629 = vpop.f32.mrf.mxu0
    %v8630 = vadd.f32 0.0, %v8629
    %v8631 = vpop.f32.mrf.mxu0
    %8632 = vmatprep.mubr.f32.mxu0 0.0
    %8633 = vmatmul.mubr.f32.gmra.mxu0 %v8497
    %v8634 = vpop.f32.mrf.mxu0
    %v8635 = vadd.f32 0.0, %v8634
    %v8636 = vpop.f32.mrf.mxu0
    %8637 = vmatprep.mubr.f32.mxu0 0.0
    %8638 = vmatmul.mubr.f32.gmra.mxu0 %v8500
    %v8639 = vpop.f32.mrf.mxu0
    %v8640 = vadd.f32 0.0, %v8639
    %v8641 = vpop.f32.mrf.mxu0
    %8642 = vmatprep.mubr.f32.mxu0 0.0
    %8643 = vmatmul.mubr.f32.gmra.mxu0 %v8503
    %v8644 = vpop.f32.mrf.mxu0
    %v8645 = vadd.f32 0.0, %v8644
    %v8646 = vpop.f32.mrf.mxu0
    %8647 = vmatprep.mubr.f32.mxu0 0.0
    %8648 = vmatmul.mubr.f32.gmra.mxu0 %v8506
    %v8649 = vpop.f32.mrf.mxu0
    %v8650 = vadd.f32 0.0, %v8649
    %v8651 = vpop.f32.mrf.mxu0
    %8652 = vdwg.mxu0
    %v8653 = vadd.f32 %v8271, %v8575
    %v8654 = vadd.f32 %v8276, %v8580
    %v8655 = vadd.f32 %v8281, %v8585
    %v8656 = vadd.f32 %v8286, %v8590
    %v8657 = vadd.f32 %v8291, %v8595
    %v8658 = vadd.f32 %v8296, %v8600
    %v8659 = vadd.f32 %v8301, %v8605
    %v8660 = vadd.f32 %v8306, %v8610
    %v8661 = vadd.f32 %v8311, %v8615
    %v8662 = vadd.f32 %v8316, %v8620
    %v8663 = vadd.f32 %v8321, %v8625
    %v8664 = vadd.f32 %v8326, %v8630
    %v8665 = vadd.f32 %v8331, %v8635
    %v8666 = vadd.f32 %v8336, %v8640
    %v8667 = vadd.f32 %v8341, %v8645
    %v8668 = vadd.f32 %v8346, %v8650
    %s8669 = scalar_lea.vmem %s8, 384
    %v8670 = vld [vmem:[%s8669] sm:$0xff]
    %v8671 = vld [vmem:[%s8669 + $0x8] sm:$0xff]
    %v8672 = vld [vmem:[%s8669 + $0x10] sm:$0xff]
    %v8673 = vld [vmem:[%s8669 + $0x18] sm:$0xff]
    %v8674 = vld [vmem:[%s8669 + $0x20] sm:$0xff]
    %v8675 = vld [vmem:[%s8669 + $0x28] sm:$0xff]
    %v8676 = vld [vmem:[%s8669 + $0x30] sm:$0xff]
    %v8677 = vld [vmem:[%s8669 + $0x38] sm:$0xff]
    %v8678 = vld [vmem:[%s8669 + $0x40] sm:$0xff]
    %v8679 = vld [vmem:[%s8669 + $0x48] sm:$0xff]
    %v8680 = vld [vmem:[%s8669 + $0x50] sm:$0xff]
    %v8681 = vld [vmem:[%s8669 + $0x58] sm:$0xff]
    %v8682 = vld [vmem:[%s8669 + $0x60] sm:$0xff]
    %v8683 = vld [vmem:[%s8669 + $0x68] sm:$0xff]
    %v8684 = vld [vmem:[%s8669 + $0x70] sm:$0xff]
    %v8685 = vld [vmem:[%s8669 + $0x78] sm:$0xff]
    %s8686 = scalar_lea.vmem %s9, 192
    %v8687 = vld [vmem:[%s8686] sm:$0xff]
    %v8688 = vld [vmem:[%s8686 + $0x8] sm:$0xff]
    %v8689 = vld [vmem:[%s8686 + $0x10] sm:$0xff]
    %v8690 = vld [vmem:[%s8686 + $0x18] sm:$0xff]
    %v8691 = vld [vmem:[%s8686 + $0x20] sm:$0xff]
    %v8692 = vld [vmem:[%s8686 + $0x28] sm:$0xff]
    %v8693 = vld [vmem:[%s8686 + $0x30] sm:$0xff]
    %v8694 = vld [vmem:[%s8686 + $0x38] sm:$0xff]
    %8695 = vmatprep.subr.mxu0 0.0
    %8696 = vmatpush1.msra.mxu0 0.0
    %8697 = vmatprep.subr.mxu0 0.0
    %8698 = vmatpush1.msra.mxu0 0.0
    %8699 = vmatprep.subr.mxu0 0.0
    %8700 = vmatpush1.msra.mxu0 0.0
    %8701 = vmatprep.subr.mxu0 0.0
    %8702 = vmatpush1.msra.mxu0 0.0
    %8703 = vmatprep.subr.mxu0 0.0
    %8704 = vmatpush1.msra.mxu0 0.0
    %8705 = vmatprep.subr.mxu0 0.0
    %8706 = vmatpush1.msra.mxu0 0.0
    %8707 = vmatprep.subr.mxu0 0.0
    %8708 = vmatpush1.msra.mxu0 0.0
    %8709 = vmatprep.subr.mxu0 0.0
    %8710 = vmatpush1.msra.mxu0 0.0
    %8711 = vmatprep.subr.mxu0 0.0
    %8712 = vmatpush1.msra.mxu0 %v8694
    %8713 = vmatprep.subr.mxu0 0.0
    %8714 = vmatpush1.msra.mxu0 %v8693
    %8715 = vmatprep.subr.mxu0 0.0
    %8716 = vmatpush1.msra.mxu0 %v8692
    %8717 = vmatprep.subr.mxu0 0.0
    %8718 = vmatpush1.msra.mxu0 %v8691
    %8719 = vmatprep.subr.mxu0 0.0
    %8720 = vmatpush1.msra.mxu0 %v8690
    %8721 = vmatprep.subr.mxu0 0.0
    %8722 = vmatpush1.msra.mxu0 %v8689
    %8723 = vmatprep.subr.mxu0 0.0
    %8724 = vmatpush1.msra.mxu0 %v8688
    %8725 = vmatprep.subr.mxu0 0.0
    %8726 = vmatpush1.msra.mxu0 %v8687
    %8727 = vmatprep.subr.mxu0 0.0
    %8728 = vmatpush2.msra.mxu0 0.0
    %8729 = vmatprep.subr.mxu0 0.0
    %8730 = vmatpush2.msra.mxu0 0.0
    %8731 = vmatprep.subr.mxu0 0.0
    %8732 = vmatpush2.msra.mxu0 0.0
    %8733 = vmatprep.subr.mxu0 0.0
    %8734 = vmatpush2.msra.mxu0 0.0
    %8735 = vmatprep.subr.mxu0 0.0
    %8736 = vmatpush2.msra.mxu0 0.0
    %8737 = vmatprep.subr.mxu0 0.0
    %8738 = vmatpush2.msra.mxu0 0.0
    %8739 = vmatprep.subr.mxu0 0.0
    %8740 = vmatpush2.msra.mxu0 0.0
    %8741 = vmatprep.subr.mxu0 0.0
    %8742 = vmatpush2.msra.mxu0 0.0
    %8743 = vmatprep.subr.mxu0 0.0
    %8744 = vmatpush2.msra.mxu0 0.0
    %8745 = vmatprep.subr.mxu0 0.0
    %8746 = vmatpush2.msra.mxu0 0.0
    %8747 = vmatprep.subr.mxu0 0.0
    %8748 = vmatpush2.msra.mxu0 0.0
    %8749 = vmatprep.subr.mxu0 0.0
    %8750 = vmatpush2.msra.mxu0 0.0
    %8751 = vmatprep.subr.mxu0 0.0
    %8752 = vmatpush2.msra.mxu0 0.0
    %8753 = vmatprep.subr.mxu0 0.0
    %8754 = vmatpush2.msra.mxu0 0.0
    %8755 = vmatprep.subr.mxu0 0.0
    %8756 = vmatpush2.msra.mxu0 0.0
    %8757 = vmatprep.subr.mxu0 0.0
    %8758 = vmatpush2.msra.mxu0 0.0
    %8759 = vmatprep.mubr.f32.mxu0 0.0
    %8760 = vmatmul.mubr.f32.gmra.mxu0 %v7756
    %v8761 = vpop.f32.mrf.mxu0
    %v8762 = vadd.f32 0.0, %v8761
    %v8763 = vpop.f32.mrf.mxu0
    %8764 = vmatprep.mubr.f32.mxu0 0.0
    %8765 = vmatmul.mubr.f32.gmra.mxu0 %v7759
    %v8766 = vpop.f32.mrf.mxu0
    %v8767 = vadd.f32 0.0, %v8766
    %v8768 = vpop.f32.mrf.mxu0
    %8769 = vmatprep.mubr.f32.mxu0 0.0
    %8770 = vmatmul.mubr.f32.gmra.mxu0 %v7762
    %v8771 = vpop.f32.mrf.mxu0
    %v8772 = vadd.f32 0.0, %v8771
    %v8773 = vpop.f32.mrf.mxu0
    %8774 = vmatprep.mubr.f32.mxu0 0.0
    %8775 = vmatmul.mubr.f32.gmra.mxu0 %v7765
    %v8776 = vpop.f32.mrf.mxu0
    %v8777 = vadd.f32 0.0, %v8776
    %v8778 = vpop.f32.mrf.mxu0
    %8779 = vdwg.mxu0
    %v8781 = vsel %vm845, %v8670, 0
    %v8784 = vsel %vm845, %v8671, 0
    %v8787 = vsel %vm845, %v8672, 0
    %v8790 = vsel %vm845, %v8673, 0
    %v8793 = vsel %vm845, %v8674, 0
    %v8796 = vsel %vm845, %v8675, 0
    %v8799 = vsel %vm845, %v8676, 0
    %v8802 = vsel %vm845, %v8677, 0
    %v8805 = vsel %vm845, %v8678, 0
    %v8808 = vsel %vm845, %v8679, 0
    %v8811 = vsel %vm845, %v8680, 0
    %v8814 = vsel %vm845, %v8681, 0
    %v8817 = vsel %vm845, %v8682, 0
    %v8820 = vsel %vm845, %v8683, 0
    %v8823 = vsel %vm845, %v8684, 0
    %v8826 = vsel %vm845, %v8685, 0
    %8828 = vmatprep.subr.mxu0 0.0
    %8829 = vmatpush1.msra.mxu0 0.0
    %8830 = vmatprep.subr.mxu0 0.0
    %8831 = vmatpush1.msra.mxu0 0.0
    %8832 = vmatprep.subr.mxu0 0.0
    %8833 = vmatpush1.msra.mxu0 0.0
    %8834 = vmatprep.subr.mxu0 0.0
    %8835 = vmatpush1.msra.mxu0 0.0
    %8836 = vmatprep.subr.mxu0 0.0
    %8837 = vmatpush1.msra.mxu0 0.0
    %8838 = vmatprep.subr.mxu0 0.0
    %8839 = vmatpush1.msra.mxu0 0.0
    %8840 = vmatprep.subr.mxu0 0.0
    %8841 = vmatpush1.msra.mxu0 0.0
    %8842 = vmatprep.subr.mxu0 0.0
    %8843 = vmatpush1.msra.mxu0 0.0
    %8844 = vmatprep.subr.mxu0 0.0
    %8845 = vmatpush1.msra.mxu0 0.0
    %8846 = vmatprep.subr.mxu0 0.0
    %8847 = vmatpush1.msra.mxu0 0.0
    %8848 = vmatprep.subr.mxu0 0.0
    %8849 = vmatpush1.msra.mxu0 0.0
    %8850 = vmatprep.subr.mxu0 0.0
    %8851 = vmatpush1.msra.mxu0 0.0
    %8852 = vmatprep.subr.mxu0 0.0
    %8853 = vmatpush1.msra.mxu0 %v8777
    %8854 = vmatprep.subr.mxu0 0.0
    %8855 = vmatpush1.msra.mxu0 %v8772
    %8856 = vmatprep.subr.mxu0 0.0
    %8857 = vmatpush1.msra.mxu0 %v8767
    %8858 = vmatprep.subr.mxu0 0.0
    %8859 = vmatpush1.msra.mxu0 %v8762
    %8860 = vmatprep.subr.mxu0 0.0
    %8861 = vmatpush2.msra.mxu0 0.0
    %8862 = vmatprep.subr.mxu0 0.0
    %8863 = vmatpush2.msra.mxu0 0.0
    %8864 = vmatprep.subr.mxu0 0.0
    %8865 = vmatpush2.msra.mxu0 0.0
    %8866 = vmatprep.subr.mxu0 0.0
    %8867 = vmatpush2.msra.mxu0 0.0
    %8868 = vmatprep.subr.mxu0 0.0
    %8869 = vmatpush2.msra.mxu0 0.0
    %8870 = vmatprep.subr.mxu0 0.0
    %8871 = vmatpush2.msra.mxu0 0.0
    %8872 = vmatprep.subr.mxu0 0.0
    %8873 = vmatpush2.msra.mxu0 0.0
    %8874 = vmatprep.subr.mxu0 0.0
    %8875 = vmatpush2.msra.mxu0 0.0
    %8876 = vmatprep.subr.mxu0 0.0
    %8877 = vmatpush2.msra.mxu0 0.0
    %8878 = vmatprep.subr.mxu0 0.0
    %8879 = vmatpush2.msra.mxu0 0.0
    %8880 = vmatprep.subr.mxu0 0.0
    %8881 = vmatpush2.msra.mxu0 0.0
    %8882 = vmatprep.subr.mxu0 0.0
    %8883 = vmatpush2.msra.mxu0 0.0
    %8884 = vmatprep.subr.mxu0 0.0
    %8885 = vmatpush2.msra.mxu0 0.0
    %8886 = vmatprep.subr.mxu0 0.0
    %8887 = vmatpush2.msra.mxu0 0.0
    %8888 = vmatprep.subr.mxu0 0.0
    %8889 = vmatpush2.msra.mxu0 0.0
    %8890 = vmatprep.subr.mxu0 0.0
    %8891 = vmatpush2.msra.mxu0 0.0
    %8892 = vmatprep.mubr.f32.mxu0 0.0
    %8893 = vmatmul.mubr.f32.gmra.mxu0 %v8781
    %v8894 = vpop.f32.mrf.mxu0
    %v8895 = vadd.f32 0.0, %v8894
    %v8896 = vpop.f32.mrf.mxu0
    %8897 = vmatprep.mubr.f32.mxu0 0.0
    %8898 = vmatmul.mubr.f32.gmra.mxu0 %v8784
    %v8899 = vpop.f32.mrf.mxu0
    %v8900 = vadd.f32 0.0, %v8899
    %v8901 = vpop.f32.mrf.mxu0
    %8902 = vmatprep.mubr.f32.mxu0 0.0
    %8903 = vmatmul.mubr.f32.gmra.mxu0 %v8787
    %v8904 = vpop.f32.mrf.mxu0
    %v8905 = vadd.f32 0.0, %v8904
    %v8906 = vpop.f32.mrf.mxu0
    %8907 = vmatprep.mubr.f32.mxu0 0.0
    %8908 = vmatmul.mubr.f32.gmra.mxu0 %v8790
    %v8909 = vpop.f32.mrf.mxu0
    %v8910 = vadd.f32 0.0, %v8909
    %v8911 = vpop.f32.mrf.mxu0
    %8912 = vmatprep.mubr.f32.mxu0 0.0
    %8913 = vmatmul.mubr.f32.gmra.mxu0 %v8793
    %v8914 = vpop.f32.mrf.mxu0
    %v8915 = vadd.f32 0.0, %v8914
    %v8916 = vpop.f32.mrf.mxu0
    %8917 = vmatprep.mubr.f32.mxu0 0.0
    %8918 = vmatmul.mubr.f32.gmra.mxu0 %v8796
    %v8919 = vpop.f32.mrf.mxu0
    %v8920 = vadd.f32 0.0, %v8919
    %v8921 = vpop.f32.mrf.mxu0
    %8922 = vmatprep.mubr.f32.mxu0 0.0
    %8923 = vmatmul.mubr.f32.gmra.mxu0 %v8799
    %v8924 = vpop.f32.mrf.mxu0
    %v8925 = vadd.f32 0.0, %v8924
    %v8926 = vpop.f32.mrf.mxu0
    %8927 = vmatprep.mubr.f32.mxu0 0.0
    %8928 = vmatmul.mubr.f32.gmra.mxu0 %v8802
    %v8929 = vpop.f32.mrf.mxu0
    %v8930 = vadd.f32 0.0, %v8929
    %v8931 = vpop.f32.mrf.mxu0
    %8932 = vmatprep.mubr.f32.mxu0 0.0
    %8933 = vmatmul.mubr.f32.gmra.mxu0 %v8805
    %v8934 = vpop.f32.mrf.mxu0
    %v8935 = vadd.f32 0.0, %v8934
    %v8936 = vpop.f32.mrf.mxu0
    %8937 = vmatprep.mubr.f32.mxu0 0.0
    %8938 = vmatmul.mubr.f32.gmra.mxu0 %v8808
    %v8939 = vpop.f32.mrf.mxu0
    %v8940 = vadd.f32 0.0, %v8939
    %v8941 = vpop.f32.mrf.mxu0
    %8942 = vmatprep.mubr.f32.mxu0 0.0
    %8943 = vmatmul.mubr.f32.gmra.mxu0 %v8811
    %v8944 = vpop.f32.mrf.mxu0
    %v8945 = vadd.f32 0.0, %v8944
    %v8946 = vpop.f32.mrf.mxu0
    %8947 = vmatprep.mubr.f32.mxu0 0.0
    %8948 = vmatmul.mubr.f32.gmra.mxu0 %v8814
    %v8949 = vpop.f32.mrf.mxu0
    %v8950 = vadd.f32 0.0, %v8949
    %v8951 = vpop.f32.mrf.mxu0
    %8952 = vmatprep.mubr.f32.mxu0 0.0
    %8953 = vmatmul.mubr.f32.gmra.mxu0 %v8817
    %v8954 = vpop.f32.mrf.mxu0
    %v8955 = vadd.f32 0.0, %v8954
    %v8956 = vpop.f32.mrf.mxu0
    %8957 = vmatprep.mubr.f32.mxu0 0.0
    %8958 = vmatmul.mubr.f32.gmra.mxu0 %v8820
    %v8959 = vpop.f32.mrf.mxu0
    %v8960 = vadd.f32 0.0, %v8959
    %v8961 = vpop.f32.mrf.mxu0
    %8962 = vmatprep.mubr.f32.mxu0 0.0
    %8963 = vmatmul.mubr.f32.gmra.mxu0 %v8823
    %v8964 = vpop.f32.mrf.mxu0
    %v8965 = vadd.f32 0.0, %v8964
    %v8966 = vpop.f32.mrf.mxu0
    %8967 = vmatprep.mubr.f32.mxu0 0.0
    %8968 = vmatmul.mubr.f32.gmra.mxu0 %v8826
    %v8969 = vpop.f32.mrf.mxu0
    %v8970 = vadd.f32 0.0, %v8969
    %v8971 = vpop.f32.mrf.mxu0
    %8972 = vdwg.mxu0
    %v8973 = vadd.f32 %v8653, %v8895
    %v8974 = vadd.f32 %v8654, %v8900
    %v8975 = vadd.f32 %v8655, %v8905
    %v8976 = vadd.f32 %v8656, %v8910
    %v8977 = vadd.f32 %v8657, %v8915
    %v8978 = vadd.f32 %v8658, %v8920
    %v8979 = vadd.f32 %v8659, %v8925
    %v8980 = vadd.f32 %v8660, %v8930
    %v8981 = vadd.f32 %v8661, %v8935
    %v8982 = vadd.f32 %v8662, %v8940
    %v8983 = vadd.f32 %v8663, %v8945
    %v8984 = vadd.f32 %v8664, %v8950
    %v8985 = vadd.f32 %v8665, %v8955
    %v8986 = vadd.f32 %v8666, %v8960
    %v8987 = vadd.f32 %v8667, %v8965
    %v8988 = vadd.f32 %v8668, %v8970
    %8989 = vst.msk [vmem:[#allocation5] sm:$0xff] %vm250, %v8973
    %8990 = vst.msk [vmem:[#allocation5 + $0x8] sm:$0xff] %vm250, %v8974
    %8991 = vst.msk [vmem:[#allocation5 + $0x10] sm:$0xff] %vm250, %v8975
    %8992 = vst.msk [vmem:[#allocation5 + $0x18] sm:$0xff] %vm250, %v8976
    %8993 = vst.msk [vmem:[#allocation5 + $0x20] sm:$0xff] %vm250, %v8977
    %8994 = vst.msk [vmem:[#allocation5 + $0x28] sm:$0xff] %vm250, %v8978
    %8995 = vst.msk [vmem:[#allocation5 + $0x30] sm:$0xff] %vm250, %v8979
    %8996 = vst.msk [vmem:[#allocation5 + $0x38] sm:$0xff] %vm250, %v8980
    %8997 = vst.msk [vmem:[#allocation5 + $0x40] sm:$0xff] %vm250, %v8981
    %8998 = vst.msk [vmem:[#allocation5 + $0x48] sm:$0xff] %vm250, %v8982
    %8999 = vst.msk [vmem:[#allocation5 + $0x50] sm:$0xff] %vm250, %v8983
    %9000 = vst.msk [vmem:[#allocation5 + $0x58] sm:$0xff] %vm250, %v8984
    %9001 = vst.msk [vmem:[#allocation5 + $0x60] sm:$0xff] %vm250, %v8985
    %9002 = vst.msk [vmem:[#allocation5 + $0x68] sm:$0xff] %vm250, %v8986
    %9003 = vst.msk [vmem:[#allocation5 + $0x70] sm:$0xff] %vm250, %v8987
    %9004 = vst.msk [vmem:[#allocation5 + $0x78] sm:$0xff] %vm250, %v8988
    // Predicated region
    $region46: #{forward.1} parent=1 // pred_check
      _
    $region47: #{forward.1} parent=1 // pred_check_branch
      %9006 = sbr.rel (0) target = $region49
    $region48: #{forward.1} parent=1 // pred_region
      %s9008 = ssub.s32 2048, 2048
      %9009 = vsyncadd [#allocation4], %s9008
      %s9010 = sshll.u32 [#allocation5], 4
      %s9011 = int_to_ptr.vmem [resolvable:$true] %s9010
      %9016 = dma.vmem_to_hbm [thread:$0]  %s9011, 2048, %s10, [#allocation4], 128, 128, 8
    $region49: #{forward.1} parent=1 // pred_fallthru
      _
    // Predicated region
    $region50: #{forward.1} parent=1 // pred_check
      _
    $region51: #{forward.1} parent=1 // pred_check_branch
      %9018 = sbr.rel (0) target = $region53
    $region52: #{forward.1} parent=1 // pred_region
      %9019 = dma.done [#allocation4], 2048
    $region53: #{forward.1} parent=1 // pred_fallthru
      _
    %9020 = vsyncpa [#allocation3], 1
    %9021 = vsyncpa [#allocation4], 1

</llo_original>
